<compile_context>
chip_gen: v7x
topology: tpu7x:2x2x1
jax: 0.10.0
libtpu: 0.0.40
codegen_flags: <defaults>
</compile_context>

<pallas_src>
import jax
import jax.numpy as jnp
from jax import lax
from jax.experimental import pallas as pl
from jax.experimental.pallas import tpu as pltpu

# Module hyper-parameters (from bigram.py)
N_EMBED = 384
NUM_HEADS = 6
HEAD_SIZE = N_EMBED // NUM_HEADS  # 64
BLOCK_SIZE = 256                  # max context; T <= BLOCK_SIZE
NEG_INF = -1e30                   # large finite negative: NaN-safe masking


def mha_kernel(x_ref, wqkv_ref, wp_ref, bp_ref, o_ref, cat_ref):
    """Grid = (B // bblk,). One grid step = full MHA forward for `bblk` batch
    rows: fused QKV matmul -> per-(row, head) causal softmax attention (static
    unrolled) writing into a bf16 VMEM scratch -> one lane-dense output
    projection + bias, stored as bf16."""
    bblk, T, C = x_ref.shape
    M = bblk * T
    HS = HEAD_SIZE

    x = x_ref[...].reshape(M, C)                                   # (M, C) bf16
    # Fused QKV projection (C**-0.5 already folded into the q-columns of wqkv);
    # single bf16 cast of the whole (M, 3C) intermediate.
    qkv = jnp.dot(x, wqkv_ref[...],
                  preferred_element_type=jnp.float32).astype(jnp.bfloat16)

    # Causal mask, built once per grid step, reused by all rows/heads.
    row = lax.broadcasted_iota(jnp.int32, (T, T), 0)
    col = lax.broadcasted_iota(jnp.int32, (T, T), 1)
    causal = col <= row

    for b in range(bblk):                       # static unroll over batch rows
        base = b * T
        for h in range(NUM_HEADS):              # static unroll over heads
            q = qkv[base:base + T, h * HS:(h + 1) * HS]
            k = qkv[base:base + T, C + h * HS:C + (h + 1) * HS]
            v = qkv[base:base + T, 2 * C + h * HS:2 * C + (h + 1) * HS]

            # scores: contract head_size axes directly (no materialized k.T)
            wei = lax.dot_general(q, k, (((1,), (1,)), ((), ())),
                                  preferred_element_type=jnp.float32)  # (T, T)
            wei = jnp.where(causal, wei, NEG_INF)
            wei = wei - jnp.max(wei, axis=-1, keepdims=True)
            p = jnp.exp(wei)                                           # f32
            inv = pl.reciprocal(jnp.sum(p, axis=-1, keepdims=True),
                                approx=True)                           # (T, 1)

            out_h = jnp.dot(p.astype(jnp.bfloat16), v,
                            preferred_element_type=jnp.float32)        # (T, HS)
            out_h = out_h * inv          # deferred normalization on (T, HS)
            cat_ref[base:base + T, h * HS:(h + 1) * HS] = out_h.astype(jnp.bfloat16)

    # One output projection + bias over all rows in this block; one bf16 store.
    y = jnp.dot(cat_ref[...], wp_ref[...],
                preferred_element_type=jnp.float32)                    # (M, C)
    y = y + bp_ref[...]
    o_ref[...] = y.reshape(bblk, T, C).astype(o_ref.dtype)


def prepare_mha_params(wq, wk, wv, wp_t, bp):
    """One-time parameter prep (hoisted out of the per-call path).
    wq/wk/wv: (H, C, hs) per-head (in, out) weights; wp_t: (C, C); bp: (1, C).
    Returns fused bf16 wqkv (C, 3C) with the softmax scale folded into the
    q-columns, bf16 wp, and f32 bias."""
    H, C, hs = wq.shape
    assert C == N_EMBED and H * hs == C

    def fuse(w):  # (H, C, hs) -> (C, H*hs), columns [h0 | h1 | ... ]
        return jnp.transpose(w, (1, 0, 2)).reshape(C, H * hs)

    scale = jnp.float32(C) ** -0.5   # PyTorch source scales by full embed dim C
    wqkv = jnp.concatenate([fuse(wq) * scale, fuse(wk), fuse(wv)],
                           axis=-1).astype(jnp.bfloat16)               # (C, 3C)
    return wqkv, wp_t.astype(jnp.bfloat16), bp.astype(jnp.float32)


def _pick_bblk(B, max_bblk=8):
    """Largest divisor of B (<= max_bblk) that still leaves >= 2 grid steps
    (keeps both v7x TensorCores busy); falls back to the largest divisor."""
    divs = [d for d in range(1, min(B, max_bblk) + 1) if B % d == 0]
    good = [d for d in divs if B // d >= 2]
    return max(good) if good else max(divs)


@jax.jit
def multi_head_attention(x, wqkv, wp, bp):
    """x: (B, T, C) f32; wqkv: (C, 3C) bf16 fused; wp: (C, C) bf16 (in, out);
    bp: (1, C) f32. Returns (B, T, C) bf16."""
    B, T, C = x.shape
    assert C == N_EMBED and T <= BLOCK_SIZE
    H, hs = NUM_HEADS, HEAD_SIZE
    bblk = _pick_bblk(B)

    flops = (2 * B * T * C * 3 * C          # fused QKV
             + 4 * B * H * T * T * hs       # scores + PV
             + 2 * B * T * C * C)           # output projection
    bytes_accessed = (B * T * C * 2         # x (bf16)
                      + C * 3 * C * 2       # wqkv
                      + C * C * 2           # wp
                      + C * 4               # bias
                      + B * T * C * 2)      # out (bf16)
    cost = pl.CostEstimate(flops=flops, transcendentals=B * H * T * T,
                           bytes_accessed=bytes_accessed)

    return pl.pallas_call(
        mha_kernel,
        out_shape=jax.ShapeDtypeStruct((B, T, C), jnp.bfloat16),
        grid_spec=pltpu.PrefetchScalarGridSpec(
            num_scalar_prefetch=0,
            grid=(B // bblk,),
            in_specs=[
                pl.BlockSpec((bblk, T, C), lambda b: (b, 0, 0)),   # x block
                pl.BlockSpec((C, 3 * C), lambda b: (0, 0)),        # fused Wqkv (resident)
                pl.BlockSpec((C, C), lambda b: (0, 0)),            # Wp (resident)
                pl.BlockSpec((1, C), lambda b: (0, 0)),            # proj bias
            ],
            out_specs=pl.BlockSpec((bblk, T, C), lambda b: (b, 0, 0)),
            scratch_shapes=[pltpu.VMEM((bblk * T, C), jnp.bfloat16)],  # head-out slab
        ),
        compiler_params=pltpu.CompilerParams(
            dimension_semantics=("parallel",),
        ),
        cost_estimate=cost,
    )(x.astype(jnp.bfloat16), wqkv, wp, bp)


def reference_mha(x, wq, wk, wv, wp_t, bp):
    """Pure-JAX f32 reference matching the PyTorch forward (dropout = identity)."""
    B, T, C = x.shape
    H = wq.shape[0]
    outs = []
    mask = jnp.tril(jnp.ones((T, T)))
    for h in range(H):
        q = x @ wq[h]
        k = x @ wk[h]
        v = x @ wv[h]
        wei = (q @ jnp.swapaxes(k, -1, -2)) * (C ** -0.5)
        wei = jnp.where(mask == 0, -jnp.inf, wei)
        wei = jax.nn.softmax(wei, axis=-1)
        outs.append(wei @ v)
    cat = jnp.concatenate(outs, axis=-1)
    return cat @ wp_t + bp


if __name__ == "__main__":
    key = jax.random.PRNGKey(0)
    kx, kq, kk, kv, kp, kb = jax.random.split(key, 6)

    B, T = 2, 128  # T <= block_size (256)

    x = jax.random.normal(kx, (B, T, N_EMBED), dtype=jnp.float32)

    # Deterministic parameter init (shapes from the module's __init__).
    # nn.Linear(n_embed, head_size, bias=False) weight is (hs, C); we store the
    # transposed (C, hs) layout per head, stacked over heads.
    w_scale = 1.0 / jnp.sqrt(jnp.float32(N_EMBED))
    wq = jax.random.uniform(kq, (NUM_HEADS, N_EMBED, HEAD_SIZE), jnp.float32,
                            -w_scale, w_scale)
    wk = jax.random.uniform(kk, (NUM_HEADS, N_EMBED, HEAD_SIZE), jnp.float32,
                            -w_scale, w_scale)
    wv = jax.random.uniform(kv, (NUM_HEADS, N_EMBED, HEAD_SIZE), jnp.float32,
                            -w_scale, w_scale)
    # nn.Linear(n_embed, n_embed) -> transposed weight (in, out) and bias (1, C)
    wp_t = jax.random.uniform(kp, (N_EMBED, N_EMBED), jnp.float32, -w_scale, w_scale)
    bp = jax.random.uniform(kb, (1, N_EMBED), jnp.float32, -w_scale, w_scale)

    # One-time fused-weight prep (hoisted out of the per-call path).
    wqkv, wp_bf16, bp_f32 = prepare_mha_params(wq, wk, wv, wp_t, bp)

    out = multi_head_attention(x, wqkv, wp_bf16, bp_f32)
    out = jax.block_until_ready(out)

    ref = reference_mha(x, wq, wk, wv, wp_t, bp)
    assert out.shape == (B, T, N_EMBED)
    assert out.dtype == jnp.bfloat16
    # bf16 MXU operands / bf16 output with f32 accumulation -> relaxed tolerance.
    assert jnp.allclose(out.astype(jnp.float32), ref, atol=5e-2, rtol=5e-2), \
        "mismatch vs reference"

    print("KERNEL_OK")
</pallas_src>

<mosaic_0001>
module attributes {stable_mosaic.version = 11 : i64} {
  func.func @mha_kernel(%arg0: i32, %arg1: memref<1x128x384xbf16, #tpu.memory_space<vmem>>, %arg2: memref<384x1152xbf16, #tpu.memory_space<vmem>>, %arg3: memref<384x384xbf16, #tpu.memory_space<vmem>>, %arg4: memref<1x384xf32, #tpu.memory_space<vmem>>, %arg5: memref<1x128x384xbf16, #tpu.memory_space<vmem>>, %arg6: memref<128x384xbf16, #tpu.memory_space<vmem>>) attributes {dimension_semantics = [#tpu.dimension_semantics<parallel>], iteration_bounds = array<i64: 2>, scalar_prefetch = 0 : i64, scratch_operands = 1 : i64, tpu.core_type = #tpu.core_type<tc>, window_params = [{transform_indices = @transform_0, window_bounds = array<i64: 1, 128, 384>}, {pipeline_mode = #tpu.pipeline_mode<synchronous>, transform_indices = @transform_1, window_bounds = array<i64: 384, 1152>}, {pipeline_mode = #tpu.pipeline_mode<synchronous>, transform_indices = @transform_2, window_bounds = array<i64: 384, 384>}, {pipeline_mode = #tpu.pipeline_mode<synchronous>, transform_indices = @transform_3, window_bounds = array<i64: 1, 384>}, {transform_indices = @transform_4, window_bounds = array<i64: 1, 128, 384>}]} {
    %c0 = arith.constant 0 : index
    %c0_0 = arith.constant 0 : index
    %c0_1 = arith.constant 0 : index
    %0 = vector.load %arg1[%c0, %c0_0, %c0_1] : memref<1x128x384xbf16, #tpu.memory_space<vmem>>, vector<1x128x384xbf16>
    %1 = vector.shape_cast %0 : vector<1x128x384xbf16> to vector<128x384xbf16>
    %c0_2 = arith.constant 0 : index
    %c0_3 = arith.constant 0 : index
    %2 = vector.load %arg2[%c0_2, %c0_3] : memref<384x1152xbf16, #tpu.memory_space<vmem>>, vector<384x1152xbf16>
    %cst = arith.constant dense<0.000000e+00> : vector<128x1152xf32>
    %3 = tpu.matmul %1, %2, %cst {dimension_numbers = #tpu.dot_dimension_numbers<[1], [0], [0], [1], [0, 0, 1, 1], [], []>} : vector<128x384xbf16>, vector<384x1152xbf16>, vector<128x1152xf32> -> vector<128x1152xf32>
    %4 = arith.truncf %3 : vector<128x1152xf32> to vector<128x1152xbf16>
    %5 = tpu.iota {dimensions = array<i32: 0>} : vector<128x128xi32>
    %6 = tpu.iota {dimensions = array<i32: 1>} : vector<128x128xi32>
    %7 = arith.cmpi sle, %6, %5 : vector<128x128xi32>
    %8 = vector.extract_strided_slice %4 {offsets = [0, 0], sizes = [128, 64], strides = [1, 1]} : vector<128x1152xbf16> to vector<128x64xbf16>
    %9 = vector.extract_strided_slice %4 {offsets = [0, 384], sizes = [128, 64], strides = [1, 1]} : vector<128x1152xbf16> to vector<128x64xbf16>
    %10 = vector.extract_strided_slice %4 {offsets = [0, 768], sizes = [128, 64], strides = [1, 1]} : vector<128x1152xbf16> to vector<128x64xbf16>
    %cst_4 = arith.constant dense<0.000000e+00> : vector<128x128xf32>
    %11 = tpu.matmul %8, %9, %cst_4 {dimension_numbers = #tpu.dot_dimension_numbers<[1], [1], [0], [0], [0, 0, 1, 0], [], []>} : vector<128x64xbf16>, vector<128x64xbf16>, vector<128x128xf32> -> vector<128x128xf32>
    %cst_5 = arith.constant -1.000000e+30 : f32
    %12 = vector.broadcast %cst_5 : f32 to vector<128x128xf32>
    %13 = arith.select %7, %11, %12 : vector<128x128xi1>, vector<128x128xf32>
    %cst_6 = arith.constant dense<0xFF800000> : vector<128xf32>
    %14 = vector.multi_reduction <maximumf>, %13, %cst_6 [1] : vector<128x128xf32> to vector<128xf32>
    %15 = vector.shape_cast %14 : vector<128xf32> to vector<128x1xf32>
    %16 = vector.broadcast %15 : vector<128x1xf32> to vector<128x128xf32>
    %17 = arith.subf %13, %16 : vector<128x128xf32>
    %18 = math.exp %17 : vector<128x128xf32>
    %cst_7 = arith.constant dense<0.000000e+00> : vector<128xf32>
    %19 = vector.multi_reduction <add>, %18, %cst_7 [1] : vector<128x128xf32> to vector<128xf32>
    %20 = vector.shape_cast %19 : vector<128xf32> to vector<128x1xf32>
    %21 = tpu.reciprocal %20 {approx = true} : vector<128x1xf32> -> vector<128x1xf32>
    %22 = arith.truncf %18 : vector<128x128xf32> to vector<128x128xbf16>
    %cst_8 = arith.constant dense<0.000000e+00> : vector<128x64xf32>
    %23 = tpu.matmul %22, %10, %cst_8 {dimension_numbers = #tpu.dot_dimension_numbers<[1], [0], [0], [1], [0, 0, 1, 1], [], []>} : vector<128x128xbf16>, vector<128x64xbf16>, vector<128x64xf32> -> vector<128x64xf32>
    %24 = vector.broadcast %21 : vector<128x1xf32> to vector<128x64xf32>
    %25 = arith.mulf %23, %24 : vector<128x64xf32>
    %26 = arith.truncf %25 : vector<128x64xf32> to vector<128x64xbf16>
    %c0_9 = arith.constant 0 : index
    %c0_10 = arith.constant 0 : index
    %27 = vector.load %arg6[%c0_9, %c0_10] : memref<128x384xbf16, #tpu.memory_space<vmem>>, vector<128x64xbf16>
    tpu.vector_store %arg6[%c0_9, %c0_10], %26 {strides = array<i32>} : memref<128x384xbf16, #tpu.memory_space<vmem>>, vector<128x64xbf16>,
    %28 = vector.extract_strided_slice %4 {offsets = [0, 64], sizes = [128, 64], strides = [1, 1]} : vector<128x1152xbf16> to vector<128x64xbf16>
    %29 = vector.extract_strided_slice %4 {offsets = [0, 448], sizes = [128, 64], strides = [1, 1]} : vector<128x1152xbf16> to vector<128x64xbf16>
    %30 = vector.extract_strided_slice %4 {offsets = [0, 832], sizes = [128, 64], strides = [1, 1]} : vector<128x1152xbf16> to vector<128x64xbf16>
    %cst_11 = arith.constant dense<0.000000e+00> : vector<128x128xf32>
    %31 = tpu.matmul %28, %29, %cst_11 {dimension_numbers = #tpu.dot_dimension_numbers<[1], [1], [0], [0], [0, 0, 1, 0], [], []>} : vector<128x64xbf16>, vector<128x64xbf16>, vector<128x128xf32> -> vector<128x128xf32>
    %cst_12 = arith.constant -1.000000e+30 : f32
    %32 = vector.broadcast %cst_12 : f32 to vector<128x128xf32>
    %33 = arith.select %7, %31, %32 : vector<128x128xi1>, vector<128x128xf32>
    %cst_13 = arith.constant dense<0xFF800000> : vector<128xf32>
    %34 = vector.multi_reduction <maximumf>, %33, %cst_13 [1] : vector<128x128xf32> to vector<128xf32>
    %35 = vector.shape_cast %34 : vector<128xf32> to vector<128x1xf32>
    %36 = vector.broadcast %35 : vector<128x1xf32> to vector<128x128xf32>
    %37 = arith.subf %33, %36 : vector<128x128xf32>
    %38 = math.exp %37 : vector<128x128xf32>
    %cst_14 = arith.constant dense<0.000000e+00> : vector<128xf32>
    %39 = vector.multi_reduction <add>, %38, %cst_14 [1] : vector<128x128xf32> to vector<128xf32>
    %40 = vector.shape_cast %39 : vector<128xf32> to vector<128x1xf32>
    %41 = tpu.reciprocal %40 {approx = true} : vector<128x1xf32> -> vector<128x1xf32>
    %42 = arith.truncf %38 : vector<128x128xf32> to vector<128x128xbf16>
    %cst_15 = arith.constant dense<0.000000e+00> : vector<128x64xf32>
    %43 = tpu.matmul %42, %30, %cst_15 {dimension_numbers = #tpu.dot_dimension_numbers<[1], [0], [0], [1], [0, 0, 1, 1], [], []>} : vector<128x128xbf16>, vector<128x64xbf16>, vector<128x64xf32> -> vector<128x64xf32>
    %44 = vector.broadcast %41 : vector<128x1xf32> to vector<128x64xf32>
    %45 = arith.mulf %43, %44 : vector<128x64xf32>
    %46 = arith.truncf %45 : vector<128x64xf32> to vector<128x64xbf16>
    %c0_16 = arith.constant 0 : index
    %c64 = arith.constant 64 : index
    %47 = vector.load %arg6[%c0_16, %c64] : memref<128x384xbf16, #tpu.memory_space<vmem>>, vector<128x64xbf16>
    tpu.vector_store %arg6[%c0_16, %c64], %46 {strides = array<i32>} : memref<128x384xbf16, #tpu.memory_space<vmem>>, vector<128x64xbf16>,
    %48 = vector.extract_strided_slice %4 {offsets = [0, 128], sizes = [128, 64], strides = [1, 1]} : vector<128x1152xbf16> to vector<128x64xbf16>
    %49 = vector.extract_strided_slice %4 {offsets = [0, 512], sizes = [128, 64], strides = [1, 1]} : vector<128x1152xbf16> to vector<128x64xbf16>
    %50 = vector.extract_strided_slice %4 {offsets = [0, 896], sizes = [128, 64], strides = [1, 1]} : vector<128x1152xbf16> to vector<128x64xbf16>
    %cst_17 = arith.constant dense<0.000000e+00> : vector<128x128xf32>
    %51 = tpu.matmul %48, %49, %cst_17 {dimension_numbers = #tpu.dot_dimension_numbers<[1], [1], [0], [0], [0, 0, 1, 0], [], []>} : vector<128x64xbf16>, vector<128x64xbf16>, vector<128x128xf32> -> vector<128x128xf32>
    %cst_18 = arith.constant -1.000000e+30 : f32
    %52 = vector.broadcast %cst_18 : f32 to vector<128x128xf32>
    %53 = arith.select %7, %51, %52 : vector<128x128xi1>, vector<128x128xf32>
    %cst_19 = arith.constant dense<0xFF800000> : vector<128xf32>
    %54 = vector.multi_reduction <maximumf>, %53, %cst_19 [1] : vector<128x128xf32> to vector<128xf32>
    %55 = vector.shape_cast %54 : vector<128xf32> to vector<128x1xf32>
    %56 = vector.broadcast %55 : vector<128x1xf32> to vector<128x128xf32>
    %57 = arith.subf %53, %56 : vector<128x128xf32>
    %58 = math.exp %57 : vector<128x128xf32>
    %cst_20 = arith.constant dense<0.000000e+00> : vector<128xf32>
    %59 = vector.multi_reduction <add>, %58, %cst_20 [1] : vector<128x128xf32> to vector<128xf32>
    %60 = vector.shape_cast %59 : vector<128xf32> to vector<128x1xf32>
    %61 = tpu.reciprocal %60 {approx = true} : vector<128x1xf32> -> vector<128x1xf32>
    %62 = arith.truncf %58 : vector<128x128xf32> to vector<128x128xbf16>
    %cst_21 = arith.constant dense<0.000000e+00> : vector<128x64xf32>
    %63 = tpu.matmul %62, %50, %cst_21 {dimension_numbers = #tpu.dot_dimension_numbers<[1], [0], [0], [1], [0, 0, 1, 1], [], []>} : vector<128x128xbf16>, vector<128x64xbf16>, vector<128x64xf32> -> vector<128x64xf32>
    %64 = vector.broadcast %61 : vector<128x1xf32> to vector<128x64xf32>
    %65 = arith.mulf %63, %64 : vector<128x64xf32>
    %66 = arith.truncf %65 : vector<128x64xf32> to vector<128x64xbf16>
    %c0_22 = arith.constant 0 : index
    %c128 = arith.constant 128 : index
    %67 = vector.load %arg6[%c0_22, %c128] : memref<128x384xbf16, #tpu.memory_space<vmem>>, vector<128x64xbf16>
    tpu.vector_store %arg6[%c0_22, %c128], %66 {strides = array<i32>} : memref<128x384xbf16, #tpu.memory_space<vmem>>, vector<128x64xbf16>,
    %68 = vector.extract_strided_slice %4 {offsets = [0, 192], sizes = [128, 64], strides = [1, 1]} : vector<128x1152xbf16> to vector<128x64xbf16>
    %69 = vector.extract_strided_slice %4 {offsets = [0, 576], sizes = [128, 64], strides = [1, 1]} : vector<128x1152xbf16> to vector<128x64xbf16>
    %70 = vector.extract_strided_slice %4 {offsets = [0, 960], sizes = [128, 64], strides = [1, 1]} : vector<128x1152xbf16> to vector<128x64xbf16>
    %cst_23 = arith.constant dense<0.000000e+00> : vector<128x128xf32>
    %71 = tpu.matmul %68, %69, %cst_23 {dimension_numbers = #tpu.dot_dimension_numbers<[1], [1], [0], [0], [0, 0, 1, 0], [], []>} : vector<128x64xbf16>, vector<128x64xbf16>, vector<128x128xf32> -> vector<128x128xf32>
    %cst_24 = arith.constant -1.000000e+30 : f32
    %72 = vector.broadcast %cst_24 : f32 to vector<128x128xf32>
    %73 = arith.select %7, %71, %72 : vector<128x128xi1>, vector<128x128xf32>
    %cst_25 = arith.constant dense<0xFF800000> : vector<128xf32>
    %74 = vector.multi_reduction <maximumf>, %73, %cst_25 [1] : vector<128x128xf32> to vector<128xf32>
    %75 = vector.shape_cast %74 : vector<128xf32> to vector<128x1xf32>
    %76 = vector.broadcast %75 : vector<128x1xf32> to vector<128x128xf32>
    %77 = arith.subf %73, %76 : vector<128x128xf32>
    %78 = math.exp %77 : vector<128x128xf32>
    %cst_26 = arith.constant dense<0.000000e+00> : vector<128xf32>
    %79 = vector.multi_reduction <add>, %78, %cst_26 [1] : vector<128x128xf32> to vector<128xf32>
    %80 = vector.shape_cast %79 : vector<128xf32> to vector<128x1xf32>
    %81 = tpu.reciprocal %80 {approx = true} : vector<128x1xf32> -> vector<128x1xf32>
    %82 = arith.truncf %78 : vector<128x128xf32> to vector<128x128xbf16>
    %cst_27 = arith.constant dense<0.000000e+00> : vector<128x64xf32>
    %83 = tpu.matmul %82, %70, %cst_27 {dimension_numbers = #tpu.dot_dimension_numbers<[1], [0], [0], [1], [0, 0, 1, 1], [], []>} : vector<128x128xbf16>, vector<128x64xbf16>, vector<128x64xf32> -> vector<128x64xf32>
    %84 = vector.broadcast %81 : vector<128x1xf32> to vector<128x64xf32>
    %85 = arith.mulf %83, %84 : vector<128x64xf32>
    %86 = arith.truncf %85 : vector<128x64xf32> to vector<128x64xbf16>
    %c0_28 = arith.constant 0 : index
    %c192 = arith.constant 192 : index
    %87 = vector.load %arg6[%c0_28, %c192] : memref<128x384xbf16, #tpu.memory_space<vmem>>, vector<128x64xbf16>
    tpu.vector_store %arg6[%c0_28, %c192], %86 {strides = array<i32>} : memref<128x384xbf16, #tpu.memory_space<vmem>>, vector<128x64xbf16>,
    %88 = vector.extract_strided_slice %4 {offsets = [0, 256], sizes = [128, 64], strides = [1, 1]} : vector<128x1152xbf16> to vector<128x64xbf16>
    %89 = vector.extract_strided_slice %4 {offsets = [0, 640], sizes = [128, 64], strides = [1, 1]} : vector<128x1152xbf16> to vector<128x64xbf16>
    %90 = vector.extract_strided_slice %4 {offsets = [0, 1024], sizes = [128, 64], strides = [1, 1]} : vector<128x1152xbf16> to vector<128x64xbf16>
    %cst_29 = arith.constant dense<0.000000e+00> : vector<128x128xf32>
    %91 = tpu.matmul %88, %89, %cst_29 {dimension_numbers = #tpu.dot_dimension_numbers<[1], [1], [0], [0], [0, 0, 1, 0], [], []>} : vector<128x64xbf16>, vector<128x64xbf16>, vector<128x128xf32> -> vector<128x128xf32>
    %cst_30 = arith.constant -1.000000e+30 : f32
    %92 = vector.broadcast %cst_30 : f32 to vector<128x128xf32>
    %93 = arith.select %7, %91, %92 : vector<128x128xi1>, vector<128x128xf32>
    %cst_31 = arith.constant dense<0xFF800000> : vector<128xf32>
    %94 = vector.multi_reduction <maximumf>, %93, %cst_31 [1] : vector<128x128xf32> to vector<128xf32>
    %95 = vector.shape_cast %94 : vector<128xf32> to vector<128x1xf32>
    %96 = vector.broadcast %95 : vector<128x1xf32> to vector<128x128xf32>
    %97 = arith.subf %93, %96 : vector<128x128xf32>
    %98 = math.exp %97 : vector<128x128xf32>
    %cst_32 = arith.constant dense<0.000000e+00> : vector<128xf32>
    %99 = vector.multi_reduction <add>, %98, %cst_32 [1] : vector<128x128xf32> to vector<128xf32>
    %100 = vector.shape_cast %99 : vector<128xf32> to vector<128x1xf32>
    %101 = tpu.reciprocal %100 {approx = true} : vector<128x1xf32> -> vector<128x1xf32>
    %102 = arith.truncf %98 : vector<128x128xf32> to vector<128x128xbf16>
    %cst_33 = arith.constant dense<0.000000e+00> : vector<128x64xf32>
    %103 = tpu.matmul %102, %90, %cst_33 {dimension_numbers = #tpu.dot_dimension_numbers<[1], [0], [0], [1], [0, 0, 1, 1], [], []>} : vector<128x128xbf16>, vector<128x64xbf16>, vector<128x64xf32> -> vector<128x64xf32>
    %104 = vector.broadcast %101 : vector<128x1xf32> to vector<128x64xf32>
    %105 = arith.mulf %103, %104 : vector<128x64xf32>
    %106 = arith.truncf %105 : vector<128x64xf32> to vector<128x64xbf16>
    %c0_34 = arith.constant 0 : index
    %c256 = arith.constant 256 : index
    %107 = vector.load %arg6[%c0_34, %c256] : memref<128x384xbf16, #tpu.memory_space<vmem>>, vector<128x64xbf16>
    tpu.vector_store %arg6[%c0_34, %c256], %106 {strides = array<i32>} : memref<128x384xbf16, #tpu.memory_space<vmem>>, vector<128x64xbf16>,
    %108 = vector.extract_strided_slice %4 {offsets = [0, 320], sizes = [128, 64], strides = [1, 1]} : vector<128x1152xbf16> to vector<128x64xbf16>
    %109 = vector.extract_strided_slice %4 {offsets = [0, 704], sizes = [128, 64], strides = [1, 1]} : vector<128x1152xbf16> to vector<128x64xbf16>
    %110 = vector.extract_strided_slice %4 {offsets = [0, 1088], sizes = [128, 64], strides = [1, 1]} : vector<128x1152xbf16> to vector<128x64xbf16>
    %cst_35 = arith.constant dense<0.000000e+00> : vector<128x128xf32>
    %111 = tpu.matmul %108, %109, %cst_35 {dimension_numbers = #tpu.dot_dimension_numbers<[1], [1], [0], [0], [0, 0, 1, 0], [], []>} : vector<128x64xbf16>, vector<128x64xbf16>, vector<128x128xf32> -> vector<128x128xf32>
    %cst_36 = arith.constant -1.000000e+30 : f32
    %112 = vector.broadcast %cst_36 : f32 to vector<128x128xf32>
    %113 = arith.select %7, %111, %112 : vector<128x128xi1>, vector<128x128xf32>
    %cst_37 = arith.constant dense<0xFF800000> : vector<128xf32>
    %114 = vector.multi_reduction <maximumf>, %113, %cst_37 [1] : vector<128x128xf32> to vector<128xf32>
    %115 = vector.shape_cast %114 : vector<128xf32> to vector<128x1xf32>
    %116 = vector.broadcast %115 : vector<128x1xf32> to vector<128x128xf32>
    %117 = arith.subf %113, %116 : vector<128x128xf32>
    %118 = math.exp %117 : vector<128x128xf32>
    %cst_38 = arith.constant dense<0.000000e+00> : vector<128xf32>
    %119 = vector.multi_reduction <add>, %118, %cst_38 [1] : vector<128x128xf32> to vector<128xf32>
    %120 = vector.shape_cast %119 : vector<128xf32> to vector<128x1xf32>
    %121 = tpu.reciprocal %120 {approx = true} : vector<128x1xf32> -> vector<128x1xf32>
    %122 = arith.truncf %118 : vector<128x128xf32> to vector<128x128xbf16>
    %cst_39 = arith.constant dense<0.000000e+00> : vector<128x64xf32>
    %123 = tpu.matmul %122, %110, %cst_39 {dimension_numbers = #tpu.dot_dimension_numbers<[1], [0], [0], [1], [0, 0, 1, 1], [], []>} : vector<128x128xbf16>, vector<128x64xbf16>, vector<128x64xf32> -> vector<128x64xf32>
    %124 = vector.broadcast %121 : vector<128x1xf32> to vector<128x64xf32>
    %125 = arith.mulf %123, %124 : vector<128x64xf32>
    %126 = arith.truncf %125 : vector<128x64xf32> to vector<128x64xbf16>
    %c0_40 = arith.constant 0 : index
    %c320 = arith.constant 320 : index
    %127 = vector.load %arg6[%c0_40, %c320] : memref<128x384xbf16, #tpu.memory_space<vmem>>, vector<128x64xbf16>
    tpu.vector_store %arg6[%c0_40, %c320], %126 {strides = array<i32>} : memref<128x384xbf16, #tpu.memory_space<vmem>>, vector<128x64xbf16>,
    %c0_41 = arith.constant 0 : index
    %c0_42 = arith.constant 0 : index
    %128 = vector.load %arg6[%c0_41, %c0_42] : memref<128x384xbf16, #tpu.memory_space<vmem>>, vector<128x384xbf16>
    %c0_43 = arith.constant 0 : index
    %c0_44 = arith.constant 0 : index
    %129 = vector.load %arg3[%c0_43, %c0_44] : memref<384x384xbf16, #tpu.memory_space<vmem>>, vector<384x384xbf16>
    %cst_45 = arith.constant dense<0.000000e+00> : vector<128x384xf32>
    %130 = tpu.matmul %128, %129, %cst_45 {dimension_numbers = #tpu.dot_dimension_numbers<[1], [0], [0], [1], [0, 0, 1, 1], [], []>} : vector<128x384xbf16>, vector<384x384xbf16>, vector<128x384xf32> -> vector<128x384xf32>
    %c0_46 = arith.constant 0 : index
    %c0_47 = arith.constant 0 : index
    %131 = vector.load %arg4[%c0_46, %c0_47] : memref<1x384xf32, #tpu.memory_space<vmem>>, vector<1x384xf32>
    %132 = vector.broadcast %131 : vector<1x384xf32> to vector<128x384xf32>
    %133 = arith.addf %130, %132 : vector<128x384xf32>
    %134 = vector.shape_cast %133 : vector<128x384xf32> to vector<1x128x384xf32>
    %135 = arith.truncf %134 : vector<1x128x384xf32> to vector<1x128x384xbf16>
    %c0_48 = arith.constant 0 : index
    %c0_49 = arith.constant 0 : index
    %c0_50 = arith.constant 0 : index
    %136 = vector.load %arg5[%c0_48, %c0_49, %c0_50] : memref<1x128x384xbf16, #tpu.memory_space<vmem>>, vector<1x128x384xbf16>
    tpu.vector_store %arg5[%c0_48, %c0_49, %c0_50], %135 {strides = array<i32>} : memref<1x128x384xbf16, #tpu.memory_space<vmem>>, vector<1x128x384xbf16>,
    return
  }
  func.func @transform_0(%arg0: i32) -> (i32, i32, i32) {
    %c0_i32 = arith.constant 0 : i32
    %c0_i32_0 = arith.constant 0 : i32
    %c0_i32_1 = arith.constant 0 : i32
    return %arg0, %c0_i32, %c0_i32_0 : i32, i32, i32
  }
  func.func @transform_1(%arg0: i32) -> (i32, i32) {
    %c0_i32 = arith.constant 0 : i32
    %c0_i32_0 = arith.constant 0 : i32
    %c0_i32_1 = arith.constant 0 : i32
    return %c0_i32, %c0_i32_0 : i32, i32
  }
  func.func @transform_2(%arg0: i32) -> (i32, i32) {
    %c0_i32 = arith.constant 0 : i32
    %c0_i32_0 = arith.constant 0 : i32
    %c0_i32_1 = arith.constant 0 : i32
    return %c0_i32, %c0_i32_0 : i32, i32
  }
  func.func @transform_3(%arg0: i32) -> (i32, i32) {
    %c0_i32 = arith.constant 0 : i32
    %c0_i32_0 = arith.constant 0 : i32
    %c0_i32_1 = arith.constant 0 : i32
    return %c0_i32, %c0_i32_0 : i32, i32
  }
  func.func @transform_4(%arg0: i32) -> (i32, i32, i32) {
    %c0_i32 = arith.constant 0 : i32
    %c0_i32_0 = arith.constant 0 : i32
    %c0_i32_1 = arith.constant 0 : i32
    return %arg0, %c0_i32, %c0_i32_0 : i32, i32, i32
  }
}

</mosaic_0001>

<llo_original>
// kernel: multi_head_attention.1
$region0: #{multi_head_attention.1}
  #allocation0 [shape = 'u32[]', space=smem, size = 0x4, offset = 0x4, fixed_abs, tag = 'smem constant byte address 0x4 - core index']
  #allocation1 [shape = 'u32[144,128]{1,0:T(1,128)}', space=vmem, size = 0x12000, scoped, tag = 'internal scratch']
  #allocation2 [shape = 'bf16[128,384]{1,0:T(16,128)(2,1)}', space=vmem, size = 0x18000, scoped, tag = 'scratch operand']
  %s0 = inlined_call_operand.vmem [shape: bf16[2,128,384], index: 0, kind: input, shape index: {}]
  %s1 = inlined_call_operand.hbm [shape: bf16[384,1152], index: 1, kind: input, shape index: {}]
  %s2 = inlined_call_operand.vmem [shape: bf16[384,384], index: 2, kind: input, shape index: {}]
  %s3 = inlined_call_operand.vmem [shape: f32[1,384], index: 3, kind: input, shape index: {}]
  %s4 = inlined_call_operand.hbm [shape: bf16[2,128,384], index: 4, kind: output, shape index: {}]
  %s5 = sld [smem:[#allocation0]]
  $region53: #{multi_head_attention.1} parent=0
    _
  %s7 = ssub.s32 1, %s5
  %s8 = scalar_select 0, %s7, %s5
  $region1: #{multi_head_attention.1} parent=0
    #allocation3 [shape = 'u8[884736]{0}', space=vmem, size = 0xd8000, scoped, tag = 'input window, operand 1, single buffered']
    #allocation4 [shape = 's32[2]{0}', space=sflag, size = 0x8, scoped, tag = 'scoped memory for multi_head_attention.1']
    #allocation5 [shape = 's32[2]{0}', space=sflag, size = 0x8, scoped, tag = 'scoped memory for multi_head_attention.1']
    #allocation6 [shape = 'u8[196608]{0}', space=vmem, size = 0x30000, scoped, tag = 'output window, operand 0']
    %9 = vsyncpa [#allocation4], 0
    %10 = vsyncpa [#allocation5], 0
    %s11 = scalar_lea.sflag [#allocation5], 1
    %12 = vsyncpa %s11, 0
    loop: start=0, step=1, limit=4
    $region2: #{multi_head_attention.1} parent=1 // loop_pre_header
      _
    $region3: #{multi_head_attention.1} parent=1 // loop_header
      %s14 = sphi 0, %s18
      %p15 = scmp.ge.s32.totalorder %s14, 4
      %s24 = sphi 0, %s26
      %s27 = sphi 0, %s24
      %s28 = sphi 0, %s27
      %s44 = sphi 0, %s28
      %s48 = sphi 0, %s48
      %s50 = sphi 0, %s48
      %s51 = sphi 0, %s50
      %s65 = sphi 0, %s51
      %s69 = sphi 0, %s69
      %s71 = sphi 0, %s69
      %s72 = sphi 0, %s71
      %s86 = sphi 0, %s72
      %s90 = sphi 0, %s90
      %s92 = sphi 0, %s90
      %s93 = sphi 0, %s92
      %s107 = sphi 0, %s93
      %s113 = sphi 0, %s115
      %s116 = sphi 0, %s113
      %s117 = sphi 0, %s116
      %s133 = sphi 0, %s117
    $region4: #{multi_head_attention.1} parent=1 // loop_header_branch
      %17 = sbr.rel (%p15) target = $region8
    $region5: #{multi_head_attention.1} parent=1 // loop_body
      %s19 = ssub.s32 %s14, 1
      %s20 = ssub.s32 %s14, 2
      %s21 = sadd.s32 %s14, 1
      %s22 = ssub.s32 %s14, %s21
      %p23 = scmp.eq.s32.totalorder %s22, 0
      %s25 = sadd.s32 %s24, 1
      %s26 = scalar_select %p23, %s24, %s25
      %p29 = pneg %p23
      %p30 = scmp.eq.s32.totalorder %s14, 1
      %p31 = por %p29, %p30
      %p32 = scmp.ne.s32.totalorder %s24, %s27
      %p33 = scmp.eq.s32.totalorder %s14, 0
      %p34 = por %p32, %p33
      %p35 = scmp.ne.s32.totalorder %s24, %s27
      %p36 = scmp.eq.s32.totalorder %s19, 1
      %p37 = por %p35, %p36
      %p38 = scmp.ne.s32.totalorder %s27, %s28
      %p39 = scmp.eq.s32.totalorder %s19, 0
      %p40 = por %p38, %p39
      %p41 = scmp.ne.s32.totalorder %s27, %s28
      %p42 = scmp.eq.s32.totalorder %s20, 1
      %p43 = por %p41, %p42
      %p45 = scmp.ne.s32.totalorder %s28, %s44
      %p46 = scmp.eq.s32.totalorder %s20, 0
      %p47 = por %p45, %p46
      %s49 = sadd.s32 %s48, 1
      %p52 = scmp.eq.s32.totalorder %s14, 1
      %p53 = scmp.ne.s32.totalorder %s48, %s50
      %p54 = scmp.eq.s32.totalorder %s14, 0
      %p55 = por %p53, %p54
      %p56 = scmp.ne.s32.totalorder %s48, %s50
      %p57 = scmp.eq.s32.totalorder %s19, 1
      %p58 = por %p56, %p57
      %p59 = scmp.ne.s32.totalorder %s50, %s51
      %p60 = scmp.eq.s32.totalorder %s19, 0
      %p61 = por %p59, %p60
      %p62 = scmp.ne.s32.totalorder %s50, %s51
      %p63 = scmp.eq.s32.totalorder %s20, 1
      %p64 = por %p62, %p63
      %p66 = scmp.ne.s32.totalorder %s51, %s65
      %p67 = scmp.eq.s32.totalorder %s20, 0
      %p68 = por %p66, %p67
      %s70 = sadd.s32 %s69, 1
      %p73 = scmp.eq.s32.totalorder %s14, 1
      %p74 = scmp.ne.s32.totalorder %s69, %s71
      %p75 = scmp.eq.s32.totalorder %s14, 0
      %p76 = por %p74, %p75
      %p77 = scmp.ne.s32.totalorder %s69, %s71
      %p78 = scmp.eq.s32.totalorder %s19, 1
      %p79 = por %p77, %p78
      %p80 = scmp.ne.s32.totalorder %s71, %s72
      %p81 = scmp.eq.s32.totalorder %s19, 0
      %p82 = por %p80, %p81
      %p83 = scmp.ne.s32.totalorder %s71, %s72
      %p84 = scmp.eq.s32.totalorder %s20, 1
      %p85 = por %p83, %p84
      %p87 = scmp.ne.s32.totalorder %s72, %s86
      %p88 = scmp.eq.s32.totalorder %s20, 0
      %p89 = por %p87, %p88
      %s91 = sadd.s32 %s90, 1
      %p94 = scmp.eq.s32.totalorder %s14, 1
      %p95 = scmp.ne.s32.totalorder %s90, %s92
      %p96 = scmp.eq.s32.totalorder %s14, 0
      %p97 = por %p95, %p96
      %p98 = scmp.ne.s32.totalorder %s90, %s92
      %p99 = scmp.eq.s32.totalorder %s19, 1
      %p100 = por %p98, %p99
      %p101 = scmp.ne.s32.totalorder %s92, %s93
      %p102 = scmp.eq.s32.totalorder %s19, 0
      %p103 = por %p101, %p102
      %p104 = scmp.ne.s32.totalorder %s92, %s93
      %p105 = scmp.eq.s32.totalorder %s20, 1
      %p106 = por %p104, %p105
      %p108 = scmp.ne.s32.totalorder %s93, %s107
      %p109 = scmp.eq.s32.totalorder %s20, 0
      %p110 = por %p108, %p109
      %s111 = ssub.s32 %s14, %s21
      %p112 = scmp.eq.s32.totalorder %s111, 0
      %s114 = sadd.s32 %s113, 1
      %s115 = scalar_select %p112, %s113, %s114
      %p118 = pneg %p112
      %p119 = scmp.eq.s32.totalorder %s14, 1
      %p120 = por %p118, %p119
      %p121 = scmp.ne.s32.totalorder %s113, %s116
      %p122 = scmp.eq.s32.totalorder %s14, 0
      %p123 = por %p121, %p122
      %p124 = scmp.ne.s32.totalorder %s113, %s116
      %p125 = scmp.eq.s32.totalorder %s19, 1
      %p126 = por %p124, %p125
      %p127 = scmp.ne.s32.totalorder %s116, %s117
      %p128 = scmp.eq.s32.totalorder %s19, 0
      %p129 = por %p127, %p128
      %p130 = scmp.ne.s32.totalorder %s116, %s117
      %p131 = scmp.eq.s32.totalorder %s20, 1
      %p132 = por %p130, %p131
      %p134 = scmp.ne.s32.totalorder %s117, %s133
      %p135 = scmp.eq.s32.totalorder %s20, 0
      %p136 = por %p134, %p135
      %p137 = scmp.le.s32.totalorder 1, %s14
      %p138 = scmp.lt.s32.totalorder %s14, 3
      %p139 = pnand %p137, %p138
      %p140 = pneg %p139
      // Predicated region
      $region9: #{multi_head_attention.1} parent=5 // pred_check
        _
      $region10: #{multi_head_attention.1} parent=5 // pred_check_branch
        %142 = sbr.rel (%p139) target = $region12
      $region11: #{multi_head_attention.1} parent=5 // pred_region
        %s143 = ssub.s32 %s14, 1
        // Predicated region
        $region13: #{multi_head_attention.1} parent=11 // pred_check
          %p144 = pneg %p61
        $region14: #{multi_head_attention.1} parent=11 // pred_check_branch
          %146 = sbr.rel (%p144) target = $region16
        $region15: #{multi_head_attention.1} parent=11 // pred_region
          %s148 = ssub.s32 27648, 27648
          %149 = vsyncadd [#allocation4], %s148
          %s150 = sshll.u32 [#allocation3], 4
          %s151 = int_to_ptr.vmem [resolvable:$true] %s150
          %156 = dma.hbm_to_vmem [thread:$0]  %s1, 27648, %s151, [#allocation4], 576, 576, 36
        $region16: #{multi_head_attention.1} parent=11 // pred_fallthru
          _
        // Predicated region
        $region17: #{multi_head_attention.1} parent=11 // pred_check
          %p157 = pneg %p82
        $region18: #{multi_head_attention.1} parent=11 // pred_check_branch
          %159 = sbr.rel (%p157) target = $region20
        $region19: #{multi_head_attention.1} parent=11 // pred_region
          _
        $region20: #{multi_head_attention.1} parent=11 // pred_fallthru
          _
        // Predicated region
        $region21: #{multi_head_attention.1} parent=11 // pred_check
          %p160 = pneg %p103
        $region22: #{multi_head_attention.1} parent=11 // pred_check_branch
          %162 = sbr.rel (%p160) target = $region24
        $region23: #{multi_head_attention.1} parent=11 // pred_region
          _
        $region24: #{multi_head_attention.1} parent=11 // pred_fallthru
          _
      $region12: #{multi_head_attention.1} parent=5 // pred_fallthru
        _
      %p163 = scmp.lt.s32.totalorder %s14, 2
      // Predicated region
      $region25: #{multi_head_attention.1} parent=5 // pred_check
        %p164 = pneg %p163
      $region26: #{multi_head_attention.1} parent=5 // pred_check_branch
        %166 = sbr.rel (%p164) target = $region28
      $region27: #{multi_head_attention.1} parent=5 // pred_region
        // Predicated region
        $region29: #{multi_head_attention.1} parent=27 // pred_check
          %p167 = pneg %p34
        $region30: #{multi_head_attention.1} parent=27 // pred_check_branch
          %169 = sbr.rel (%p167) target = $region32
        $region31: #{multi_head_attention.1} parent=27 // pred_region
          %p170 = scmp.lt.s32.totalorder %s14, 1
          %s171 = scalar_select %p170, %s14, 1
          %s172 = smul.addr %s171, 48
          %s173 = smul.addr %s172, 4
          %s174 = scalar_lea.vmem %s0, %s173
        $region32: #{multi_head_attention.1} parent=27 // pred_fallthru
          _
      $region28: #{multi_head_attention.1} parent=5 // pred_fallthru
        _
      %p175 = scmp.le.s32.totalorder 1, %s14
      %p176 = scmp.lt.s32.totalorder %s14, 3
      %p177 = pnand %p175, %p176
      %p178 = pneg %p177
      // Predicated region
      $region33: #{multi_head_attention.1} parent=5 // pred_check
        _
      $region34: #{multi_head_attention.1} parent=5 // pred_check_branch
        %180 = sbr.rel (%p177) target = $region36
      $region35: #{multi_head_attention.1} parent=5 // pred_region
        %s181 = ssub.s32 %s14, 1
        // Predicated region
        $region37: #{multi_head_attention.1} parent=35 // pred_check
          %p182 = pneg %p61
        $region38: #{multi_head_attention.1} parent=35 // pred_check_branch
          %184 = sbr.rel (%p182) target = $region40
        $region39: #{multi_head_attention.1} parent=35 // pred_region
          %185 = dma.done [#allocation4], 27648
        $region40: #{multi_head_attention.1} parent=35 // pred_fallthru
          _
        %p186 = scmp.lt.s32.totalorder %s19, 1
        %s187 = scalar_select %p186, %s19, 1
        %s188 = smul.addr %s187, 48
        %s189 = smul.addr %s188, 4
        %s190 = scalar_lea.vmem %s0, %s189
        %p191 = pneg %p40
        %p192 = pneg %p37
        %p193 = pneg %p61
        %p194 = pneg %p58
        %p195 = pneg %p82
        %p196 = pneg %p79
        %p197 = pneg %p103
        %p198 = pneg %p100
        %p199 = pneg %p129
        %p200 = pneg %p126
        %s201 = sand.u32 %s116, 1
        %s202 = scalar_lea.sflag [#allocation5], %s201
        %s203 = sand.u32 %s116, 1
        %s204 = smul.addr %s203, 192
        %s205 = scalar_lea.vmem [#allocation6], %s204
        %p206 = scmp.lt.s32.totalorder %s19, 1
        %s207 = scalar_select %p206, %s19, 1
        %s208 = smul.addr %s207, 48
        %s209 = smul.addr %s208, 4
        %s210 = scalar_lea.vmem %s0, %s209
        %v212 = vld [vmem:[%s210] sm:$0xff]
        %v213 = vld [vmem:[%s210 + $0x8] sm:$0xf]
        %v214 = vld [vmem:[%s210 + $0xc] sm:$0xff]
        %v215 = vld [vmem:[%s210 + $0x14] sm:$0xf]
        %v216 = vld [vmem:[%s210 + $0x18] sm:$0xff]
        %v217 = vld [vmem:[%s210 + $0x20] sm:$0xf]
        %v218 = vld [vmem:[%s210 + $0x24] sm:$0xff]
        %v219 = vld [vmem:[%s210 + $0x2c] sm:$0xf]
        %v220 = vld [vmem:[%s210 + $0x30] sm:$0xff]
        %v221 = vld [vmem:[%s210 + $0x38] sm:$0xf]
        %v222 = vld [vmem:[%s210 + $0x3c] sm:$0xff]
        %v223 = vld [vmem:[%s210 + $0x44] sm:$0xf]
        %v224 = vld [vmem:[%s210 + $0x48] sm:$0xff]
        %v225 = vld [vmem:[%s210 + $0x50] sm:$0xf]
        %v226 = vld [vmem:[%s210 + $0x54] sm:$0xff]
        %v227 = vld [vmem:[%s210 + $0x5c] sm:$0xf]
        %v228 = vld [vmem:[%s210 + $0x60] sm:$0xff]
        %v229 = vld [vmem:[%s210 + $0x68] sm:$0xf]
        %v230 = vld [vmem:[%s210 + $0x6c] sm:$0xff]
        %v231 = vld [vmem:[%s210 + $0x74] sm:$0xf]
        %v232 = vld [vmem:[%s210 + $0x78] sm:$0xff]
        %v233 = vld [vmem:[%s210 + $0x80] sm:$0xf]
        %v234 = vld [vmem:[%s210 + $0x84] sm:$0xff]
        %v235 = vld [vmem:[%s210 + $0x8c] sm:$0xf]
        %v236 = vld [vmem:[%s210 + $0x90] sm:$0xff]
        %v237 = vld [vmem:[%s210 + $0x98] sm:$0xf]
        %v238 = vld [vmem:[%s210 + $0x9c] sm:$0xff]
        %v239 = vld [vmem:[%s210 + $0xa4] sm:$0xf]
        %v240 = vld [vmem:[%s210 + $0xa8] sm:$0xff]
        %v241 = vld [vmem:[%s210 + $0xb0] sm:$0xf]
        %v242 = vld [vmem:[%s210 + $0xb4] sm:$0xff]
        %v243 = vld [vmem:[%s210 + $0xbc] sm:$0xf]
        %v244 = vld [vmem:[#allocation3] sm:$0xff]
        %v245 = vld [vmem:[#allocation3 + $0x8] sm:$0xff]
        %v246 = vld [vmem:[#allocation3 + $0x10] sm:$0xff]
        %v247 = vld [vmem:[#allocation3 + $0x18] sm:$0xff]
        %v248 = vld [vmem:[#allocation3 + $0x20] sm:$0xf]
        %v249 = vld [vmem:[#allocation3 + $0x24] sm:$0xff]
        %v250 = vld [vmem:[#allocation3 + $0x2c] sm:$0xff]
        %v251 = vld [vmem:[#allocation3 + $0x34] sm:$0xff]
        %v252 = vld [vmem:[#allocation3 + $0x3c] sm:$0xff]
        %v253 = vld [vmem:[#allocation3 + $0x44] sm:$0xf]
        %v254 = vld [vmem:[#allocation3 + $0x48] sm:$0xff]
        %v255 = vld [vmem:[#allocation3 + $0x50] sm:$0xff]
        %v256 = vld [vmem:[#allocation3 + $0x58] sm:$0xff]
        %v257 = vld [vmem:[#allocation3 + $0x60] sm:$0xff]
        %v258 = vld [vmem:[#allocation3 + $0x68] sm:$0xf]
        %v259 = vld [vmem:[#allocation3 + $0x6c] sm:$0xff]
        %v260 = vld [vmem:[#allocation3 + $0x74] sm:$0xff]
        %v261 = vld [vmem:[#allocation3 + $0x7c] sm:$0xff]
        %v262 = vld [vmem:[#allocation3 + $0x84] sm:$0xff]
        %v263 = vld [vmem:[#allocation3 + $0x8c] sm:$0xf]
        %v264 = vld [vmem:[#allocation3 + $0x90] sm:$0xff]
        %v265 = vld [vmem:[#allocation3 + $0x98] sm:$0xff]
        %v266 = vld [vmem:[#allocation3 + $0xa0] sm:$0xff]
        %v267 = vld [vmem:[#allocation3 + $0xa8] sm:$0xff]
        %v268 = vld [vmem:[#allocation3 + $0xb0] sm:$0xf]
        %v269 = vld [vmem:[#allocation3 + $0xb4] sm:$0xff]
        %v270 = vld [vmem:[#allocation3 + $0xbc] sm:$0xff]
        %v271 = vld [vmem:[#allocation3 + $0xc4] sm:$0xff]
        %v272 = vld [vmem:[#allocation3 + $0xcc] sm:$0xff]
        %v273 = vld [vmem:[#allocation3 + $0xd4] sm:$0xf]
        %v274 = vld [vmem:[#allocation3 + $0xd8] sm:$0xff]
        %v275 = vld [vmem:[#allocation3 + $0xe0] sm:$0xff]
        %v276 = vld [vmem:[#allocation3 + $0xe8] sm:$0xff]
        %v277 = vld [vmem:[#allocation3 + $0xf0] sm:$0xff]
        %v278 = vld [vmem:[#allocation3 + $0xf8] sm:$0xf]
        %v279 = vld [vmem:[#allocation3 + $0xfc] sm:$0xff]
        %v280 = vld [vmem:[#allocation3 + $0x104] sm:$0xff]
        %v281 = vld [vmem:[#allocation3 + $0x10c] sm:$0xff]
        %v282 = vld [vmem:[#allocation3 + $0x114] sm:$0xff]
        %v283 = vld [vmem:[#allocation3 + $0x11c] sm:$0xf]
        %v284 = vld [vmem:[#allocation3 + $0x120] sm:$0xff]
        %v285 = vld [vmem:[#allocation3 + $0x128] sm:$0xff]
        %v286 = vld [vmem:[#allocation3 + $0x130] sm:$0xff]
        %v287 = vld [vmem:[#allocation3 + $0x138] sm:$0xff]
        %v288 = vld [vmem:[#allocation3 + $0x140] sm:$0xf]
        %v289 = vld [vmem:[#allocation3 + $0x144] sm:$0xff]
        %v290 = vld [vmem:[#allocation3 + $0x14c] sm:$0xff]
        %v291 = vld [vmem:[#allocation3 + $0x154] sm:$0xff]
        %v292 = vld [vmem:[#allocation3 + $0x15c] sm:$0xff]
        %v293 = vld [vmem:[#allocation3 + $0x164] sm:$0xf]
        %v294 = vld [vmem:[#allocation3 + $0x168] sm:$0xff]
        %v295 = vld [vmem:[#allocation3 + $0x170] sm:$0xff]
        %v296 = vld [vmem:[#allocation3 + $0x178] sm:$0xff]
        %v297 = vld [vmem:[#allocation3 + $0x180] sm:$0xff]
        %v298 = vld [vmem:[#allocation3 + $0x188] sm:$0xf]
        %v299 = vld [vmem:[#allocation3 + $0x18c] sm:$0xff]
        %v300 = vld [vmem:[#allocation3 + $0x194] sm:$0xff]
        %v301 = vld [vmem:[#allocation3 + $0x19c] sm:$0xff]
        %v302 = vld [vmem:[#allocation3 + $0x1a4] sm:$0xff]
        %v303 = vld [vmem:[#allocation3 + $0x1ac] sm:$0xf]
        %v304 = vld [vmem:[#allocation3 + $0x1b0] sm:$0xff]
        %v305 = vld [vmem:[#allocation3 + $0x1b8] sm:$0xff]
        %v306 = vld [vmem:[#allocation3 + $0x1c0] sm:$0xff]
        %v307 = vld [vmem:[#allocation3 + $0x1c8] sm:$0xff]
        %v308 = vld [vmem:[#allocation3 + $0x1d0] sm:$0xf]
        %v309 = vld [vmem:[#allocation3 + $0x1d4] sm:$0xff]
        %v310 = vld [vmem:[#allocation3 + $0x1dc] sm:$0xff]
        %v311 = vld [vmem:[#allocation3 + $0x1e4] sm:$0xff]
        %v312 = vld [vmem:[#allocation3 + $0x1ec] sm:$0xff]
        %v313 = vld [vmem:[#allocation3 + $0x1f4] sm:$0xf]
        %v314 = vld [vmem:[#allocation3 + $0x1f8] sm:$0xff]
        %v315 = vld [vmem:[#allocation3 + $0x200] sm:$0xff]
        %v316 = vld [vmem:[#allocation3 + $0x208] sm:$0xff]
        %v317 = vld [vmem:[#allocation3 + $0x210] sm:$0xff]
        %v318 = vld [vmem:[#allocation3 + $0x218] sm:$0xf]
        %v319 = vld [vmem:[#allocation3 + $0x21c] sm:$0xff]
        %v320 = vld [vmem:[#allocation3 + $0x224] sm:$0xff]
        %v321 = vld [vmem:[#allocation3 + $0x22c] sm:$0xff]
        %v322 = vld [vmem:[#allocation3 + $0x234] sm:$0xff]
        %v323 = vld [vmem:[#allocation3 + $0x23c] sm:$0xf]
        %v324 = vld [vmem:[#allocation3 + $0x240] sm:$0xff]
        %v325 = vld [vmem:[#allocation3 + $0x248] sm:$0xff]
        %v326 = vld [vmem:[#allocation3 + $0x250] sm:$0xff]
        %v327 = vld [vmem:[#allocation3 + $0x258] sm:$0xff]
        %v328 = vld [vmem:[#allocation3 + $0x260] sm:$0xf]
        %v329 = vld [vmem:[#allocation3 + $0x264] sm:$0xff]
        %v330 = vld [vmem:[#allocation3 + $0x26c] sm:$0xff]
        %v331 = vld [vmem:[#allocation3 + $0x274] sm:$0xff]
        %v332 = vld [vmem:[#allocation3 + $0x27c] sm:$0xff]
        %v333 = vld [vmem:[#allocation3 + $0x284] sm:$0xf]
        %v334 = vld [vmem:[#allocation3 + $0x288] sm:$0xff]
        %v335 = vld [vmem:[#allocation3 + $0x290] sm:$0xff]
        %v336 = vld [vmem:[#allocation3 + $0x298] sm:$0xff]
        %v337 = vld [vmem:[#allocation3 + $0x2a0] sm:$0xff]
        %v338 = vld [vmem:[#allocation3 + $0x2a8] sm:$0xf]
        %v339 = vld [vmem:[#allocation3 + $0x2ac] sm:$0xff]
        %v340 = vld [vmem:[#allocation3 + $0x2b4] sm:$0xff]
        %v341 = vld [vmem:[#allocation3 + $0x2bc] sm:$0xff]
        %v342 = vld [vmem:[#allocation3 + $0x2c4] sm:$0xff]
        %v343 = vld [vmem:[#allocation3 + $0x2cc] sm:$0xf]
        %v344 = vld [vmem:[#allocation3 + $0x2d0] sm:$0xff]
        %v345 = vld [vmem:[#allocation3 + $0x2d8] sm:$0xff]
        %v346 = vld [vmem:[#allocation3 + $0x2e0] sm:$0xff]
        %v347 = vld [vmem:[#allocation3 + $0x2e8] sm:$0xff]
        %v348 = vld [vmem:[#allocation3 + $0x2f0] sm:$0xf]
        %v349 = vld [vmem:[#allocation3 + $0x2f4] sm:$0xff]
        %v350 = vld [vmem:[#allocation3 + $0x2fc] sm:$0xff]
        %v351 = vld [vmem:[#allocation3 + $0x304] sm:$0xff]
        %v352 = vld [vmem:[#allocation3 + $0x30c] sm:$0xff]
        %v353 = vld [vmem:[#allocation3 + $0x314] sm:$0xf]
        %v354 = vld [vmem:[#allocation3 + $0x318] sm:$0xff]
        %v355 = vld [vmem:[#allocation3 + $0x320] sm:$0xff]
        %v356 = vld [vmem:[#allocation3 + $0x328] sm:$0xff]
        %v357 = vld [vmem:[#allocation3 + $0x330] sm:$0xff]
        %v358 = vld [vmem:[#allocation3 + $0x338] sm:$0xf]
        %v359 = vld [vmem:[#allocation3 + $0x33c] sm:$0xff]
        %v360 = vld [vmem:[#allocation3 + $0x344] sm:$0xff]
        %v361 = vld [vmem:[#allocation3 + $0x34c] sm:$0xff]
        %v362 = vld [vmem:[#allocation3 + $0x354] sm:$0xff]
        %v363 = vld [vmem:[#allocation3 + $0x35c] sm:$0xf]
        %v364 = vld [vmem:[#allocation3 + $0x360] sm:$0xff]
        %v365 = vld [vmem:[#allocation3 + $0x368] sm:$0xff]
        %v366 = vld [vmem:[#allocation3 + $0x370] sm:$0xff]
        %v367 = vld [vmem:[#allocation3 + $0x378] sm:$0xff]
        %v368 = vld [vmem:[#allocation3 + $0x380] sm:$0xf]
        %v369 = vld [vmem:[#allocation3 + $0x384] sm:$0xff]
        %v370 = vld [vmem:[#allocation3 + $0x38c] sm:$0xff]
        %v371 = vld [vmem:[#allocation3 + $0x394] sm:$0xff]
        %v372 = vld [vmem:[#allocation3 + $0x39c] sm:$0xff]
        %v373 = vld [vmem:[#allocation3 + $0x3a4] sm:$0xf]
        %v374 = vld [vmem:[#allocation3 + $0x3a8] sm:$0xff]
        %v375 = vld [vmem:[#allocation3 + $0x3b0] sm:$0xff]
        %v376 = vld [vmem:[#allocation3 + $0x3b8] sm:$0xff]
        %v377 = vld [vmem:[#allocation3 + $0x3c0] sm:$0xff]
        %v378 = vld [vmem:[#allocation3 + $0x3c8] sm:$0xf]
        %v379 = vld [vmem:[#allocation3 + $0x3cc] sm:$0xff]
        %v380 = vld [vmem:[#allocation3 + $0x3d4] sm:$0xff]
        %v381 = vld [vmem:[#allocation3 + $0x3dc] sm:$0xff]
        %v382 = vld [vmem:[#allocation3 + $0x3e4] sm:$0xff]
        %v383 = vld [vmem:[#allocation3 + $0x3ec] sm:$0xf]
        %v384 = vld [vmem:[#allocation3 + $0x3f0] sm:$0xff]
        %v385 = vld [vmem:[#allocation3 + $0x3f8] sm:$0xff]
        %v386 = vld [vmem:[#allocation3 + $0x400] sm:$0xff]
        %v387 = vld [vmem:[#allocation3 + $0x408] sm:$0xff]
        %v388 = vld [vmem:[#allocation3 + $0x410] sm:$0xf]
        %v389 = vld [vmem:[#allocation3 + $0x414] sm:$0xff]
        %v390 = vld [vmem:[#allocation3 + $0x41c] sm:$0xff]
        %v391 = vld [vmem:[#allocation3 + $0x424] sm:$0xff]
        %v392 = vld [vmem:[#allocation3 + $0x42c] sm:$0xff]
        %v393 = vld [vmem:[#allocation3 + $0x434] sm:$0xf]
        %v394 = vld [vmem:[#allocation3 + $0x438] sm:$0xff]
        %v395 = vld [vmem:[#allocation3 + $0x440] sm:$0xff]
        %v396 = vld [vmem:[#allocation3 + $0x448] sm:$0xff]
        %v397 = vld [vmem:[#allocation3 + $0x450] sm:$0xff]
        %v398 = vld [vmem:[#allocation3 + $0x458] sm:$0xf]
        %v399 = vld [vmem:[#allocation3 + $0x45c] sm:$0xff]
        %v400 = vld [vmem:[#allocation3 + $0x464] sm:$0xff]
        %v401 = vld [vmem:[#allocation3 + $0x46c] sm:$0xff]
        %v402 = vld [vmem:[#allocation3 + $0x474] sm:$0xff]
        %v403 = vld [vmem:[#allocation3 + $0x47c] sm:$0xf]
        %v404 = vld [vmem:[#allocation3 + $0x480] sm:$0xff]
        %v405 = vld [vmem:[#allocation3 + $0x488] sm:$0xff]
        %v406 = vld [vmem:[#allocation3 + $0x490] sm:$0xff]
        %v407 = vld [vmem:[#allocation3 + $0x498] sm:$0xff]
        %v408 = vld [vmem:[#allocation3 + $0x4a0] sm:$0xf]
        %v409 = vld [vmem:[#allocation3 + $0x4a4] sm:$0xff]
        %v410 = vld [vmem:[#allocation3 + $0x4ac] sm:$0xff]
        %v411 = vld [vmem:[#allocation3 + $0x4b4] sm:$0xff]
        %v412 = vld [vmem:[#allocation3 + $0x4bc] sm:$0xff]
        %v413 = vld [vmem:[#allocation3 + $0x4c4] sm:$0xf]
        %v414 = vld [vmem:[#allocation3 + $0x4c8] sm:$0xff]
        %v415 = vld [vmem:[#allocation3 + $0x4d0] sm:$0xff]
        %v416 = vld [vmem:[#allocation3 + $0x4d8] sm:$0xff]
        %v417 = vld [vmem:[#allocation3 + $0x4e0] sm:$0xff]
        %v418 = vld [vmem:[#allocation3 + $0x4e8] sm:$0xf]
        %v419 = vld [vmem:[#allocation3 + $0x4ec] sm:$0xff]
        %v420 = vld [vmem:[#allocation3 + $0x4f4] sm:$0xff]
        %v421 = vld [vmem:[#allocation3 + $0x4fc] sm:$0xff]
        %v422 = vld [vmem:[#allocation3 + $0x504] sm:$0xff]
        %v423 = vld [vmem:[#allocation3 + $0x50c] sm:$0xf]
        %v424 = vld [vmem:[#allocation3 + $0x510] sm:$0xff]
        %v425 = vld [vmem:[#allocation3 + $0x518] sm:$0xff]
        %v426 = vld [vmem:[#allocation3 + $0x520] sm:$0xff]
        %v427 = vld [vmem:[#allocation3 + $0x528] sm:$0xff]
        %v428 = vld [vmem:[#allocation3 + $0x530] sm:$0xf]
        %v429 = vld [vmem:[#allocation3 + $0x534] sm:$0xff]
        %v430 = vld [vmem:[#allocation3 + $0x53c] sm:$0xff]
        %v431 = vld [vmem:[#allocation3 + $0x544] sm:$0xff]
        %v432 = vld [vmem:[#allocation3 + $0x54c] sm:$0xff]
        %v433 = vld [vmem:[#allocation3 + $0x554] sm:$0xf]
        %v434 = vld [vmem:[#allocation3 + $0x558] sm:$0xff]
        %v435 = vld [vmem:[#allocation3 + $0x560] sm:$0xff]
        %v436 = vld [vmem:[#allocation3 + $0x568] sm:$0xff]
        %v437 = vld [vmem:[#allocation3 + $0x570] sm:$0xff]
        %v438 = vld [vmem:[#allocation3 + $0x578] sm:$0xf]
        %v439 = vld [vmem:[#allocation3 + $0x57c] sm:$0xff]
        %v440 = vld [vmem:[#allocation3 + $0x584] sm:$0xff]
        %v441 = vld [vmem:[#allocation3 + $0x58c] sm:$0xff]
        %v442 = vld [vmem:[#allocation3 + $0x594] sm:$0xff]
        %v443 = vld [vmem:[#allocation3 + $0x59c] sm:$0xf]
        %v444 = vld [vmem:[#allocation3 + $0x5a0] sm:$0xff]
        %v445 = vld [vmem:[#allocation3 + $0x5a8] sm:$0xff]
        %v446 = vld [vmem:[#allocation3 + $0x5b0] sm:$0xff]
        %v447 = vld [vmem:[#allocation3 + $0x5b8] sm:$0xff]
        %v448 = vld [vmem:[#allocation3 + $0x5c0] sm:$0xf]
        %v449 = vld [vmem:[#allocation3 + $0x5c4] sm:$0xff]
        %v450 = vld [vmem:[#allocation3 + $0x5cc] sm:$0xff]
        %v451 = vld [vmem:[#allocation3 + $0x5d4] sm:$0xff]
        %v452 = vld [vmem:[#allocation3 + $0x5dc] sm:$0xff]
        %v453 = vld [vmem:[#allocation3 + $0x5e4] sm:$0xf]
        %v454 = vld [vmem:[#allocation3 + $0x5e8] sm:$0xff]
        %v455 = vld [vmem:[#allocation3 + $0x5f0] sm:$0xff]
        %v456 = vld [vmem:[#allocation3 + $0x5f8] sm:$0xff]
        %v457 = vld [vmem:[#allocation3 + $0x600] sm:$0xff]
        %v458 = vld [vmem:[#allocation3 + $0x608] sm:$0xf]
        %v459 = vld [vmem:[#allocation3 + $0x60c] sm:$0xff]
        %v460 = vld [vmem:[#allocation3 + $0x614] sm:$0xff]
        %v461 = vld [vmem:[#allocation3 + $0x61c] sm:$0xff]
        %v462 = vld [vmem:[#allocation3 + $0x624] sm:$0xff]
        %v463 = vld [vmem:[#allocation3 + $0x62c] sm:$0xf]
        %v464 = vld [vmem:[#allocation3 + $0x630] sm:$0xff]
        %v465 = vld [vmem:[#allocation3 + $0x638] sm:$0xff]
        %v466 = vld [vmem:[#allocation3 + $0x640] sm:$0xff]
        %v467 = vld [vmem:[#allocation3 + $0x648] sm:$0xff]
        %v468 = vld [vmem:[#allocation3 + $0x650] sm:$0xf]
        %v469 = vld [vmem:[#allocation3 + $0x654] sm:$0xff]
        %v470 = vld [vmem:[#allocation3 + $0x65c] sm:$0xff]
        %v471 = vld [vmem:[#allocation3 + $0x664] sm:$0xff]
        %v472 = vld [vmem:[#allocation3 + $0x66c] sm:$0xff]
        %v473 = vld [vmem:[#allocation3 + $0x674] sm:$0xf]
        %v474 = vld [vmem:[#allocation3 + $0x678] sm:$0xff]
        %v475 = vld [vmem:[#allocation3 + $0x680] sm:$0xff]
        %v476 = vld [vmem:[#allocation3 + $0x688] sm:$0xff]
        %v477 = vld [vmem:[#allocation3 + $0x690] sm:$0xff]
        %v478 = vld [vmem:[#allocation3 + $0x698] sm:$0xf]
        %v479 = vld [vmem:[#allocation3 + $0x69c] sm:$0xff]
        %v480 = vld [vmem:[#allocation3 + $0x6a4] sm:$0xff]
        %v481 = vld [vmem:[#allocation3 + $0x6ac] sm:$0xff]
        %v482 = vld [vmem:[#allocation3 + $0x6b4] sm:$0xff]
        %v483 = vld [vmem:[#allocation3 + $0x6bc] sm:$0xf]
        %v516 = vunpack.c.l.b16 %v212
        %v517 = vunpack.c.h.b16 %v212
        %v518 = vunpack.c.l.b16 %v213
        %v519 = vunpack.c.l.b16 %v214
        %v520 = vunpack.c.h.b16 %v214
        %v521 = vunpack.c.l.b16 %v215
        %v522 = vunpack.c.l.b16 %v216
        %v523 = vunpack.c.h.b16 %v216
        %v524 = vunpack.c.l.b16 %v217
        %v525 = vunpack.c.l.b16 %v218
        %v526 = vunpack.c.h.b16 %v218
        %v527 = vunpack.c.l.b16 %v219
        %v528 = vunpack.c.l.b16 %v220
        %v529 = vunpack.c.h.b16 %v220
        %v530 = vunpack.c.l.b16 %v221
        %v531 = vunpack.c.l.b16 %v222
        %v532 = vunpack.c.h.b16 %v222
        %v533 = vunpack.c.l.b16 %v223
        %v534 = vunpack.c.l.b16 %v224
        %v535 = vunpack.c.h.b16 %v224
        %v536 = vunpack.c.l.b16 %v225
        %v537 = vunpack.c.l.b16 %v226
        %v538 = vunpack.c.h.b16 %v226
        %v539 = vunpack.c.l.b16 %v227
        %v540 = vunpack.c.l.b16 %v228
        %v541 = vunpack.c.h.b16 %v228
        %v542 = vunpack.c.l.b16 %v229
        %v543 = vunpack.c.l.b16 %v230
        %v544 = vunpack.c.h.b16 %v230
        %v545 = vunpack.c.l.b16 %v231
        %v546 = vunpack.c.l.b16 %v232
        %v547 = vunpack.c.h.b16 %v232
        %v548 = vunpack.c.l.b16 %v233
        %v549 = vunpack.c.l.b16 %v234
        %v550 = vunpack.c.h.b16 %v234
        %v551 = vunpack.c.l.b16 %v235
        %v552 = vunpack.c.l.b16 %v236
        %v553 = vunpack.c.h.b16 %v236
        %v554 = vunpack.c.l.b16 %v237
        %v555 = vunpack.c.l.b16 %v238
        %v556 = vunpack.c.h.b16 %v238
        %v557 = vunpack.c.l.b16 %v239
        %v558 = vunpack.c.l.b16 %v240
        %v559 = vunpack.c.h.b16 %v240
        %v560 = vunpack.c.l.b16 %v241
        %v561 = vunpack.c.l.b16 %v242
        %v562 = vunpack.c.h.b16 %v242
        %v563 = vunpack.c.l.b16 %v243
        %v564 = vpack.c.b16 %v519, %v516
        %v565 = vpack.c.b16 %v520, %v517
        %v566 = vpack.c.b16 %v521, %v518
        %v567 = vpack.c.b16 %v525, %v522
        %v568 = vpack.c.b16 %v526, %v523
        %v569 = vpack.c.b16 %v527, %v524
        %v570 = vpack.c.b16 %v531, %v528
        %v571 = vpack.c.b16 %v532, %v529
        %v572 = vpack.c.b16 %v533, %v530
        %v573 = vpack.c.b16 %v537, %v534
        %v574 = vpack.c.b16 %v538, %v535
        %v575 = vpack.c.b16 %v539, %v536
        %v576 = vpack.c.b16 %v543, %v540
        %v577 = vpack.c.b16 %v544, %v541
        %v578 = vpack.c.b16 %v545, %v542
        %v579 = vpack.c.b16 %v549, %v546
        %v580 = vpack.c.b16 %v550, %v547
        %v581 = vpack.c.b16 %v551, %v548
        %v582 = vpack.c.b16 %v555, %v552
        %v583 = vpack.c.b16 %v556, %v553
        %v584 = vpack.c.b16 %v557, %v554
        %v585 = vpack.c.b16 %v561, %v558
        %v586 = vpack.c.b16 %v562, %v559
        %v587 = vpack.c.b16 %v563, %v560
        %v852 = vunpack.c.l.b16 %v244
        %v853 = vunpack.c.h.b16 %v244
        %v854 = vunpack.c.l.b16 %v245
        %v855 = vunpack.c.h.b16 %v245
        %v856 = vunpack.c.l.b16 %v246
        %v857 = vunpack.c.h.b16 %v246
        %v858 = vunpack.c.l.b16 %v247
        %v859 = vunpack.c.h.b16 %v247
        %v860 = vunpack.c.l.b16 %v248
        %v861 = vunpack.c.l.b16 %v249
        %v862 = vunpack.c.h.b16 %v249
        %v863 = vunpack.c.l.b16 %v250
        %v864 = vunpack.c.h.b16 %v250
        %v865 = vunpack.c.l.b16 %v251
        %v866 = vunpack.c.h.b16 %v251
        %v867 = vunpack.c.l.b16 %v252
        %v868 = vunpack.c.h.b16 %v252
        %v869 = vunpack.c.l.b16 %v253
        %v870 = vunpack.c.l.b16 %v254
        %v871 = vunpack.c.h.b16 %v254
        %v872 = vunpack.c.l.b16 %v255
        %v873 = vunpack.c.h.b16 %v255
        %v874 = vunpack.c.l.b16 %v256
        %v875 = vunpack.c.h.b16 %v256
        %v876 = vunpack.c.l.b16 %v257
        %v877 = vunpack.c.h.b16 %v257
        %v878 = vunpack.c.l.b16 %v258
        %v879 = vunpack.c.l.b16 %v259
        %v880 = vunpack.c.h.b16 %v259
        %v881 = vunpack.c.l.b16 %v260
        %v882 = vunpack.c.h.b16 %v260
        %v883 = vunpack.c.l.b16 %v261
        %v884 = vunpack.c.h.b16 %v261
        %v885 = vunpack.c.l.b16 %v262
        %v886 = vunpack.c.h.b16 %v262
        %v887 = vunpack.c.l.b16 %v263
        %v888 = vunpack.c.l.b16 %v264
        %v889 = vunpack.c.h.b16 %v264
        %v890 = vunpack.c.l.b16 %v265
        %v891 = vunpack.c.h.b16 %v265
        %v892 = vunpack.c.l.b16 %v266
        %v893 = vunpack.c.h.b16 %v266
        %v894 = vunpack.c.l.b16 %v267
        %v895 = vunpack.c.h.b16 %v267
        %v896 = vunpack.c.l.b16 %v268
        %v897 = vunpack.c.l.b16 %v269
        %v898 = vunpack.c.h.b16 %v269
        %v899 = vunpack.c.l.b16 %v270
        %v900 = vunpack.c.h.b16 %v270
        %v901 = vunpack.c.l.b16 %v271
        %v902 = vunpack.c.h.b16 %v271
        %v903 = vunpack.c.l.b16 %v272
        %v904 = vunpack.c.h.b16 %v272
        %v905 = vunpack.c.l.b16 %v273
        %v906 = vunpack.c.l.b16 %v274
        %v907 = vunpack.c.h.b16 %v274
        %v908 = vunpack.c.l.b16 %v275
        %v909 = vunpack.c.h.b16 %v275
        %v910 = vunpack.c.l.b16 %v276
        %v911 = vunpack.c.h.b16 %v276
        %v912 = vunpack.c.l.b16 %v277
        %v913 = vunpack.c.h.b16 %v277
        %v914 = vunpack.c.l.b16 %v278
        %v915 = vunpack.c.l.b16 %v279
        %v916 = vunpack.c.h.b16 %v279
        %v917 = vunpack.c.l.b16 %v280
        %v918 = vunpack.c.h.b16 %v280
        %v919 = vunpack.c.l.b16 %v281
        %v920 = vunpack.c.h.b16 %v281
        %v921 = vunpack.c.l.b16 %v282
        %v922 = vunpack.c.h.b16 %v282
        %v923 = vunpack.c.l.b16 %v283
        %v924 = vunpack.c.l.b16 %v284
        %v925 = vunpack.c.h.b16 %v284
        %v926 = vunpack.c.l.b16 %v285
        %v927 = vunpack.c.h.b16 %v285
        %v928 = vunpack.c.l.b16 %v286
        %v929 = vunpack.c.h.b16 %v286
        %v930 = vunpack.c.l.b16 %v287
        %v931 = vunpack.c.h.b16 %v287
        %v932 = vunpack.c.l.b16 %v288
        %v933 = vunpack.c.l.b16 %v289
        %v934 = vunpack.c.h.b16 %v289
        %v935 = vunpack.c.l.b16 %v290
        %v936 = vunpack.c.h.b16 %v290
        %v937 = vunpack.c.l.b16 %v291
        %v938 = vunpack.c.h.b16 %v291
        %v939 = vunpack.c.l.b16 %v292
        %v940 = vunpack.c.h.b16 %v292
        %v941 = vunpack.c.l.b16 %v293
        %v942 = vunpack.c.l.b16 %v294
        %v943 = vunpack.c.h.b16 %v294
        %v944 = vunpack.c.l.b16 %v295
        %v945 = vunpack.c.h.b16 %v295
        %v946 = vunpack.c.l.b16 %v296
        %v947 = vunpack.c.h.b16 %v296
        %v948 = vunpack.c.l.b16 %v297
        %v949 = vunpack.c.h.b16 %v297
        %v950 = vunpack.c.l.b16 %v298
        %v951 = vunpack.c.l.b16 %v299
        %v952 = vunpack.c.h.b16 %v299
        %v953 = vunpack.c.l.b16 %v300
        %v954 = vunpack.c.h.b16 %v300
        %v955 = vunpack.c.l.b16 %v301
        %v956 = vunpack.c.h.b16 %v301
        %v957 = vunpack.c.l.b16 %v302
        %v958 = vunpack.c.h.b16 %v302
        %v959 = vunpack.c.l.b16 %v303
        %v960 = vunpack.c.l.b16 %v304
        %v961 = vunpack.c.h.b16 %v304
        %v962 = vunpack.c.l.b16 %v305
        %v963 = vunpack.c.h.b16 %v305
        %v964 = vunpack.c.l.b16 %v306
        %v965 = vunpack.c.h.b16 %v306
        %v966 = vunpack.c.l.b16 %v307
        %v967 = vunpack.c.h.b16 %v307
        %v968 = vunpack.c.l.b16 %v308
        %v969 = vunpack.c.l.b16 %v309
        %v970 = vunpack.c.h.b16 %v309
        %v971 = vunpack.c.l.b16 %v310
        %v972 = vunpack.c.h.b16 %v310
        %v973 = vunpack.c.l.b16 %v311
        %v974 = vunpack.c.h.b16 %v311
        %v975 = vunpack.c.l.b16 %v312
        %v976 = vunpack.c.h.b16 %v312
        %v977 = vunpack.c.l.b16 %v313
        %v978 = vunpack.c.l.b16 %v314
        %v979 = vunpack.c.h.b16 %v314
        %v980 = vunpack.c.l.b16 %v315
        %v981 = vunpack.c.h.b16 %v315
        %v982 = vunpack.c.l.b16 %v316
        %v983 = vunpack.c.h.b16 %v316
        %v984 = vunpack.c.l.b16 %v317
        %v985 = vunpack.c.h.b16 %v317
        %v986 = vunpack.c.l.b16 %v318
        %v987 = vunpack.c.l.b16 %v319
        %v988 = vunpack.c.h.b16 %v319
        %v989 = vunpack.c.l.b16 %v320
        %v990 = vunpack.c.h.b16 %v320
        %v991 = vunpack.c.l.b16 %v321
        %v992 = vunpack.c.h.b16 %v321
        %v993 = vunpack.c.l.b16 %v322
        %v994 = vunpack.c.h.b16 %v322
        %v995 = vunpack.c.l.b16 %v323
        %v996 = vunpack.c.l.b16 %v324
        %v997 = vunpack.c.h.b16 %v324
        %v998 = vunpack.c.l.b16 %v325
        %v999 = vunpack.c.h.b16 %v325
        %v1000 = vunpack.c.l.b16 %v326
        %v1001 = vunpack.c.h.b16 %v326
        %v1002 = vunpack.c.l.b16 %v327
        %v1003 = vunpack.c.h.b16 %v327
        %v1004 = vunpack.c.l.b16 %v328
        %v1005 = vunpack.c.l.b16 %v329
        %v1006 = vunpack.c.h.b16 %v329
        %v1007 = vunpack.c.l.b16 %v330
        %v1008 = vunpack.c.h.b16 %v330
        %v1009 = vunpack.c.l.b16 %v331
        %v1010 = vunpack.c.h.b16 %v331
        %v1011 = vunpack.c.l.b16 %v332
        %v1012 = vunpack.c.h.b16 %v332
        %v1013 = vunpack.c.l.b16 %v333
        %v1014 = vunpack.c.l.b16 %v334
        %v1015 = vunpack.c.h.b16 %v334
        %v1016 = vunpack.c.l.b16 %v335
        %v1017 = vunpack.c.h.b16 %v335
        %v1018 = vunpack.c.l.b16 %v336
        %v1019 = vunpack.c.h.b16 %v336
        %v1020 = vunpack.c.l.b16 %v337
        %v1021 = vunpack.c.h.b16 %v337
        %v1022 = vunpack.c.l.b16 %v338
        %v1023 = vunpack.c.l.b16 %v339
        %v1024 = vunpack.c.h.b16 %v339
        %v1025 = vunpack.c.l.b16 %v340
        %v1026 = vunpack.c.h.b16 %v340
        %v1027 = vunpack.c.l.b16 %v341
        %v1028 = vunpack.c.h.b16 %v341
        %v1029 = vunpack.c.l.b16 %v342
        %v1030 = vunpack.c.h.b16 %v342
        %v1031 = vunpack.c.l.b16 %v343
        %v1032 = vunpack.c.l.b16 %v344
        %v1033 = vunpack.c.h.b16 %v344
        %v1034 = vunpack.c.l.b16 %v345
        %v1035 = vunpack.c.h.b16 %v345
        %v1036 = vunpack.c.l.b16 %v346
        %v1037 = vunpack.c.h.b16 %v346
        %v1038 = vunpack.c.l.b16 %v347
        %v1039 = vunpack.c.h.b16 %v347
        %v1040 = vunpack.c.l.b16 %v348
        %v1041 = vunpack.c.l.b16 %v349
        %v1042 = vunpack.c.h.b16 %v349
        %v1043 = vunpack.c.l.b16 %v350
        %v1044 = vunpack.c.h.b16 %v350
        %v1045 = vunpack.c.l.b16 %v351
        %v1046 = vunpack.c.h.b16 %v351
        %v1047 = vunpack.c.l.b16 %v352
        %v1048 = vunpack.c.h.b16 %v352
        %v1049 = vunpack.c.l.b16 %v353
        %v1050 = vunpack.c.l.b16 %v354
        %v1051 = vunpack.c.h.b16 %v354
        %v1052 = vunpack.c.l.b16 %v355
        %v1053 = vunpack.c.h.b16 %v355
        %v1054 = vunpack.c.l.b16 %v356
        %v1055 = vunpack.c.h.b16 %v356
        %v1056 = vunpack.c.l.b16 %v357
        %v1057 = vunpack.c.h.b16 %v357
        %v1058 = vunpack.c.l.b16 %v358
        %v1059 = vunpack.c.l.b16 %v359
        %v1060 = vunpack.c.h.b16 %v359
        %v1061 = vunpack.c.l.b16 %v360
        %v1062 = vunpack.c.h.b16 %v360
        %v1063 = vunpack.c.l.b16 %v361
        %v1064 = vunpack.c.h.b16 %v361
        %v1065 = vunpack.c.l.b16 %v362
        %v1066 = vunpack.c.h.b16 %v362
        %v1067 = vunpack.c.l.b16 %v363
        %v1068 = vunpack.c.l.b16 %v364
        %v1069 = vunpack.c.h.b16 %v364
        %v1070 = vunpack.c.l.b16 %v365
        %v1071 = vunpack.c.h.b16 %v365
        %v1072 = vunpack.c.l.b16 %v366
        %v1073 = vunpack.c.h.b16 %v366
        %v1074 = vunpack.c.l.b16 %v367
        %v1075 = vunpack.c.h.b16 %v367
        %v1076 = vunpack.c.l.b16 %v368
        %v1077 = vunpack.c.l.b16 %v369
        %v1078 = vunpack.c.h.b16 %v369
        %v1079 = vunpack.c.l.b16 %v370
        %v1080 = vunpack.c.h.b16 %v370
        %v1081 = vunpack.c.l.b16 %v371
        %v1082 = vunpack.c.h.b16 %v371
        %v1083 = vunpack.c.l.b16 %v372
        %v1084 = vunpack.c.h.b16 %v372
        %v1085 = vunpack.c.l.b16 %v373
        %v1086 = vunpack.c.l.b16 %v374
        %v1087 = vunpack.c.h.b16 %v374
        %v1088 = vunpack.c.l.b16 %v375
        %v1089 = vunpack.c.h.b16 %v375
        %v1090 = vunpack.c.l.b16 %v376
        %v1091 = vunpack.c.h.b16 %v376
        %v1092 = vunpack.c.l.b16 %v377
        %v1093 = vunpack.c.h.b16 %v377
        %v1094 = vunpack.c.l.b16 %v378
        %v1095 = vunpack.c.l.b16 %v379
        %v1096 = vunpack.c.h.b16 %v379
        %v1097 = vunpack.c.l.b16 %v380
        %v1098 = vunpack.c.h.b16 %v380
        %v1099 = vunpack.c.l.b16 %v381
        %v1100 = vunpack.c.h.b16 %v381
        %v1101 = vunpack.c.l.b16 %v382
        %v1102 = vunpack.c.h.b16 %v382
        %v1103 = vunpack.c.l.b16 %v383
        %v1104 = vunpack.c.l.b16 %v384
        %v1105 = vunpack.c.h.b16 %v384
        %v1106 = vunpack.c.l.b16 %v385
        %v1107 = vunpack.c.h.b16 %v385
        %v1108 = vunpack.c.l.b16 %v386
        %v1109 = vunpack.c.h.b16 %v386
        %v1110 = vunpack.c.l.b16 %v387
        %v1111 = vunpack.c.h.b16 %v387
        %v1112 = vunpack.c.l.b16 %v388
        %v1113 = vunpack.c.l.b16 %v389
        %v1114 = vunpack.c.h.b16 %v389
        %v1115 = vunpack.c.l.b16 %v390
        %v1116 = vunpack.c.h.b16 %v390
        %v1117 = vunpack.c.l.b16 %v391
        %v1118 = vunpack.c.h.b16 %v391
        %v1119 = vunpack.c.l.b16 %v392
        %v1120 = vunpack.c.h.b16 %v392
        %v1121 = vunpack.c.l.b16 %v393
        %v1122 = vunpack.c.l.b16 %v394
        %v1123 = vunpack.c.h.b16 %v394
        %v1124 = vunpack.c.l.b16 %v395
        %v1125 = vunpack.c.h.b16 %v395
        %v1126 = vunpack.c.l.b16 %v396
        %v1127 = vunpack.c.h.b16 %v396
        %v1128 = vunpack.c.l.b16 %v397
        %v1129 = vunpack.c.h.b16 %v397
        %v1130 = vunpack.c.l.b16 %v398
        %v1131 = vunpack.c.l.b16 %v399
        %v1132 = vunpack.c.h.b16 %v399
        %v1133 = vunpack.c.l.b16 %v400
        %v1134 = vunpack.c.h.b16 %v400
        %v1135 = vunpack.c.l.b16 %v401
        %v1136 = vunpack.c.h.b16 %v401
        %v1137 = vunpack.c.l.b16 %v402
        %v1138 = vunpack.c.h.b16 %v402
        %v1139 = vunpack.c.l.b16 %v403
        %v1140 = vunpack.c.l.b16 %v404
        %v1141 = vunpack.c.h.b16 %v404
        %v1142 = vunpack.c.l.b16 %v405
        %v1143 = vunpack.c.h.b16 %v405
        %v1144 = vunpack.c.l.b16 %v406
        %v1145 = vunpack.c.h.b16 %v406
        %v1146 = vunpack.c.l.b16 %v407
        %v1147 = vunpack.c.h.b16 %v407
        %v1148 = vunpack.c.l.b16 %v408
        %v1149 = vunpack.c.l.b16 %v409
        %v1150 = vunpack.c.h.b16 %v409
        %v1151 = vunpack.c.l.b16 %v410
        %v1152 = vunpack.c.h.b16 %v410
        %v1153 = vunpack.c.l.b16 %v411
        %v1154 = vunpack.c.h.b16 %v411
        %v1155 = vunpack.c.l.b16 %v412
        %v1156 = vunpack.c.h.b16 %v412
        %v1157 = vunpack.c.l.b16 %v413
        %v1158 = vunpack.c.l.b16 %v414
        %v1159 = vunpack.c.h.b16 %v414
        %v1160 = vunpack.c.l.b16 %v415
        %v1161 = vunpack.c.h.b16 %v415
        %v1162 = vunpack.c.l.b16 %v416
        %v1163 = vunpack.c.h.b16 %v416
        %v1164 = vunpack.c.l.b16 %v417
        %v1165 = vunpack.c.h.b16 %v417
        %v1166 = vunpack.c.l.b16 %v418
        %v1167 = vunpack.c.l.b16 %v419
        %v1168 = vunpack.c.h.b16 %v419
        %v1169 = vunpack.c.l.b16 %v420
        %v1170 = vunpack.c.h.b16 %v420
        %v1171 = vunpack.c.l.b16 %v421
        %v1172 = vunpack.c.h.b16 %v421
        %v1173 = vunpack.c.l.b16 %v422
        %v1174 = vunpack.c.h.b16 %v422
        %v1175 = vunpack.c.l.b16 %v423
        %v1176 = vunpack.c.l.b16 %v424
        %v1177 = vunpack.c.h.b16 %v424
        %v1178 = vunpack.c.l.b16 %v425
        %v1179 = vunpack.c.h.b16 %v425
        %v1180 = vunpack.c.l.b16 %v426
        %v1181 = vunpack.c.h.b16 %v426
        %v1182 = vunpack.c.l.b16 %v427
        %v1183 = vunpack.c.h.b16 %v427
        %v1184 = vunpack.c.l.b16 %v428
        %v1185 = vunpack.c.l.b16 %v429
        %v1186 = vunpack.c.h.b16 %v429
        %v1187 = vunpack.c.l.b16 %v430
        %v1188 = vunpack.c.h.b16 %v430
        %v1189 = vunpack.c.l.b16 %v431
        %v1190 = vunpack.c.h.b16 %v431
        %v1191 = vunpack.c.l.b16 %v432
        %v1192 = vunpack.c.h.b16 %v432
        %v1193 = vunpack.c.l.b16 %v433
        %v1194 = vunpack.c.l.b16 %v434
        %v1195 = vunpack.c.h.b16 %v434
        %v1196 = vunpack.c.l.b16 %v435
        %v1197 = vunpack.c.h.b16 %v435
        %v1198 = vunpack.c.l.b16 %v436
        %v1199 = vunpack.c.h.b16 %v436
        %v1200 = vunpack.c.l.b16 %v437
        %v1201 = vunpack.c.h.b16 %v437
        %v1202 = vunpack.c.l.b16 %v438
        %v1203 = vunpack.c.l.b16 %v439
        %v1204 = vunpack.c.h.b16 %v439
        %v1205 = vunpack.c.l.b16 %v440
        %v1206 = vunpack.c.h.b16 %v440
        %v1207 = vunpack.c.l.b16 %v441
        %v1208 = vunpack.c.h.b16 %v441
        %v1209 = vunpack.c.l.b16 %v442
        %v1210 = vunpack.c.h.b16 %v442
        %v1211 = vunpack.c.l.b16 %v443
        %v1212 = vunpack.c.l.b16 %v444
        %v1213 = vunpack.c.h.b16 %v444
        %v1214 = vunpack.c.l.b16 %v445
        %v1215 = vunpack.c.h.b16 %v445
        %v1216 = vunpack.c.l.b16 %v446
        %v1217 = vunpack.c.h.b16 %v446
        %v1218 = vunpack.c.l.b16 %v447
        %v1219 = vunpack.c.h.b16 %v447
        %v1220 = vunpack.c.l.b16 %v448
        %v1221 = vunpack.c.l.b16 %v449
        %v1222 = vunpack.c.h.b16 %v449
        %v1223 = vunpack.c.l.b16 %v450
        %v1224 = vunpack.c.h.b16 %v450
        %v1225 = vunpack.c.l.b16 %v451
        %v1226 = vunpack.c.h.b16 %v451
        %v1227 = vunpack.c.l.b16 %v452
        %v1228 = vunpack.c.h.b16 %v452
        %v1229 = vunpack.c.l.b16 %v453
        %v1230 = vunpack.c.l.b16 %v454
        %v1231 = vunpack.c.h.b16 %v454
        %v1232 = vunpack.c.l.b16 %v455
        %v1233 = vunpack.c.h.b16 %v455
        %v1234 = vunpack.c.l.b16 %v456
        %v1235 = vunpack.c.h.b16 %v456
        %v1236 = vunpack.c.l.b16 %v457
        %v1237 = vunpack.c.h.b16 %v457
        %v1238 = vunpack.c.l.b16 %v458
        %v1239 = vunpack.c.l.b16 %v459
        %v1240 = vunpack.c.h.b16 %v459
        %v1241 = vunpack.c.l.b16 %v460
        %v1242 = vunpack.c.h.b16 %v460
        %v1243 = vunpack.c.l.b16 %v461
        %v1244 = vunpack.c.h.b16 %v461
        %v1245 = vunpack.c.l.b16 %v462
        %v1246 = vunpack.c.h.b16 %v462
        %v1247 = vunpack.c.l.b16 %v463
        %v1248 = vunpack.c.l.b16 %v464
        %v1249 = vunpack.c.h.b16 %v464
        %v1250 = vunpack.c.l.b16 %v465
        %v1251 = vunpack.c.h.b16 %v465
        %v1252 = vunpack.c.l.b16 %v466
        %v1253 = vunpack.c.h.b16 %v466
        %v1254 = vunpack.c.l.b16 %v467
        %v1255 = vunpack.c.h.b16 %v467
        %v1256 = vunpack.c.l.b16 %v468
        %v1257 = vunpack.c.l.b16 %v469
        %v1258 = vunpack.c.h.b16 %v469
        %v1259 = vunpack.c.l.b16 %v470
        %v1260 = vunpack.c.h.b16 %v470
        %v1261 = vunpack.c.l.b16 %v471
        %v1262 = vunpack.c.h.b16 %v471
        %v1263 = vunpack.c.l.b16 %v472
        %v1264 = vunpack.c.h.b16 %v472
        %v1265 = vunpack.c.l.b16 %v473
        %v1266 = vunpack.c.l.b16 %v474
        %v1267 = vunpack.c.h.b16 %v474
        %v1268 = vunpack.c.l.b16 %v475
        %v1269 = vunpack.c.h.b16 %v475
        %v1270 = vunpack.c.l.b16 %v476
        %v1271 = vunpack.c.h.b16 %v476
        %v1272 = vunpack.c.l.b16 %v477
        %v1273 = vunpack.c.h.b16 %v477
        %v1274 = vunpack.c.l.b16 %v478
        %v1275 = vunpack.c.l.b16 %v479
        %v1276 = vunpack.c.h.b16 %v479
        %v1277 = vunpack.c.l.b16 %v480
        %v1278 = vunpack.c.h.b16 %v480
        %v1279 = vunpack.c.l.b16 %v481
        %v1280 = vunpack.c.h.b16 %v481
        %v1281 = vunpack.c.l.b16 %v482
        %v1282 = vunpack.c.h.b16 %v482
        %v1283 = vunpack.c.l.b16 %v483
        %v1284 = vpack.c.b16 %v861, %v852
        %v1285 = vpack.c.b16 %v862, %v853
        %v1286 = vpack.c.b16 %v863, %v854
        %v1287 = vpack.c.b16 %v864, %v855
        %v1288 = vpack.c.b16 %v865, %v856
        %v1289 = vpack.c.b16 %v866, %v857
        %v1290 = vpack.c.b16 %v867, %v858
        %v1291 = vpack.c.b16 %v868, %v859
        %v1292 = vpack.c.b16 %v869, %v860
        %v1293 = vpack.c.b16 %v879, %v870
        %v1294 = vpack.c.b16 %v880, %v871
        %v1295 = vpack.c.b16 %v881, %v872
        %v1296 = vpack.c.b16 %v882, %v873
        %v1297 = vpack.c.b16 %v883, %v874
        %v1298 = vpack.c.b16 %v884, %v875
        %v1299 = vpack.c.b16 %v885, %v876
        %v1300 = vpack.c.b16 %v886, %v877
        %v1301 = vpack.c.b16 %v887, %v878
        %v1302 = vpack.c.b16 %v897, %v888
        %v1303 = vpack.c.b16 %v898, %v889
        %v1304 = vpack.c.b16 %v899, %v890
        %v1305 = vpack.c.b16 %v900, %v891
        %v1306 = vpack.c.b16 %v901, %v892
        %v1307 = vpack.c.b16 %v902, %v893
        %v1308 = vpack.c.b16 %v903, %v894
        %v1309 = vpack.c.b16 %v904, %v895
        %v1310 = vpack.c.b16 %v905, %v896
        %v1311 = vpack.c.b16 %v915, %v906
        %v1312 = vpack.c.b16 %v916, %v907
        %v1313 = vpack.c.b16 %v917, %v908
        %v1314 = vpack.c.b16 %v918, %v909
        %v1315 = vpack.c.b16 %v919, %v910
        %v1316 = vpack.c.b16 %v920, %v911
        %v1317 = vpack.c.b16 %v921, %v912
        %v1318 = vpack.c.b16 %v922, %v913
        %v1319 = vpack.c.b16 %v923, %v914
        %v1320 = vpack.c.b16 %v933, %v924
        %v1321 = vpack.c.b16 %v934, %v925
        %v1322 = vpack.c.b16 %v935, %v926
        %v1323 = vpack.c.b16 %v936, %v927
        %v1324 = vpack.c.b16 %v937, %v928
        %v1325 = vpack.c.b16 %v938, %v929
        %v1326 = vpack.c.b16 %v939, %v930
        %v1327 = vpack.c.b16 %v940, %v931
        %v1328 = vpack.c.b16 %v941, %v932
        %v1329 = vpack.c.b16 %v951, %v942
        %v1330 = vpack.c.b16 %v952, %v943
        %v1331 = vpack.c.b16 %v953, %v944
        %v1332 = vpack.c.b16 %v954, %v945
        %v1333 = vpack.c.b16 %v955, %v946
        %v1334 = vpack.c.b16 %v956, %v947
        %v1335 = vpack.c.b16 %v957, %v948
        %v1336 = vpack.c.b16 %v958, %v949
        %v1337 = vpack.c.b16 %v959, %v950
        %v1338 = vpack.c.b16 %v969, %v960
        %v1339 = vpack.c.b16 %v970, %v961
        %v1340 = vpack.c.b16 %v971, %v962
        %v1341 = vpack.c.b16 %v972, %v963
        %v1342 = vpack.c.b16 %v973, %v964
        %v1343 = vpack.c.b16 %v974, %v965
        %v1344 = vpack.c.b16 %v975, %v966
        %v1345 = vpack.c.b16 %v976, %v967
        %v1346 = vpack.c.b16 %v977, %v968
        %v1347 = vpack.c.b16 %v987, %v978
        %v1348 = vpack.c.b16 %v988, %v979
        %v1349 = vpack.c.b16 %v989, %v980
        %v1350 = vpack.c.b16 %v990, %v981
        %v1351 = vpack.c.b16 %v991, %v982
        %v1352 = vpack.c.b16 %v992, %v983
        %v1353 = vpack.c.b16 %v993, %v984
        %v1354 = vpack.c.b16 %v994, %v985
        %v1355 = vpack.c.b16 %v995, %v986
        %v1356 = vpack.c.b16 %v1005, %v996
        %v1357 = vpack.c.b16 %v1006, %v997
        %v1358 = vpack.c.b16 %v1007, %v998
        %v1359 = vpack.c.b16 %v1008, %v999
        %v1360 = vpack.c.b16 %v1009, %v1000
        %v1361 = vpack.c.b16 %v1010, %v1001
        %v1362 = vpack.c.b16 %v1011, %v1002
        %v1363 = vpack.c.b16 %v1012, %v1003
        %v1364 = vpack.c.b16 %v1013, %v1004
        %v1365 = vpack.c.b16 %v1023, %v1014
        %v1366 = vpack.c.b16 %v1024, %v1015
        %v1367 = vpack.c.b16 %v1025, %v1016
        %v1368 = vpack.c.b16 %v1026, %v1017
        %v1369 = vpack.c.b16 %v1027, %v1018
        %v1370 = vpack.c.b16 %v1028, %v1019
        %v1371 = vpack.c.b16 %v1029, %v1020
        %v1372 = vpack.c.b16 %v1030, %v1021
        %v1373 = vpack.c.b16 %v1031, %v1022
        %v1374 = vpack.c.b16 %v1041, %v1032
        %v1375 = vpack.c.b16 %v1042, %v1033
        %v1376 = vpack.c.b16 %v1043, %v1034
        %v1377 = vpack.c.b16 %v1044, %v1035
        %v1378 = vpack.c.b16 %v1045, %v1036
        %v1379 = vpack.c.b16 %v1046, %v1037
        %v1380 = vpack.c.b16 %v1047, %v1038
        %v1381 = vpack.c.b16 %v1048, %v1039
        %v1382 = vpack.c.b16 %v1049, %v1040
        %v1383 = vpack.c.b16 %v1059, %v1050
        %v1384 = vpack.c.b16 %v1060, %v1051
        %v1385 = vpack.c.b16 %v1061, %v1052
        %v1386 = vpack.c.b16 %v1062, %v1053
        %v1387 = vpack.c.b16 %v1063, %v1054
        %v1388 = vpack.c.b16 %v1064, %v1055
        %v1389 = vpack.c.b16 %v1065, %v1056
        %v1390 = vpack.c.b16 %v1066, %v1057
        %v1391 = vpack.c.b16 %v1067, %v1058
        %v1392 = vpack.c.b16 %v1077, %v1068
        %v1393 = vpack.c.b16 %v1078, %v1069
        %v1394 = vpack.c.b16 %v1079, %v1070
        %v1395 = vpack.c.b16 %v1080, %v1071
        %v1396 = vpack.c.b16 %v1081, %v1072
        %v1397 = vpack.c.b16 %v1082, %v1073
        %v1398 = vpack.c.b16 %v1083, %v1074
        %v1399 = vpack.c.b16 %v1084, %v1075
        %v1400 = vpack.c.b16 %v1085, %v1076
        %v1401 = vpack.c.b16 %v1095, %v1086
        %v1402 = vpack.c.b16 %v1096, %v1087
        %v1403 = vpack.c.b16 %v1097, %v1088
        %v1404 = vpack.c.b16 %v1098, %v1089
        %v1405 = vpack.c.b16 %v1099, %v1090
        %v1406 = vpack.c.b16 %v1100, %v1091
        %v1407 = vpack.c.b16 %v1101, %v1092
        %v1408 = vpack.c.b16 %v1102, %v1093
        %v1409 = vpack.c.b16 %v1103, %v1094
        %v1410 = vpack.c.b16 %v1113, %v1104
        %v1411 = vpack.c.b16 %v1114, %v1105
        %v1412 = vpack.c.b16 %v1115, %v1106
        %v1413 = vpack.c.b16 %v1116, %v1107
        %v1414 = vpack.c.b16 %v1117, %v1108
        %v1415 = vpack.c.b16 %v1118, %v1109
        %v1416 = vpack.c.b16 %v1119, %v1110
        %v1417 = vpack.c.b16 %v1120, %v1111
        %v1418 = vpack.c.b16 %v1121, %v1112
        %v1419 = vpack.c.b16 %v1131, %v1122
        %v1420 = vpack.c.b16 %v1132, %v1123
        %v1421 = vpack.c.b16 %v1133, %v1124
        %v1422 = vpack.c.b16 %v1134, %v1125
        %v1423 = vpack.c.b16 %v1135, %v1126
        %v1424 = vpack.c.b16 %v1136, %v1127
        %v1425 = vpack.c.b16 %v1137, %v1128
        %v1426 = vpack.c.b16 %v1138, %v1129
        %v1427 = vpack.c.b16 %v1139, %v1130
        %v1428 = vpack.c.b16 %v1149, %v1140
        %v1429 = vpack.c.b16 %v1150, %v1141
        %v1430 = vpack.c.b16 %v1151, %v1142
        %v1431 = vpack.c.b16 %v1152, %v1143
        %v1432 = vpack.c.b16 %v1153, %v1144
        %v1433 = vpack.c.b16 %v1154, %v1145
        %v1434 = vpack.c.b16 %v1155, %v1146
        %v1435 = vpack.c.b16 %v1156, %v1147
        %v1436 = vpack.c.b16 %v1157, %v1148
        %v1437 = vpack.c.b16 %v1167, %v1158
        %v1438 = vpack.c.b16 %v1168, %v1159
        %v1439 = vpack.c.b16 %v1169, %v1160
        %v1440 = vpack.c.b16 %v1170, %v1161
        %v1441 = vpack.c.b16 %v1171, %v1162
        %v1442 = vpack.c.b16 %v1172, %v1163
        %v1443 = vpack.c.b16 %v1173, %v1164
        %v1444 = vpack.c.b16 %v1174, %v1165
        %v1445 = vpack.c.b16 %v1175, %v1166
        %v1446 = vpack.c.b16 %v1185, %v1176
        %v1447 = vpack.c.b16 %v1186, %v1177
        %v1448 = vpack.c.b16 %v1187, %v1178
        %v1449 = vpack.c.b16 %v1188, %v1179
        %v1450 = vpack.c.b16 %v1189, %v1180
        %v1451 = vpack.c.b16 %v1190, %v1181
        %v1452 = vpack.c.b16 %v1191, %v1182
        %v1453 = vpack.c.b16 %v1192, %v1183
        %v1454 = vpack.c.b16 %v1193, %v1184
        %v1455 = vpack.c.b16 %v1203, %v1194
        %v1456 = vpack.c.b16 %v1204, %v1195
        %v1457 = vpack.c.b16 %v1205, %v1196
        %v1458 = vpack.c.b16 %v1206, %v1197
        %v1459 = vpack.c.b16 %v1207, %v1198
        %v1460 = vpack.c.b16 %v1208, %v1199
        %v1461 = vpack.c.b16 %v1209, %v1200
        %v1462 = vpack.c.b16 %v1210, %v1201
        %v1463 = vpack.c.b16 %v1211, %v1202
        %v1464 = vpack.c.b16 %v1221, %v1212
        %v1465 = vpack.c.b16 %v1222, %v1213
        %v1466 = vpack.c.b16 %v1223, %v1214
        %v1467 = vpack.c.b16 %v1224, %v1215
        %v1468 = vpack.c.b16 %v1225, %v1216
        %v1469 = vpack.c.b16 %v1226, %v1217
        %v1470 = vpack.c.b16 %v1227, %v1218
        %v1471 = vpack.c.b16 %v1228, %v1219
        %v1472 = vpack.c.b16 %v1229, %v1220
        %v1473 = vpack.c.b16 %v1239, %v1230
        %v1474 = vpack.c.b16 %v1240, %v1231
        %v1475 = vpack.c.b16 %v1241, %v1232
        %v1476 = vpack.c.b16 %v1242, %v1233
        %v1477 = vpack.c.b16 %v1243, %v1234
        %v1478 = vpack.c.b16 %v1244, %v1235
        %v1479 = vpack.c.b16 %v1245, %v1236
        %v1480 = vpack.c.b16 %v1246, %v1237
        %v1481 = vpack.c.b16 %v1247, %v1238
        %v1482 = vpack.c.b16 %v1257, %v1248
        %v1483 = vpack.c.b16 %v1258, %v1249
        %v1484 = vpack.c.b16 %v1259, %v1250
        %v1485 = vpack.c.b16 %v1260, %v1251
        %v1486 = vpack.c.b16 %v1261, %v1252
        %v1487 = vpack.c.b16 %v1262, %v1253
        %v1488 = vpack.c.b16 %v1263, %v1254
        %v1489 = vpack.c.b16 %v1264, %v1255
        %v1490 = vpack.c.b16 %v1265, %v1256
        %v1491 = vpack.c.b16 %v1275, %v1266
        %v1492 = vpack.c.b16 %v1276, %v1267
        %v1493 = vpack.c.b16 %v1277, %v1268
        %v1494 = vpack.c.b16 %v1278, %v1269
        %v1495 = vpack.c.b16 %v1279, %v1270
        %v1496 = vpack.c.b16 %v1280, %v1271
        %v1497 = vpack.c.b16 %v1281, %v1272
        %v1498 = vpack.c.b16 %v1282, %v1273
        %v1499 = vpack.c.b16 %v1283, %v1274
        %1716 = vmatprep.subr.bf16.mxu0 %v1285
        %1717 = vmatpush1.bf16.msra.mxu0 %v1284
        %1718 = vmatprep.subr.bf16.mxu0 %v1294
        %1719 = vmatpush1.bf16.msra.mxu0 %v1293
        %1720 = vmatprep.subr.bf16.mxu0 %v1303
        %1721 = vmatpush1.bf16.msra.mxu0 %v1302
        %1722 = vmatprep.subr.bf16.mxu0 %v1312
        %1723 = vmatpush1.bf16.msra.mxu0 %v1311
        %1724 = vmatprep.subr.bf16.mxu0 %v1321
        %1725 = vmatpush1.bf16.msra.mxu0 %v1320
        %1726 = vmatprep.subr.bf16.mxu0 %v1330
        %1727 = vmatpush1.bf16.msra.mxu0 %v1329
        %1728 = vmatprep.subr.bf16.mxu0 %v1339
        %1729 = vmatpush1.bf16.msra.mxu0 %v1338
        %1730 = vmatprep.subr.bf16.mxu0 %v1348
        %1731 = vmatpush1.bf16.msra.mxu0 %v1347
        %1732 = vmatprep.subr.bf16.mxu0 %v1357
        %1733 = vmatpush1.bf16.msra.mxu0 %v1356
        %1734 = vmatprep.subr.bf16.mxu0 %v1366
        %1735 = vmatpush1.bf16.msra.mxu0 %v1365
        %1736 = vmatprep.subr.bf16.mxu0 %v1375
        %1737 = vmatpush1.bf16.msra.mxu0 %v1374
        %1738 = vmatprep.subr.bf16.mxu0 %v1384
        %1739 = vmatpush1.bf16.msra.mxu0 %v1383
        %1740 = vmatprep.subr.bf16.mxu0 %v1393
        %1741 = vmatpush1.bf16.msra.mxu0 %v1392
        %1742 = vmatprep.subr.bf16.mxu0 %v1402
        %1743 = vmatpush1.bf16.msra.mxu0 %v1401
        %1744 = vmatprep.subr.bf16.mxu0 %v1411
        %1745 = vmatpush1.bf16.msra.mxu0 %v1410
        %1746 = vmatprep.subr.bf16.mxu0 %v1420
        %1747 = vmatpush1.bf16.msra.mxu0 %v1419
        %1748 = vmatprep.mubr.bf16.mxu0 %v565
        %1749 = vmatmul.mubr.bf16.gmra.mrb[0].mxu0 %v564
        %v1750 = vpop.f32.mrb[0].mxu0
        %v1751 = vadd.f32 0.0, %v1750
        %v1752 = vpop.f32.mrb[0].mxu0
        %v1753 = vadd.f32 0.0, %v1752
        %v1754 = vpop.f32.mrb[0].mxu0
        %v1755 = vadd.f32 0.0, %v1754
        %v1756 = vpop.f32.mrb[0].mxu0
        %v1757 = vadd.f32 0.0, %v1756
        %1758 = vmatprep.mubr.bf16.mxu0 %v568
        %1759 = vmatmul.mubr.bf16.gmra.mrb[0].mxu0 %v567
        %v1760 = vpop.f32.mrb[0].mxu0
        %v1761 = vadd.f32 0.0, %v1760
        %v1762 = vpop.f32.mrb[0].mxu0
        %v1763 = vadd.f32 0.0, %v1762
        %v1764 = vpop.f32.mrb[0].mxu0
        %v1765 = vadd.f32 0.0, %v1764
        %v1766 = vpop.f32.mrb[0].mxu0
        %v1767 = vadd.f32 0.0, %v1766
        %1768 = vmatprep.mubr.bf16.mxu0 %v571
        %1769 = vmatmul.mubr.bf16.gmra.mrb[0].mxu0 %v570
        %v1770 = vpop.f32.mrb[0].mxu0
        %v1771 = vadd.f32 0.0, %v1770
        %v1772 = vpop.f32.mrb[0].mxu0
        %v1773 = vadd.f32 0.0, %v1772
        %v1774 = vpop.f32.mrb[0].mxu0
        %v1775 = vadd.f32 0.0, %v1774
        %v1776 = vpop.f32.mrb[0].mxu0
        %v1777 = vadd.f32 0.0, %v1776
        %1778 = vmatprep.mubr.bf16.mxu0 %v574
        %1779 = vmatmul.mubr.bf16.gmra.mrb[0].mxu0 %v573
        %v1780 = vpop.f32.mrb[0].mxu0
        %v1781 = vadd.f32 0.0, %v1780
        %v1782 = vpop.f32.mrb[0].mxu0
        %v1783 = vadd.f32 0.0, %v1782
        %v1784 = vpop.f32.mrb[0].mxu0
        %v1785 = vadd.f32 0.0, %v1784
        %v1786 = vpop.f32.mrb[0].mxu0
        %v1787 = vadd.f32 0.0, %v1786
        %1788 = vmatprep.mubr.bf16.mxu0 %v577
        %1789 = vmatmul.mubr.bf16.gmra.mrb[0].mxu0 %v576
        %v1790 = vpop.f32.mrb[0].mxu0
        %v1791 = vadd.f32 0.0, %v1790
        %v1792 = vpop.f32.mrb[0].mxu0
        %v1793 = vadd.f32 0.0, %v1792
        %v1794 = vpop.f32.mrb[0].mxu0
        %v1795 = vadd.f32 0.0, %v1794
        %v1796 = vpop.f32.mrb[0].mxu0
        %v1797 = vadd.f32 0.0, %v1796
        %1798 = vmatprep.mubr.bf16.mxu0 %v580
        %1799 = vmatmul.mubr.bf16.gmra.mrb[0].mxu0 %v579
        %v1800 = vpop.f32.mrb[0].mxu0
        %v1801 = vadd.f32 0.0, %v1800
        %v1802 = vpop.f32.mrb[0].mxu0
        %v1803 = vadd.f32 0.0, %v1802
        %v1804 = vpop.f32.mrb[0].mxu0
        %v1805 = vadd.f32 0.0, %v1804
        %v1806 = vpop.f32.mrb[0].mxu0
        %v1807 = vadd.f32 0.0, %v1806
        %1808 = vmatprep.mubr.bf16.mxu0 %v583
        %1809 = vmatmul.mubr.bf16.gmra.mrb[0].mxu0 %v582
        %v1810 = vpop.f32.mrb[0].mxu0
        %v1811 = vadd.f32 0.0, %v1810
        %v1812 = vpop.f32.mrb[0].mxu0
        %v1813 = vadd.f32 0.0, %v1812
        %v1814 = vpop.f32.mrb[0].mxu0
        %v1815 = vadd.f32 0.0, %v1814
        %v1816 = vpop.f32.mrb[0].mxu0
        %v1817 = vadd.f32 0.0, %v1816
        %1818 = vmatprep.mubr.bf16.mxu0 %v586
        %1819 = vmatmul.mubr.bf16.gmra.mrb[0].mxu0 %v585
        %v1820 = vpop.f32.mrb[0].mxu0
        %v1821 = vadd.f32 0.0, %v1820
        %v1822 = vpop.f32.mrb[0].mxu0
        %v1823 = vadd.f32 0.0, %v1822
        %v1824 = vpop.f32.mrb[0].mxu0
        %v1825 = vadd.f32 0.0, %v1824
        %v1826 = vpop.f32.mrb[0].mxu0
        %v1827 = vadd.f32 0.0, %v1826
        %1828 = vdwg.mxu0
        %1829 = vmatprep.subr.bf16.mxu0 %v1429
        %1830 = vmatpush1.bf16.msra.mxu0 %v1428
        %1831 = vmatprep.subr.bf16.mxu0 %v1438
        %1832 = vmatpush1.bf16.msra.mxu0 %v1437
        %1833 = vmatprep.subr.bf16.mxu0 %v1447
        %1834 = vmatpush1.bf16.msra.mxu0 %v1446
        %1835 = vmatprep.subr.bf16.mxu0 %v1456
        %1836 = vmatpush1.bf16.msra.mxu0 %v1455
        %1837 = vmatprep.subr.bf16.mxu0 %v1465
        %1838 = vmatpush1.bf16.msra.mxu0 %v1464
        %1839 = vmatprep.subr.bf16.mxu0 %v1474
        %1840 = vmatpush1.bf16.msra.mxu0 %v1473
        %1841 = vmatprep.subr.bf16.mxu0 %v1483
        %1842 = vmatpush1.bf16.msra.mxu0 %v1482
        %1843 = vmatprep.subr.bf16.mxu0 %v1492
        %1844 = vmatpush1.bf16.msra.mxu0 %v1491
        %1845 = vmatprep.subr.bf16.mxu0 0
        %1846 = vmatpush1.bf16.msra.mxu0 0
        %1847 = vmatprep.subr.bf16.mxu0 0
        %1848 = vmatpush1.bf16.msra.mxu0 0
        %1849 = vmatprep.subr.bf16.mxu0 0
        %1850 = vmatpush1.bf16.msra.mxu0 0
        %1851 = vmatprep.subr.bf16.mxu0 0
        %1852 = vmatpush1.bf16.msra.mxu0 0
        %1853 = vmatprep.subr.bf16.mxu0 0
        %1854 = vmatpush1.bf16.msra.mxu0 0
        %1855 = vmatprep.subr.bf16.mxu0 0
        %1856 = vmatpush1.bf16.msra.mxu0 0
        %1857 = vmatprep.subr.bf16.mxu0 0
        %1858 = vmatpush1.bf16.msra.mxu0 0
        %1859 = vmatprep.subr.bf16.mxu0 0
        %1860 = vmatpush1.bf16.msra.mxu0 0
        %1861 = vmatprep.mubr.bf16.mxu0 0
        %1862 = vmatmul.mubr.bf16.gmra.mrb[0].mxu0 %v566
        %v1863 = vpop.f32.mrb[0].mxu0
        %v1864 = vadd.f32 %v1751, %v1863
        %v1865 = vpop.f32.mrb[0].mxu0
        %v1866 = vadd.f32 %v1753, %v1865
        %v1867 = vpop.f32.mrb[0].mxu0
        %v1868 = vadd.f32 %v1755, %v1867
        %v1869 = vpop.f32.mrb[0].mxu0
        %v1870 = vadd.f32 %v1757, %v1869
        %1871 = vmatprep.mubr.bf16.mxu0 0
        %1872 = vmatmul.mubr.bf16.gmra.mrb[0].mxu0 %v569
        %v1873 = vpop.f32.mrb[0].mxu0
        %v1874 = vadd.f32 %v1761, %v1873
        %v1875 = vpop.f32.mrb[0].mxu0
        %v1876 = vadd.f32 %v1763, %v1875
        %v1877 = vpop.f32.mrb[0].mxu0
        %v1878 = vadd.f32 %v1765, %v1877
        %v1879 = vpop.f32.mrb[0].mxu0
        %v1880 = vadd.f32 %v1767, %v1879
        %1881 = vmatprep.mubr.bf16.mxu0 0
        %1882 = vmatmul.mubr.bf16.gmra.mrb[0].mxu0 %v572
        %v1883 = vpop.f32.mrb[0].mxu0
        %v1884 = vadd.f32 %v1771, %v1883
        %v1885 = vpop.f32.mrb[0].mxu0
        %v1886 = vadd.f32 %v1773, %v1885
        %v1887 = vpop.f32.mrb[0].mxu0
        %v1888 = vadd.f32 %v1775, %v1887
        %v1889 = vpop.f32.mrb[0].mxu0
        %v1890 = vadd.f32 %v1777, %v1889
        %1891 = vmatprep.mubr.bf16.mxu0 0
        %1892 = vmatmul.mubr.bf16.gmra.mrb[0].mxu0 %v575
        %v1893 = vpop.f32.mrb[0].mxu0
        %v1894 = vadd.f32 %v1781, %v1893
        %v1895 = vpop.f32.mrb[0].mxu0
        %v1896 = vadd.f32 %v1783, %v1895
        %v1897 = vpop.f32.mrb[0].mxu0
        %v1898 = vadd.f32 %v1785, %v1897
        %v1899 = vpop.f32.mrb[0].mxu0
        %v1900 = vadd.f32 %v1787, %v1899
        %1901 = vmatprep.mubr.bf16.mxu0 0
        %1902 = vmatmul.mubr.bf16.gmra.mrb[0].mxu0 %v578
        %v1903 = vpop.f32.mrb[0].mxu0
        %v1904 = vadd.f32 %v1791, %v1903
        %v1905 = vpop.f32.mrb[0].mxu0
        %v1906 = vadd.f32 %v1793, %v1905
        %v1907 = vpop.f32.mrb[0].mxu0
        %v1908 = vadd.f32 %v1795, %v1907
        %v1909 = vpop.f32.mrb[0].mxu0
        %v1910 = vadd.f32 %v1797, %v1909
        %1911 = vmatprep.mubr.bf16.mxu0 0
        %1912 = vmatmul.mubr.bf16.gmra.mrb[0].mxu0 %v581
        %v1913 = vpop.f32.mrb[0].mxu0
        %v1914 = vadd.f32 %v1801, %v1913
        %v1915 = vpop.f32.mrb[0].mxu0
        %v1916 = vadd.f32 %v1803, %v1915
        %v1917 = vpop.f32.mrb[0].mxu0
        %v1918 = vadd.f32 %v1805, %v1917
        %v1919 = vpop.f32.mrb[0].mxu0
        %v1920 = vadd.f32 %v1807, %v1919
        %1921 = vmatprep.mubr.bf16.mxu0 0
        %1922 = vmatmul.mubr.bf16.gmra.mrb[0].mxu0 %v584
        %v1923 = vpop.f32.mrb[0].mxu0
        %v1924 = vadd.f32 %v1811, %v1923
        %v1925 = vpop.f32.mrb[0].mxu0
        %v1926 = vadd.f32 %v1813, %v1925
        %v1927 = vpop.f32.mrb[0].mxu0
        %v1928 = vadd.f32 %v1815, %v1927
        %v1929 = vpop.f32.mrb[0].mxu0
        %v1930 = vadd.f32 %v1817, %v1929
        %1931 = vmatprep.mubr.bf16.mxu0 0
        %1932 = vmatmul.mubr.bf16.gmra.mrb[0].mxu0 %v587
        %v1933 = vpop.f32.mrb[0].mxu0
        %v1934 = vadd.f32 %v1821, %v1933
        %v1935 = vpop.f32.mrb[0].mxu0
        %v1936 = vadd.f32 %v1823, %v1935
        %v1937 = vpop.f32.mrb[0].mxu0
        %v1938 = vadd.f32 %v1825, %v1937
        %v1939 = vpop.f32.mrb[0].mxu0
        %v1940 = vadd.f32 %v1827, %v1939
        %1941 = vdwg.mxu0
        %1942 = vmatprep.subr.bf16.mxu0 %v1287
        %1943 = vmatpush1.bf16.msra.mxu0 %v1286
        %1944 = vmatprep.subr.bf16.mxu0 %v1296
        %1945 = vmatpush1.bf16.msra.mxu0 %v1295
        %1946 = vmatprep.subr.bf16.mxu0 %v1305
        %1947 = vmatpush1.bf16.msra.mxu0 %v1304
        %1948 = vmatprep.subr.bf16.mxu0 %v1314
        %1949 = vmatpush1.bf16.msra.mxu0 %v1313
        %1950 = vmatprep.subr.bf16.mxu0 %v1323
        %1951 = vmatpush1.bf16.msra.mxu0 %v1322
        %1952 = vmatprep.subr.bf16.mxu0 %v1332
        %1953 = vmatpush1.bf16.msra.mxu0 %v1331
        %1954 = vmatprep.subr.bf16.mxu0 %v1341
        %1955 = vmatpush1.bf16.msra.mxu0 %v1340
        %1956 = vmatprep.subr.bf16.mxu0 %v1350
        %1957 = vmatpush1.bf16.msra.mxu0 %v1349
        %1958 = vmatprep.subr.bf16.mxu0 %v1359
        %1959 = vmatpush1.bf16.msra.mxu0 %v1358
        %1960 = vmatprep.subr.bf16.mxu0 %v1368
        %1961 = vmatpush1.bf16.msra.mxu0 %v1367
        %1962 = vmatprep.subr.bf16.mxu0 %v1377
        %1963 = vmatpush1.bf16.msra.mxu0 %v1376
        %1964 = vmatprep.subr.bf16.mxu0 %v1386
        %1965 = vmatpush1.bf16.msra.mxu0 %v1385
        %1966 = vmatprep.subr.bf16.mxu0 %v1395
        %1967 = vmatpush1.bf16.msra.mxu0 %v1394
        %1968 = vmatprep.subr.bf16.mxu0 %v1404
        %1969 = vmatpush1.bf16.msra.mxu0 %v1403
        %1970 = vmatprep.subr.bf16.mxu0 %v1413
        %1971 = vmatpush1.bf16.msra.mxu0 %v1412
        %1972 = vmatprep.subr.bf16.mxu0 %v1422
        %1973 = vmatpush1.bf16.msra.mxu0 %v1421
        %1974 = vmatprep.mubr.bf16.mxu0 %v565
        %1975 = vmatmul.mubr.bf16.gmra.mrb[0].mxu0 %v564
        %v1976 = vpop.f32.mrb[0].mxu0
        %v1977 = vadd.f32 0.0, %v1976
        %v1978 = vpop.f32.mrb[0].mxu0
        %v1979 = vadd.f32 0.0, %v1978
        %v1980 = vpop.f32.mrb[0].mxu0
        %v1981 = vadd.f32 0.0, %v1980
        %v1982 = vpop.f32.mrb[0].mxu0
        %v1983 = vadd.f32 0.0, %v1982
        %1984 = vmatprep.mubr.bf16.mxu0 %v568
        %1985 = vmatmul.mubr.bf16.gmra.mrb[0].mxu0 %v567
        %v1986 = vpop.f32.mrb[0].mxu0
        %v1987 = vadd.f32 0.0, %v1986
        %v1988 = vpop.f32.mrb[0].mxu0
        %v1989 = vadd.f32 0.0, %v1988
        %v1990 = vpop.f32.mrb[0].mxu0
        %v1991 = vadd.f32 0.0, %v1990
        %v1992 = vpop.f32.mrb[0].mxu0
        %v1993 = vadd.f32 0.0, %v1992
        %1994 = vmatprep.mubr.bf16.mxu0 %v571
        %1995 = vmatmul.mubr.bf16.gmra.mrb[0].mxu0 %v570
        %v1996 = vpop.f32.mrb[0].mxu0
        %v1997 = vadd.f32 0.0, %v1996
        %v1998 = vpop.f32.mrb[0].mxu0
        %v1999 = vadd.f32 0.0, %v1998
        %v2000 = vpop.f32.mrb[0].mxu0
        %v2001 = vadd.f32 0.0, %v2000
        %v2002 = vpop.f32.mrb[0].mxu0
        %v2003 = vadd.f32 0.0, %v2002
        %2004 = vmatprep.mubr.bf16.mxu0 %v574
        %2005 = vmatmul.mubr.bf16.gmra.mrb[0].mxu0 %v573
        %v2006 = vpop.f32.mrb[0].mxu0
        %v2007 = vadd.f32 0.0, %v2006
        %v2008 = vpop.f32.mrb[0].mxu0
        %v2009 = vadd.f32 0.0, %v2008
        %v2010 = vpop.f32.mrb[0].mxu0
        %v2011 = vadd.f32 0.0, %v2010
        %v2012 = vpop.f32.mrb[0].mxu0
        %v2013 = vadd.f32 0.0, %v2012
        %2014 = vmatprep.mubr.bf16.mxu0 %v577
        %2015 = vmatmul.mubr.bf16.gmra.mrb[0].mxu0 %v576
        %v2016 = vpop.f32.mrb[0].mxu0
        %v2017 = vadd.f32 0.0, %v2016
        %v2018 = vpop.f32.mrb[0].mxu0
        %v2019 = vadd.f32 0.0, %v2018
        %v2020 = vpop.f32.mrb[0].mxu0
        %v2021 = vadd.f32 0.0, %v2020
        %v2022 = vpop.f32.mrb[0].mxu0
        %v2023 = vadd.f32 0.0, %v2022
        %2024 = vmatprep.mubr.bf16.mxu0 %v580
        %2025 = vmatmul.mubr.bf16.gmra.mrb[0].mxu0 %v579
        %v2026 = vpop.f32.mrb[0].mxu0
        %v2027 = vadd.f32 0.0, %v2026
        %v2028 = vpop.f32.mrb[0].mxu0
        %v2029 = vadd.f32 0.0, %v2028
        %v2030 = vpop.f32.mrb[0].mxu0
        %v2031 = vadd.f32 0.0, %v2030
        %v2032 = vpop.f32.mrb[0].mxu0
        %v2033 = vadd.f32 0.0, %v2032
        %2034 = vmatprep.mubr.bf16.mxu0 %v583
        %2035 = vmatmul.mubr.bf16.gmra.mrb[0].mxu0 %v582
        %v2036 = vpop.f32.mrb[0].mxu0
        %v2037 = vadd.f32 0.0, %v2036
        %v2038 = vpop.f32.mrb[0].mxu0
        %v2039 = vadd.f32 0.0, %v2038
        %v2040 = vpop.f32.mrb[0].mxu0
        %v2041 = vadd.f32 0.0, %v2040
        %v2042 = vpop.f32.mrb[0].mxu0
        %v2043 = vadd.f32 0.0, %v2042
        %2044 = vmatprep.mubr.bf16.mxu0 %v586
        %2045 = vmatmul.mubr.bf16.gmra.mrb[0].mxu0 %v585
        %v2046 = vpop.f32.mrb[0].mxu0
        %v2047 = vadd.f32 0.0, %v2046
        %v2048 = vpop.f32.mrb[0].mxu0
        %v2049 = vadd.f32 0.0, %v2048
        %v2050 = vpop.f32.mrb[0].mxu0
        %v2051 = vadd.f32 0.0, %v2050
        %v2052 = vpop.f32.mrb[0].mxu0
        %v2053 = vadd.f32 0.0, %v2052
        %2054 = vdwg.mxu0
        %2055 = vmatprep.subr.bf16.mxu0 %v1431
        %2056 = vmatpush1.bf16.msra.mxu0 %v1430
        %2057 = vmatprep.subr.bf16.mxu0 %v1440
        %2058 = vmatpush1.bf16.msra.mxu0 %v1439
        %2059 = vmatprep.subr.bf16.mxu0 %v1449
        %2060 = vmatpush1.bf16.msra.mxu0 %v1448
        %2061 = vmatprep.subr.bf16.mxu0 %v1458
        %2062 = vmatpush1.bf16.msra.mxu0 %v1457
        %2063 = vmatprep.subr.bf16.mxu0 %v1467
        %2064 = vmatpush1.bf16.msra.mxu0 %v1466
        %2065 = vmatprep.subr.bf16.mxu0 %v1476
        %2066 = vmatpush1.bf16.msra.mxu0 %v1475
        %2067 = vmatprep.subr.bf16.mxu0 %v1485
        %2068 = vmatpush1.bf16.msra.mxu0 %v1484
        %2069 = vmatprep.subr.bf16.mxu0 %v1494
        %2070 = vmatpush1.bf16.msra.mxu0 %v1493
        %2071 = vmatprep.subr.bf16.mxu0 0
        %2072 = vmatpush1.bf16.msra.mxu0 0
        %2073 = vmatprep.subr.bf16.mxu0 0
        %2074 = vmatpush1.bf16.msra.mxu0 0
        %2075 = vmatprep.subr.bf16.mxu0 0
        %2076 = vmatpush1.bf16.msra.mxu0 0
        %2077 = vmatprep.subr.bf16.mxu0 0
        %2078 = vmatpush1.bf16.msra.mxu0 0
        %2079 = vmatprep.subr.bf16.mxu0 0
        %2080 = vmatpush1.bf16.msra.mxu0 0
        %2081 = vmatprep.subr.bf16.mxu0 0
        %2082 = vmatpush1.bf16.msra.mxu0 0
        %2083 = vmatprep.subr.bf16.mxu0 0
        %2084 = vmatpush1.bf16.msra.mxu0 0
        %2085 = vmatprep.subr.bf16.mxu0 0
        %2086 = vmatpush1.bf16.msra.mxu0 0
        %2087 = vmatprep.mubr.bf16.mxu0 0
        %2088 = vmatmul.mubr.bf16.gmra.mrb[0].mxu0 %v566
        %v2089 = vpop.f32.mrb[0].mxu0
        %v2090 = vadd.f32 %v1977, %v2089
        %v2091 = vpop.f32.mrb[0].mxu0
        %v2092 = vadd.f32 %v1979, %v2091
        %v2093 = vpop.f32.mrb[0].mxu0
        %v2094 = vadd.f32 %v1981, %v2093
        %v2095 = vpop.f32.mrb[0].mxu0
        %v2096 = vadd.f32 %v1983, %v2095
        %2097 = vmatprep.mubr.bf16.mxu0 0
        %2098 = vmatmul.mubr.bf16.gmra.mrb[0].mxu0 %v569
        %v2099 = vpop.f32.mrb[0].mxu0
        %v2100 = vadd.f32 %v1987, %v2099
        %v2101 = vpop.f32.mrb[0].mxu0
        %v2102 = vadd.f32 %v1989, %v2101
        %v2103 = vpop.f32.mrb[0].mxu0
        %v2104 = vadd.f32 %v1991, %v2103
        %v2105 = vpop.f32.mrb[0].mxu0
        %v2106 = vadd.f32 %v1993, %v2105
        %2107 = vmatprep.mubr.bf16.mxu0 0
        %2108 = vmatmul.mubr.bf16.gmra.mrb[0].mxu0 %v572
        %v2109 = vpop.f32.mrb[0].mxu0
        %v2110 = vadd.f32 %v1997, %v2109
        %v2111 = vpop.f32.mrb[0].mxu0
        %v2112 = vadd.f32 %v1999, %v2111
        %v2113 = vpop.f32.mrb[0].mxu0
        %v2114 = vadd.f32 %v2001, %v2113
        %v2115 = vpop.f32.mrb[0].mxu0
        %v2116 = vadd.f32 %v2003, %v2115
        %2117 = vmatprep.mubr.bf16.mxu0 0
        %2118 = vmatmul.mubr.bf16.gmra.mrb[0].mxu0 %v575
        %v2119 = vpop.f32.mrb[0].mxu0
        %v2120 = vadd.f32 %v2007, %v2119
        %v2121 = vpop.f32.mrb[0].mxu0
        %v2122 = vadd.f32 %v2009, %v2121
        %v2123 = vpop.f32.mrb[0].mxu0
        %v2124 = vadd.f32 %v2011, %v2123
        %v2125 = vpop.f32.mrb[0].mxu0
        %v2126 = vadd.f32 %v2013, %v2125
        %2127 = vmatprep.mubr.bf16.mxu0 0
        %2128 = vmatmul.mubr.bf16.gmra.mrb[0].mxu0 %v578
        %v2129 = vpop.f32.mrb[0].mxu0
        %v2130 = vadd.f32 %v2017, %v2129
        %v2131 = vpop.f32.mrb[0].mxu0
        %v2132 = vadd.f32 %v2019, %v2131
        %v2133 = vpop.f32.mrb[0].mxu0
        %v2134 = vadd.f32 %v2021, %v2133
        %v2135 = vpop.f32.mrb[0].mxu0
        %v2136 = vadd.f32 %v2023, %v2135
        %2137 = vmatprep.mubr.bf16.mxu0 0
        %2138 = vmatmul.mubr.bf16.gmra.mrb[0].mxu0 %v581
        %v2139 = vpop.f32.mrb[0].mxu0
        %v2140 = vadd.f32 %v2027, %v2139
        %v2141 = vpop.f32.mrb[0].mxu0
        %v2142 = vadd.f32 %v2029, %v2141
        %v2143 = vpop.f32.mrb[0].mxu0
        %v2144 = vadd.f32 %v2031, %v2143
        %v2145 = vpop.f32.mrb[0].mxu0
        %v2146 = vadd.f32 %v2033, %v2145
        %2147 = vmatprep.mubr.bf16.mxu0 0
        %2148 = vmatmul.mubr.bf16.gmra.mrb[0].mxu0 %v584
        %v2149 = vpop.f32.mrb[0].mxu0
        %v2150 = vadd.f32 %v2037, %v2149
        %v2151 = vpop.f32.mrb[0].mxu0
        %v2152 = vadd.f32 %v2039, %v2151
        %v2153 = vpop.f32.mrb[0].mxu0
        %v2154 = vadd.f32 %v2041, %v2153
        %v2155 = vpop.f32.mrb[0].mxu0
        %v2156 = vadd.f32 %v2043, %v2155
        %2157 = vmatprep.mubr.bf16.mxu0 0
        %2158 = vmatmul.mubr.bf16.gmra.mrb[0].mxu0 %v587
        %v2159 = vpop.f32.mrb[0].mxu0
        %v2160 = vadd.f32 %v2047, %v2159
        %v2161 = vpop.f32.mrb[0].mxu0
        %v2162 = vadd.f32 %v2049, %v2161
        %v2163 = vpop.f32.mrb[0].mxu0
        %v2164 = vadd.f32 %v2051, %v2163
        %v2165 = vpop.f32.mrb[0].mxu0
        %v2166 = vadd.f32 %v2053, %v2165
        %2167 = vdwg.mxu0
        %2168 = vmatprep.subr.bf16.mxu0 %v1289
        %2169 = vmatpush1.bf16.msra.mxu0 %v1288
        %2170 = vmatprep.subr.bf16.mxu0 %v1298
        %2171 = vmatpush1.bf16.msra.mxu0 %v1297
        %2172 = vmatprep.subr.bf16.mxu0 %v1307
        %2173 = vmatpush1.bf16.msra.mxu0 %v1306
        %2174 = vmatprep.subr.bf16.mxu0 %v1316
        %2175 = vmatpush1.bf16.msra.mxu0 %v1315
        %2176 = vmatprep.subr.bf16.mxu0 %v1325
        %2177 = vmatpush1.bf16.msra.mxu0 %v1324
        %2178 = vmatprep.subr.bf16.mxu0 %v1334
        %2179 = vmatpush1.bf16.msra.mxu0 %v1333
        %2180 = vmatprep.subr.bf16.mxu0 %v1343
        %2181 = vmatpush1.bf16.msra.mxu0 %v1342
        %2182 = vmatprep.subr.bf16.mxu0 %v1352
        %2183 = vmatpush1.bf16.msra.mxu0 %v1351
        %2184 = vmatprep.subr.bf16.mxu0 %v1361
        %2185 = vmatpush1.bf16.msra.mxu0 %v1360
        %2186 = vmatprep.subr.bf16.mxu0 %v1370
        %2187 = vmatpush1.bf16.msra.mxu0 %v1369
        %2188 = vmatprep.subr.bf16.mxu0 %v1379
        %2189 = vmatpush1.bf16.msra.mxu0 %v1378
        %2190 = vmatprep.subr.bf16.mxu0 %v1388
        %2191 = vmatpush1.bf16.msra.mxu0 %v1387
        %2192 = vmatprep.subr.bf16.mxu0 %v1397
        %2193 = vmatpush1.bf16.msra.mxu0 %v1396
        %2194 = vmatprep.subr.bf16.mxu0 %v1406
        %2195 = vmatpush1.bf16.msra.mxu0 %v1405
        %2196 = vmatprep.subr.bf16.mxu0 %v1415
        %2197 = vmatpush1.bf16.msra.mxu0 %v1414
        %2198 = vmatprep.subr.bf16.mxu0 %v1424
        %2199 = vmatpush1.bf16.msra.mxu0 %v1423
        %2200 = vmatprep.mubr.bf16.mxu0 %v565
        %2201 = vmatmul.mubr.bf16.gmra.mrb[0].mxu0 %v564
        %v2202 = vpop.f32.mrb[0].mxu0
        %v2203 = vadd.f32 0.0, %v2202
        %v2204 = vpop.f32.mrb[0].mxu0
        %v2205 = vadd.f32 0.0, %v2204
        %v2206 = vpop.f32.mrb[0].mxu0
        %v2207 = vadd.f32 0.0, %v2206
        %v2208 = vpop.f32.mrb[0].mxu0
        %v2209 = vadd.f32 0.0, %v2208
        %2210 = vmatprep.mubr.bf16.mxu0 %v568
        %2211 = vmatmul.mubr.bf16.gmra.mrb[0].mxu0 %v567
        %v2212 = vpop.f32.mrb[0].mxu0
        %v2213 = vadd.f32 0.0, %v2212
        %v2214 = vpop.f32.mrb[0].mxu0
        %v2215 = vadd.f32 0.0, %v2214
        %v2216 = vpop.f32.mrb[0].mxu0
        %v2217 = vadd.f32 0.0, %v2216
        %v2218 = vpop.f32.mrb[0].mxu0
        %v2219 = vadd.f32 0.0, %v2218
        %2220 = vmatprep.mubr.bf16.mxu0 %v571
        %2221 = vmatmul.mubr.bf16.gmra.mrb[0].mxu0 %v570
        %v2222 = vpop.f32.mrb[0].mxu0
        %v2223 = vadd.f32 0.0, %v2222
        %v2224 = vpop.f32.mrb[0].mxu0
        %v2225 = vadd.f32 0.0, %v2224
        %v2226 = vpop.f32.mrb[0].mxu0
        %v2227 = vadd.f32 0.0, %v2226
        %v2228 = vpop.f32.mrb[0].mxu0
        %v2229 = vadd.f32 0.0, %v2228
        %2230 = vmatprep.mubr.bf16.mxu0 %v574
        %2231 = vmatmul.mubr.bf16.gmra.mrb[0].mxu0 %v573
        %v2232 = vpop.f32.mrb[0].mxu0
        %v2233 = vadd.f32 0.0, %v2232
        %v2234 = vpop.f32.mrb[0].mxu0
        %v2235 = vadd.f32 0.0, %v2234
        %v2236 = vpop.f32.mrb[0].mxu0
        %v2237 = vadd.f32 0.0, %v2236
        %v2238 = vpop.f32.mrb[0].mxu0
        %v2239 = vadd.f32 0.0, %v2238
        %2240 = vmatprep.mubr.bf16.mxu0 %v577
        %2241 = vmatmul.mubr.bf16.gmra.mrb[0].mxu0 %v576
        %v2242 = vpop.f32.mrb[0].mxu0
        %v2243 = vadd.f32 0.0, %v2242
        %v2244 = vpop.f32.mrb[0].mxu0
        %v2245 = vadd.f32 0.0, %v2244
        %v2246 = vpop.f32.mrb[0].mxu0
        %v2247 = vadd.f32 0.0, %v2246
        %v2248 = vpop.f32.mrb[0].mxu0
        %v2249 = vadd.f32 0.0, %v2248
        %2250 = vmatprep.mubr.bf16.mxu0 %v580
        %2251 = vmatmul.mubr.bf16.gmra.mrb[0].mxu0 %v579
        %v2252 = vpop.f32.mrb[0].mxu0
        %v2253 = vadd.f32 0.0, %v2252
        %v2254 = vpop.f32.mrb[0].mxu0
        %v2255 = vadd.f32 0.0, %v2254
        %v2256 = vpop.f32.mrb[0].mxu0
        %v2257 = vadd.f32 0.0, %v2256
        %v2258 = vpop.f32.mrb[0].mxu0
        %v2259 = vadd.f32 0.0, %v2258
        %2260 = vmatprep.mubr.bf16.mxu0 %v583
        %2261 = vmatmul.mubr.bf16.gmra.mrb[0].mxu0 %v582
        %v2262 = vpop.f32.mrb[0].mxu0
        %v2263 = vadd.f32 0.0, %v2262
        %v2264 = vpop.f32.mrb[0].mxu0
        %v2265 = vadd.f32 0.0, %v2264
        %v2266 = vpop.f32.mrb[0].mxu0
        %v2267 = vadd.f32 0.0, %v2266
        %v2268 = vpop.f32.mrb[0].mxu0
        %v2269 = vadd.f32 0.0, %v2268
        %2270 = vmatprep.mubr.bf16.mxu0 %v586
        %2271 = vmatmul.mubr.bf16.gmra.mrb[0].mxu0 %v585
        %v2272 = vpop.f32.mrb[0].mxu0
        %v2273 = vadd.f32 0.0, %v2272
        %v2274 = vpop.f32.mrb[0].mxu0
        %v2275 = vadd.f32 0.0, %v2274
        %v2276 = vpop.f32.mrb[0].mxu0
        %v2277 = vadd.f32 0.0, %v2276
        %v2278 = vpop.f32.mrb[0].mxu0
        %v2279 = vadd.f32 0.0, %v2278
        %2280 = vdwg.mxu0
        %2281 = vmatprep.subr.bf16.mxu0 %v1433
        %2282 = vmatpush1.bf16.msra.mxu0 %v1432
        %2283 = vmatprep.subr.bf16.mxu0 %v1442
        %2284 = vmatpush1.bf16.msra.mxu0 %v1441
        %2285 = vmatprep.subr.bf16.mxu0 %v1451
        %2286 = vmatpush1.bf16.msra.mxu0 %v1450
        %2287 = vmatprep.subr.bf16.mxu0 %v1460
        %2288 = vmatpush1.bf16.msra.mxu0 %v1459
        %2289 = vmatprep.subr.bf16.mxu0 %v1469
        %2290 = vmatpush1.bf16.msra.mxu0 %v1468
        %2291 = vmatprep.subr.bf16.mxu0 %v1478
        %2292 = vmatpush1.bf16.msra.mxu0 %v1477
        %2293 = vmatprep.subr.bf16.mxu0 %v1487
        %2294 = vmatpush1.bf16.msra.mxu0 %v1486
        %2295 = vmatprep.subr.bf16.mxu0 %v1496
        %2296 = vmatpush1.bf16.msra.mxu0 %v1495
        %2297 = vmatprep.subr.bf16.mxu0 0
        %2298 = vmatpush1.bf16.msra.mxu0 0
        %2299 = vmatprep.subr.bf16.mxu0 0
        %2300 = vmatpush1.bf16.msra.mxu0 0
        %2301 = vmatprep.subr.bf16.mxu0 0
        %2302 = vmatpush1.bf16.msra.mxu0 0
        %2303 = vmatprep.subr.bf16.mxu0 0
        %2304 = vmatpush1.bf16.msra.mxu0 0
        %2305 = vmatprep.subr.bf16.mxu0 0
        %2306 = vmatpush1.bf16.msra.mxu0 0
        %2307 = vmatprep.subr.bf16.mxu0 0
        %2308 = vmatpush1.bf16.msra.mxu0 0
        %2309 = vmatprep.subr.bf16.mxu0 0
        %2310 = vmatpush1.bf16.msra.mxu0 0
        %2311 = vmatprep.subr.bf16.mxu0 0
        %2312 = vmatpush1.bf16.msra.mxu0 0
        %2313 = vmatprep.mubr.bf16.mxu0 0
        %2314 = vmatmul.mubr.bf16.gmra.mrb[0].mxu0 %v566
        %v2315 = vpop.f32.mrb[0].mxu0
        %v2316 = vadd.f32 %v2203, %v2315
        %v2317 = vpop.f32.mrb[0].mxu0
        %v2318 = vadd.f32 %v2205, %v2317
        %v2319 = vpop.f32.mrb[0].mxu0
        %v2320 = vadd.f32 %v2207, %v2319
        %v2321 = vpop.f32.mrb[0].mxu0
        %v2322 = vadd.f32 %v2209, %v2321
        %2323 = vmatprep.mubr.bf16.mxu0 0
        %2324 = vmatmul.mubr.bf16.gmra.mrb[0].mxu0 %v569
        %v2325 = vpop.f32.mrb[0].mxu0
        %v2326 = vadd.f32 %v2213, %v2325
        %v2327 = vpop.f32.mrb[0].mxu0
        %v2328 = vadd.f32 %v2215, %v2327
        %v2329 = vpop.f32.mrb[0].mxu0
        %v2330 = vadd.f32 %v2217, %v2329
        %v2331 = vpop.f32.mrb[0].mxu0
        %v2332 = vadd.f32 %v2219, %v2331
        %2333 = vmatprep.mubr.bf16.mxu0 0
        %2334 = vmatmul.mubr.bf16.gmra.mrb[0].mxu0 %v572
        %v2335 = vpop.f32.mrb[0].mxu0
        %v2336 = vadd.f32 %v2223, %v2335
        %v2337 = vpop.f32.mrb[0].mxu0
        %v2338 = vadd.f32 %v2225, %v2337
        %v2339 = vpop.f32.mrb[0].mxu0
        %v2340 = vadd.f32 %v2227, %v2339
        %v2341 = vpop.f32.mrb[0].mxu0
        %v2342 = vadd.f32 %v2229, %v2341
        %2343 = vmatprep.mubr.bf16.mxu0 0
        %2344 = vmatmul.mubr.bf16.gmra.mrb[0].mxu0 %v575
        %v2345 = vpop.f32.mrb[0].mxu0
        %v2346 = vadd.f32 %v2233, %v2345
        %v2347 = vpop.f32.mrb[0].mxu0
        %v2348 = vadd.f32 %v2235, %v2347
        %v2349 = vpop.f32.mrb[0].mxu0
        %v2350 = vadd.f32 %v2237, %v2349
        %v2351 = vpop.f32.mrb[0].mxu0
        %v2352 = vadd.f32 %v2239, %v2351
        %2353 = vmatprep.mubr.bf16.mxu0 0
        %2354 = vmatmul.mubr.bf16.gmra.mrb[0].mxu0 %v578
        %v2355 = vpop.f32.mrb[0].mxu0
        %v2356 = vadd.f32 %v2243, %v2355
        %v2357 = vpop.f32.mrb[0].mxu0
        %v2358 = vadd.f32 %v2245, %v2357
        %v2359 = vpop.f32.mrb[0].mxu0
        %v2360 = vadd.f32 %v2247, %v2359
        %v2361 = vpop.f32.mrb[0].mxu0
        %v2362 = vadd.f32 %v2249, %v2361
        %2363 = vmatprep.mubr.bf16.mxu0 0
        %2364 = vmatmul.mubr.bf16.gmra.mrb[0].mxu0 %v581
        %v2365 = vpop.f32.mrb[0].mxu0
        %v2366 = vadd.f32 %v2253, %v2365
        %v2367 = vpop.f32.mrb[0].mxu0
        %v2368 = vadd.f32 %v2255, %v2367
        %v2369 = vpop.f32.mrb[0].mxu0
        %v2370 = vadd.f32 %v2257, %v2369
        %v2371 = vpop.f32.mrb[0].mxu0
        %v2372 = vadd.f32 %v2259, %v2371
        %2373 = vmatprep.mubr.bf16.mxu0 0
        %2374 = vmatmul.mubr.bf16.gmra.mrb[0].mxu0 %v584
        %v2375 = vpop.f32.mrb[0].mxu0
        %v2376 = vadd.f32 %v2263, %v2375
        %v2377 = vpop.f32.mrb[0].mxu0
        %v2378 = vadd.f32 %v2265, %v2377
        %v2379 = vpop.f32.mrb[0].mxu0
        %v2380 = vadd.f32 %v2267, %v2379
        %v2381 = vpop.f32.mrb[0].mxu0
        %v2382 = vadd.f32 %v2269, %v2381
        %2383 = vmatprep.mubr.bf16.mxu0 0
        %2384 = vmatmul.mubr.bf16.gmra.mrb[0].mxu0 %v587
        %v2385 = vpop.f32.mrb[0].mxu0
        %v2386 = vadd.f32 %v2273, %v2385
        %v2387 = vpop.f32.mrb[0].mxu0
        %v2388 = vadd.f32 %v2275, %v2387
        %v2389 = vpop.f32.mrb[0].mxu0
        %v2390 = vadd.f32 %v2277, %v2389
        %v2391 = vpop.f32.mrb[0].mxu0
        %v2392 = vadd.f32 %v2279, %v2391
        %2393 = vdwg.mxu0
        %2394 = vmatprep.subr.bf16.mxu0 %v1291
        %2395 = vmatpush1.bf16.msra.mxu0 %v1290
        %2396 = vmatprep.subr.bf16.mxu0 %v1300
        %2397 = vmatpush1.bf16.msra.mxu0 %v1299
        %2398 = vmatprep.subr.bf16.mxu0 %v1309
        %2399 = vmatpush1.bf16.msra.mxu0 %v1308
        %2400 = vmatprep.subr.bf16.mxu0 %v1318
        %2401 = vmatpush1.bf16.msra.mxu0 %v1317
        %2402 = vmatprep.subr.bf16.mxu0 %v1327
        %2403 = vmatpush1.bf16.msra.mxu0 %v1326
        %2404 = vmatprep.subr.bf16.mxu0 %v1336
        %2405 = vmatpush1.bf16.msra.mxu0 %v1335
        %2406 = vmatprep.subr.bf16.mxu0 %v1345
        %2407 = vmatpush1.bf16.msra.mxu0 %v1344
        %2408 = vmatprep.subr.bf16.mxu0 %v1354
        %2409 = vmatpush1.bf16.msra.mxu0 %v1353
        %2410 = vmatprep.subr.bf16.mxu0 %v1363
        %2411 = vmatpush1.bf16.msra.mxu0 %v1362
        %2412 = vmatprep.subr.bf16.mxu0 %v1372
        %2413 = vmatpush1.bf16.msra.mxu0 %v1371
        %2414 = vmatprep.subr.bf16.mxu0 %v1381
        %2415 = vmatpush1.bf16.msra.mxu0 %v1380
        %2416 = vmatprep.subr.bf16.mxu0 %v1390
        %2417 = vmatpush1.bf16.msra.mxu0 %v1389
        %2418 = vmatprep.subr.bf16.mxu0 %v1399
        %2419 = vmatpush1.bf16.msra.mxu0 %v1398
        %2420 = vmatprep.subr.bf16.mxu0 %v1408
        %2421 = vmatpush1.bf16.msra.mxu0 %v1407
        %2422 = vmatprep.subr.bf16.mxu0 %v1417
        %2423 = vmatpush1.bf16.msra.mxu0 %v1416
        %2424 = vmatprep.subr.bf16.mxu0 %v1426
        %2425 = vmatpush1.bf16.msra.mxu0 %v1425
        %2426 = vmatprep.mubr.bf16.mxu0 %v565
        %2427 = vmatmul.mubr.bf16.gmra.mrb[0].mxu0 %v564
        %v2428 = vpop.f32.mrb[0].mxu0
        %v2429 = vadd.f32 0.0, %v2428
        %v2430 = vpop.f32.mrb[0].mxu0
        %v2431 = vadd.f32 0.0, %v2430
        %v2432 = vpop.f32.mrb[0].mxu0
        %v2433 = vadd.f32 0.0, %v2432
        %v2434 = vpop.f32.mrb[0].mxu0
        %v2435 = vadd.f32 0.0, %v2434
        %2436 = vmatprep.mubr.bf16.mxu0 %v568
        %2437 = vmatmul.mubr.bf16.gmra.mrb[0].mxu0 %v567
        %v2438 = vpop.f32.mrb[0].mxu0
        %v2439 = vadd.f32 0.0, %v2438
        %v2440 = vpop.f32.mrb[0].mxu0
        %v2441 = vadd.f32 0.0, %v2440
        %v2442 = vpop.f32.mrb[0].mxu0
        %v2443 = vadd.f32 0.0, %v2442
        %v2444 = vpop.f32.mrb[0].mxu0
        %v2445 = vadd.f32 0.0, %v2444
        %2446 = vmatprep.mubr.bf16.mxu0 %v571
        %2447 = vmatmul.mubr.bf16.gmra.mrb[0].mxu0 %v570
        %v2448 = vpop.f32.mrb[0].mxu0
        %v2449 = vadd.f32 0.0, %v2448
        %v2450 = vpop.f32.mrb[0].mxu0
        %v2451 = vadd.f32 0.0, %v2450
        %v2452 = vpop.f32.mrb[0].mxu0
        %v2453 = vadd.f32 0.0, %v2452
        %v2454 = vpop.f32.mrb[0].mxu0
        %v2455 = vadd.f32 0.0, %v2454
        %2456 = vmatprep.mubr.bf16.mxu0 %v574
        %2457 = vmatmul.mubr.bf16.gmra.mrb[0].mxu0 %v573
        %v2458 = vpop.f32.mrb[0].mxu0
        %v2459 = vadd.f32 0.0, %v2458
        %v2460 = vpop.f32.mrb[0].mxu0
        %v2461 = vadd.f32 0.0, %v2460
        %v2462 = vpop.f32.mrb[0].mxu0
        %v2463 = vadd.f32 0.0, %v2462
        %v2464 = vpop.f32.mrb[0].mxu0
        %v2465 = vadd.f32 0.0, %v2464
        %2466 = vmatprep.mubr.bf16.mxu0 %v577
        %2467 = vmatmul.mubr.bf16.gmra.mrb[0].mxu0 %v576
        %v2468 = vpop.f32.mrb[0].mxu0
        %v2469 = vadd.f32 0.0, %v2468
        %v2470 = vpop.f32.mrb[0].mxu0
        %v2471 = vadd.f32 0.0, %v2470
        %v2472 = vpop.f32.mrb[0].mxu0
        %v2473 = vadd.f32 0.0, %v2472
        %v2474 = vpop.f32.mrb[0].mxu0
        %v2475 = vadd.f32 0.0, %v2474
        %2476 = vmatprep.mubr.bf16.mxu0 %v580
        %2477 = vmatmul.mubr.bf16.gmra.mrb[0].mxu0 %v579
        %v2478 = vpop.f32.mrb[0].mxu0
        %v2479 = vadd.f32 0.0, %v2478
        %v2480 = vpop.f32.mrb[0].mxu0
        %v2481 = vadd.f32 0.0, %v2480
        %v2482 = vpop.f32.mrb[0].mxu0
        %v2483 = vadd.f32 0.0, %v2482
        %v2484 = vpop.f32.mrb[0].mxu0
        %v2485 = vadd.f32 0.0, %v2484
        %2486 = vmatprep.mubr.bf16.mxu0 %v583
        %2487 = vmatmul.mubr.bf16.gmra.mrb[0].mxu0 %v582
        %v2488 = vpop.f32.mrb[0].mxu0
        %v2489 = vadd.f32 0.0, %v2488
        %v2490 = vpop.f32.mrb[0].mxu0
        %v2491 = vadd.f32 0.0, %v2490
        %v2492 = vpop.f32.mrb[0].mxu0
        %v2493 = vadd.f32 0.0, %v2492
        %v2494 = vpop.f32.mrb[0].mxu0
        %v2495 = vadd.f32 0.0, %v2494
        %2496 = vmatprep.mubr.bf16.mxu0 %v586
        %2497 = vmatmul.mubr.bf16.gmra.mrb[0].mxu0 %v585
        %v2498 = vpop.f32.mrb[0].mxu0
        %v2499 = vadd.f32 0.0, %v2498
        %v2500 = vpop.f32.mrb[0].mxu0
        %v2501 = vadd.f32 0.0, %v2500
        %v2502 = vpop.f32.mrb[0].mxu0
        %v2503 = vadd.f32 0.0, %v2502
        %v2504 = vpop.f32.mrb[0].mxu0
        %v2505 = vadd.f32 0.0, %v2504
        %2506 = vdwg.mxu0
        %2507 = vmatprep.subr.bf16.mxu0 %v1435
        %2508 = vmatpush1.bf16.msra.mxu0 %v1434
        %2509 = vmatprep.subr.bf16.mxu0 %v1444
        %2510 = vmatpush1.bf16.msra.mxu0 %v1443
        %2511 = vmatprep.subr.bf16.mxu0 %v1453
        %2512 = vmatpush1.bf16.msra.mxu0 %v1452
        %2513 = vmatprep.subr.bf16.mxu0 %v1462
        %2514 = vmatpush1.bf16.msra.mxu0 %v1461
        %2515 = vmatprep.subr.bf16.mxu0 %v1471
        %2516 = vmatpush1.bf16.msra.mxu0 %v1470
        %2517 = vmatprep.subr.bf16.mxu0 %v1480
        %2518 = vmatpush1.bf16.msra.mxu0 %v1479
        %2519 = vmatprep.subr.bf16.mxu0 %v1489
        %2520 = vmatpush1.bf16.msra.mxu0 %v1488
        %2521 = vmatprep.subr.bf16.mxu0 %v1498
        %2522 = vmatpush1.bf16.msra.mxu0 %v1497
        %2523 = vmatprep.subr.bf16.mxu0 0
        %2524 = vmatpush1.bf16.msra.mxu0 0
        %2525 = vmatprep.subr.bf16.mxu0 0
        %2526 = vmatpush1.bf16.msra.mxu0 0
        %2527 = vmatprep.subr.bf16.mxu0 0
        %2528 = vmatpush1.bf16.msra.mxu0 0
        %2529 = vmatprep.subr.bf16.mxu0 0
        %2530 = vmatpush1.bf16.msra.mxu0 0
        %2531 = vmatprep.subr.bf16.mxu0 0
        %2532 = vmatpush1.bf16.msra.mxu0 0
        %2533 = vmatprep.subr.bf16.mxu0 0
        %2534 = vmatpush1.bf16.msra.mxu0 0
        %2535 = vmatprep.subr.bf16.mxu0 0
        %2536 = vmatpush1.bf16.msra.mxu0 0
        %2537 = vmatprep.subr.bf16.mxu0 0
        %2538 = vmatpush1.bf16.msra.mxu0 0
        %2539 = vmatprep.mubr.bf16.mxu0 0
        %2540 = vmatmul.mubr.bf16.gmra.mrb[0].mxu0 %v566
        %v2541 = vpop.f32.mrb[0].mxu0
        %v2542 = vadd.f32 %v2429, %v2541
        %v2543 = vpop.f32.mrb[0].mxu0
        %v2544 = vadd.f32 %v2431, %v2543
        %v2545 = vpop.f32.mrb[0].mxu0
        %v2546 = vadd.f32 %v2433, %v2545
        %v2547 = vpop.f32.mrb[0].mxu0
        %v2548 = vadd.f32 %v2435, %v2547
        %2549 = vmatprep.mubr.bf16.mxu0 0
        %2550 = vmatmul.mubr.bf16.gmra.mrb[0].mxu0 %v569
        %v2551 = vpop.f32.mrb[0].mxu0
        %v2552 = vadd.f32 %v2439, %v2551
        %v2553 = vpop.f32.mrb[0].mxu0
        %v2554 = vadd.f32 %v2441, %v2553
        %v2555 = vpop.f32.mrb[0].mxu0
        %v2556 = vadd.f32 %v2443, %v2555
        %v2557 = vpop.f32.mrb[0].mxu0
        %v2558 = vadd.f32 %v2445, %v2557
        %2559 = vmatprep.mubr.bf16.mxu0 0
        %2560 = vmatmul.mubr.bf16.gmra.mrb[0].mxu0 %v572
        %v2561 = vpop.f32.mrb[0].mxu0
        %v2562 = vadd.f32 %v2449, %v2561
        %v2563 = vpop.f32.mrb[0].mxu0
        %v2564 = vadd.f32 %v2451, %v2563
        %v2565 = vpop.f32.mrb[0].mxu0
        %v2566 = vadd.f32 %v2453, %v2565
        %v2567 = vpop.f32.mrb[0].mxu0
        %v2568 = vadd.f32 %v2455, %v2567
        %2569 = vmatprep.mubr.bf16.mxu0 0
        %2570 = vmatmul.mubr.bf16.gmra.mrb[0].mxu0 %v575
        %v2571 = vpop.f32.mrb[0].mxu0
        %v2572 = vadd.f32 %v2459, %v2571
        %v2573 = vpop.f32.mrb[0].mxu0
        %v2574 = vadd.f32 %v2461, %v2573
        %v2575 = vpop.f32.mrb[0].mxu0
        %v2576 = vadd.f32 %v2463, %v2575
        %v2577 = vpop.f32.mrb[0].mxu0
        %v2578 = vadd.f32 %v2465, %v2577
        %2579 = vmatprep.mubr.bf16.mxu0 0
        %2580 = vmatmul.mubr.bf16.gmra.mrb[0].mxu0 %v578
        %v2581 = vpop.f32.mrb[0].mxu0
        %v2582 = vadd.f32 %v2469, %v2581
        %v2583 = vpop.f32.mrb[0].mxu0
        %v2584 = vadd.f32 %v2471, %v2583
        %v2585 = vpop.f32.mrb[0].mxu0
        %v2586 = vadd.f32 %v2473, %v2585
        %v2587 = vpop.f32.mrb[0].mxu0
        %v2588 = vadd.f32 %v2475, %v2587
        %2589 = vmatprep.mubr.bf16.mxu0 0
        %2590 = vmatmul.mubr.bf16.gmra.mrb[0].mxu0 %v581
        %v2591 = vpop.f32.mrb[0].mxu0
        %v2592 = vadd.f32 %v2479, %v2591
        %v2593 = vpop.f32.mrb[0].mxu0
        %v2594 = vadd.f32 %v2481, %v2593
        %v2595 = vpop.f32.mrb[0].mxu0
        %v2596 = vadd.f32 %v2483, %v2595
        %v2597 = vpop.f32.mrb[0].mxu0
        %v2598 = vadd.f32 %v2485, %v2597
        %2599 = vmatprep.mubr.bf16.mxu0 0
        %2600 = vmatmul.mubr.bf16.gmra.mrb[0].mxu0 %v584
        %v2601 = vpop.f32.mrb[0].mxu0
        %v2602 = vadd.f32 %v2489, %v2601
        %v2603 = vpop.f32.mrb[0].mxu0
        %v2604 = vadd.f32 %v2491, %v2603
        %v2605 = vpop.f32.mrb[0].mxu0
        %v2606 = vadd.f32 %v2493, %v2605
        %v2607 = vpop.f32.mrb[0].mxu0
        %v2608 = vadd.f32 %v2495, %v2607
        %2609 = vmatprep.mubr.bf16.mxu0 0
        %2610 = vmatmul.mubr.bf16.gmra.mrb[0].mxu0 %v587
        %v2611 = vpop.f32.mrb[0].mxu0
        %v2612 = vadd.f32 %v2499, %v2611
        %v2613 = vpop.f32.mrb[0].mxu0
        %v2614 = vadd.f32 %v2501, %v2613
        %v2615 = vpop.f32.mrb[0].mxu0
        %v2616 = vadd.f32 %v2503, %v2615
        %v2617 = vpop.f32.mrb[0].mxu0
        %v2618 = vadd.f32 %v2505, %v2617
        %2619 = vdwg.mxu0
        %2620 = vmatprep.subr.bf16.mxu0 0
        %2621 = vmatpush1.bf16.msra.mxu0 %v1292
        %2622 = vmatprep.subr.bf16.mxu0 0
        %2623 = vmatpush1.bf16.msra.mxu0 %v1301
        %2624 = vmatprep.subr.bf16.mxu0 0
        %2625 = vmatpush1.bf16.msra.mxu0 %v1310
        %2626 = vmatprep.subr.bf16.mxu0 0
        %2627 = vmatpush1.bf16.msra.mxu0 %v1319
        %2628 = vmatprep.subr.bf16.mxu0 0
        %2629 = vmatpush1.bf16.msra.mxu0 %v1328
        %2630 = vmatprep.subr.bf16.mxu0 0
        %2631 = vmatpush1.bf16.msra.mxu0 %v1337
        %2632 = vmatprep.subr.bf16.mxu0 0
        %2633 = vmatpush1.bf16.msra.mxu0 %v1346
        %2634 = vmatprep.subr.bf16.mxu0 0
        %2635 = vmatpush1.bf16.msra.mxu0 %v1355
        %2636 = vmatprep.subr.bf16.mxu0 0
        %2637 = vmatpush1.bf16.msra.mxu0 %v1364
        %2638 = vmatprep.subr.bf16.mxu0 0
        %2639 = vmatpush1.bf16.msra.mxu0 %v1373
        %2640 = vmatprep.subr.bf16.mxu0 0
        %2641 = vmatpush1.bf16.msra.mxu0 %v1382
        %2642 = vmatprep.subr.bf16.mxu0 0
        %2643 = vmatpush1.bf16.msra.mxu0 %v1391
        %2644 = vmatprep.subr.bf16.mxu0 0
        %2645 = vmatpush1.bf16.msra.mxu0 %v1400
        %2646 = vmatprep.subr.bf16.mxu0 0
        %2647 = vmatpush1.bf16.msra.mxu0 %v1409
        %2648 = vmatprep.subr.bf16.mxu0 0
        %2649 = vmatpush1.bf16.msra.mxu0 %v1418
        %2650 = vmatprep.subr.bf16.mxu0 0
        %2651 = vmatpush1.bf16.msra.mxu0 %v1427
        %2652 = vmatprep.mubr.bf16.mxu0 %v565
        %2653 = vmatmul.mubr.bf16.gmra.mrb[0].mxu0 %v564
        %v2654 = vpop.f32.mrb[0].mxu0
        %v2655 = vadd.f32 0.0, %v2654
        %v2656 = vpop.f32.mrb[0].mxu0
        %v2657 = vpop.f32.mrb[0].mxu0
        %v2658 = vadd.f32 0.0, %v2657
        %v2659 = vpop.f32.mrb[0].mxu0
        %2660 = vmatprep.mubr.bf16.mxu0 %v568
        %2661 = vmatmul.mubr.bf16.gmra.mrb[0].mxu0 %v567
        %v2662 = vpop.f32.mrb[0].mxu0
        %v2663 = vadd.f32 0.0, %v2662
        %v2664 = vpop.f32.mrb[0].mxu0
        %v2665 = vpop.f32.mrb[0].mxu0
        %v2666 = vadd.f32 0.0, %v2665
        %v2667 = vpop.f32.mrb[0].mxu0
        %2668 = vmatprep.mubr.bf16.mxu0 %v571
        %2669 = vmatmul.mubr.bf16.gmra.mrb[0].mxu0 %v570
        %v2670 = vpop.f32.mrb[0].mxu0
        %v2671 = vadd.f32 0.0, %v2670
        %v2672 = vpop.f32.mrb[0].mxu0
        %v2673 = vpop.f32.mrb[0].mxu0
        %v2674 = vadd.f32 0.0, %v2673
        %v2675 = vpop.f32.mrb[0].mxu0
        %2676 = vmatprep.mubr.bf16.mxu0 %v574
        %2677 = vmatmul.mubr.bf16.gmra.mrb[0].mxu0 %v573
        %v2678 = vpop.f32.mrb[0].mxu0
        %v2679 = vadd.f32 0.0, %v2678
        %v2680 = vpop.f32.mrb[0].mxu0
        %v2681 = vpop.f32.mrb[0].mxu0
        %v2682 = vadd.f32 0.0, %v2681
        %v2683 = vpop.f32.mrb[0].mxu0
        %2684 = vmatprep.mubr.bf16.mxu0 %v577
        %2685 = vmatmul.mubr.bf16.gmra.mrb[0].mxu0 %v576
        %v2686 = vpop.f32.mrb[0].mxu0
        %v2687 = vadd.f32 0.0, %v2686
        %v2688 = vpop.f32.mrb[0].mxu0
        %v2689 = vpop.f32.mrb[0].mxu0
        %v2690 = vadd.f32 0.0, %v2689
        %v2691 = vpop.f32.mrb[0].mxu0
        %2692 = vmatprep.mubr.bf16.mxu0 %v580
        %2693 = vmatmul.mubr.bf16.gmra.mrb[0].mxu0 %v579
        %v2694 = vpop.f32.mrb[0].mxu0
        %v2695 = vadd.f32 0.0, %v2694
        %v2696 = vpop.f32.mrb[0].mxu0
        %v2697 = vpop.f32.mrb[0].mxu0
        %v2698 = vadd.f32 0.0, %v2697
        %v2699 = vpop.f32.mrb[0].mxu0
        %2700 = vmatprep.mubr.bf16.mxu0 %v583
        %2701 = vmatmul.mubr.bf16.gmra.mrb[0].mxu0 %v582
        %v2702 = vpop.f32.mrb[0].mxu0
        %v2703 = vadd.f32 0.0, %v2702
        %v2704 = vpop.f32.mrb[0].mxu0
        %v2705 = vpop.f32.mrb[0].mxu0
        %v2706 = vadd.f32 0.0, %v2705
        %v2707 = vpop.f32.mrb[0].mxu0
        %2708 = vmatprep.mubr.bf16.mxu0 %v586
        %2709 = vmatmul.mubr.bf16.gmra.mrb[0].mxu0 %v585
        %v2710 = vpop.f32.mrb[0].mxu0
        %v2711 = vadd.f32 0.0, %v2710
        %v2712 = vpop.f32.mrb[0].mxu0
        %v2713 = vpop.f32.mrb[0].mxu0
        %v2714 = vadd.f32 0.0, %v2713
        %v2715 = vpop.f32.mrb[0].mxu0
        %2716 = vdwg.mxu0
        %2717 = vmatprep.subr.bf16.mxu0 0
        %2718 = vmatpush1.bf16.msra.mxu0 %v1436
        %2719 = vmatprep.subr.bf16.mxu0 0
        %2720 = vmatpush1.bf16.msra.mxu0 %v1445
        %2721 = vmatprep.subr.bf16.mxu0 0
        %2722 = vmatpush1.bf16.msra.mxu0 %v1454
        %2723 = vmatprep.subr.bf16.mxu0 0
        %2724 = vmatpush1.bf16.msra.mxu0 %v1463
        %2725 = vmatprep.subr.bf16.mxu0 0
        %2726 = vmatpush1.bf16.msra.mxu0 %v1472
        %2727 = vmatprep.subr.bf16.mxu0 0
        %2728 = vmatpush1.bf16.msra.mxu0 %v1481
        %2729 = vmatprep.subr.bf16.mxu0 0
        %2730 = vmatpush1.bf16.msra.mxu0 %v1490
        %2731 = vmatprep.subr.bf16.mxu0 0
        %2732 = vmatpush1.bf16.msra.mxu0 %v1499
        %2733 = vmatprep.subr.bf16.mxu0 0
        %2734 = vmatpush1.bf16.msra.mxu0 0
        %2735 = vmatprep.subr.bf16.mxu0 0
        %2736 = vmatpush1.bf16.msra.mxu0 0
        %2737 = vmatprep.subr.bf16.mxu0 0
        %2738 = vmatpush1.bf16.msra.mxu0 0
        %2739 = vmatprep.subr.bf16.mxu0 0
        %2740 = vmatpush1.bf16.msra.mxu0 0
        %2741 = vmatprep.subr.bf16.mxu0 0
        %2742 = vmatpush1.bf16.msra.mxu0 0
        %2743 = vmatprep.subr.bf16.mxu0 0
        %2744 = vmatpush1.bf16.msra.mxu0 0
        %2745 = vmatprep.subr.bf16.mxu0 0
        %2746 = vmatpush1.bf16.msra.mxu0 0
        %2747 = vmatprep.subr.bf16.mxu0 0
        %2748 = vmatpush1.bf16.msra.mxu0 0
        %2749 = vmatprep.mubr.bf16.mxu0 0
        %2750 = vmatmul.mubr.bf16.gmra.mrb[0].mxu0 %v566
        %v2751 = vpop.f32.mrb[0].mxu0
        %v2752 = vadd.f32 %v2655, %v2751
        %v2753 = vpop.f32.mrb[0].mxu0
        %v2754 = vpop.f32.mrb[0].mxu0
        %v2755 = vadd.f32 %v2658, %v2754
        %v2756 = vpop.f32.mrb[0].mxu0
        %2757 = vmatprep.mubr.bf16.mxu0 0
        %2758 = vmatmul.mubr.bf16.gmra.mrb[0].mxu0 %v569
        %v2759 = vpop.f32.mrb[0].mxu0
        %v2760 = vadd.f32 %v2663, %v2759
        %v2761 = vpop.f32.mrb[0].mxu0
        %v2762 = vpop.f32.mrb[0].mxu0
        %v2763 = vadd.f32 %v2666, %v2762
        %v2764 = vpop.f32.mrb[0].mxu0
        %2765 = vmatprep.mubr.bf16.mxu0 0
        %2766 = vmatmul.mubr.bf16.gmra.mrb[0].mxu0 %v572
        %v2767 = vpop.f32.mrb[0].mxu0
        %v2768 = vadd.f32 %v2671, %v2767
        %v2769 = vpop.f32.mrb[0].mxu0
        %v2770 = vpop.f32.mrb[0].mxu0
        %v2771 = vadd.f32 %v2674, %v2770
        %v2772 = vpop.f32.mrb[0].mxu0
        %2773 = vmatprep.mubr.bf16.mxu0 0
        %2774 = vmatmul.mubr.bf16.gmra.mrb[0].mxu0 %v575
        %v2775 = vpop.f32.mrb[0].mxu0
        %v2776 = vadd.f32 %v2679, %v2775
        %v2777 = vpop.f32.mrb[0].mxu0
        %v2778 = vpop.f32.mrb[0].mxu0
        %v2779 = vadd.f32 %v2682, %v2778
        %v2780 = vpop.f32.mrb[0].mxu0
        %2781 = vmatprep.mubr.bf16.mxu0 0
        %2782 = vmatmul.mubr.bf16.gmra.mrb[0].mxu0 %v578
        %v2783 = vpop.f32.mrb[0].mxu0
        %v2784 = vadd.f32 %v2687, %v2783
        %v2785 = vpop.f32.mrb[0].mxu0
        %v2786 = vpop.f32.mrb[0].mxu0
        %v2787 = vadd.f32 %v2690, %v2786
        %v2788 = vpop.f32.mrb[0].mxu0
        %2789 = vmatprep.mubr.bf16.mxu0 0
        %2790 = vmatmul.mubr.bf16.gmra.mrb[0].mxu0 %v581
        %v2791 = vpop.f32.mrb[0].mxu0
        %v2792 = vadd.f32 %v2695, %v2791
        %v2793 = vpop.f32.mrb[0].mxu0
        %v2794 = vpop.f32.mrb[0].mxu0
        %v2795 = vadd.f32 %v2698, %v2794
        %v2796 = vpop.f32.mrb[0].mxu0
        %2797 = vmatprep.mubr.bf16.mxu0 0
        %2798 = vmatmul.mubr.bf16.gmra.mrb[0].mxu0 %v584
        %v2799 = vpop.f32.mrb[0].mxu0
        %v2800 = vadd.f32 %v2703, %v2799
        %v2801 = vpop.f32.mrb[0].mxu0
        %v2802 = vpop.f32.mrb[0].mxu0
        %v2803 = vadd.f32 %v2706, %v2802
        %v2804 = vpop.f32.mrb[0].mxu0
        %2805 = vmatprep.mubr.bf16.mxu0 0
        %2806 = vmatmul.mubr.bf16.gmra.mrb[0].mxu0 %v587
        %v2807 = vpop.f32.mrb[0].mxu0
        %v2808 = vadd.f32 %v2711, %v2807
        %v2809 = vpop.f32.mrb[0].mxu0
        %v2810 = vpop.f32.mrb[0].mxu0
        %v2811 = vadd.f32 %v2714, %v2810
        %v2812 = vpop.f32.mrb[0].mxu0
        %2813 = vdwg.mxu0
        %v2814 = vpack.c.bf16 %v1868, %v1864
        %v2815 = vpack.c.bf16 %v1870, %v1866
        %v2816 = vpack.c.bf16 %v2094, %v2090
        %v2817 = vpack.c.bf16 %v2096, %v2092
        %v2818 = vpack.c.bf16 %v2320, %v2316
        %v2819 = vpack.c.bf16 %v2322, %v2318
        %v2820 = vpack.c.bf16 %v2546, %v2542
        %v2821 = vpack.c.bf16 %v2548, %v2544
        %v2822 = vpack.c.bf16 %v2755, %v2752
        %v2823 = vpack.c.bf16 %v1878, %v1874
        %v2824 = vpack.c.bf16 %v1880, %v1876
        %v2825 = vpack.c.bf16 %v2104, %v2100
        %v2826 = vpack.c.bf16 %v2106, %v2102
        %v2827 = vpack.c.bf16 %v2330, %v2326
        %v2828 = vpack.c.bf16 %v2332, %v2328
        %v2829 = vpack.c.bf16 %v2556, %v2552
        %v2830 = vpack.c.bf16 %v2558, %v2554
        %v2831 = vpack.c.bf16 %v2763, %v2760
        %v2832 = vpack.c.bf16 %v1888, %v1884
        %v2833 = vpack.c.bf16 %v1890, %v1886
        %v2834 = vpack.c.bf16 %v2114, %v2110
        %v2835 = vpack.c.bf16 %v2116, %v2112
        %v2836 = vpack.c.bf16 %v2340, %v2336
        %v2837 = vpack.c.bf16 %v2342, %v2338
        %v2838 = vpack.c.bf16 %v2566, %v2562
        %v2839 = vpack.c.bf16 %v2568, %v2564
        %v2840 = vpack.c.bf16 %v2771, %v2768
        %v2841 = vpack.c.bf16 %v1898, %v1894
        %v2842 = vpack.c.bf16 %v1900, %v1896
        %v2843 = vpack.c.bf16 %v2124, %v2120
        %v2844 = vpack.c.bf16 %v2126, %v2122
        %v2845 = vpack.c.bf16 %v2350, %v2346
        %v2846 = vpack.c.bf16 %v2352, %v2348
        %v2847 = vpack.c.bf16 %v2576, %v2572
        %v2848 = vpack.c.bf16 %v2578, %v2574
        %v2849 = vpack.c.bf16 %v2779, %v2776
        %v2850 = vpack.c.bf16 %v1908, %v1904
        %v2851 = vpack.c.bf16 %v1910, %v1906
        %v2852 = vpack.c.bf16 %v2134, %v2130
        %v2853 = vpack.c.bf16 %v2136, %v2132
        %v2854 = vpack.c.bf16 %v2360, %v2356
        %v2855 = vpack.c.bf16 %v2362, %v2358
        %v2856 = vpack.c.bf16 %v2586, %v2582
        %v2857 = vpack.c.bf16 %v2588, %v2584
        %v2858 = vpack.c.bf16 %v2787, %v2784
        %v2859 = vpack.c.bf16 %v1918, %v1914
        %v2860 = vpack.c.bf16 %v1920, %v1916
        %v2861 = vpack.c.bf16 %v2144, %v2140
        %v2862 = vpack.c.bf16 %v2146, %v2142
        %v2863 = vpack.c.bf16 %v2370, %v2366
        %v2864 = vpack.c.bf16 %v2372, %v2368
        %v2865 = vpack.c.bf16 %v2596, %v2592
        %v2866 = vpack.c.bf16 %v2598, %v2594
        %v2867 = vpack.c.bf16 %v2795, %v2792
        %v2868 = vpack.c.bf16 %v1928, %v1924
        %v2869 = vpack.c.bf16 %v1930, %v1926
        %v2870 = vpack.c.bf16 %v2154, %v2150
        %v2871 = vpack.c.bf16 %v2156, %v2152
        %v2872 = vpack.c.bf16 %v2380, %v2376
        %v2873 = vpack.c.bf16 %v2382, %v2378
        %v2874 = vpack.c.bf16 %v2606, %v2602
        %v2875 = vpack.c.bf16 %v2608, %v2604
        %v2876 = vpack.c.bf16 %v2803, %v2800
        %v2877 = vpack.c.bf16 %v1938, %v1934
        %v2878 = vpack.c.bf16 %v1940, %v1936
        %v2879 = vpack.c.bf16 %v2164, %v2160
        %v2880 = vpack.c.bf16 %v2166, %v2162
        %v2881 = vpack.c.bf16 %v2390, %v2386
        %v2882 = vpack.c.bf16 %v2392, %v2388
        %v2883 = vpack.c.bf16 %v2616, %v2612
        %v2884 = vpack.c.bf16 %v2618, %v2614
        %v2885 = vpack.c.bf16 %v2811, %v2808
        %v2886 = vlaneseq
        %v2887 = vshrl.u32 %v2886, 7
        %v2888 = vadd.s32 %v2887, 8
        %v2889 = vadd.s32 %v2887, 16
        %v2890 = vadd.s32 %v2887, 24
        %v2891 = vadd.s32 %v2887, 32
        %v2892 = vadd.s32 %v2887, 40
        %v2893 = vadd.s32 %v2887, 48
        %v2894 = vadd.s32 %v2887, 56
        %v2895 = vadd.s32 %v2887, 64
        %v2896 = vadd.s32 %v2887, 72
        %v2897 = vadd.s32 %v2887, 80
        %v2898 = vadd.s32 %v2887, 88
        %v2899 = vadd.s32 %v2887, 96
        %v2900 = vadd.s32 %v2887, 104
        %v2901 = vadd.s32 %v2887, 112
        %v2902 = vadd.s32 %v2887, 120
        %v2903 = vlaneseq
        %v2904 = vand.u32 %v2903, 127
        %vm2905 = vcmp.le.s32.totalorder %v2904, %v2887
        %vm2906 = vcmp.le.s32.totalorder %v2904, %v2888
        %vm2907 = vcmp.le.s32.totalorder %v2904, %v2889
        %vm2908 = vcmp.le.s32.totalorder %v2904, %v2890
        %vm2909 = vcmp.le.s32.totalorder %v2904, %v2891
        %vm2910 = vcmp.le.s32.totalorder %v2904, %v2892
        %vm2911 = vcmp.le.s32.totalorder %v2904, %v2893
        %vm2912 = vcmp.le.s32.totalorder %v2904, %v2894
        %vm2913 = vcmp.le.s32.totalorder %v2904, %v2895
        %vm2914 = vcmp.le.s32.totalorder %v2904, %v2896
        %vm2915 = vcmp.le.s32.totalorder %v2904, %v2897
        %vm2916 = vcmp.le.s32.totalorder %v2904, %v2898
        %vm2917 = vcmp.le.s32.totalorder %v2904, %v2899
        %vm2918 = vcmp.le.s32.totalorder %v2904, %v2900
        %vm2919 = vcmp.le.s32.totalorder %v2904, %v2901
        %vm2920 = vcmp.le.s32.totalorder %v2904, %v2902
        %vm2921 = vcmask 523264
        %v2923 = vsel %vm2921, %v2814, 0
        %v2926 = vsel %vm2921, %v2823, 0
        %v2929 = vsel %vm2921, %v2832, 0
        %v2932 = vsel %vm2921, %v2841, 0
        %v2935 = vsel %vm2921, %v2850, 0
        %v2938 = vsel %vm2921, %v2859, 0
        %v2941 = vsel %vm2921, %v2868, 0
        %v2944 = vsel %vm2921, %v2877, 0
        %v2947 = vsel %vm2921, %v2817, 0
        %v2950 = vsel %vm2921, %v2826, 0
        %v2953 = vsel %vm2921, %v2835, 0
        %v2956 = vsel %vm2921, %v2844, 0
        %v2959 = vsel %vm2921, %v2853, 0
        %v2962 = vsel %vm2921, %v2862, 0
        %v2965 = vsel %vm2921, %v2871, 0
        %v2968 = vsel %vm2921, %v2880, 0
        %2970 = vmatprep.subr.bf16.mxu0 0
        %2971 = vmatpush1.bf16.xpose.msra.mxu0 %v2947
        %2972 = vmatprep.subr.bf16.mxu0 0
        %2973 = vmatpush1.bf16.xpose.msra.mxu0 %v2950
        %2974 = vmatprep.subr.bf16.mxu0 0
        %2975 = vmatpush1.bf16.xpose.msra.mxu0 %v2953
        %2976 = vmatprep.subr.bf16.mxu0 0
        %2977 = vmatpush1.bf16.xpose.msra.mxu0 %v2956
        %2978 = vmatprep.subr.bf16.mxu0 0
        %2979 = vmatpush1.bf16.xpose.msra.mxu0 %v2959
        %2980 = vmatprep.subr.bf16.mxu0 0
        %2981 = vmatpush1.bf16.xpose.msra.mxu0 %v2962
        %2982 = vmatprep.subr.bf16.mxu0 0
        %2983 = vmatpush1.bf16.xpose.msra.mxu0 %v2965
        %2984 = vmatprep.subr.bf16.mxu0 0
        %2985 = vmatpush1.bf16.xpose.msra.mxu0 %v2968
        %2986 = vmatprep.subr.bf16.mxu0 0
        %2987 = vmatpush1.bf16.xpose.msra.mxu0 0
        %2988 = vmatprep.subr.bf16.mxu0 0
        %2989 = vmatpush1.bf16.xpose.msra.mxu0 0
        %2990 = vmatprep.subr.bf16.mxu0 0
        %2991 = vmatpush1.bf16.xpose.msra.mxu0 0
        %2992 = vmatprep.subr.bf16.mxu0 0
        %2993 = vmatpush1.bf16.xpose.msra.mxu0 0
        %2994 = vmatprep.subr.bf16.mxu0 0
        %2995 = vmatpush1.bf16.xpose.msra.mxu0 0
        %2996 = vmatprep.subr.bf16.mxu0 0
        %2997 = vmatpush1.bf16.xpose.msra.mxu0 0
        %2998 = vmatprep.subr.bf16.mxu0 0
        %2999 = vmatpush1.bf16.xpose.msra.mxu0 0
        %3000 = vmatprep.subr.bf16.mxu0 0
        %3001 = vmatpush1.bf16.xpose.msra.mxu0 0
        %3002 = vmatprep.mubr.bf16.mxu0 0
        %3003 = vmatmul.mubr.bf16.gmra.mrb[0].mxu0 %v2923
        %v3004 = vpop.f32.mrb[0].mxu0
        %v3005 = vadd.f32 0.0, %v3004
        %v3006 = vpop.f32.mrb[0].mxu0
        %v3007 = vpop.f32.mrb[0].mxu0
        %v3008 = vadd.f32 0.0, %v3007
        %v3009 = vpop.f32.mrb[0].mxu0
        %3010 = vmatprep.mubr.bf16.mxu0 0
        %3011 = vmatmul.mubr.bf16.gmra.mrb[0].mxu0 %v2926
        %v3012 = vpop.f32.mrb[0].mxu0
        %v3013 = vadd.f32 0.0, %v3012
        %v3014 = vpop.f32.mrb[0].mxu0
        %v3015 = vpop.f32.mrb[0].mxu0
        %v3016 = vadd.f32 0.0, %v3015
        %v3017 = vpop.f32.mrb[0].mxu0
        %3018 = vmatprep.mubr.bf16.mxu0 0
        %3019 = vmatmul.mubr.bf16.gmra.mrb[0].mxu0 %v2929
        %v3020 = vpop.f32.mrb[0].mxu0
        %v3021 = vadd.f32 0.0, %v3020
        %v3022 = vpop.f32.mrb[0].mxu0
        %v3023 = vpop.f32.mrb[0].mxu0
        %v3024 = vadd.f32 0.0, %v3023
        %v3025 = vpop.f32.mrb[0].mxu0
        %3026 = vmatprep.mubr.bf16.mxu0 0
        %3027 = vmatmul.mubr.bf16.gmra.mrb[0].mxu0 %v2932
        %v3028 = vpop.f32.mrb[0].mxu0
        %v3029 = vadd.f32 0.0, %v3028
        %v3030 = vpop.f32.mrb[0].mxu0
        %v3031 = vpop.f32.mrb[0].mxu0
        %v3032 = vadd.f32 0.0, %v3031
        %v3033 = vpop.f32.mrb[0].mxu0
        %3034 = vmatprep.mubr.bf16.mxu0 0
        %3035 = vmatmul.mubr.bf16.gmra.mrb[0].mxu0 %v2935
        %v3036 = vpop.f32.mrb[0].mxu0
        %v3037 = vadd.f32 0.0, %v3036
        %v3038 = vpop.f32.mrb[0].mxu0
        %v3039 = vpop.f32.mrb[0].mxu0
        %v3040 = vadd.f32 0.0, %v3039
        %v3041 = vpop.f32.mrb[0].mxu0
        %3042 = vmatprep.mubr.bf16.mxu0 0
        %3043 = vmatmul.mubr.bf16.gmra.mrb[0].mxu0 %v2938
        %v3044 = vpop.f32.mrb[0].mxu0
        %v3045 = vadd.f32 0.0, %v3044
        %v3046 = vpop.f32.mrb[0].mxu0
        %v3047 = vpop.f32.mrb[0].mxu0
        %v3048 = vadd.f32 0.0, %v3047
        %v3049 = vpop.f32.mrb[0].mxu0
        %3050 = vmatprep.mubr.bf16.mxu0 0
        %3051 = vmatmul.mubr.bf16.gmra.mrb[0].mxu0 %v2941
        %v3052 = vpop.f32.mrb[0].mxu0
        %v3053 = vadd.f32 0.0, %v3052
        %v3054 = vpop.f32.mrb[0].mxu0
        %v3055 = vpop.f32.mrb[0].mxu0
        %v3056 = vadd.f32 0.0, %v3055
        %v3057 = vpop.f32.mrb[0].mxu0
        %3058 = vmatprep.mubr.bf16.mxu0 0
        %3059 = vmatmul.mubr.bf16.gmra.mrb[0].mxu0 %v2944
        %v3060 = vpop.f32.mrb[0].mxu0
        %v3061 = vadd.f32 0.0, %v3060
        %v3062 = vpop.f32.mrb[0].mxu0
        %v3063 = vpop.f32.mrb[0].mxu0
        %v3064 = vadd.f32 0.0, %v3063
        %v3065 = vpop.f32.mrb[0].mxu0
        %3066 = vdwg.mxu0
        %v3067 = vsel %vm2905, %v3005, -1e+30
        %v3068 = vsel %vm2906, %v3008, -1e+30
        %v3069 = vsel %vm2907, %v3013, -1e+30
        %v3070 = vsel %vm2908, %v3016, -1e+30
        %v3071 = vsel %vm2909, %v3021, -1e+30
        %v3072 = vsel %vm2910, %v3024, -1e+30
        %v3073 = vsel %vm2911, %v3029, -1e+30
        %v3074 = vsel %vm2912, %v3032, -1e+30
        %v3075 = vsel %vm2913, %v3037, -1e+30
        %v3076 = vsel %vm2914, %v3040, -1e+30
        %v3077 = vsel %vm2915, %v3045, -1e+30
        %v3078 = vsel %vm2916, %v3048, -1e+30
        %v3079 = vsel %vm2917, %v3053, -1e+30
        %v3080 = vsel %vm2918, %v3056, -1e+30
        %v3081 = vsel %vm2919, %v3061, -1e+30
        %v3082 = vsel %vm2920, %v3064, -1e+30
        %3083 = vmax.xlane.f32.xlu0 %v3067
        %v3084 = vpop.xlane.xlu0 %3083
        %3085 = vmax.xlane.f32.xlu0 %v3068
        %v3086 = vpop.xlane.xlu0 %3085
        %3087 = vmax.xlane.f32.xlu0 %v3069
        %v3088 = vpop.xlane.xlu0 %3087
        %3089 = vmax.xlane.f32.xlu0 %v3070
        %v3090 = vpop.xlane.xlu0 %3089
        %3091 = vmax.xlane.f32.xlu0 %v3071
        %v3092 = vpop.xlane.xlu0 %3091
        %3093 = vmax.xlane.f32.xlu0 %v3072
        %v3094 = vpop.xlane.xlu0 %3093
        %3095 = vmax.xlane.f32.xlu0 %v3073
        %v3096 = vpop.xlane.xlu0 %3095
        %3097 = vmax.xlane.f32.xlu0 %v3074
        %v3098 = vpop.xlane.xlu0 %3097
        %3099 = vmax.xlane.f32.xlu0 %v3075
        %v3100 = vpop.xlane.xlu0 %3099
        %3101 = vmax.xlane.f32.xlu0 %v3076
        %v3102 = vpop.xlane.xlu0 %3101
        %3103 = vmax.xlane.f32.xlu0 %v3077
        %v3104 = vpop.xlane.xlu0 %3103
        %3105 = vmax.xlane.f32.xlu0 %v3078
        %v3106 = vpop.xlane.xlu0 %3105
        %3107 = vmax.xlane.f32.xlu0 %v3079
        %v3108 = vpop.xlane.xlu0 %3107
        %3109 = vmax.xlane.f32.xlu0 %v3080
        %v3110 = vpop.xlane.xlu0 %3109
        %3111 = vmax.xlane.f32.xlu0 %v3081
        %v3112 = vpop.xlane.xlu0 %3111
        %3113 = vmax.xlane.f32.xlu0 %v3082
        %v3114 = vpop.xlane.xlu0 %3113
        %v3115 = vsub.f32 %v3067, %v3084
        %v3116 = vsub.f32 %v3068, %v3086
        %v3117 = vsub.f32 %v3069, %v3088
        %v3118 = vsub.f32 %v3070, %v3090
        %v3119 = vsub.f32 %v3071, %v3092
        %v3120 = vsub.f32 %v3072, %v3094
        %v3121 = vsub.f32 %v3073, %v3096
        %v3122 = vsub.f32 %v3074, %v3098
        %v3123 = vsub.f32 %v3075, %v3100
        %v3124 = vsub.f32 %v3076, %v3102
        %v3125 = vsub.f32 %v3077, %v3104
        %v3126 = vsub.f32 %v3078, %v3106
        %v3127 = vsub.f32 %v3079, %v3108
        %v3128 = vsub.f32 %v3080, %v3110
        %v3129 = vsub.f32 %v3081, %v3112
        %v3130 = vsub.f32 %v3082, %v3114
        %v3131 = vmul.f32 %v3115, 1.442695
        %v3132 = vpow.pop %v3131
        %v3133 = vmul.f32 %v3116, 1.442695
        %v3134 = vpow.pop %v3133
        %v3135 = vmul.f32 %v3117, 1.442695
        %v3136 = vpow.pop %v3135
        %v3137 = vmul.f32 %v3118, 1.442695
        %v3138 = vpow.pop %v3137
        %v3139 = vmul.f32 %v3119, 1.442695
        %v3140 = vpow.pop %v3139
        %v3141 = vmul.f32 %v3120, 1.442695
        %v3142 = vpow.pop %v3141
        %v3143 = vmul.f32 %v3121, 1.442695
        %v3144 = vpow.pop %v3143
        %v3145 = vmul.f32 %v3122, 1.442695
        %v3146 = vpow.pop %v3145
        %v3147 = vmul.f32 %v3123, 1.442695
        %v3148 = vpow.pop %v3147
        %v3149 = vmul.f32 %v3124, 1.442695
        %v3150 = vpow.pop %v3149
        %v3151 = vmul.f32 %v3125, 1.442695
        %v3152 = vpow.pop %v3151
        %v3153 = vmul.f32 %v3126, 1.442695
        %v3154 = vpow.pop %v3153
        %v3155 = vmul.f32 %v3127, 1.442695
        %v3156 = vpow.pop %v3155
        %v3157 = vmul.f32 %v3128, 1.442695
        %v3158 = vpow.pop %v3157
        %v3159 = vmul.f32 %v3129, 1.442695
        %v3160 = vpow.pop %v3159
        %v3161 = vmul.f32 %v3130, 1.442695
        %v3162 = vpow.pop %v3161
        %3163 = vadd.xlane.f32.xlu0 %v3132
        %v3164 = vpop.xlane.xlu0 %3163
        %3165 = vadd.xlane.f32.xlu0 %v3134
        %v3166 = vpop.xlane.xlu0 %3165
        %3167 = vadd.xlane.f32.xlu0 %v3136
        %v3168 = vpop.xlane.xlu0 %3167
        %3169 = vadd.xlane.f32.xlu0 %v3138
        %v3170 = vpop.xlane.xlu0 %3169
        %3171 = vadd.xlane.f32.xlu0 %v3140
        %v3172 = vpop.xlane.xlu0 %3171
        %3173 = vadd.xlane.f32.xlu0 %v3142
        %v3174 = vpop.xlane.xlu0 %3173
        %3175 = vadd.xlane.f32.xlu0 %v3144
        %v3176 = vpop.xlane.xlu0 %3175
        %3177 = vadd.xlane.f32.xlu0 %v3146
        %v3178 = vpop.xlane.xlu0 %3177
        %3179 = vadd.xlane.f32.xlu0 %v3148
        %v3180 = vpop.xlane.xlu0 %3179
        %3181 = vadd.xlane.f32.xlu0 %v3150
        %v3182 = vpop.xlane.xlu0 %3181
        %3183 = vadd.xlane.f32.xlu0 %v3152
        %v3184 = vpop.xlane.xlu0 %3183
        %3185 = vadd.xlane.f32.xlu0 %v3154
        %v3186 = vpop.xlane.xlu0 %3185
        %3187 = vadd.xlane.f32.xlu0 %v3156
        %v3188 = vpop.xlane.xlu0 %3187
        %3189 = vadd.xlane.f32.xlu0 %v3158
        %v3190 = vpop.xlane.xlu0 %3189
        %3191 = vadd.xlane.f32.xlu0 %v3160
        %v3192 = vpop.xlane.xlu0 %3191
        %3193 = vadd.xlane.f32.xlu0 %v3162
        %v3194 = vpop.xlane.xlu0 %3193
        %v3195 = vrcp.pop %v3164
        %v3196 = vrcp.pop %v3166
        %v3197 = vrcp.pop %v3168
        %v3198 = vrcp.pop %v3170
        %v3199 = vrcp.pop %v3172
        %v3200 = vrcp.pop %v3174
        %v3201 = vrcp.pop %v3176
        %v3202 = vrcp.pop %v3178
        %v3203 = vrcp.pop %v3180
        %v3204 = vrcp.pop %v3182
        %v3205 = vrcp.pop %v3184
        %v3206 = vrcp.pop %v3186
        %v3207 = vrcp.pop %v3188
        %v3208 = vrcp.pop %v3190
        %v3209 = vrcp.pop %v3192
        %v3210 = vrcp.pop %v3194
        %v3211 = vpack.c.bf16 %v3134, %v3132
        %v3212 = vpack.c.bf16 %v3138, %v3136
        %v3213 = vpack.c.bf16 %v3142, %v3140
        %v3214 = vpack.c.bf16 %v3146, %v3144
        %v3215 = vpack.c.bf16 %v3150, %v3148
        %v3216 = vpack.c.bf16 %v3154, %v3152
        %v3217 = vpack.c.bf16 %v3158, %v3156
        %v3218 = vpack.c.bf16 %v3162, %v3160
        %3219 = vmatprep.subr.bf16.mxu0 0
        %3220 = vmatpush1.bf16.msra.mxu0 %v2820
        %3221 = vmatprep.subr.bf16.mxu0 0
        %3222 = vmatpush1.bf16.msra.mxu0 %v2829
        %3223 = vmatprep.subr.bf16.mxu0 0
        %3224 = vmatpush1.bf16.msra.mxu0 %v2838
        %3225 = vmatprep.subr.bf16.mxu0 0
        %3226 = vmatpush1.bf16.msra.mxu0 %v2847
        %3227 = vmatprep.subr.bf16.mxu0 0
        %3228 = vmatpush1.bf16.msra.mxu0 %v2856
        %3229 = vmatprep.subr.bf16.mxu0 0
        %3230 = vmatpush1.bf16.msra.mxu0 %v2865
        %3231 = vmatprep.subr.bf16.mxu0 0
        %3232 = vmatpush1.bf16.msra.mxu0 %v2874
        %3233 = vmatprep.subr.bf16.mxu0 0
        %3234 = vmatpush1.bf16.msra.mxu0 %v2883
        %3235 = vmatprep.subr.bf16.mxu0 0
        %3236 = vmatpush1.bf16.msra.mxu0 0
        %3237 = vmatprep.subr.bf16.mxu0 0
        %3238 = vmatpush1.bf16.msra.mxu0 0
        %3239 = vmatprep.subr.bf16.mxu0 0
        %3240 = vmatpush1.bf16.msra.mxu0 0
        %3241 = vmatprep.subr.bf16.mxu0 0
        %3242 = vmatpush1.bf16.msra.mxu0 0
        %3243 = vmatprep.subr.bf16.mxu0 0
        %3244 = vmatpush1.bf16.msra.mxu0 0
        %3245 = vmatprep.subr.bf16.mxu0 0
        %3246 = vmatpush1.bf16.msra.mxu0 0
        %3247 = vmatprep.subr.bf16.mxu0 0
        %3248 = vmatpush1.bf16.msra.mxu0 0
        %3249 = vmatprep.subr.bf16.mxu0 0
        %3250 = vmatpush1.bf16.msra.mxu0 0
        %3251 = vmatprep.mubr.bf16.mxu0 0
        %3252 = vmatmul.mubr.bf16.gmra.mrb[0].mxu0 %v3211
        %v3253 = vpop.f32.mrb[0].mxu0
        %v3254 = vadd.f32 0.0, %v3253
        %v3255 = vpop.f32.mrb[0].mxu0
        %v3256 = vpop.f32.mrb[0].mxu0
        %v3257 = vadd.f32 0.0, %v3256
        %v3258 = vpop.f32.mrb[0].mxu0
        %3259 = vmatprep.mubr.bf16.mxu0 0
        %3260 = vmatmul.mubr.bf16.gmra.mrb[0].mxu0 %v3212
        %v3261 = vpop.f32.mrb[0].mxu0
        %v3262 = vadd.f32 0.0, %v3261
        %v3263 = vpop.f32.mrb[0].mxu0
        %v3264 = vpop.f32.mrb[0].mxu0
        %v3265 = vadd.f32 0.0, %v3264
        %v3266 = vpop.f32.mrb[0].mxu0
        %3267 = vmatprep.mubr.bf16.mxu0 0
        %3268 = vmatmul.mubr.bf16.gmra.mrb[0].mxu0 %v3213
        %v3269 = vpop.f32.mrb[0].mxu0
        %v3270 = vadd.f32 0.0, %v3269
        %v3271 = vpop.f32.mrb[0].mxu0
        %v3272 = vpop.f32.mrb[0].mxu0
        %v3273 = vadd.f32 0.0, %v3272
        %v3274 = vpop.f32.mrb[0].mxu0
        %3275 = vmatprep.mubr.bf16.mxu0 0
        %3276 = vmatmul.mubr.bf16.gmra.mrb[0].mxu0 %v3214
        %v3277 = vpop.f32.mrb[0].mxu0
        %v3278 = vadd.f32 0.0, %v3277
        %v3279 = vpop.f32.mrb[0].mxu0
        %v3280 = vpop.f32.mrb[0].mxu0
        %v3281 = vadd.f32 0.0, %v3280
        %v3282 = vpop.f32.mrb[0].mxu0
        %3283 = vmatprep.mubr.bf16.mxu0 0
        %3284 = vmatmul.mubr.bf16.gmra.mrb[0].mxu0 %v3215
        %v3285 = vpop.f32.mrb[0].mxu0
        %v3286 = vadd.f32 0.0, %v3285
        %v3287 = vpop.f32.mrb[0].mxu0
        %v3288 = vpop.f32.mrb[0].mxu0
        %v3289 = vadd.f32 0.0, %v3288
        %v3290 = vpop.f32.mrb[0].mxu0
        %3291 = vmatprep.mubr.bf16.mxu0 0
        %3292 = vmatmul.mubr.bf16.gmra.mrb[0].mxu0 %v3216
        %v3293 = vpop.f32.mrb[0].mxu0
        %v3294 = vadd.f32 0.0, %v3293
        %v3295 = vpop.f32.mrb[0].mxu0
        %v3296 = vpop.f32.mrb[0].mxu0
        %v3297 = vadd.f32 0.0, %v3296
        %v3298 = vpop.f32.mrb[0].mxu0
        %3299 = vmatprep.mubr.bf16.mxu0 0
        %3300 = vmatmul.mubr.bf16.gmra.mrb[0].mxu0 %v3217
        %v3301 = vpop.f32.mrb[0].mxu0
        %v3302 = vadd.f32 0.0, %v3301
        %v3303 = vpop.f32.mrb[0].mxu0
        %v3304 = vpop.f32.mrb[0].mxu0
        %v3305 = vadd.f32 0.0, %v3304
        %v3306 = vpop.f32.mrb[0].mxu0
        %3307 = vmatprep.mubr.bf16.mxu0 0
        %3308 = vmatmul.mubr.bf16.gmra.mrb[0].mxu0 %v3218
        %v3309 = vpop.f32.mrb[0].mxu0
        %v3310 = vadd.f32 0.0, %v3309
        %v3311 = vpop.f32.mrb[0].mxu0
        %v3312 = vpop.f32.mrb[0].mxu0
        %v3313 = vadd.f32 0.0, %v3312
        %v3314 = vpop.f32.mrb[0].mxu0
        %3315 = vdwg.mxu0
        %v3316 = vmul.f32 %v3254, %v3195
        %v3317 = vmul.f32 %v3257, %v3196
        %v3318 = vmul.f32 %v3262, %v3197
        %v3319 = vmul.f32 %v3265, %v3198
        %v3320 = vmul.f32 %v3270, %v3199
        %v3321 = vmul.f32 %v3273, %v3200
        %v3322 = vmul.f32 %v3278, %v3201
        %v3323 = vmul.f32 %v3281, %v3202
        %v3324 = vmul.f32 %v3286, %v3203
        %v3325 = vmul.f32 %v3289, %v3204
        %v3326 = vmul.f32 %v3294, %v3205
        %v3327 = vmul.f32 %v3297, %v3206
        %v3328 = vmul.f32 %v3302, %v3207
        %v3329 = vmul.f32 %v3305, %v3208
        %v3330 = vmul.f32 %v3310, %v3209
        %v3331 = vmul.f32 %v3313, %v3210
        %v3332 = vpack.c.bf16 %v3317, %v3316
        %v3333 = vpack.c.bf16 %v3319, %v3318
        %v3334 = vpack.c.bf16 %v3321, %v3320
        %v3335 = vpack.c.bf16 %v3323, %v3322
        %v3336 = vpack.c.bf16 %v3325, %v3324
        %v3337 = vpack.c.bf16 %v3327, %v3326
        %v3338 = vpack.c.bf16 %v3329, %v3328
        %v3339 = vpack.c.bf16 %v3331, %v3330
        %3340 = vst.msk [vmem:[#allocation2] sm:$0xff] %vm2921, %v3332
        %3341 = vst.msk [vmem:[#allocation2 + $0x18] sm:$0xff] %vm2921, %v3333
        %3342 = vst.msk [vmem:[#allocation2 + $0x30] sm:$0xff] %vm2921, %v3334
        %3343 = vst.msk [vmem:[#allocation2 + $0x48] sm:$0xff] %vm2921, %v3335
        %3344 = vst.msk [vmem:[#allocation2 + $0x60] sm:$0xff] %vm2921, %v3336
        %3345 = vst.msk [vmem:[#allocation2 + $0x78] sm:$0xff] %vm2921, %v3337
        %3346 = vst.msk [vmem:[#allocation2 + $0x90] sm:$0xff] %vm2921, %v3338
        %3347 = vst.msk [vmem:[#allocation2 + $0xa8] sm:$0xff] %vm2921, %v3339
        %3356 = vrot.lane.b32.xlu0 %v2814, 64
        %v3357 = vpop.permute.xlu0 %3356
        %3358 = vrot.lane.b32.xlu0 %v2823, 64
        %v3359 = vpop.permute.xlu0 %3358
        %3360 = vrot.lane.b32.xlu0 %v2832, 64
        %v3361 = vpop.permute.xlu0 %3360
        %3362 = vrot.lane.b32.xlu0 %v2841, 64
        %v3363 = vpop.permute.xlu0 %3362
        %3364 = vrot.lane.b32.xlu0 %v2850, 64
        %v3365 = vpop.permute.xlu0 %3364
        %3366 = vrot.lane.b32.xlu0 %v2859, 64
        %v3367 = vpop.permute.xlu0 %3366
        %3368 = vrot.lane.b32.xlu0 %v2868, 64
        %v3369 = vpop.permute.xlu0 %3368
        %3370 = vrot.lane.b32.xlu0 %v2877, 64
        %v3371 = vpop.permute.xlu0 %3370
        %3380 = vrot.lane.b32.xlu0 %v2817, 64
        %v3381 = vpop.permute.xlu0 %3380
        %3382 = vrot.lane.b32.xlu0 %v2826, 64
        %v3383 = vpop.permute.xlu0 %3382
        %3384 = vrot.lane.b32.xlu0 %v2835, 64
        %v3385 = vpop.permute.xlu0 %3384
        %3386 = vrot.lane.b32.xlu0 %v2844, 64
        %v3387 = vpop.permute.xlu0 %3386
        %3388 = vrot.lane.b32.xlu0 %v2853, 64
        %v3389 = vpop.permute.xlu0 %3388
        %3390 = vrot.lane.b32.xlu0 %v2862, 64
        %v3391 = vpop.permute.xlu0 %3390
        %3392 = vrot.lane.b32.xlu0 %v2871, 64
        %v3393 = vpop.permute.xlu0 %3392
        %3394 = vrot.lane.b32.xlu0 %v2880, 64
        %v3395 = vpop.permute.xlu0 %3394
        %v3397 = vsel %vm2921, %v3357, 0
        %v3400 = vsel %vm2921, %v3359, 0
        %v3403 = vsel %vm2921, %v3361, 0
        %v3406 = vsel %vm2921, %v3363, 0
        %v3409 = vsel %vm2921, %v3365, 0
        %v3412 = vsel %vm2921, %v3367, 0
        %v3415 = vsel %vm2921, %v3369, 0
        %v3418 = vsel %vm2921, %v3371, 0
        %v3421 = vsel %vm2921, %v3381, 0
        %v3424 = vsel %vm2921, %v3383, 0
        %v3427 = vsel %vm2921, %v3385, 0
        %v3430 = vsel %vm2921, %v3387, 0
        %v3433 = vsel %vm2921, %v3389, 0
        %v3436 = vsel %vm2921, %v3391, 0
        %v3439 = vsel %vm2921, %v3393, 0
        %v3442 = vsel %vm2921, %v3395, 0
        %3444 = vmatprep.subr.bf16.mxu0 0
        %3445 = vmatpush1.bf16.xpose.msra.mxu0 %v3421
        %3446 = vmatprep.subr.bf16.mxu0 0
        %3447 = vmatpush1.bf16.xpose.msra.mxu0 %v3424
        %3448 = vmatprep.subr.bf16.mxu0 0
        %3449 = vmatpush1.bf16.xpose.msra.mxu0 %v3427
        %3450 = vmatprep.subr.bf16.mxu0 0
        %3451 = vmatpush1.bf16.xpose.msra.mxu0 %v3430
        %3452 = vmatprep.subr.bf16.mxu0 0
        %3453 = vmatpush1.bf16.xpose.msra.mxu0 %v3433
        %3454 = vmatprep.subr.bf16.mxu0 0
        %3455 = vmatpush1.bf16.xpose.msra.mxu0 %v3436
        %3456 = vmatprep.subr.bf16.mxu0 0
        %3457 = vmatpush1.bf16.xpose.msra.mxu0 %v3439
        %3458 = vmatprep.subr.bf16.mxu0 0
        %3459 = vmatpush1.bf16.xpose.msra.mxu0 %v3442
        %3460 = vmatprep.subr.bf16.mxu0 0
        %3461 = vmatpush1.bf16.xpose.msra.mxu0 0
        %3462 = vmatprep.subr.bf16.mxu0 0
        %3463 = vmatpush1.bf16.xpose.msra.mxu0 0
        %3464 = vmatprep.subr.bf16.mxu0 0
        %3465 = vmatpush1.bf16.xpose.msra.mxu0 0
        %3466 = vmatprep.subr.bf16.mxu0 0
        %3467 = vmatpush1.bf16.xpose.msra.mxu0 0
        %3468 = vmatprep.subr.bf16.mxu0 0
        %3469 = vmatpush1.bf16.xpose.msra.mxu0 0
        %3470 = vmatprep.subr.bf16.mxu0 0
        %3471 = vmatpush1.bf16.xpose.msra.mxu0 0
        %3472 = vmatprep.subr.bf16.mxu0 0
        %3473 = vmatpush1.bf16.xpose.msra.mxu0 0
        %3474 = vmatprep.subr.bf16.mxu0 0
        %3475 = vmatpush1.bf16.xpose.msra.mxu0 0
        %3476 = vmatprep.mubr.bf16.mxu0 0
        %3477 = vmatmul.mubr.bf16.gmra.mrb[0].mxu0 %v3397
        %v3478 = vpop.f32.mrb[0].mxu0
        %v3479 = vadd.f32 0.0, %v3478
        %v3480 = vpop.f32.mrb[0].mxu0
        %v3481 = vpop.f32.mrb[0].mxu0
        %v3482 = vadd.f32 0.0, %v3481
        %v3483 = vpop.f32.mrb[0].mxu0
        %3484 = vmatprep.mubr.bf16.mxu0 0
        %3485 = vmatmul.mubr.bf16.gmra.mrb[0].mxu0 %v3400
        %v3486 = vpop.f32.mrb[0].mxu0
        %v3487 = vadd.f32 0.0, %v3486
        %v3488 = vpop.f32.mrb[0].mxu0
        %v3489 = vpop.f32.mrb[0].mxu0
        %v3490 = vadd.f32 0.0, %v3489
        %v3491 = vpop.f32.mrb[0].mxu0
        %3492 = vmatprep.mubr.bf16.mxu0 0
        %3493 = vmatmul.mubr.bf16.gmra.mrb[0].mxu0 %v3403
        %v3494 = vpop.f32.mrb[0].mxu0
        %v3495 = vadd.f32 0.0, %v3494
        %v3496 = vpop.f32.mrb[0].mxu0
        %v3497 = vpop.f32.mrb[0].mxu0
        %v3498 = vadd.f32 0.0, %v3497
        %v3499 = vpop.f32.mrb[0].mxu0
        %3500 = vmatprep.mubr.bf16.mxu0 0
        %3501 = vmatmul.mubr.bf16.gmra.mrb[0].mxu0 %v3406
        %v3502 = vpop.f32.mrb[0].mxu0
        %v3503 = vadd.f32 0.0, %v3502
        %v3504 = vpop.f32.mrb[0].mxu0
        %v3505 = vpop.f32.mrb[0].mxu0
        %v3506 = vadd.f32 0.0, %v3505
        %v3507 = vpop.f32.mrb[0].mxu0
        %3508 = vmatprep.mubr.bf16.mxu0 0
        %3509 = vmatmul.mubr.bf16.gmra.mrb[0].mxu0 %v3409
        %v3510 = vpop.f32.mrb[0].mxu0
        %v3511 = vadd.f32 0.0, %v3510
        %v3512 = vpop.f32.mrb[0].mxu0
        %v3513 = vpop.f32.mrb[0].mxu0
        %v3514 = vadd.f32 0.0, %v3513
        %v3515 = vpop.f32.mrb[0].mxu0
        %3516 = vmatprep.mubr.bf16.mxu0 0
        %3517 = vmatmul.mubr.bf16.gmra.mrb[0].mxu0 %v3412
        %v3518 = vpop.f32.mrb[0].mxu0
        %v3519 = vadd.f32 0.0, %v3518
        %v3520 = vpop.f32.mrb[0].mxu0
        %v3521 = vpop.f32.mrb[0].mxu0
        %v3522 = vadd.f32 0.0, %v3521
        %v3523 = vpop.f32.mrb[0].mxu0
        %3524 = vmatprep.mubr.bf16.mxu0 0
        %3525 = vmatmul.mubr.bf16.gmra.mrb[0].mxu0 %v3415
        %v3526 = vpop.f32.mrb[0].mxu0
        %v3527 = vadd.f32 0.0, %v3526
        %v3528 = vpop.f32.mrb[0].mxu0
        %v3529 = vpop.f32.mrb[0].mxu0
        %v3530 = vadd.f32 0.0, %v3529
        %v3531 = vpop.f32.mrb[0].mxu0
        %3532 = vmatprep.mubr.bf16.mxu0 0
        %3533 = vmatmul.mubr.bf16.gmra.mrb[0].mxu0 %v3418
        %v3534 = vpop.f32.mrb[0].mxu0
        %v3535 = vadd.f32 0.0, %v3534
        %v3536 = vpop.f32.mrb[0].mxu0
        %v3537 = vpop.f32.mrb[0].mxu0
        %v3538 = vadd.f32 0.0, %v3537
        %v3539 = vpop.f32.mrb[0].mxu0
        %3540 = vdwg.mxu0
        %v3541 = vsel %vm2905, %v3479, -1e+30
        %v3542 = vsel %vm2906, %v3482, -1e+30
        %v3543 = vsel %vm2907, %v3487, -1e+30
        %v3544 = vsel %vm2908, %v3490, -1e+30
        %v3545 = vsel %vm2909, %v3495, -1e+30
        %v3546 = vsel %vm2910, %v3498, -1e+30
        %v3547 = vsel %vm2911, %v3503, -1e+30
        %v3548 = vsel %vm2912, %v3506, -1e+30
        %v3549 = vsel %vm2913, %v3511, -1e+30
        %v3550 = vsel %vm2914, %v3514, -1e+30
        %v3551 = vsel %vm2915, %v3519, -1e+30
        %v3552 = vsel %vm2916, %v3522, -1e+30
        %v3553 = vsel %vm2917, %v3527, -1e+30
        %v3554 = vsel %vm2918, %v3530, -1e+30
        %v3555 = vsel %vm2919, %v3535, -1e+30
        %v3556 = vsel %vm2920, %v3538, -1e+30
        %3557 = vmax.xlane.f32.xlu0 %v3541
        %v3558 = vpop.xlane.xlu0 %3557
        %3559 = vmax.xlane.f32.xlu0 %v3542
        %v3560 = vpop.xlane.xlu0 %3559
        %3561 = vmax.xlane.f32.xlu0 %v3543
        %v3562 = vpop.xlane.xlu0 %3561
        %3563 = vmax.xlane.f32.xlu0 %v3544
        %v3564 = vpop.xlane.xlu0 %3563
        %3565 = vmax.xlane.f32.xlu0 %v3545
        %v3566 = vpop.xlane.xlu0 %3565
        %3567 = vmax.xlane.f32.xlu0 %v3546
        %v3568 = vpop.xlane.xlu0 %3567
        %3569 = vmax.xlane.f32.xlu0 %v3547
        %v3570 = vpop.xlane.xlu0 %3569
        %3571 = vmax.xlane.f32.xlu0 %v3548
        %v3572 = vpop.xlane.xlu0 %3571
        %3573 = vmax.xlane.f32.xlu0 %v3549
        %v3574 = vpop.xlane.xlu0 %3573
        %3575 = vmax.xlane.f32.xlu0 %v3550
        %v3576 = vpop.xlane.xlu0 %3575
        %3577 = vmax.xlane.f32.xlu0 %v3551
        %v3578 = vpop.xlane.xlu0 %3577
        %3579 = vmax.xlane.f32.xlu0 %v3552
        %v3580 = vpop.xlane.xlu0 %3579
        %3581 = vmax.xlane.f32.xlu0 %v3553
        %v3582 = vpop.xlane.xlu0 %3581
        %3583 = vmax.xlane.f32.xlu0 %v3554
        %v3584 = vpop.xlane.xlu0 %3583
        %3585 = vmax.xlane.f32.xlu0 %v3555
        %v3586 = vpop.xlane.xlu0 %3585
        %3587 = vmax.xlane.f32.xlu0 %v3556
        %v3588 = vpop.xlane.xlu0 %3587
        %v3589 = vsub.f32 %v3541, %v3558
        %v3590 = vsub.f32 %v3542, %v3560
        %v3591 = vsub.f32 %v3543, %v3562
        %v3592 = vsub.f32 %v3544, %v3564
        %v3593 = vsub.f32 %v3545, %v3566
        %v3594 = vsub.f32 %v3546, %v3568
        %v3595 = vsub.f32 %v3547, %v3570
        %v3596 = vsub.f32 %v3548, %v3572
        %v3597 = vsub.f32 %v3549, %v3574
        %v3598 = vsub.f32 %v3550, %v3576
        %v3599 = vsub.f32 %v3551, %v3578
        %v3600 = vsub.f32 %v3552, %v3580
        %v3601 = vsub.f32 %v3553, %v3582
        %v3602 = vsub.f32 %v3554, %v3584
        %v3603 = vsub.f32 %v3555, %v3586
        %v3604 = vsub.f32 %v3556, %v3588
        %v3605 = vmul.f32 %v3589, 1.442695
        %v3606 = vpow.pop %v3605
        %v3607 = vmul.f32 %v3590, 1.442695
        %v3608 = vpow.pop %v3607
        %v3609 = vmul.f32 %v3591, 1.442695
        %v3610 = vpow.pop %v3609
        %v3611 = vmul.f32 %v3592, 1.442695
        %v3612 = vpow.pop %v3611
        %v3613 = vmul.f32 %v3593, 1.442695
        %v3614 = vpow.pop %v3613
        %v3615 = vmul.f32 %v3594, 1.442695
        %v3616 = vpow.pop %v3615
        %v3617 = vmul.f32 %v3595, 1.442695
        %v3618 = vpow.pop %v3617
        %v3619 = vmul.f32 %v3596, 1.442695
        %v3620 = vpow.pop %v3619
        %v3621 = vmul.f32 %v3597, 1.442695
        %v3622 = vpow.pop %v3621
        %v3623 = vmul.f32 %v3598, 1.442695
        %v3624 = vpow.pop %v3623
        %v3625 = vmul.f32 %v3599, 1.442695
        %v3626 = vpow.pop %v3625
        %v3627 = vmul.f32 %v3600, 1.442695
        %v3628 = vpow.pop %v3627
        %v3629 = vmul.f32 %v3601, 1.442695
        %v3630 = vpow.pop %v3629
        %v3631 = vmul.f32 %v3602, 1.442695
        %v3632 = vpow.pop %v3631
        %v3633 = vmul.f32 %v3603, 1.442695
        %v3634 = vpow.pop %v3633
        %v3635 = vmul.f32 %v3604, 1.442695
        %v3636 = vpow.pop %v3635
        %3637 = vadd.xlane.f32.xlu0 %v3606
        %v3638 = vpop.xlane.xlu0 %3637
        %3639 = vadd.xlane.f32.xlu0 %v3608
        %v3640 = vpop.xlane.xlu0 %3639
        %3641 = vadd.xlane.f32.xlu0 %v3610
        %v3642 = vpop.xlane.xlu0 %3641
        %3643 = vadd.xlane.f32.xlu0 %v3612
        %v3644 = vpop.xlane.xlu0 %3643
        %3645 = vadd.xlane.f32.xlu0 %v3614
        %v3646 = vpop.xlane.xlu0 %3645
        %3647 = vadd.xlane.f32.xlu0 %v3616
        %v3648 = vpop.xlane.xlu0 %3647
        %3649 = vadd.xlane.f32.xlu0 %v3618
        %v3650 = vpop.xlane.xlu0 %3649
        %3651 = vadd.xlane.f32.xlu0 %v3620
        %v3652 = vpop.xlane.xlu0 %3651
        %3653 = vadd.xlane.f32.xlu0 %v3622
        %v3654 = vpop.xlane.xlu0 %3653
        %3655 = vadd.xlane.f32.xlu0 %v3624
        %v3656 = vpop.xlane.xlu0 %3655
        %3657 = vadd.xlane.f32.xlu0 %v3626
        %v3658 = vpop.xlane.xlu0 %3657
        %3659 = vadd.xlane.f32.xlu0 %v3628
        %v3660 = vpop.xlane.xlu0 %3659
        %3661 = vadd.xlane.f32.xlu0 %v3630
        %v3662 = vpop.xlane.xlu0 %3661
        %3663 = vadd.xlane.f32.xlu0 %v3632
        %v3664 = vpop.xlane.xlu0 %3663
        %3665 = vadd.xlane.f32.xlu0 %v3634
        %v3666 = vpop.xlane.xlu0 %3665
        %3667 = vadd.xlane.f32.xlu0 %v3636
        %v3668 = vpop.xlane.xlu0 %3667
        %v3669 = vrcp.pop %v3638
        %v3670 = vrcp.pop %v3640
        %v3671 = vrcp.pop %v3642
        %v3672 = vrcp.pop %v3644
        %v3673 = vrcp.pop %v3646
        %v3674 = vrcp.pop %v3648
        %v3675 = vrcp.pop %v3650
        %v3676 = vrcp.pop %v3652
        %v3677 = vrcp.pop %v3654
        %v3678 = vrcp.pop %v3656
        %v3679 = vrcp.pop %v3658
        %v3680 = vrcp.pop %v3660
        %v3681 = vrcp.pop %v3662
        %v3682 = vrcp.pop %v3664
        %v3683 = vrcp.pop %v3666
        %v3684 = vrcp.pop %v3668
        %v3685 = vpack.c.bf16 %v3608, %v3606
        %v3686 = vpack.c.bf16 %v3612, %v3610
        %v3687 = vpack.c.bf16 %v3616, %v3614
        %v3688 = vpack.c.bf16 %v3620, %v3618
        %v3689 = vpack.c.bf16 %v3624, %v3622
        %v3690 = vpack.c.bf16 %v3628, %v3626
        %v3691 = vpack.c.bf16 %v3632, %v3630
        %v3692 = vpack.c.bf16 %v3636, %v3634
        %3701 = vrot.lane.b32.xlu0 %v2820, 64
        %v3702 = vpop.permute.xlu0 %3701
        %3703 = vrot.lane.b32.xlu0 %v2829, 64
        %v3704 = vpop.permute.xlu0 %3703
        %3705 = vrot.lane.b32.xlu0 %v2838, 64
        %v3706 = vpop.permute.xlu0 %3705
        %3707 = vrot.lane.b32.xlu0 %v2847, 64
        %v3708 = vpop.permute.xlu0 %3707
        %3709 = vrot.lane.b32.xlu0 %v2856, 64
        %v3710 = vpop.permute.xlu0 %3709
        %3711 = vrot.lane.b32.xlu0 %v2865, 64
        %v3712 = vpop.permute.xlu0 %3711
        %3713 = vrot.lane.b32.xlu0 %v2874, 64
        %v3714 = vpop.permute.xlu0 %3713
        %3715 = vrot.lane.b32.xlu0 %v2883, 64
        %v3716 = vpop.permute.xlu0 %3715
        %3725 = vmatprep.subr.bf16.mxu0 0
        %3726 = vmatpush1.bf16.msra.mxu0 %v3702
        %3727 = vmatprep.subr.bf16.mxu0 0
        %3728 = vmatpush1.bf16.msra.mxu0 %v3704
        %3729 = vmatprep.subr.bf16.mxu0 0
        %3730 = vmatpush1.bf16.msra.mxu0 %v3706
        %3731 = vmatprep.subr.bf16.mxu0 0
        %3732 = vmatpush1.bf16.msra.mxu0 %v3708
        %3733 = vmatprep.subr.bf16.mxu0 0
        %3734 = vmatpush1.bf16.msra.mxu0 %v3710
        %3735 = vmatprep.subr.bf16.mxu0 0
        %3736 = vmatpush1.bf16.msra.mxu0 %v3712
        %3737 = vmatprep.subr.bf16.mxu0 0
        %3738 = vmatpush1.bf16.msra.mxu0 %v3714
        %3739 = vmatprep.subr.bf16.mxu0 0
        %3740 = vmatpush1.bf16.msra.mxu0 %v3716
        %3741 = vmatprep.subr.bf16.mxu0 0
        %3742 = vmatpush1.bf16.msra.mxu0 0
        %3743 = vmatprep.subr.bf16.mxu0 0
        %3744 = vmatpush1.bf16.msra.mxu0 0
        %3745 = vmatprep.subr.bf16.mxu0 0
        %3746 = vmatpush1.bf16.msra.mxu0 0
        %3747 = vmatprep.subr.bf16.mxu0 0
        %3748 = vmatpush1.bf16.msra.mxu0 0
        %3749 = vmatprep.subr.bf16.mxu0 0
        %3750 = vmatpush1.bf16.msra.mxu0 0
        %3751 = vmatprep.subr.bf16.mxu0 0
        %3752 = vmatpush1.bf16.msra.mxu0 0
        %3753 = vmatprep.subr.bf16.mxu0 0
        %3754 = vmatpush1.bf16.msra.mxu0 0
        %3755 = vmatprep.subr.bf16.mxu0 0
        %3756 = vmatpush1.bf16.msra.mxu0 0
        %3757 = vmatprep.mubr.bf16.mxu0 0
        %3758 = vmatmul.mubr.bf16.gmra.mrb[0].mxu0 %v3685
        %v3759 = vpop.f32.mrb[0].mxu0
        %v3760 = vadd.f32 0.0, %v3759
        %v3761 = vpop.f32.mrb[0].mxu0
        %v3762 = vpop.f32.mrb[0].mxu0
        %v3763 = vadd.f32 0.0, %v3762
        %v3764 = vpop.f32.mrb[0].mxu0
        %3765 = vmatprep.mubr.bf16.mxu0 0
        %3766 = vmatmul.mubr.bf16.gmra.mrb[0].mxu0 %v3686
        %v3767 = vpop.f32.mrb[0].mxu0
        %v3768 = vadd.f32 0.0, %v3767
        %v3769 = vpop.f32.mrb[0].mxu0
        %v3770 = vpop.f32.mrb[0].mxu0
        %v3771 = vadd.f32 0.0, %v3770
        %v3772 = vpop.f32.mrb[0].mxu0
        %3773 = vmatprep.mubr.bf16.mxu0 0
        %3774 = vmatmul.mubr.bf16.gmra.mrb[0].mxu0 %v3687
        %v3775 = vpop.f32.mrb[0].mxu0
        %v3776 = vadd.f32 0.0, %v3775
        %v3777 = vpop.f32.mrb[0].mxu0
        %v3778 = vpop.f32.mrb[0].mxu0
        %v3779 = vadd.f32 0.0, %v3778
        %v3780 = vpop.f32.mrb[0].mxu0
        %3781 = vmatprep.mubr.bf16.mxu0 0
        %3782 = vmatmul.mubr.bf16.gmra.mrb[0].mxu0 %v3688
        %v3783 = vpop.f32.mrb[0].mxu0
        %v3784 = vadd.f32 0.0, %v3783
        %v3785 = vpop.f32.mrb[0].mxu0
        %v3786 = vpop.f32.mrb[0].mxu0
        %v3787 = vadd.f32 0.0, %v3786
        %v3788 = vpop.f32.mrb[0].mxu0
        %3789 = vmatprep.mubr.bf16.mxu0 0
        %3790 = vmatmul.mubr.bf16.gmra.mrb[0].mxu0 %v3689
        %v3791 = vpop.f32.mrb[0].mxu0
        %v3792 = vadd.f32 0.0, %v3791
        %v3793 = vpop.f32.mrb[0].mxu0
        %v3794 = vpop.f32.mrb[0].mxu0
        %v3795 = vadd.f32 0.0, %v3794
        %v3796 = vpop.f32.mrb[0].mxu0
        %3797 = vmatprep.mubr.bf16.mxu0 0
        %3798 = vmatmul.mubr.bf16.gmra.mrb[0].mxu0 %v3690
        %v3799 = vpop.f32.mrb[0].mxu0
        %v3800 = vadd.f32 0.0, %v3799
        %v3801 = vpop.f32.mrb[0].mxu0
        %v3802 = vpop.f32.mrb[0].mxu0
        %v3803 = vadd.f32 0.0, %v3802
        %v3804 = vpop.f32.mrb[0].mxu0
        %3805 = vmatprep.mubr.bf16.mxu0 0
        %3806 = vmatmul.mubr.bf16.gmra.mrb[0].mxu0 %v3691
        %v3807 = vpop.f32.mrb[0].mxu0
        %v3808 = vadd.f32 0.0, %v3807
        %v3809 = vpop.f32.mrb[0].mxu0
        %v3810 = vpop.f32.mrb[0].mxu0
        %v3811 = vadd.f32 0.0, %v3810
        %v3812 = vpop.f32.mrb[0].mxu0
        %3813 = vmatprep.mubr.bf16.mxu0 0
        %3814 = vmatmul.mubr.bf16.gmra.mrb[0].mxu0 %v3692
        %v3815 = vpop.f32.mrb[0].mxu0
        %v3816 = vadd.f32 0.0, %v3815
        %v3817 = vpop.f32.mrb[0].mxu0
        %v3818 = vpop.f32.mrb[0].mxu0
        %v3819 = vadd.f32 0.0, %v3818
        %v3820 = vpop.f32.mrb[0].mxu0
        %3821 = vdwg.mxu0
        %v3822 = vmul.f32 %v3760, %v3669
        %v3823 = vmul.f32 %v3763, %v3670
        %v3824 = vmul.f32 %v3768, %v3671
        %v3825 = vmul.f32 %v3771, %v3672
        %v3826 = vmul.f32 %v3776, %v3673
        %v3827 = vmul.f32 %v3779, %v3674
        %v3828 = vmul.f32 %v3784, %v3675
        %v3829 = vmul.f32 %v3787, %v3676
        %v3830 = vmul.f32 %v3792, %v3677
        %v3831 = vmul.f32 %v3795, %v3678
        %v3832 = vmul.f32 %v3800, %v3679
        %v3833 = vmul.f32 %v3803, %v3680
        %v3834 = vmul.f32 %v3808, %v3681
        %v3835 = vmul.f32 %v3811, %v3682
        %v3836 = vmul.f32 %v3816, %v3683
        %v3837 = vmul.f32 %v3819, %v3684
        %v3838 = vpack.c.bf16 %v3823, %v3822
        %v3839 = vpack.c.bf16 %v3825, %v3824
        %v3840 = vpack.c.bf16 %v3827, %v3826
        %v3841 = vpack.c.bf16 %v3829, %v3828
        %v3842 = vpack.c.bf16 %v3831, %v3830
        %v3843 = vpack.c.bf16 %v3833, %v3832
        %v3844 = vpack.c.bf16 %v3835, %v3834
        %v3845 = vpack.c.bf16 %v3837, %v3836
        %3854 = vrot.lane.b32.xlu0 %v3838, 64
        %v3855 = vpop.permute.xlu0 %3854
        %3856 = vrot.lane.b32.xlu0 %v3839, 64
        %v3857 = vpop.permute.xlu0 %3856
        %3858 = vrot.lane.b32.xlu0 %v3840, 64
        %v3859 = vpop.permute.xlu0 %3858
        %3860 = vrot.lane.b32.xlu0 %v3841, 64
        %v3861 = vpop.permute.xlu0 %3860
        %3862 = vrot.lane.b32.xlu0 %v3842, 64
        %v3863 = vpop.permute.xlu0 %3862
        %3864 = vrot.lane.b32.xlu0 %v3843, 64
        %v3865 = vpop.permute.xlu0 %3864
        %3866 = vrot.lane.b32.xlu0 %v3844, 64
        %v3867 = vpop.permute.xlu0 %3866
        %3868 = vrot.lane.b32.xlu0 %v3845, 64
        %v3869 = vpop.permute.xlu0 %3868
        %vm3878 = vcmask 1048064
        %3879 = vst.msk [vmem:[#allocation2] sm:$0xff] %vm3878, %v3855
        %3880 = vst.msk [vmem:[#allocation2 + $0x18] sm:$0xff] %vm3878, %v3857
        %3881 = vst.msk [vmem:[#allocation2 + $0x30] sm:$0xff] %vm3878, %v3859
        %3882 = vst.msk [vmem:[#allocation2 + $0x48] sm:$0xff] %vm3878, %v3861
        %3883 = vst.msk [vmem:[#allocation2 + $0x60] sm:$0xff] %vm3878, %v3863
        %3884 = vst.msk [vmem:[#allocation2 + $0x78] sm:$0xff] %vm3878, %v3865
        %3885 = vst.msk [vmem:[#allocation2 + $0x90] sm:$0xff] %vm3878, %v3867
        %3886 = vst.msk [vmem:[#allocation2 + $0xa8] sm:$0xff] %vm3878, %v3869
        %v3888 = vsel %vm2921, %v2815, 0
        %v3891 = vsel %vm2921, %v2824, 0
        %v3894 = vsel %vm2921, %v2833, 0
        %v3897 = vsel %vm2921, %v2842, 0
        %v3900 = vsel %vm2921, %v2851, 0
        %v3903 = vsel %vm2921, %v2860, 0
        %v3906 = vsel %vm2921, %v2869, 0
        %v3909 = vsel %vm2921, %v2878, 0
        %v3912 = vsel %vm2921, %v2818, 0
        %v3915 = vsel %vm2921, %v2827, 0
        %v3918 = vsel %vm2921, %v2836, 0
        %v3921 = vsel %vm2921, %v2845, 0
        %v3924 = vsel %vm2921, %v2854, 0
        %v3927 = vsel %vm2921, %v2863, 0
        %v3930 = vsel %vm2921, %v2872, 0
        %v3933 = vsel %vm2921, %v2881, 0
        %3935 = vmatprep.subr.bf16.mxu0 0
        %3936 = vmatpush1.bf16.xpose.msra.mxu0 %v3912
        %3937 = vmatprep.subr.bf16.mxu0 0
        %3938 = vmatpush1.bf16.xpose.msra.mxu0 %v3915
        %3939 = vmatprep.subr.bf16.mxu0 0
        %3940 = vmatpush1.bf16.xpose.msra.mxu0 %v3918
        %3941 = vmatprep.subr.bf16.mxu0 0
        %3942 = vmatpush1.bf16.xpose.msra.mxu0 %v3921
        %3943 = vmatprep.subr.bf16.mxu0 0
        %3944 = vmatpush1.bf16.xpose.msra.mxu0 %v3924
        %3945 = vmatprep.subr.bf16.mxu0 0
        %3946 = vmatpush1.bf16.xpose.msra.mxu0 %v3927
        %3947 = vmatprep.subr.bf16.mxu0 0
        %3948 = vmatpush1.bf16.xpose.msra.mxu0 %v3930
        %3949 = vmatprep.subr.bf16.mxu0 0
        %3950 = vmatpush1.bf16.xpose.msra.mxu0 %v3933
        %3951 = vmatprep.subr.bf16.mxu0 0
        %3952 = vmatpush1.bf16.xpose.msra.mxu0 0
        %3953 = vmatprep.subr.bf16.mxu0 0
        %3954 = vmatpush1.bf16.xpose.msra.mxu0 0
        %3955 = vmatprep.subr.bf16.mxu0 0
        %3956 = vmatpush1.bf16.xpose.msra.mxu0 0
        %3957 = vmatprep.subr.bf16.mxu0 0
        %3958 = vmatpush1.bf16.xpose.msra.mxu0 0
        %3959 = vmatprep.subr.bf16.mxu0 0
        %3960 = vmatpush1.bf16.xpose.msra.mxu0 0
        %3961 = vmatprep.subr.bf16.mxu0 0
        %3962 = vmatpush1.bf16.xpose.msra.mxu0 0
        %3963 = vmatprep.subr.bf16.mxu0 0
        %3964 = vmatpush1.bf16.xpose.msra.mxu0 0
        %3965 = vmatprep.subr.bf16.mxu0 0
        %3966 = vmatpush1.bf16.xpose.msra.mxu0 0
        %3967 = vmatprep.mubr.bf16.mxu0 0
        %3968 = vmatmul.mubr.bf16.gmra.mrb[0].mxu0 %v3888
        %v3969 = vpop.f32.mrb[0].mxu0
        %v3970 = vadd.f32 0.0, %v3969
        %v3971 = vpop.f32.mrb[0].mxu0
        %v3972 = vpop.f32.mrb[0].mxu0
        %v3973 = vadd.f32 0.0, %v3972
        %v3974 = vpop.f32.mrb[0].mxu0
        %3975 = vmatprep.mubr.bf16.mxu0 0
        %3976 = vmatmul.mubr.bf16.gmra.mrb[0].mxu0 %v3891
        %v3977 = vpop.f32.mrb[0].mxu0
        %v3978 = vadd.f32 0.0, %v3977
        %v3979 = vpop.f32.mrb[0].mxu0
        %v3980 = vpop.f32.mrb[0].mxu0
        %v3981 = vadd.f32 0.0, %v3980
        %v3982 = vpop.f32.mrb[0].mxu0
        %3983 = vmatprep.mubr.bf16.mxu0 0
        %3984 = vmatmul.mubr.bf16.gmra.mrb[0].mxu0 %v3894
        %v3985 = vpop.f32.mrb[0].mxu0
        %v3986 = vadd.f32 0.0, %v3985
        %v3987 = vpop.f32.mrb[0].mxu0
        %v3988 = vpop.f32.mrb[0].mxu0
        %v3989 = vadd.f32 0.0, %v3988
        %v3990 = vpop.f32.mrb[0].mxu0
        %3991 = vmatprep.mubr.bf16.mxu0 0
        %3992 = vmatmul.mubr.bf16.gmra.mrb[0].mxu0 %v3897
        %v3993 = vpop.f32.mrb[0].mxu0
        %v3994 = vadd.f32 0.0, %v3993
        %v3995 = vpop.f32.mrb[0].mxu0
        %v3996 = vpop.f32.mrb[0].mxu0
        %v3997 = vadd.f32 0.0, %v3996
        %v3998 = vpop.f32.mrb[0].mxu0
        %3999 = vmatprep.mubr.bf16.mxu0 0
        %4000 = vmatmul.mubr.bf16.gmra.mrb[0].mxu0 %v3900
        %v4001 = vpop.f32.mrb[0].mxu0
        %v4002 = vadd.f32 0.0, %v4001
        %v4003 = vpop.f32.mrb[0].mxu0
        %v4004 = vpop.f32.mrb[0].mxu0
        %v4005 = vadd.f32 0.0, %v4004
        %v4006 = vpop.f32.mrb[0].mxu0
        %4007 = vmatprep.mubr.bf16.mxu0 0
        %4008 = vmatmul.mubr.bf16.gmra.mrb[0].mxu0 %v3903
        %v4009 = vpop.f32.mrb[0].mxu0
        %v4010 = vadd.f32 0.0, %v4009
        %v4011 = vpop.f32.mrb[0].mxu0
        %v4012 = vpop.f32.mrb[0].mxu0
        %v4013 = vadd.f32 0.0, %v4012
        %v4014 = vpop.f32.mrb[0].mxu0
        %4015 = vmatprep.mubr.bf16.mxu0 0
        %4016 = vmatmul.mubr.bf16.gmra.mrb[0].mxu0 %v3906
        %v4017 = vpop.f32.mrb[0].mxu0
        %v4018 = vadd.f32 0.0, %v4017
        %v4019 = vpop.f32.mrb[0].mxu0
        %v4020 = vpop.f32.mrb[0].mxu0
        %v4021 = vadd.f32 0.0, %v4020
        %v4022 = vpop.f32.mrb[0].mxu0
        %4023 = vmatprep.mubr.bf16.mxu0 0
        %4024 = vmatmul.mubr.bf16.gmra.mrb[0].mxu0 %v3909
        %v4025 = vpop.f32.mrb[0].mxu0
        %v4026 = vadd.f32 0.0, %v4025
        %v4027 = vpop.f32.mrb[0].mxu0
        %v4028 = vpop.f32.mrb[0].mxu0
        %v4029 = vadd.f32 0.0, %v4028
        %v4030 = vpop.f32.mrb[0].mxu0
        %4031 = vdwg.mxu0
        %v4032 = vsel %vm2905, %v3970, -1e+30
        %v4033 = vsel %vm2906, %v3973, -1e+30
        %v4034 = vsel %vm2907, %v3978, -1e+30
        %v4035 = vsel %vm2908, %v3981, -1e+30
        %v4036 = vsel %vm2909, %v3986, -1e+30
        %v4037 = vsel %vm2910, %v3989, -1e+30
        %v4038 = vsel %vm2911, %v3994, -1e+30
        %v4039 = vsel %vm2912, %v3997, -1e+30
        %v4040 = vsel %vm2913, %v4002, -1e+30
        %v4041 = vsel %vm2914, %v4005, -1e+30
        %v4042 = vsel %vm2915, %v4010, -1e+30
        %v4043 = vsel %vm2916, %v4013, -1e+30
        %v4044 = vsel %vm2917, %v4018, -1e+30
        %v4045 = vsel %vm2918, %v4021, -1e+30
        %v4046 = vsel %vm2919, %v4026, -1e+30
        %v4047 = vsel %vm2920, %v4029, -1e+30
        %4048 = vmax.xlane.f32.xlu0 %v4032
        %v4049 = vpop.xlane.xlu0 %4048
        %4050 = vmax.xlane.f32.xlu0 %v4033
        %v4051 = vpop.xlane.xlu0 %4050
        %4052 = vmax.xlane.f32.xlu0 %v4034
        %v4053 = vpop.xlane.xlu0 %4052
        %4054 = vmax.xlane.f32.xlu0 %v4035
        %v4055 = vpop.xlane.xlu0 %4054
        %4056 = vmax.xlane.f32.xlu0 %v4036
        %v4057 = vpop.xlane.xlu0 %4056
        %4058 = vmax.xlane.f32.xlu0 %v4037
        %v4059 = vpop.xlane.xlu0 %4058
        %4060 = vmax.xlane.f32.xlu0 %v4038
        %v4061 = vpop.xlane.xlu0 %4060
        %4062 = vmax.xlane.f32.xlu0 %v4039
        %v4063 = vpop.xlane.xlu0 %4062
        %4064 = vmax.xlane.f32.xlu0 %v4040
        %v4065 = vpop.xlane.xlu0 %4064
        %4066 = vmax.xlane.f32.xlu0 %v4041
        %v4067 = vpop.xlane.xlu0 %4066
        %4068 = vmax.xlane.f32.xlu0 %v4042
        %v4069 = vpop.xlane.xlu0 %4068
        %4070 = vmax.xlane.f32.xlu0 %v4043
        %v4071 = vpop.xlane.xlu0 %4070
        %4072 = vmax.xlane.f32.xlu0 %v4044
        %v4073 = vpop.xlane.xlu0 %4072
        %4074 = vmax.xlane.f32.xlu0 %v4045
        %v4075 = vpop.xlane.xlu0 %4074
        %4076 = vmax.xlane.f32.xlu0 %v4046
        %v4077 = vpop.xlane.xlu0 %4076
        %4078 = vmax.xlane.f32.xlu0 %v4047
        %v4079 = vpop.xlane.xlu0 %4078
        %v4080 = vsub.f32 %v4032, %v4049
        %v4081 = vsub.f32 %v4033, %v4051
        %v4082 = vsub.f32 %v4034, %v4053
        %v4083 = vsub.f32 %v4035, %v4055
        %v4084 = vsub.f32 %v4036, %v4057
        %v4085 = vsub.f32 %v4037, %v4059
        %v4086 = vsub.f32 %v4038, %v4061
        %v4087 = vsub.f32 %v4039, %v4063
        %v4088 = vsub.f32 %v4040, %v4065
        %v4089 = vsub.f32 %v4041, %v4067
        %v4090 = vsub.f32 %v4042, %v4069
        %v4091 = vsub.f32 %v4043, %v4071
        %v4092 = vsub.f32 %v4044, %v4073
        %v4093 = vsub.f32 %v4045, %v4075
        %v4094 = vsub.f32 %v4046, %v4077
        %v4095 = vsub.f32 %v4047, %v4079
        %v4096 = vmul.f32 %v4080, 1.442695
        %v4097 = vpow.pop %v4096
        %v4098 = vmul.f32 %v4081, 1.442695
        %v4099 = vpow.pop %v4098
        %v4100 = vmul.f32 %v4082, 1.442695
        %v4101 = vpow.pop %v4100
        %v4102 = vmul.f32 %v4083, 1.442695
        %v4103 = vpow.pop %v4102
        %v4104 = vmul.f32 %v4084, 1.442695
        %v4105 = vpow.pop %v4104
        %v4106 = vmul.f32 %v4085, 1.442695
        %v4107 = vpow.pop %v4106
        %v4108 = vmul.f32 %v4086, 1.442695
        %v4109 = vpow.pop %v4108
        %v4110 = vmul.f32 %v4087, 1.442695
        %v4111 = vpow.pop %v4110
        %v4112 = vmul.f32 %v4088, 1.442695
        %v4113 = vpow.pop %v4112
        %v4114 = vmul.f32 %v4089, 1.442695
        %v4115 = vpow.pop %v4114
        %v4116 = vmul.f32 %v4090, 1.442695
        %v4117 = vpow.pop %v4116
        %v4118 = vmul.f32 %v4091, 1.442695
        %v4119 = vpow.pop %v4118
        %v4120 = vmul.f32 %v4092, 1.442695
        %v4121 = vpow.pop %v4120
        %v4122 = vmul.f32 %v4093, 1.442695
        %v4123 = vpow.pop %v4122
        %v4124 = vmul.f32 %v4094, 1.442695
        %v4125 = vpow.pop %v4124
        %v4126 = vmul.f32 %v4095, 1.442695
        %v4127 = vpow.pop %v4126
        %4128 = vadd.xlane.f32.xlu0 %v4097
        %v4129 = vpop.xlane.xlu0 %4128
        %4130 = vadd.xlane.f32.xlu0 %v4099
        %v4131 = vpop.xlane.xlu0 %4130
        %4132 = vadd.xlane.f32.xlu0 %v4101
        %v4133 = vpop.xlane.xlu0 %4132
        %4134 = vadd.xlane.f32.xlu0 %v4103
        %v4135 = vpop.xlane.xlu0 %4134
        %4136 = vadd.xlane.f32.xlu0 %v4105
        %v4137 = vpop.xlane.xlu0 %4136
        %4138 = vadd.xlane.f32.xlu0 %v4107
        %v4139 = vpop.xlane.xlu0 %4138
        %4140 = vadd.xlane.f32.xlu0 %v4109
        %v4141 = vpop.xlane.xlu0 %4140
        %4142 = vadd.xlane.f32.xlu0 %v4111
        %v4143 = vpop.xlane.xlu0 %4142
        %4144 = vadd.xlane.f32.xlu0 %v4113
        %v4145 = vpop.xlane.xlu0 %4144
        %4146 = vadd.xlane.f32.xlu0 %v4115
        %v4147 = vpop.xlane.xlu0 %4146
        %4148 = vadd.xlane.f32.xlu0 %v4117
        %v4149 = vpop.xlane.xlu0 %4148
        %4150 = vadd.xlane.f32.xlu0 %v4119
        %v4151 = vpop.xlane.xlu0 %4150
        %4152 = vadd.xlane.f32.xlu0 %v4121
        %v4153 = vpop.xlane.xlu0 %4152
        %4154 = vadd.xlane.f32.xlu0 %v4123
        %v4155 = vpop.xlane.xlu0 %4154
        %4156 = vadd.xlane.f32.xlu0 %v4125
        %v4157 = vpop.xlane.xlu0 %4156
        %4158 = vadd.xlane.f32.xlu0 %v4127
        %v4159 = vpop.xlane.xlu0 %4158
        %v4160 = vrcp.pop %v4129
        %v4161 = vrcp.pop %v4131
        %v4162 = vrcp.pop %v4133
        %v4163 = vrcp.pop %v4135
        %v4164 = vrcp.pop %v4137
        %v4165 = vrcp.pop %v4139
        %v4166 = vrcp.pop %v4141
        %v4167 = vrcp.pop %v4143
        %v4168 = vrcp.pop %v4145
        %v4169 = vrcp.pop %v4147
        %v4170 = vrcp.pop %v4149
        %v4171 = vrcp.pop %v4151
        %v4172 = vrcp.pop %v4153
        %v4173 = vrcp.pop %v4155
        %v4174 = vrcp.pop %v4157
        %v4175 = vrcp.pop %v4159
        %v4176 = vpack.c.bf16 %v4099, %v4097
        %v4177 = vpack.c.bf16 %v4103, %v4101
        %v4178 = vpack.c.bf16 %v4107, %v4105
        %v4179 = vpack.c.bf16 %v4111, %v4109
        %v4180 = vpack.c.bf16 %v4115, %v4113
        %v4181 = vpack.c.bf16 %v4119, %v4117
        %v4182 = vpack.c.bf16 %v4123, %v4121
        %v4183 = vpack.c.bf16 %v4127, %v4125
        %4184 = vmatprep.subr.bf16.mxu0 0
        %4185 = vmatpush1.bf16.msra.mxu0 %v2821
        %4186 = vmatprep.subr.bf16.mxu0 0
        %4187 = vmatpush1.bf16.msra.mxu0 %v2830
        %4188 = vmatprep.subr.bf16.mxu0 0
        %4189 = vmatpush1.bf16.msra.mxu0 %v2839
        %4190 = vmatprep.subr.bf16.mxu0 0
        %4191 = vmatpush1.bf16.msra.mxu0 %v2848
        %4192 = vmatprep.subr.bf16.mxu0 0
        %4193 = vmatpush1.bf16.msra.mxu0 %v2857
        %4194 = vmatprep.subr.bf16.mxu0 0
        %4195 = vmatpush1.bf16.msra.mxu0 %v2866
        %4196 = vmatprep.subr.bf16.mxu0 0
        %4197 = vmatpush1.bf16.msra.mxu0 %v2875
        %4198 = vmatprep.subr.bf16.mxu0 0
        %4199 = vmatpush1.bf16.msra.mxu0 %v2884
        %4200 = vmatprep.subr.bf16.mxu0 0
        %4201 = vmatpush1.bf16.msra.mxu0 0
        %4202 = vmatprep.subr.bf16.mxu0 0
        %4203 = vmatpush1.bf16.msra.mxu0 0
        %4204 = vmatprep.subr.bf16.mxu0 0
        %4205 = vmatpush1.bf16.msra.mxu0 0
        %4206 = vmatprep.subr.bf16.mxu0 0
        %4207 = vmatpush1.bf16.msra.mxu0 0
        %4208 = vmatprep.subr.bf16.mxu0 0
        %4209 = vmatpush1.bf16.msra.mxu0 0
        %4210 = vmatprep.subr.bf16.mxu0 0
        %4211 = vmatpush1.bf16.msra.mxu0 0
        %4212 = vmatprep.subr.bf16.mxu0 0
        %4213 = vmatpush1.bf16.msra.mxu0 0
        %4214 = vmatprep.subr.bf16.mxu0 0
        %4215 = vmatpush1.bf16.msra.mxu0 0
        %4216 = vmatprep.mubr.bf16.mxu0 0
        %4217 = vmatmul.mubr.bf16.gmra.mrb[0].mxu0 %v4176
        %v4218 = vpop.f32.mrb[0].mxu0
        %v4219 = vadd.f32 0.0, %v4218
        %v4220 = vpop.f32.mrb[0].mxu0
        %v4221 = vpop.f32.mrb[0].mxu0
        %v4222 = vadd.f32 0.0, %v4221
        %v4223 = vpop.f32.mrb[0].mxu0
        %4224 = vmatprep.mubr.bf16.mxu0 0
        %4225 = vmatmul.mubr.bf16.gmra.mrb[0].mxu0 %v4177
        %v4226 = vpop.f32.mrb[0].mxu0
        %v4227 = vadd.f32 0.0, %v4226
        %v4228 = vpop.f32.mrb[0].mxu0
        %v4229 = vpop.f32.mrb[0].mxu0
        %v4230 = vadd.f32 0.0, %v4229
        %v4231 = vpop.f32.mrb[0].mxu0
        %4232 = vmatprep.mubr.bf16.mxu0 0
        %4233 = vmatmul.mubr.bf16.gmra.mrb[0].mxu0 %v4178
        %v4234 = vpop.f32.mrb[0].mxu0
        %v4235 = vadd.f32 0.0, %v4234
        %v4236 = vpop.f32.mrb[0].mxu0
        %v4237 = vpop.f32.mrb[0].mxu0
        %v4238 = vadd.f32 0.0, %v4237
        %v4239 = vpop.f32.mrb[0].mxu0
        %4240 = vmatprep.mubr.bf16.mxu0 0
        %4241 = vmatmul.mubr.bf16.gmra.mrb[0].mxu0 %v4179
        %v4242 = vpop.f32.mrb[0].mxu0
        %v4243 = vadd.f32 0.0, %v4242
        %v4244 = vpop.f32.mrb[0].mxu0
        %v4245 = vpop.f32.mrb[0].mxu0
        %v4246 = vadd.f32 0.0, %v4245
        %v4247 = vpop.f32.mrb[0].mxu0
        %4248 = vmatprep.mubr.bf16.mxu0 0
        %4249 = vmatmul.mubr.bf16.gmra.mrb[0].mxu0 %v4180
        %v4250 = vpop.f32.mrb[0].mxu0
        %v4251 = vadd.f32 0.0, %v4250
        %v4252 = vpop.f32.mrb[0].mxu0
        %v4253 = vpop.f32.mrb[0].mxu0
        %v4254 = vadd.f32 0.0, %v4253
        %v4255 = vpop.f32.mrb[0].mxu0
        %4256 = vmatprep.mubr.bf16.mxu0 0
        %4257 = vmatmul.mubr.bf16.gmra.mrb[0].mxu0 %v4181
        %v4258 = vpop.f32.mrb[0].mxu0
        %v4259 = vadd.f32 0.0, %v4258
        %v4260 = vpop.f32.mrb[0].mxu0
        %v4261 = vpop.f32.mrb[0].mxu0
        %v4262 = vadd.f32 0.0, %v4261
        %v4263 = vpop.f32.mrb[0].mxu0
        %4264 = vmatprep.mubr.bf16.mxu0 0
        %4265 = vmatmul.mubr.bf16.gmra.mrb[0].mxu0 %v4182
        %v4266 = vpop.f32.mrb[0].mxu0
        %v4267 = vadd.f32 0.0, %v4266
        %v4268 = vpop.f32.mrb[0].mxu0
        %v4269 = vpop.f32.mrb[0].mxu0
        %v4270 = vadd.f32 0.0, %v4269
        %v4271 = vpop.f32.mrb[0].mxu0
        %4272 = vmatprep.mubr.bf16.mxu0 0
        %4273 = vmatmul.mubr.bf16.gmra.mrb[0].mxu0 %v4183
        %v4274 = vpop.f32.mrb[0].mxu0
        %v4275 = vadd.f32 0.0, %v4274
        %v4276 = vpop.f32.mrb[0].mxu0
        %v4277 = vpop.f32.mrb[0].mxu0
        %v4278 = vadd.f32 0.0, %v4277
        %v4279 = vpop.f32.mrb[0].mxu0
        %4280 = vdwg.mxu0
        %v4281 = vmul.f32 %v4219, %v4160
        %v4282 = vmul.f32 %v4222, %v4161
        %v4283 = vmul.f32 %v4227, %v4162
        %v4284 = vmul.f32 %v4230, %v4163
        %v4285 = vmul.f32 %v4235, %v4164
        %v4286 = vmul.f32 %v4238, %v4165
        %v4287 = vmul.f32 %v4243, %v4166
        %v4288 = vmul.f32 %v4246, %v4167
        %v4289 = vmul.f32 %v4251, %v4168
        %v4290 = vmul.f32 %v4254, %v4169
        %v4291 = vmul.f32 %v4259, %v4170
        %v4292 = vmul.f32 %v4262, %v4171
        %v4293 = vmul.f32 %v4267, %v4172
        %v4294 = vmul.f32 %v4270, %v4173
        %v4295 = vmul.f32 %v4275, %v4174
        %v4296 = vmul.f32 %v4278, %v4175
        %v4297 = vpack.c.bf16 %v4282, %v4281
        %v4298 = vpack.c.bf16 %v4284, %v4283
        %v4299 = vpack.c.bf16 %v4286, %v4285
        %v4300 = vpack.c.bf16 %v4288, %v4287
        %v4301 = vpack.c.bf16 %v4290, %v4289
        %v4302 = vpack.c.bf16 %v4292, %v4291
        %v4303 = vpack.c.bf16 %v4294, %v4293
        %v4304 = vpack.c.bf16 %v4296, %v4295
        %4305 = vst.msk [vmem:[#allocation2 + $0x8] sm:$0xff] %vm2921, %v4297
        %4306 = vst.msk [vmem:[#allocation2 + $0x20] sm:$0xff] %vm2921, %v4298
        %4307 = vst.msk [vmem:[#allocation2 + $0x38] sm:$0xff] %vm2921, %v4299
        %4308 = vst.msk [vmem:[#allocation2 + $0x50] sm:$0xff] %vm2921, %v4300
        %4309 = vst.msk [vmem:[#allocation2 + $0x68] sm:$0xff] %vm2921, %v4301
        %4310 = vst.msk [vmem:[#allocation2 + $0x80] sm:$0xff] %vm2921, %v4302
        %4311 = vst.msk [vmem:[#allocation2 + $0x98] sm:$0xff] %vm2921, %v4303
        %4312 = vst.msk [vmem:[#allocation2 + $0xb0] sm:$0xff] %vm2921, %v4304
        %4321 = vrot.lane.b32.xlu0 %v2815, 64
        %v4322 = vpop.permute.xlu0 %4321
        %4323 = vrot.lane.b32.xlu0 %v2824, 64
        %v4324 = vpop.permute.xlu0 %4323
        %4325 = vrot.lane.b32.xlu0 %v2833, 64
        %v4326 = vpop.permute.xlu0 %4325
        %4327 = vrot.lane.b32.xlu0 %v2842, 64
        %v4328 = vpop.permute.xlu0 %4327
        %4329 = vrot.lane.b32.xlu0 %v2851, 64
        %v4330 = vpop.permute.xlu0 %4329
        %4331 = vrot.lane.b32.xlu0 %v2860, 64
        %v4332 = vpop.permute.xlu0 %4331
        %4333 = vrot.lane.b32.xlu0 %v2869, 64
        %v4334 = vpop.permute.xlu0 %4333
        %4335 = vrot.lane.b32.xlu0 %v2878, 64
        %v4336 = vpop.permute.xlu0 %4335
        %4345 = vrot.lane.b32.xlu0 %v2818, 64
        %v4346 = vpop.permute.xlu0 %4345
        %4347 = vrot.lane.b32.xlu0 %v2827, 64
        %v4348 = vpop.permute.xlu0 %4347
        %4349 = vrot.lane.b32.xlu0 %v2836, 64
        %v4350 = vpop.permute.xlu0 %4349
        %4351 = vrot.lane.b32.xlu0 %v2845, 64
        %v4352 = vpop.permute.xlu0 %4351
        %4353 = vrot.lane.b32.xlu0 %v2854, 64
        %v4354 = vpop.permute.xlu0 %4353
        %4355 = vrot.lane.b32.xlu0 %v2863, 64
        %v4356 = vpop.permute.xlu0 %4355
        %4357 = vrot.lane.b32.xlu0 %v2872, 64
        %v4358 = vpop.permute.xlu0 %4357
        %4359 = vrot.lane.b32.xlu0 %v2881, 64
        %v4360 = vpop.permute.xlu0 %4359
        %v4362 = vsel %vm2921, %v4322, 0
        %v4365 = vsel %vm2921, %v4324, 0
        %v4368 = vsel %vm2921, %v4326, 0
        %v4371 = vsel %vm2921, %v4328, 0
        %v4374 = vsel %vm2921, %v4330, 0
        %v4377 = vsel %vm2921, %v4332, 0
        %v4380 = vsel %vm2921, %v4334, 0
        %v4383 = vsel %vm2921, %v4336, 0
        %v4386 = vsel %vm2921, %v4346, 0
        %v4389 = vsel %vm2921, %v4348, 0
        %v4392 = vsel %vm2921, %v4350, 0
        %v4395 = vsel %vm2921, %v4352, 0
        %v4398 = vsel %vm2921, %v4354, 0
        %v4401 = vsel %vm2921, %v4356, 0
        %v4404 = vsel %vm2921, %v4358, 0
        %v4407 = vsel %vm2921, %v4360, 0
        %4409 = vmatprep.subr.bf16.mxu0 0
        %4410 = vmatpush1.bf16.xpose.msra.mxu0 %v4386
        %4411 = vmatprep.subr.bf16.mxu0 0
        %4412 = vmatpush1.bf16.xpose.msra.mxu0 %v4389
        %4413 = vmatprep.subr.bf16.mxu0 0
        %4414 = vmatpush1.bf16.xpose.msra.mxu0 %v4392
        %4415 = vmatprep.subr.bf16.mxu0 0
        %4416 = vmatpush1.bf16.xpose.msra.mxu0 %v4395
        %4417 = vmatprep.subr.bf16.mxu0 0
        %4418 = vmatpush1.bf16.xpose.msra.mxu0 %v4398
        %4419 = vmatprep.subr.bf16.mxu0 0
        %4420 = vmatpush1.bf16.xpose.msra.mxu0 %v4401
        %4421 = vmatprep.subr.bf16.mxu0 0
        %4422 = vmatpush1.bf16.xpose.msra.mxu0 %v4404
        %4423 = vmatprep.subr.bf16.mxu0 0
        %4424 = vmatpush1.bf16.xpose.msra.mxu0 %v4407
        %4425 = vmatprep.subr.bf16.mxu0 0
        %4426 = vmatpush1.bf16.xpose.msra.mxu0 0
        %4427 = vmatprep.subr.bf16.mxu0 0
        %4428 = vmatpush1.bf16.xpose.msra.mxu0 0
        %4429 = vmatprep.subr.bf16.mxu0 0
        %4430 = vmatpush1.bf16.xpose.msra.mxu0 0
        %4431 = vmatprep.subr.bf16.mxu0 0
        %4432 = vmatpush1.bf16.xpose.msra.mxu0 0
        %4433 = vmatprep.subr.bf16.mxu0 0
        %4434 = vmatpush1.bf16.xpose.msra.mxu0 0
        %4435 = vmatprep.subr.bf16.mxu0 0
        %4436 = vmatpush1.bf16.xpose.msra.mxu0 0
        %4437 = vmatprep.subr.bf16.mxu0 0
        %4438 = vmatpush1.bf16.xpose.msra.mxu0 0
        %4439 = vmatprep.subr.bf16.mxu0 0
        %4440 = vmatpush1.bf16.xpose.msra.mxu0 0
        %4441 = vmatprep.mubr.bf16.mxu0 0
        %4442 = vmatmul.mubr.bf16.gmra.mrb[0].mxu0 %v4362
        %v4443 = vpop.f32.mrb[0].mxu0
        %v4444 = vadd.f32 0.0, %v4443
        %v4445 = vpop.f32.mrb[0].mxu0
        %v4446 = vpop.f32.mrb[0].mxu0
        %v4447 = vadd.f32 0.0, %v4446
        %v4448 = vpop.f32.mrb[0].mxu0
        %4449 = vmatprep.mubr.bf16.mxu0 0
        %4450 = vmatmul.mubr.bf16.gmra.mrb[0].mxu0 %v4365
        %v4451 = vpop.f32.mrb[0].mxu0
        %v4452 = vadd.f32 0.0, %v4451
        %v4453 = vpop.f32.mrb[0].mxu0
        %v4454 = vpop.f32.mrb[0].mxu0
        %v4455 = vadd.f32 0.0, %v4454
        %v4456 = vpop.f32.mrb[0].mxu0
        %4457 = vmatprep.mubr.bf16.mxu0 0
        %4458 = vmatmul.mubr.bf16.gmra.mrb[0].mxu0 %v4368
        %v4459 = vpop.f32.mrb[0].mxu0
        %v4460 = vadd.f32 0.0, %v4459
        %v4461 = vpop.f32.mrb[0].mxu0
        %v4462 = vpop.f32.mrb[0].mxu0
        %v4463 = vadd.f32 0.0, %v4462
        %v4464 = vpop.f32.mrb[0].mxu0
        %4465 = vmatprep.mubr.bf16.mxu0 0
        %4466 = vmatmul.mubr.bf16.gmra.mrb[0].mxu0 %v4371
        %v4467 = vpop.f32.mrb[0].mxu0
        %v4468 = vadd.f32 0.0, %v4467
        %v4469 = vpop.f32.mrb[0].mxu0
        %v4470 = vpop.f32.mrb[0].mxu0
        %v4471 = vadd.f32 0.0, %v4470
        %v4472 = vpop.f32.mrb[0].mxu0
        %4473 = vmatprep.mubr.bf16.mxu0 0
        %4474 = vmatmul.mubr.bf16.gmra.mrb[0].mxu0 %v4374
        %v4475 = vpop.f32.mrb[0].mxu0
        %v4476 = vadd.f32 0.0, %v4475
        %v4477 = vpop.f32.mrb[0].mxu0
        %v4478 = vpop.f32.mrb[0].mxu0
        %v4479 = vadd.f32 0.0, %v4478
        %v4480 = vpop.f32.mrb[0].mxu0
        %4481 = vmatprep.mubr.bf16.mxu0 0
        %4482 = vmatmul.mubr.bf16.gmra.mrb[0].mxu0 %v4377
        %v4483 = vpop.f32.mrb[0].mxu0
        %v4484 = vadd.f32 0.0, %v4483
        %v4485 = vpop.f32.mrb[0].mxu0
        %v4486 = vpop.f32.mrb[0].mxu0
        %v4487 = vadd.f32 0.0, %v4486
        %v4488 = vpop.f32.mrb[0].mxu0
        %4489 = vmatprep.mubr.bf16.mxu0 0
        %4490 = vmatmul.mubr.bf16.gmra.mrb[0].mxu0 %v4380
        %v4491 = vpop.f32.mrb[0].mxu0
        %v4492 = vadd.f32 0.0, %v4491
        %v4493 = vpop.f32.mrb[0].mxu0
        %v4494 = vpop.f32.mrb[0].mxu0
        %v4495 = vadd.f32 0.0, %v4494
        %v4496 = vpop.f32.mrb[0].mxu0
        %4497 = vmatprep.mubr.bf16.mxu0 0
        %4498 = vmatmul.mubr.bf16.gmra.mrb[0].mxu0 %v4383
        %v4499 = vpop.f32.mrb[0].mxu0
        %v4500 = vadd.f32 0.0, %v4499
        %v4501 = vpop.f32.mrb[0].mxu0
        %v4502 = vpop.f32.mrb[0].mxu0
        %v4503 = vadd.f32 0.0, %v4502
        %v4504 = vpop.f32.mrb[0].mxu0
        %4505 = vdwg.mxu0
        %v4506 = vsel %vm2905, %v4444, -1e+30
        %v4507 = vsel %vm2906, %v4447, -1e+30
        %v4508 = vsel %vm2907, %v4452, -1e+30
        %v4509 = vsel %vm2908, %v4455, -1e+30
        %v4510 = vsel %vm2909, %v4460, -1e+30
        %v4511 = vsel %vm2910, %v4463, -1e+30
        %v4512 = vsel %vm2911, %v4468, -1e+30
        %v4513 = vsel %vm2912, %v4471, -1e+30
        %v4514 = vsel %vm2913, %v4476, -1e+30
        %v4515 = vsel %vm2914, %v4479, -1e+30
        %v4516 = vsel %vm2915, %v4484, -1e+30
        %v4517 = vsel %vm2916, %v4487, -1e+30
        %v4518 = vsel %vm2917, %v4492, -1e+30
        %v4519 = vsel %vm2918, %v4495, -1e+30
        %v4520 = vsel %vm2919, %v4500, -1e+30
        %v4521 = vsel %vm2920, %v4503, -1e+30
        %4522 = vmax.xlane.f32.xlu0 %v4506
        %v4523 = vpop.xlane.xlu0 %4522
        %4524 = vmax.xlane.f32.xlu0 %v4507
        %v4525 = vpop.xlane.xlu0 %4524
        %4526 = vmax.xlane.f32.xlu0 %v4508
        %v4527 = vpop.xlane.xlu0 %4526
        %4528 = vmax.xlane.f32.xlu0 %v4509
        %v4529 = vpop.xlane.xlu0 %4528
        %4530 = vmax.xlane.f32.xlu0 %v4510
        %v4531 = vpop.xlane.xlu0 %4530
        %4532 = vmax.xlane.f32.xlu0 %v4511
        %v4533 = vpop.xlane.xlu0 %4532
        %4534 = vmax.xlane.f32.xlu0 %v4512
        %v4535 = vpop.xlane.xlu0 %4534
        %4536 = vmax.xlane.f32.xlu0 %v4513
        %v4537 = vpop.xlane.xlu0 %4536
        %4538 = vmax.xlane.f32.xlu0 %v4514
        %v4539 = vpop.xlane.xlu0 %4538
        %4540 = vmax.xlane.f32.xlu0 %v4515
        %v4541 = vpop.xlane.xlu0 %4540
        %4542 = vmax.xlane.f32.xlu0 %v4516
        %v4543 = vpop.xlane.xlu0 %4542
        %4544 = vmax.xlane.f32.xlu0 %v4517
        %v4545 = vpop.xlane.xlu0 %4544
        %4546 = vmax.xlane.f32.xlu0 %v4518
        %v4547 = vpop.xlane.xlu0 %4546
        %4548 = vmax.xlane.f32.xlu0 %v4519
        %v4549 = vpop.xlane.xlu0 %4548
        %4550 = vmax.xlane.f32.xlu0 %v4520
        %v4551 = vpop.xlane.xlu0 %4550
        %4552 = vmax.xlane.f32.xlu0 %v4521
        %v4553 = vpop.xlane.xlu0 %4552
        %v4554 = vsub.f32 %v4506, %v4523
        %v4555 = vsub.f32 %v4507, %v4525
        %v4556 = vsub.f32 %v4508, %v4527
        %v4557 = vsub.f32 %v4509, %v4529
        %v4558 = vsub.f32 %v4510, %v4531
        %v4559 = vsub.f32 %v4511, %v4533
        %v4560 = vsub.f32 %v4512, %v4535
        %v4561 = vsub.f32 %v4513, %v4537
        %v4562 = vsub.f32 %v4514, %v4539
        %v4563 = vsub.f32 %v4515, %v4541
        %v4564 = vsub.f32 %v4516, %v4543
        %v4565 = vsub.f32 %v4517, %v4545
        %v4566 = vsub.f32 %v4518, %v4547
        %v4567 = vsub.f32 %v4519, %v4549
        %v4568 = vsub.f32 %v4520, %v4551
        %v4569 = vsub.f32 %v4521, %v4553
        %v4570 = vmul.f32 %v4554, 1.442695
        %v4571 = vpow.pop %v4570
        %v4572 = vmul.f32 %v4555, 1.442695
        %v4573 = vpow.pop %v4572
        %v4574 = vmul.f32 %v4556, 1.442695
        %v4575 = vpow.pop %v4574
        %v4576 = vmul.f32 %v4557, 1.442695
        %v4577 = vpow.pop %v4576
        %v4578 = vmul.f32 %v4558, 1.442695
        %v4579 = vpow.pop %v4578
        %v4580 = vmul.f32 %v4559, 1.442695
        %v4581 = vpow.pop %v4580
        %v4582 = vmul.f32 %v4560, 1.442695
        %v4583 = vpow.pop %v4582
        %v4584 = vmul.f32 %v4561, 1.442695
        %v4585 = vpow.pop %v4584
        %v4586 = vmul.f32 %v4562, 1.442695
        %v4587 = vpow.pop %v4586
        %v4588 = vmul.f32 %v4563, 1.442695
        %v4589 = vpow.pop %v4588
        %v4590 = vmul.f32 %v4564, 1.442695
        %v4591 = vpow.pop %v4590
        %v4592 = vmul.f32 %v4565, 1.442695
        %v4593 = vpow.pop %v4592
        %v4594 = vmul.f32 %v4566, 1.442695
        %v4595 = vpow.pop %v4594
        %v4596 = vmul.f32 %v4567, 1.442695
        %v4597 = vpow.pop %v4596
        %v4598 = vmul.f32 %v4568, 1.442695
        %v4599 = vpow.pop %v4598
        %v4600 = vmul.f32 %v4569, 1.442695
        %v4601 = vpow.pop %v4600
        %4602 = vadd.xlane.f32.xlu0 %v4571
        %v4603 = vpop.xlane.xlu0 %4602
        %4604 = vadd.xlane.f32.xlu0 %v4573
        %v4605 = vpop.xlane.xlu0 %4604
        %4606 = vadd.xlane.f32.xlu0 %v4575
        %v4607 = vpop.xlane.xlu0 %4606
        %4608 = vadd.xlane.f32.xlu0 %v4577
        %v4609 = vpop.xlane.xlu0 %4608
        %4610 = vadd.xlane.f32.xlu0 %v4579
        %v4611 = vpop.xlane.xlu0 %4610
        %4612 = vadd.xlane.f32.xlu0 %v4581
        %v4613 = vpop.xlane.xlu0 %4612
        %4614 = vadd.xlane.f32.xlu0 %v4583
        %v4615 = vpop.xlane.xlu0 %4614
        %4616 = vadd.xlane.f32.xlu0 %v4585
        %v4617 = vpop.xlane.xlu0 %4616
        %4618 = vadd.xlane.f32.xlu0 %v4587
        %v4619 = vpop.xlane.xlu0 %4618
        %4620 = vadd.xlane.f32.xlu0 %v4589
        %v4621 = vpop.xlane.xlu0 %4620
        %4622 = vadd.xlane.f32.xlu0 %v4591
        %v4623 = vpop.xlane.xlu0 %4622
        %4624 = vadd.xlane.f32.xlu0 %v4593
        %v4625 = vpop.xlane.xlu0 %4624
        %4626 = vadd.xlane.f32.xlu0 %v4595
        %v4627 = vpop.xlane.xlu0 %4626
        %4628 = vadd.xlane.f32.xlu0 %v4597
        %v4629 = vpop.xlane.xlu0 %4628
        %4630 = vadd.xlane.f32.xlu0 %v4599
        %v4631 = vpop.xlane.xlu0 %4630
        %4632 = vadd.xlane.f32.xlu0 %v4601
        %v4633 = vpop.xlane.xlu0 %4632
        %v4634 = vrcp.pop %v4603
        %v4635 = vrcp.pop %v4605
        %v4636 = vrcp.pop %v4607
        %v4637 = vrcp.pop %v4609
        %v4638 = vrcp.pop %v4611
        %v4639 = vrcp.pop %v4613
        %v4640 = vrcp.pop %v4615
        %v4641 = vrcp.pop %v4617
        %v4642 = vrcp.pop %v4619
        %v4643 = vrcp.pop %v4621
        %v4644 = vrcp.pop %v4623
        %v4645 = vrcp.pop %v4625
        %v4646 = vrcp.pop %v4627
        %v4647 = vrcp.pop %v4629
        %v4648 = vrcp.pop %v4631
        %v4649 = vrcp.pop %v4633
        %v4650 = vpack.c.bf16 %v4573, %v4571
        %v4651 = vpack.c.bf16 %v4577, %v4575
        %v4652 = vpack.c.bf16 %v4581, %v4579
        %v4653 = vpack.c.bf16 %v4585, %v4583
        %v4654 = vpack.c.bf16 %v4589, %v4587
        %v4655 = vpack.c.bf16 %v4593, %v4591
        %v4656 = vpack.c.bf16 %v4597, %v4595
        %v4657 = vpack.c.bf16 %v4601, %v4599
        %4666 = vrot.lane.b32.xlu0 %v2821, 64
        %v4667 = vpop.permute.xlu0 %4666
        %4668 = vrot.lane.b32.xlu0 %v2830, 64
        %v4669 = vpop.permute.xlu0 %4668
        %4670 = vrot.lane.b32.xlu0 %v2839, 64
        %v4671 = vpop.permute.xlu0 %4670
        %4672 = vrot.lane.b32.xlu0 %v2848, 64
        %v4673 = vpop.permute.xlu0 %4672
        %4674 = vrot.lane.b32.xlu0 %v2857, 64
        %v4675 = vpop.permute.xlu0 %4674
        %4676 = vrot.lane.b32.xlu0 %v2866, 64
        %v4677 = vpop.permute.xlu0 %4676
        %4678 = vrot.lane.b32.xlu0 %v2875, 64
        %v4679 = vpop.permute.xlu0 %4678
        %4680 = vrot.lane.b32.xlu0 %v2884, 64
        %v4681 = vpop.permute.xlu0 %4680
        %4690 = vmatprep.subr.bf16.mxu0 0
        %4691 = vmatpush1.bf16.msra.mxu0 %v4667
        %4692 = vmatprep.subr.bf16.mxu0 0
        %4693 = vmatpush1.bf16.msra.mxu0 %v4669
        %4694 = vmatprep.subr.bf16.mxu0 0
        %4695 = vmatpush1.bf16.msra.mxu0 %v4671
        %4696 = vmatprep.subr.bf16.mxu0 0
        %4697 = vmatpush1.bf16.msra.mxu0 %v4673
        %4698 = vmatprep.subr.bf16.mxu0 0
        %4699 = vmatpush1.bf16.msra.mxu0 %v4675
        %4700 = vmatprep.subr.bf16.mxu0 0
        %4701 = vmatpush1.bf16.msra.mxu0 %v4677
        %4702 = vmatprep.subr.bf16.mxu0 0
        %4703 = vmatpush1.bf16.msra.mxu0 %v4679
        %4704 = vmatprep.subr.bf16.mxu0 0
        %4705 = vmatpush1.bf16.msra.mxu0 %v4681
        %4706 = vmatprep.subr.bf16.mxu0 0
        %4707 = vmatpush1.bf16.msra.mxu0 0
        %4708 = vmatprep.subr.bf16.mxu0 0
        %4709 = vmatpush1.bf16.msra.mxu0 0
        %4710 = vmatprep.subr.bf16.mxu0 0
        %4711 = vmatpush1.bf16.msra.mxu0 0
        %4712 = vmatprep.subr.bf16.mxu0 0
        %4713 = vmatpush1.bf16.msra.mxu0 0
        %4714 = vmatprep.subr.bf16.mxu0 0
        %4715 = vmatpush1.bf16.msra.mxu0 0
        %4716 = vmatprep.subr.bf16.mxu0 0
        %4717 = vmatpush1.bf16.msra.mxu0 0
        %4718 = vmatprep.subr.bf16.mxu0 0
        %4719 = vmatpush1.bf16.msra.mxu0 0
        %4720 = vmatprep.subr.bf16.mxu0 0
        %4721 = vmatpush1.bf16.msra.mxu0 0
        %4722 = vmatprep.mubr.bf16.mxu0 0
        %4723 = vmatmul.mubr.bf16.gmra.mrb[0].mxu0 %v4650
        %v4724 = vpop.f32.mrb[0].mxu0
        %v4725 = vadd.f32 0.0, %v4724
        %v4726 = vpop.f32.mrb[0].mxu0
        %v4727 = vpop.f32.mrb[0].mxu0
        %v4728 = vadd.f32 0.0, %v4727
        %v4729 = vpop.f32.mrb[0].mxu0
        %4730 = vmatprep.mubr.bf16.mxu0 0
        %4731 = vmatmul.mubr.bf16.gmra.mrb[0].mxu0 %v4651
        %v4732 = vpop.f32.mrb[0].mxu0
        %v4733 = vadd.f32 0.0, %v4732
        %v4734 = vpop.f32.mrb[0].mxu0
        %v4735 = vpop.f32.mrb[0].mxu0
        %v4736 = vadd.f32 0.0, %v4735
        %v4737 = vpop.f32.mrb[0].mxu0
        %4738 = vmatprep.mubr.bf16.mxu0 0
        %4739 = vmatmul.mubr.bf16.gmra.mrb[0].mxu0 %v4652
        %v4740 = vpop.f32.mrb[0].mxu0
        %v4741 = vadd.f32 0.0, %v4740
        %v4742 = vpop.f32.mrb[0].mxu0
        %v4743 = vpop.f32.mrb[0].mxu0
        %v4744 = vadd.f32 0.0, %v4743
        %v4745 = vpop.f32.mrb[0].mxu0
        %4746 = vmatprep.mubr.bf16.mxu0 0
        %4747 = vmatmul.mubr.bf16.gmra.mrb[0].mxu0 %v4653
        %v4748 = vpop.f32.mrb[0].mxu0
        %v4749 = vadd.f32 0.0, %v4748
        %v4750 = vpop.f32.mrb[0].mxu0
        %v4751 = vpop.f32.mrb[0].mxu0
        %v4752 = vadd.f32 0.0, %v4751
        %v4753 = vpop.f32.mrb[0].mxu0
        %4754 = vmatprep.mubr.bf16.mxu0 0
        %4755 = vmatmul.mubr.bf16.gmra.mrb[0].mxu0 %v4654
        %v4756 = vpop.f32.mrb[0].mxu0
        %v4757 = vadd.f32 0.0, %v4756
        %v4758 = vpop.f32.mrb[0].mxu0
        %v4759 = vpop.f32.mrb[0].mxu0
        %v4760 = vadd.f32 0.0, %v4759
        %v4761 = vpop.f32.mrb[0].mxu0
        %4762 = vmatprep.mubr.bf16.mxu0 0
        %4763 = vmatmul.mubr.bf16.gmra.mrb[0].mxu0 %v4655
        %v4764 = vpop.f32.mrb[0].mxu0
        %v4765 = vadd.f32 0.0, %v4764
        %v4766 = vpop.f32.mrb[0].mxu0
        %v4767 = vpop.f32.mrb[0].mxu0
        %v4768 = vadd.f32 0.0, %v4767
        %v4769 = vpop.f32.mrb[0].mxu0
        %4770 = vmatprep.mubr.bf16.mxu0 0
        %4771 = vmatmul.mubr.bf16.gmra.mrb[0].mxu0 %v4656
        %v4772 = vpop.f32.mrb[0].mxu0
        %v4773 = vadd.f32 0.0, %v4772
        %v4774 = vpop.f32.mrb[0].mxu0
        %v4775 = vpop.f32.mrb[0].mxu0
        %v4776 = vadd.f32 0.0, %v4775
        %v4777 = vpop.f32.mrb[0].mxu0
        %4778 = vmatprep.mubr.bf16.mxu0 0
        %4779 = vmatmul.mubr.bf16.gmra.mrb[0].mxu0 %v4657
        %v4780 = vpop.f32.mrb[0].mxu0
        %v4781 = vadd.f32 0.0, %v4780
        %v4782 = vpop.f32.mrb[0].mxu0
        %v4783 = vpop.f32.mrb[0].mxu0
        %v4784 = vadd.f32 0.0, %v4783
        %v4785 = vpop.f32.mrb[0].mxu0
        %4786 = vdwg.mxu0
        %v4787 = vmul.f32 %v4725, %v4634
        %v4788 = vmul.f32 %v4728, %v4635
        %v4789 = vmul.f32 %v4733, %v4636
        %v4790 = vmul.f32 %v4736, %v4637
        %v4791 = vmul.f32 %v4741, %v4638
        %v4792 = vmul.f32 %v4744, %v4639
        %v4793 = vmul.f32 %v4749, %v4640
        %v4794 = vmul.f32 %v4752, %v4641
        %v4795 = vmul.f32 %v4757, %v4642
        %v4796 = vmul.f32 %v4760, %v4643
        %v4797 = vmul.f32 %v4765, %v4644
        %v4798 = vmul.f32 %v4768, %v4645
        %v4799 = vmul.f32 %v4773, %v4646
        %v4800 = vmul.f32 %v4776, %v4647
        %v4801 = vmul.f32 %v4781, %v4648
        %v4802 = vmul.f32 %v4784, %v4649
        %v4803 = vpack.c.bf16 %v4788, %v4787
        %v4804 = vpack.c.bf16 %v4790, %v4789
        %v4805 = vpack.c.bf16 %v4792, %v4791
        %v4806 = vpack.c.bf16 %v4794, %v4793
        %v4807 = vpack.c.bf16 %v4796, %v4795
        %v4808 = vpack.c.bf16 %v4798, %v4797
        %v4809 = vpack.c.bf16 %v4800, %v4799
        %v4810 = vpack.c.bf16 %v4802, %v4801
        %4819 = vrot.lane.b32.xlu0 %v4803, 64
        %v4820 = vpop.permute.xlu0 %4819
        %4821 = vrot.lane.b32.xlu0 %v4804, 64
        %v4822 = vpop.permute.xlu0 %4821
        %4823 = vrot.lane.b32.xlu0 %v4805, 64
        %v4824 = vpop.permute.xlu0 %4823
        %4825 = vrot.lane.b32.xlu0 %v4806, 64
        %v4826 = vpop.permute.xlu0 %4825
        %4827 = vrot.lane.b32.xlu0 %v4807, 64
        %v4828 = vpop.permute.xlu0 %4827
        %4829 = vrot.lane.b32.xlu0 %v4808, 64
        %v4830 = vpop.permute.xlu0 %4829
        %4831 = vrot.lane.b32.xlu0 %v4809, 64
        %v4832 = vpop.permute.xlu0 %4831
        %4833 = vrot.lane.b32.xlu0 %v4810, 64
        %v4834 = vpop.permute.xlu0 %4833
        %4843 = vst.msk [vmem:[#allocation2 + $0x8] sm:$0xff] %vm3878, %v4820
        %4844 = vst.msk [vmem:[#allocation2 + $0x20] sm:$0xff] %vm3878, %v4822
        %4845 = vst.msk [vmem:[#allocation2 + $0x38] sm:$0xff] %vm3878, %v4824
        %4846 = vst.msk [vmem:[#allocation2 + $0x50] sm:$0xff] %vm3878, %v4826
        %4847 = vst.msk [vmem:[#allocation2 + $0x68] sm:$0xff] %vm3878, %v4828
        %4848 = vst.msk [vmem:[#allocation2 + $0x80] sm:$0xff] %vm3878, %v4830
        %4849 = vst.msk [vmem:[#allocation2 + $0x98] sm:$0xff] %vm3878, %v4832
        %4850 = vst.msk [vmem:[#allocation2 + $0xb0] sm:$0xff] %vm3878, %v4834
        %v4852 = vsel %vm2921, %v2816, 0
        %v4855 = vsel %vm2921, %v2825, 0
        %v4858 = vsel %vm2921, %v2834, 0
        %v4861 = vsel %vm2921, %v2843, 0
        %v4864 = vsel %vm2921, %v2852, 0
        %v4867 = vsel %vm2921, %v2861, 0
        %v4870 = vsel %vm2921, %v2870, 0
        %v4873 = vsel %vm2921, %v2879, 0
        %v4876 = vsel %vm2921, %v2819, 0
        %v4879 = vsel %vm2921, %v2828, 0
        %v4882 = vsel %vm2921, %v2837, 0
        %v4885 = vsel %vm2921, %v2846, 0
        %v4888 = vsel %vm2921, %v2855, 0
        %v4891 = vsel %vm2921, %v2864, 0
        %v4894 = vsel %vm2921, %v2873, 0
        %v4897 = vsel %vm2921, %v2882, 0
        %4899 = vmatprep.subr.bf16.mxu0 0
        %4900 = vmatpush1.bf16.xpose.msra.mxu0 %v4876
        %4901 = vmatprep.subr.bf16.mxu0 0
        %4902 = vmatpush1.bf16.xpose.msra.mxu0 %v4879
        %4903 = vmatprep.subr.bf16.mxu0 0
        %4904 = vmatpush1.bf16.xpose.msra.mxu0 %v4882
        %4905 = vmatprep.subr.bf16.mxu0 0
        %4906 = vmatpush1.bf16.xpose.msra.mxu0 %v4885
        %4907 = vmatprep.subr.bf16.mxu0 0
        %4908 = vmatpush1.bf16.xpose.msra.mxu0 %v4888
        %4909 = vmatprep.subr.bf16.mxu0 0
        %4910 = vmatpush1.bf16.xpose.msra.mxu0 %v4891
        %4911 = vmatprep.subr.bf16.mxu0 0
        %4912 = vmatpush1.bf16.xpose.msra.mxu0 %v4894
        %4913 = vmatprep.subr.bf16.mxu0 0
        %4914 = vmatpush1.bf16.xpose.msra.mxu0 %v4897
        %4915 = vmatprep.subr.bf16.mxu0 0
        %4916 = vmatpush1.bf16.xpose.msra.mxu0 0
        %4917 = vmatprep.subr.bf16.mxu0 0
        %4918 = vmatpush1.bf16.xpose.msra.mxu0 0
        %4919 = vmatprep.subr.bf16.mxu0 0
        %4920 = vmatpush1.bf16.xpose.msra.mxu0 0
        %4921 = vmatprep.subr.bf16.mxu0 0
        %4922 = vmatpush1.bf16.xpose.msra.mxu0 0
        %4923 = vmatprep.subr.bf16.mxu0 0
        %4924 = vmatpush1.bf16.xpose.msra.mxu0 0
        %4925 = vmatprep.subr.bf16.mxu0 0
        %4926 = vmatpush1.bf16.xpose.msra.mxu0 0
        %4927 = vmatprep.subr.bf16.mxu0 0
        %4928 = vmatpush1.bf16.xpose.msra.mxu0 0
        %4929 = vmatprep.subr.bf16.mxu0 0
        %4930 = vmatpush1.bf16.xpose.msra.mxu0 0
        %4931 = vmatprep.mubr.bf16.mxu0 0
        %4932 = vmatmul.mubr.bf16.gmra.mrb[0].mxu0 %v4852
        %v4933 = vpop.f32.mrb[0].mxu0
        %v4934 = vadd.f32 0.0, %v4933
        %v4935 = vpop.f32.mrb[0].mxu0
        %v4936 = vpop.f32.mrb[0].mxu0
        %v4937 = vadd.f32 0.0, %v4936
        %v4938 = vpop.f32.mrb[0].mxu0
        %4939 = vmatprep.mubr.bf16.mxu0 0
        %4940 = vmatmul.mubr.bf16.gmra.mrb[0].mxu0 %v4855
        %v4941 = vpop.f32.mrb[0].mxu0
        %v4942 = vadd.f32 0.0, %v4941
        %v4943 = vpop.f32.mrb[0].mxu0
        %v4944 = vpop.f32.mrb[0].mxu0
        %v4945 = vadd.f32 0.0, %v4944
        %v4946 = vpop.f32.mrb[0].mxu0
        %4947 = vmatprep.mubr.bf16.mxu0 0
        %4948 = vmatmul.mubr.bf16.gmra.mrb[0].mxu0 %v4858
        %v4949 = vpop.f32.mrb[0].mxu0
        %v4950 = vadd.f32 0.0, %v4949
        %v4951 = vpop.f32.mrb[0].mxu0
        %v4952 = vpop.f32.mrb[0].mxu0
        %v4953 = vadd.f32 0.0, %v4952
        %v4954 = vpop.f32.mrb[0].mxu0
        %4955 = vmatprep.mubr.bf16.mxu0 0
        %4956 = vmatmul.mubr.bf16.gmra.mrb[0].mxu0 %v4861
        %v4957 = vpop.f32.mrb[0].mxu0
        %v4958 = vadd.f32 0.0, %v4957
        %v4959 = vpop.f32.mrb[0].mxu0
        %v4960 = vpop.f32.mrb[0].mxu0
        %v4961 = vadd.f32 0.0, %v4960
        %v4962 = vpop.f32.mrb[0].mxu0
        %4963 = vmatprep.mubr.bf16.mxu0 0
        %4964 = vmatmul.mubr.bf16.gmra.mrb[0].mxu0 %v4864
        %v4965 = vpop.f32.mrb[0].mxu0
        %v4966 = vadd.f32 0.0, %v4965
        %v4967 = vpop.f32.mrb[0].mxu0
        %v4968 = vpop.f32.mrb[0].mxu0
        %v4969 = vadd.f32 0.0, %v4968
        %v4970 = vpop.f32.mrb[0].mxu0
        %4971 = vmatprep.mubr.bf16.mxu0 0
        %4972 = vmatmul.mubr.bf16.gmra.mrb[0].mxu0 %v4867
        %v4973 = vpop.f32.mrb[0].mxu0
        %v4974 = vadd.f32 0.0, %v4973
        %v4975 = vpop.f32.mrb[0].mxu0
        %v4976 = vpop.f32.mrb[0].mxu0
        %v4977 = vadd.f32 0.0, %v4976
        %v4978 = vpop.f32.mrb[0].mxu0
        %4979 = vmatprep.mubr.bf16.mxu0 0
        %4980 = vmatmul.mubr.bf16.gmra.mrb[0].mxu0 %v4870
        %v4981 = vpop.f32.mrb[0].mxu0
        %v4982 = vadd.f32 0.0, %v4981
        %v4983 = vpop.f32.mrb[0].mxu0
        %v4984 = vpop.f32.mrb[0].mxu0
        %v4985 = vadd.f32 0.0, %v4984
        %v4986 = vpop.f32.mrb[0].mxu0
        %4987 = vmatprep.mubr.bf16.mxu0 0
        %4988 = vmatmul.mubr.bf16.gmra.mrb[0].mxu0 %v4873
        %v4989 = vpop.f32.mrb[0].mxu0
        %v4990 = vadd.f32 0.0, %v4989
        %v4991 = vpop.f32.mrb[0].mxu0
        %v4992 = vpop.f32.mrb[0].mxu0
        %v4993 = vadd.f32 0.0, %v4992
        %v4994 = vpop.f32.mrb[0].mxu0
        %4995 = vdwg.mxu0
        %v4996 = vsel %vm2905, %v4934, -1e+30
        %v4997 = vsel %vm2906, %v4937, -1e+30
        %v4998 = vsel %vm2907, %v4942, -1e+30
        %v4999 = vsel %vm2908, %v4945, -1e+30
        %v5000 = vsel %vm2909, %v4950, -1e+30
        %v5001 = vsel %vm2910, %v4953, -1e+30
        %v5002 = vsel %vm2911, %v4958, -1e+30
        %v5003 = vsel %vm2912, %v4961, -1e+30
        %v5004 = vsel %vm2913, %v4966, -1e+30
        %v5005 = vsel %vm2914, %v4969, -1e+30
        %v5006 = vsel %vm2915, %v4974, -1e+30
        %v5007 = vsel %vm2916, %v4977, -1e+30
        %v5008 = vsel %vm2917, %v4982, -1e+30
        %v5009 = vsel %vm2918, %v4985, -1e+30
        %v5010 = vsel %vm2919, %v4990, -1e+30
        %v5011 = vsel %vm2920, %v4993, -1e+30
        %5012 = vmax.xlane.f32.xlu0 %v4996
        %v5013 = vpop.xlane.xlu0 %5012
        %5014 = vmax.xlane.f32.xlu0 %v4997
        %v5015 = vpop.xlane.xlu0 %5014
        %5016 = vmax.xlane.f32.xlu0 %v4998
        %v5017 = vpop.xlane.xlu0 %5016
        %5018 = vmax.xlane.f32.xlu0 %v4999
        %v5019 = vpop.xlane.xlu0 %5018
        %5020 = vmax.xlane.f32.xlu0 %v5000
        %v5021 = vpop.xlane.xlu0 %5020
        %5022 = vmax.xlane.f32.xlu0 %v5001
        %v5023 = vpop.xlane.xlu0 %5022
        %5024 = vmax.xlane.f32.xlu0 %v5002
        %v5025 = vpop.xlane.xlu0 %5024
        %5026 = vmax.xlane.f32.xlu0 %v5003
        %v5027 = vpop.xlane.xlu0 %5026
        %5028 = vmax.xlane.f32.xlu0 %v5004
        %v5029 = vpop.xlane.xlu0 %5028
        %5030 = vmax.xlane.f32.xlu0 %v5005
        %v5031 = vpop.xlane.xlu0 %5030
        %5032 = vmax.xlane.f32.xlu0 %v5006
        %v5033 = vpop.xlane.xlu0 %5032
        %5034 = vmax.xlane.f32.xlu0 %v5007
        %v5035 = vpop.xlane.xlu0 %5034
        %5036 = vmax.xlane.f32.xlu0 %v5008
        %v5037 = vpop.xlane.xlu0 %5036
        %5038 = vmax.xlane.f32.xlu0 %v5009
        %v5039 = vpop.xlane.xlu0 %5038
        %5040 = vmax.xlane.f32.xlu0 %v5010
        %v5041 = vpop.xlane.xlu0 %5040
        %5042 = vmax.xlane.f32.xlu0 %v5011
        %v5043 = vpop.xlane.xlu0 %5042
        %v5044 = vsub.f32 %v4996, %v5013
        %v5045 = vsub.f32 %v4997, %v5015
        %v5046 = vsub.f32 %v4998, %v5017
        %v5047 = vsub.f32 %v4999, %v5019
        %v5048 = vsub.f32 %v5000, %v5021
        %v5049 = vsub.f32 %v5001, %v5023
        %v5050 = vsub.f32 %v5002, %v5025
        %v5051 = vsub.f32 %v5003, %v5027
        %v5052 = vsub.f32 %v5004, %v5029
        %v5053 = vsub.f32 %v5005, %v5031
        %v5054 = vsub.f32 %v5006, %v5033
        %v5055 = vsub.f32 %v5007, %v5035
        %v5056 = vsub.f32 %v5008, %v5037
        %v5057 = vsub.f32 %v5009, %v5039
        %v5058 = vsub.f32 %v5010, %v5041
        %v5059 = vsub.f32 %v5011, %v5043
        %v5060 = vmul.f32 %v5044, 1.442695
        %v5061 = vpow.pop %v5060
        %v5062 = vmul.f32 %v5045, 1.442695
        %v5063 = vpow.pop %v5062
        %v5064 = vmul.f32 %v5046, 1.442695
        %v5065 = vpow.pop %v5064
        %v5066 = vmul.f32 %v5047, 1.442695
        %v5067 = vpow.pop %v5066
        %v5068 = vmul.f32 %v5048, 1.442695
        %v5069 = vpow.pop %v5068
        %v5070 = vmul.f32 %v5049, 1.442695
        %v5071 = vpow.pop %v5070
        %v5072 = vmul.f32 %v5050, 1.442695
        %v5073 = vpow.pop %v5072
        %v5074 = vmul.f32 %v5051, 1.442695
        %v5075 = vpow.pop %v5074
        %v5076 = vmul.f32 %v5052, 1.442695
        %v5077 = vpow.pop %v5076
        %v5078 = vmul.f32 %v5053, 1.442695
        %v5079 = vpow.pop %v5078
        %v5080 = vmul.f32 %v5054, 1.442695
        %v5081 = vpow.pop %v5080
        %v5082 = vmul.f32 %v5055, 1.442695
        %v5083 = vpow.pop %v5082
        %v5084 = vmul.f32 %v5056, 1.442695
        %v5085 = vpow.pop %v5084
        %v5086 = vmul.f32 %v5057, 1.442695
        %v5087 = vpow.pop %v5086
        %v5088 = vmul.f32 %v5058, 1.442695
        %v5089 = vpow.pop %v5088
        %v5090 = vmul.f32 %v5059, 1.442695
        %v5091 = vpow.pop %v5090
        %5092 = vadd.xlane.f32.xlu0 %v5061
        %v5093 = vpop.xlane.xlu0 %5092
        %5094 = vadd.xlane.f32.xlu0 %v5063
        %v5095 = vpop.xlane.xlu0 %5094
        %5096 = vadd.xlane.f32.xlu0 %v5065
        %v5097 = vpop.xlane.xlu0 %5096
        %5098 = vadd.xlane.f32.xlu0 %v5067
        %v5099 = vpop.xlane.xlu0 %5098
        %5100 = vadd.xlane.f32.xlu0 %v5069
        %v5101 = vpop.xlane.xlu0 %5100
        %5102 = vadd.xlane.f32.xlu0 %v5071
        %v5103 = vpop.xlane.xlu0 %5102
        %5104 = vadd.xlane.f32.xlu0 %v5073
        %v5105 = vpop.xlane.xlu0 %5104
        %5106 = vadd.xlane.f32.xlu0 %v5075
        %v5107 = vpop.xlane.xlu0 %5106
        %5108 = vadd.xlane.f32.xlu0 %v5077
        %v5109 = vpop.xlane.xlu0 %5108
        %5110 = vadd.xlane.f32.xlu0 %v5079
        %v5111 = vpop.xlane.xlu0 %5110
        %5112 = vadd.xlane.f32.xlu0 %v5081
        %v5113 = vpop.xlane.xlu0 %5112
        %5114 = vadd.xlane.f32.xlu0 %v5083
        %v5115 = vpop.xlane.xlu0 %5114
        %5116 = vadd.xlane.f32.xlu0 %v5085
        %v5117 = vpop.xlane.xlu0 %5116
        %5118 = vadd.xlane.f32.xlu0 %v5087
        %v5119 = vpop.xlane.xlu0 %5118
        %5120 = vadd.xlane.f32.xlu0 %v5089
        %v5121 = vpop.xlane.xlu0 %5120
        %5122 = vadd.xlane.f32.xlu0 %v5091
        %v5123 = vpop.xlane.xlu0 %5122
        %v5124 = vrcp.pop %v5093
        %v5125 = vrcp.pop %v5095
        %v5126 = vrcp.pop %v5097
        %v5127 = vrcp.pop %v5099
        %v5128 = vrcp.pop %v5101
        %v5129 = vrcp.pop %v5103
        %v5130 = vrcp.pop %v5105
        %v5131 = vrcp.pop %v5107
        %v5132 = vrcp.pop %v5109
        %v5133 = vrcp.pop %v5111
        %v5134 = vrcp.pop %v5113
        %v5135 = vrcp.pop %v5115
        %v5136 = vrcp.pop %v5117
        %v5137 = vrcp.pop %v5119
        %v5138 = vrcp.pop %v5121
        %v5139 = vrcp.pop %v5123
        %v5140 = vpack.c.bf16 %v5063, %v5061
        %v5141 = vpack.c.bf16 %v5067, %v5065
        %v5142 = vpack.c.bf16 %v5071, %v5069
        %v5143 = vpack.c.bf16 %v5075, %v5073
        %v5144 = vpack.c.bf16 %v5079, %v5077
        %v5145 = vpack.c.bf16 %v5083, %v5081
        %v5146 = vpack.c.bf16 %v5087, %v5085
        %v5147 = vpack.c.bf16 %v5091, %v5089
        %5148 = vmatprep.subr.bf16.mxu0 0
        %5149 = vmatpush1.bf16.msra.mxu0 %v2822
        %5150 = vmatprep.subr.bf16.mxu0 0
        %5151 = vmatpush1.bf16.msra.mxu0 %v2831
        %5152 = vmatprep.subr.bf16.mxu0 0
        %5153 = vmatpush1.bf16.msra.mxu0 %v2840
        %5154 = vmatprep.subr.bf16.mxu0 0
        %5155 = vmatpush1.bf16.msra.mxu0 %v2849
        %5156 = vmatprep.subr.bf16.mxu0 0
        %5157 = vmatpush1.bf16.msra.mxu0 %v2858
        %5158 = vmatprep.subr.bf16.mxu0 0
        %5159 = vmatpush1.bf16.msra.mxu0 %v2867
        %5160 = vmatprep.subr.bf16.mxu0 0
        %5161 = vmatpush1.bf16.msra.mxu0 %v2876
        %5162 = vmatprep.subr.bf16.mxu0 0
        %5163 = vmatpush1.bf16.msra.mxu0 %v2885
        %5164 = vmatprep.subr.bf16.mxu0 0
        %5165 = vmatpush1.bf16.msra.mxu0 0
        %5166 = vmatprep.subr.bf16.mxu0 0
        %5167 = vmatpush1.bf16.msra.mxu0 0
        %5168 = vmatprep.subr.bf16.mxu0 0
        %5169 = vmatpush1.bf16.msra.mxu0 0
        %5170 = vmatprep.subr.bf16.mxu0 0
        %5171 = vmatpush1.bf16.msra.mxu0 0
        %5172 = vmatprep.subr.bf16.mxu0 0
        %5173 = vmatpush1.bf16.msra.mxu0 0
        %5174 = vmatprep.subr.bf16.mxu0 0
        %5175 = vmatpush1.bf16.msra.mxu0 0
        %5176 = vmatprep.subr.bf16.mxu0 0
        %5177 = vmatpush1.bf16.msra.mxu0 0
        %5178 = vmatprep.subr.bf16.mxu0 0
        %5179 = vmatpush1.bf16.msra.mxu0 0
        %5180 = vmatprep.mubr.bf16.mxu0 0
        %5181 = vmatmul.mubr.bf16.gmra.mrb[0].mxu0 %v5140
        %v5182 = vpop.f32.mrb[0].mxu0
        %v5183 = vadd.f32 0.0, %v5182
        %v5184 = vpop.f32.mrb[0].mxu0
        %v5185 = vpop.f32.mrb[0].mxu0
        %v5186 = vadd.f32 0.0, %v5185
        %v5187 = vpop.f32.mrb[0].mxu0
        %5188 = vmatprep.mubr.bf16.mxu0 0
        %5189 = vmatmul.mubr.bf16.gmra.mrb[0].mxu0 %v5141
        %v5190 = vpop.f32.mrb[0].mxu0
        %v5191 = vadd.f32 0.0, %v5190
        %v5192 = vpop.f32.mrb[0].mxu0
        %v5193 = vpop.f32.mrb[0].mxu0
        %v5194 = vadd.f32 0.0, %v5193
        %v5195 = vpop.f32.mrb[0].mxu0
        %5196 = vmatprep.mubr.bf16.mxu0 0
        %5197 = vmatmul.mubr.bf16.gmra.mrb[0].mxu0 %v5142
        %v5198 = vpop.f32.mrb[0].mxu0
        %v5199 = vadd.f32 0.0, %v5198
        %v5200 = vpop.f32.mrb[0].mxu0
        %v5201 = vpop.f32.mrb[0].mxu0
        %v5202 = vadd.f32 0.0, %v5201
        %v5203 = vpop.f32.mrb[0].mxu0
        %5204 = vmatprep.mubr.bf16.mxu0 0
        %5205 = vmatmul.mubr.bf16.gmra.mrb[0].mxu0 %v5143
        %v5206 = vpop.f32.mrb[0].mxu0
        %v5207 = vadd.f32 0.0, %v5206
        %v5208 = vpop.f32.mrb[0].mxu0
        %v5209 = vpop.f32.mrb[0].mxu0
        %v5210 = vadd.f32 0.0, %v5209
        %v5211 = vpop.f32.mrb[0].mxu0
        %5212 = vmatprep.mubr.bf16.mxu0 0
        %5213 = vmatmul.mubr.bf16.gmra.mrb[0].mxu0 %v5144
        %v5214 = vpop.f32.mrb[0].mxu0
        %v5215 = vadd.f32 0.0, %v5214
        %v5216 = vpop.f32.mrb[0].mxu0
        %v5217 = vpop.f32.mrb[0].mxu0
        %v5218 = vadd.f32 0.0, %v5217
        %v5219 = vpop.f32.mrb[0].mxu0
        %5220 = vmatprep.mubr.bf16.mxu0 0
        %5221 = vmatmul.mubr.bf16.gmra.mrb[0].mxu0 %v5145
        %v5222 = vpop.f32.mrb[0].mxu0
        %v5223 = vadd.f32 0.0, %v5222
        %v5224 = vpop.f32.mrb[0].mxu0
        %v5225 = vpop.f32.mrb[0].mxu0
        %v5226 = vadd.f32 0.0, %v5225
        %v5227 = vpop.f32.mrb[0].mxu0
        %5228 = vmatprep.mubr.bf16.mxu0 0
        %5229 = vmatmul.mubr.bf16.gmra.mrb[0].mxu0 %v5146
        %v5230 = vpop.f32.mrb[0].mxu0
        %v5231 = vadd.f32 0.0, %v5230
        %v5232 = vpop.f32.mrb[0].mxu0
        %v5233 = vpop.f32.mrb[0].mxu0
        %v5234 = vadd.f32 0.0, %v5233
        %v5235 = vpop.f32.mrb[0].mxu0
        %5236 = vmatprep.mubr.bf16.mxu0 0
        %5237 = vmatmul.mubr.bf16.gmra.mrb[0].mxu0 %v5147
        %v5238 = vpop.f32.mrb[0].mxu0
        %v5239 = vadd.f32 0.0, %v5238
        %v5240 = vpop.f32.mrb[0].mxu0
        %v5241 = vpop.f32.mrb[0].mxu0
        %v5242 = vadd.f32 0.0, %v5241
        %v5243 = vpop.f32.mrb[0].mxu0
        %5244 = vdwg.mxu0
        %v5245 = vmul.f32 %v5183, %v5124
        %v5246 = vmul.f32 %v5186, %v5125
        %v5247 = vmul.f32 %v5191, %v5126
        %v5248 = vmul.f32 %v5194, %v5127
        %v5249 = vmul.f32 %v5199, %v5128
        %v5250 = vmul.f32 %v5202, %v5129
        %v5251 = vmul.f32 %v5207, %v5130
        %v5252 = vmul.f32 %v5210, %v5131
        %v5253 = vmul.f32 %v5215, %v5132
        %v5254 = vmul.f32 %v5218, %v5133
        %v5255 = vmul.f32 %v5223, %v5134
        %v5256 = vmul.f32 %v5226, %v5135
        %v5257 = vmul.f32 %v5231, %v5136
        %v5258 = vmul.f32 %v5234, %v5137
        %v5259 = vmul.f32 %v5239, %v5138
        %v5260 = vmul.f32 %v5242, %v5139
        %v5261 = vpack.c.bf16 %v5246, %v5245
        %v5262 = vpack.c.bf16 %v5248, %v5247
        %v5263 = vpack.c.bf16 %v5250, %v5249
        %v5264 = vpack.c.bf16 %v5252, %v5251
        %v5265 = vpack.c.bf16 %v5254, %v5253
        %v5266 = vpack.c.bf16 %v5256, %v5255
        %v5267 = vpack.c.bf16 %v5258, %v5257
        %v5268 = vpack.c.bf16 %v5260, %v5259
        %5269 = vst.msk [vmem:[#allocation2 + $0x10] sm:$0xff] %vm2921, %v5261
        %5270 = vst.msk [vmem:[#allocation2 + $0x28] sm:$0xff] %vm2921, %v5262
        %5271 = vst.msk [vmem:[#allocation2 + $0x40] sm:$0xff] %vm2921, %v5263
        %5272 = vst.msk [vmem:[#allocation2 + $0x58] sm:$0xff] %vm2921, %v5264
        %5273 = vst.msk [vmem:[#allocation2 + $0x70] sm:$0xff] %vm2921, %v5265
        %5274 = vst.msk [vmem:[#allocation2 + $0x88] sm:$0xff] %vm2921, %v5266
        %5275 = vst.msk [vmem:[#allocation2 + $0xa0] sm:$0xff] %vm2921, %v5267
        %5276 = vst.msk [vmem:[#allocation2 + $0xb8] sm:$0xff] %vm2921, %v5268
        %5285 = vrot.lane.b32.xlu0 %v2816, 64
        %v5286 = vpop.permute.xlu0 %5285
        %5287 = vrot.lane.b32.xlu0 %v2825, 64
        %v5288 = vpop.permute.xlu0 %5287
        %5289 = vrot.lane.b32.xlu0 %v2834, 64
        %v5290 = vpop.permute.xlu0 %5289
        %5291 = vrot.lane.b32.xlu0 %v2843, 64
        %v5292 = vpop.permute.xlu0 %5291
        %5293 = vrot.lane.b32.xlu0 %v2852, 64
        %v5294 = vpop.permute.xlu0 %5293
        %5295 = vrot.lane.b32.xlu0 %v2861, 64
        %v5296 = vpop.permute.xlu0 %5295
        %5297 = vrot.lane.b32.xlu0 %v2870, 64
        %v5298 = vpop.permute.xlu0 %5297
        %5299 = vrot.lane.b32.xlu0 %v2879, 64
        %v5300 = vpop.permute.xlu0 %5299
        %5309 = vrot.lane.b32.xlu0 %v2819, 64
        %v5310 = vpop.permute.xlu0 %5309
        %5311 = vrot.lane.b32.xlu0 %v2828, 64
        %v5312 = vpop.permute.xlu0 %5311
        %5313 = vrot.lane.b32.xlu0 %v2837, 64
        %v5314 = vpop.permute.xlu0 %5313
        %5315 = vrot.lane.b32.xlu0 %v2846, 64
        %v5316 = vpop.permute.xlu0 %5315
        %5317 = vrot.lane.b32.xlu0 %v2855, 64
        %v5318 = vpop.permute.xlu0 %5317
        %5319 = vrot.lane.b32.xlu0 %v2864, 64
        %v5320 = vpop.permute.xlu0 %5319
        %5321 = vrot.lane.b32.xlu0 %v2873, 64
        %v5322 = vpop.permute.xlu0 %5321
        %5323 = vrot.lane.b32.xlu0 %v2882, 64
        %v5324 = vpop.permute.xlu0 %5323
        %v5326 = vsel %vm2921, %v5286, 0
        %v5329 = vsel %vm2921, %v5288, 0
        %v5332 = vsel %vm2921, %v5290, 0
        %v5335 = vsel %vm2921, %v5292, 0
        %v5338 = vsel %vm2921, %v5294, 0
        %v5341 = vsel %vm2921, %v5296, 0
        %v5344 = vsel %vm2921, %v5298, 0
        %v5347 = vsel %vm2921, %v5300, 0
        %v5350 = vsel %vm2921, %v5310, 0
        %v5353 = vsel %vm2921, %v5312, 0
        %v5356 = vsel %vm2921, %v5314, 0
        %v5359 = vsel %vm2921, %v5316, 0
        %v5362 = vsel %vm2921, %v5318, 0
        %v5365 = vsel %vm2921, %v5320, 0
        %v5368 = vsel %vm2921, %v5322, 0
        %v5371 = vsel %vm2921, %v5324, 0
        %5373 = vmatprep.subr.bf16.mxu0 0
        %5374 = vmatpush1.bf16.xpose.msra.mxu0 %v5350
        %5375 = vmatprep.subr.bf16.mxu0 0
        %5376 = vmatpush1.bf16.xpose.msra.mxu0 %v5353
        %5377 = vmatprep.subr.bf16.mxu0 0
        %5378 = vmatpush1.bf16.xpose.msra.mxu0 %v5356
        %5379 = vmatprep.subr.bf16.mxu0 0
        %5380 = vmatpush1.bf16.xpose.msra.mxu0 %v5359
        %5381 = vmatprep.subr.bf16.mxu0 0
        %5382 = vmatpush1.bf16.xpose.msra.mxu0 %v5362
        %5383 = vmatprep.subr.bf16.mxu0 0
        %5384 = vmatpush1.bf16.xpose.msra.mxu0 %v5365
        %5385 = vmatprep.subr.bf16.mxu0 0
        %5386 = vmatpush1.bf16.xpose.msra.mxu0 %v5368
        %5387 = vmatprep.subr.bf16.mxu0 0
        %5388 = vmatpush1.bf16.xpose.msra.mxu0 %v5371
        %5389 = vmatprep.subr.bf16.mxu0 0
        %5390 = vmatpush1.bf16.xpose.msra.mxu0 0
        %5391 = vmatprep.subr.bf16.mxu0 0
        %5392 = vmatpush1.bf16.xpose.msra.mxu0 0
        %5393 = vmatprep.subr.bf16.mxu0 0
        %5394 = vmatpush1.bf16.xpose.msra.mxu0 0
        %5395 = vmatprep.subr.bf16.mxu0 0
        %5396 = vmatpush1.bf16.xpose.msra.mxu0 0
        %5397 = vmatprep.subr.bf16.mxu0 0
        %5398 = vmatpush1.bf16.xpose.msra.mxu0 0
        %5399 = vmatprep.subr.bf16.mxu0 0
        %5400 = vmatpush1.bf16.xpose.msra.mxu0 0
        %5401 = vmatprep.subr.bf16.mxu0 0
        %5402 = vmatpush1.bf16.xpose.msra.mxu0 0
        %5403 = vmatprep.subr.bf16.mxu0 0
        %5404 = vmatpush1.bf16.xpose.msra.mxu0 0
        %5405 = vmatprep.mubr.bf16.mxu0 0
        %5406 = vmatmul.mubr.bf16.gmra.mrb[0].mxu0 %v5326
        %v5407 = vpop.f32.mrb[0].mxu0
        %v5408 = vadd.f32 0.0, %v5407
        %v5409 = vpop.f32.mrb[0].mxu0
        %v5410 = vpop.f32.mrb[0].mxu0
        %v5411 = vadd.f32 0.0, %v5410
        %v5412 = vpop.f32.mrb[0].mxu0
        %5413 = vmatprep.mubr.bf16.mxu0 0
        %5414 = vmatmul.mubr.bf16.gmra.mrb[0].mxu0 %v5329
        %v5415 = vpop.f32.mrb[0].mxu0
        %v5416 = vadd.f32 0.0, %v5415
        %v5417 = vpop.f32.mrb[0].mxu0
        %v5418 = vpop.f32.mrb[0].mxu0
        %v5419 = vadd.f32 0.0, %v5418
        %v5420 = vpop.f32.mrb[0].mxu0
        %5421 = vmatprep.mubr.bf16.mxu0 0
        %5422 = vmatmul.mubr.bf16.gmra.mrb[0].mxu0 %v5332
        %v5423 = vpop.f32.mrb[0].mxu0
        %v5424 = vadd.f32 0.0, %v5423
        %v5425 = vpop.f32.mrb[0].mxu0
        %v5426 = vpop.f32.mrb[0].mxu0
        %v5427 = vadd.f32 0.0, %v5426
        %v5428 = vpop.f32.mrb[0].mxu0
        %5429 = vmatprep.mubr.bf16.mxu0 0
        %5430 = vmatmul.mubr.bf16.gmra.mrb[0].mxu0 %v5335
        %v5431 = vpop.f32.mrb[0].mxu0
        %v5432 = vadd.f32 0.0, %v5431
        %v5433 = vpop.f32.mrb[0].mxu0
        %v5434 = vpop.f32.mrb[0].mxu0
        %v5435 = vadd.f32 0.0, %v5434
        %v5436 = vpop.f32.mrb[0].mxu0
        %5437 = vmatprep.mubr.bf16.mxu0 0
        %5438 = vmatmul.mubr.bf16.gmra.mrb[0].mxu0 %v5338
        %v5439 = vpop.f32.mrb[0].mxu0
        %v5440 = vadd.f32 0.0, %v5439
        %v5441 = vpop.f32.mrb[0].mxu0
        %v5442 = vpop.f32.mrb[0].mxu0
        %v5443 = vadd.f32 0.0, %v5442
        %v5444 = vpop.f32.mrb[0].mxu0
        %5445 = vmatprep.mubr.bf16.mxu0 0
        %5446 = vmatmul.mubr.bf16.gmra.mrb[0].mxu0 %v5341
        %v5447 = vpop.f32.mrb[0].mxu0
        %v5448 = vadd.f32 0.0, %v5447
        %v5449 = vpop.f32.mrb[0].mxu0
        %v5450 = vpop.f32.mrb[0].mxu0
        %v5451 = vadd.f32 0.0, %v5450
        %v5452 = vpop.f32.mrb[0].mxu0
        %5453 = vmatprep.mubr.bf16.mxu0 0
        %5454 = vmatmul.mubr.bf16.gmra.mrb[0].mxu0 %v5344
        %v5455 = vpop.f32.mrb[0].mxu0
        %v5456 = vadd.f32 0.0, %v5455
        %v5457 = vpop.f32.mrb[0].mxu0
        %v5458 = vpop.f32.mrb[0].mxu0
        %v5459 = vadd.f32 0.0, %v5458
        %v5460 = vpop.f32.mrb[0].mxu0
        %5461 = vmatprep.mubr.bf16.mxu0 0
        %5462 = vmatmul.mubr.bf16.gmra.mrb[0].mxu0 %v5347
        %v5463 = vpop.f32.mrb[0].mxu0
        %v5464 = vadd.f32 0.0, %v5463
        %v5465 = vpop.f32.mrb[0].mxu0
        %v5466 = vpop.f32.mrb[0].mxu0
        %v5467 = vadd.f32 0.0, %v5466
        %v5468 = vpop.f32.mrb[0].mxu0
        %5469 = vdwg.mxu0
        %v5470 = vsel %vm2905, %v5408, -1e+30
        %v5471 = vsel %vm2906, %v5411, -1e+30
        %v5472 = vsel %vm2907, %v5416, -1e+30
        %v5473 = vsel %vm2908, %v5419, -1e+30
        %v5474 = vsel %vm2909, %v5424, -1e+30
        %v5475 = vsel %vm2910, %v5427, -1e+30
        %v5476 = vsel %vm2911, %v5432, -1e+30
        %v5477 = vsel %vm2912, %v5435, -1e+30
        %v5478 = vsel %vm2913, %v5440, -1e+30
        %v5479 = vsel %vm2914, %v5443, -1e+30
        %v5480 = vsel %vm2915, %v5448, -1e+30
        %v5481 = vsel %vm2916, %v5451, -1e+30
        %v5482 = vsel %vm2917, %v5456, -1e+30
        %v5483 = vsel %vm2918, %v5459, -1e+30
        %v5484 = vsel %vm2919, %v5464, -1e+30
        %v5485 = vsel %vm2920, %v5467, -1e+30
        %5486 = vmax.xlane.f32.xlu0 %v5470
        %v5487 = vpop.xlane.xlu0 %5486
        %5488 = vmax.xlane.f32.xlu0 %v5471
        %v5489 = vpop.xlane.xlu0 %5488
        %5490 = vmax.xlane.f32.xlu0 %v5472
        %v5491 = vpop.xlane.xlu0 %5490
        %5492 = vmax.xlane.f32.xlu0 %v5473
        %v5493 = vpop.xlane.xlu0 %5492
        %5494 = vmax.xlane.f32.xlu0 %v5474
        %v5495 = vpop.xlane.xlu0 %5494
        %5496 = vmax.xlane.f32.xlu0 %v5475
        %v5497 = vpop.xlane.xlu0 %5496
        %5498 = vmax.xlane.f32.xlu0 %v5476
        %v5499 = vpop.xlane.xlu0 %5498
        %5500 = vmax.xlane.f32.xlu0 %v5477
        %v5501 = vpop.xlane.xlu0 %5500
        %5502 = vmax.xlane.f32.xlu0 %v5478
        %v5503 = vpop.xlane.xlu0 %5502
        %5504 = vmax.xlane.f32.xlu0 %v5479
        %v5505 = vpop.xlane.xlu0 %5504
        %5506 = vmax.xlane.f32.xlu0 %v5480
        %v5507 = vpop.xlane.xlu0 %5506
        %5508 = vmax.xlane.f32.xlu0 %v5481
        %v5509 = vpop.xlane.xlu0 %5508
        %5510 = vmax.xlane.f32.xlu0 %v5482
        %v5511 = vpop.xlane.xlu0 %5510
        %5512 = vmax.xlane.f32.xlu0 %v5483
        %v5513 = vpop.xlane.xlu0 %5512
        %5514 = vmax.xlane.f32.xlu0 %v5484
        %v5515 = vpop.xlane.xlu0 %5514
        %5516 = vmax.xlane.f32.xlu0 %v5485
        %v5517 = vpop.xlane.xlu0 %5516
        %v5518 = vsub.f32 %v5470, %v5487
        %v5519 = vsub.f32 %v5471, %v5489
        %v5520 = vsub.f32 %v5472, %v5491
        %v5521 = vsub.f32 %v5473, %v5493
        %v5522 = vsub.f32 %v5474, %v5495
        %v5523 = vsub.f32 %v5475, %v5497
        %v5524 = vsub.f32 %v5476, %v5499
        %v5525 = vsub.f32 %v5477, %v5501
        %v5526 = vsub.f32 %v5478, %v5503
        %v5527 = vsub.f32 %v5479, %v5505
        %v5528 = vsub.f32 %v5480, %v5507
        %v5529 = vsub.f32 %v5481, %v5509
        %v5530 = vsub.f32 %v5482, %v5511
        %v5531 = vsub.f32 %v5483, %v5513
        %v5532 = vsub.f32 %v5484, %v5515
        %v5533 = vsub.f32 %v5485, %v5517
        %v5534 = vmul.f32 %v5518, 1.442695
        %v5535 = vpow.pop %v5534
        %v5536 = vmul.f32 %v5519, 1.442695
        %v5537 = vpow.pop %v5536
        %v5538 = vmul.f32 %v5520, 1.442695
        %v5539 = vpow.pop %v5538
        %v5540 = vmul.f32 %v5521, 1.442695
        %v5541 = vpow.pop %v5540
        %v5542 = vmul.f32 %v5522, 1.442695
        %v5543 = vpow.pop %v5542
        %v5544 = vmul.f32 %v5523, 1.442695
        %v5545 = vpow.pop %v5544
        %v5546 = vmul.f32 %v5524, 1.442695
        %v5547 = vpow.pop %v5546
        %v5548 = vmul.f32 %v5525, 1.442695
        %v5549 = vpow.pop %v5548
        %v5550 = vmul.f32 %v5526, 1.442695
        %v5551 = vpow.pop %v5550
        %v5552 = vmul.f32 %v5527, 1.442695
        %v5553 = vpow.pop %v5552
        %v5554 = vmul.f32 %v5528, 1.442695
        %v5555 = vpow.pop %v5554
        %v5556 = vmul.f32 %v5529, 1.442695
        %v5557 = vpow.pop %v5556
        %v5558 = vmul.f32 %v5530, 1.442695
        %v5559 = vpow.pop %v5558
        %v5560 = vmul.f32 %v5531, 1.442695
        %v5561 = vpow.pop %v5560
        %v5562 = vmul.f32 %v5532, 1.442695
        %v5563 = vpow.pop %v5562
        %v5564 = vmul.f32 %v5533, 1.442695
        %v5565 = vpow.pop %v5564
        %5566 = vadd.xlane.f32.xlu0 %v5535
        %v5567 = vpop.xlane.xlu0 %5566
        %5568 = vadd.xlane.f32.xlu0 %v5537
        %v5569 = vpop.xlane.xlu0 %5568
        %5570 = vadd.xlane.f32.xlu0 %v5539
        %v5571 = vpop.xlane.xlu0 %5570
        %5572 = vadd.xlane.f32.xlu0 %v5541
        %v5573 = vpop.xlane.xlu0 %5572
        %5574 = vadd.xlane.f32.xlu0 %v5543
        %v5575 = vpop.xlane.xlu0 %5574
        %5576 = vadd.xlane.f32.xlu0 %v5545
        %v5577 = vpop.xlane.xlu0 %5576
        %5578 = vadd.xlane.f32.xlu0 %v5547
        %v5579 = vpop.xlane.xlu0 %5578
        %5580 = vadd.xlane.f32.xlu0 %v5549
        %v5581 = vpop.xlane.xlu0 %5580
        %5582 = vadd.xlane.f32.xlu0 %v5551
        %v5583 = vpop.xlane.xlu0 %5582
        %5584 = vadd.xlane.f32.xlu0 %v5553
        %v5585 = vpop.xlane.xlu0 %5584
        %5586 = vadd.xlane.f32.xlu0 %v5555
        %v5587 = vpop.xlane.xlu0 %5586
        %5588 = vadd.xlane.f32.xlu0 %v5557
        %v5589 = vpop.xlane.xlu0 %5588
        %5590 = vadd.xlane.f32.xlu0 %v5559
        %v5591 = vpop.xlane.xlu0 %5590
        %5592 = vadd.xlane.f32.xlu0 %v5561
        %v5593 = vpop.xlane.xlu0 %5592
        %5594 = vadd.xlane.f32.xlu0 %v5563
        %v5595 = vpop.xlane.xlu0 %5594
        %5596 = vadd.xlane.f32.xlu0 %v5565
        %v5597 = vpop.xlane.xlu0 %5596
        %v5598 = vrcp.pop %v5567
        %v5599 = vrcp.pop %v5569
        %v5600 = vrcp.pop %v5571
        %v5601 = vrcp.pop %v5573
        %v5602 = vrcp.pop %v5575
        %v5603 = vrcp.pop %v5577
        %v5604 = vrcp.pop %v5579
        %v5605 = vrcp.pop %v5581
        %v5606 = vrcp.pop %v5583
        %v5607 = vrcp.pop %v5585
        %v5608 = vrcp.pop %v5587
        %v5609 = vrcp.pop %v5589
        %v5610 = vrcp.pop %v5591
        %v5611 = vrcp.pop %v5593
        %v5612 = vrcp.pop %v5595
        %v5613 = vrcp.pop %v5597
        %v5614 = vpack.c.bf16 %v5537, %v5535
        %v5615 = vpack.c.bf16 %v5541, %v5539
        %v5616 = vpack.c.bf16 %v5545, %v5543
        %v5617 = vpack.c.bf16 %v5549, %v5547
        %v5618 = vpack.c.bf16 %v5553, %v5551
        %v5619 = vpack.c.bf16 %v5557, %v5555
        %v5620 = vpack.c.bf16 %v5561, %v5559
        %v5621 = vpack.c.bf16 %v5565, %v5563
        %5630 = vrot.lane.b32.xlu0 %v2822, 64
        %v5631 = vpop.permute.xlu0 %5630
        %5632 = vrot.lane.b32.xlu0 %v2831, 64
        %v5633 = vpop.permute.xlu0 %5632
        %5634 = vrot.lane.b32.xlu0 %v2840, 64
        %v5635 = vpop.permute.xlu0 %5634
        %5636 = vrot.lane.b32.xlu0 %v2849, 64
        %v5637 = vpop.permute.xlu0 %5636
        %5638 = vrot.lane.b32.xlu0 %v2858, 64
        %v5639 = vpop.permute.xlu0 %5638
        %5640 = vrot.lane.b32.xlu0 %v2867, 64
        %v5641 = vpop.permute.xlu0 %5640
        %5642 = vrot.lane.b32.xlu0 %v2876, 64
        %v5643 = vpop.permute.xlu0 %5642
        %5644 = vrot.lane.b32.xlu0 %v2885, 64
        %v5645 = vpop.permute.xlu0 %5644
        %5654 = vmatprep.subr.bf16.mxu0 0
        %5655 = vmatpush1.bf16.msra.mxu0 %v5631
        %5656 = vmatprep.subr.bf16.mxu0 0
        %5657 = vmatpush1.bf16.msra.mxu0 %v5633
        %5658 = vmatprep.subr.bf16.mxu0 0
        %5659 = vmatpush1.bf16.msra.mxu0 %v5635
        %5660 = vmatprep.subr.bf16.mxu0 0
        %5661 = vmatpush1.bf16.msra.mxu0 %v5637
        %5662 = vmatprep.subr.bf16.mxu0 0
        %5663 = vmatpush1.bf16.msra.mxu0 %v5639
        %5664 = vmatprep.subr.bf16.mxu0 0
        %5665 = vmatpush1.bf16.msra.mxu0 %v5641
        %5666 = vmatprep.subr.bf16.mxu0 0
        %5667 = vmatpush1.bf16.msra.mxu0 %v5643
        %5668 = vmatprep.subr.bf16.mxu0 0
        %5669 = vmatpush1.bf16.msra.mxu0 %v5645
        %5670 = vmatprep.subr.bf16.mxu0 0
        %5671 = vmatpush1.bf16.msra.mxu0 0
        %5672 = vmatprep.subr.bf16.mxu0 0
        %5673 = vmatpush1.bf16.msra.mxu0 0
        %5674 = vmatprep.subr.bf16.mxu0 0
        %5675 = vmatpush1.bf16.msra.mxu0 0
        %5676 = vmatprep.subr.bf16.mxu0 0
        %5677 = vmatpush1.bf16.msra.mxu0 0
        %5678 = vmatprep.subr.bf16.mxu0 0
        %5679 = vmatpush1.bf16.msra.mxu0 0
        %5680 = vmatprep.subr.bf16.mxu0 0
        %5681 = vmatpush1.bf16.msra.mxu0 0
        %5682 = vmatprep.subr.bf16.mxu0 0
        %5683 = vmatpush1.bf16.msra.mxu0 0
        %5684 = vmatprep.subr.bf16.mxu0 0
        %5685 = vmatpush1.bf16.msra.mxu0 0
        %5686 = vmatprep.mubr.bf16.mxu0 0
        %5687 = vmatmul.mubr.bf16.gmra.mrb[0].mxu0 %v5614
        %v5688 = vpop.f32.mrb[0].mxu0
        %v5689 = vadd.f32 0.0, %v5688
        %v5690 = vpop.f32.mrb[0].mxu0
        %v5691 = vpop.f32.mrb[0].mxu0
        %v5692 = vadd.f32 0.0, %v5691
        %v5693 = vpop.f32.mrb[0].mxu0
        %5694 = vmatprep.mubr.bf16.mxu0 0
        %5695 = vmatmul.mubr.bf16.gmra.mrb[0].mxu0 %v5615
        %v5696 = vpop.f32.mrb[0].mxu0
        %v5697 = vadd.f32 0.0, %v5696
        %v5698 = vpop.f32.mrb[0].mxu0
        %v5699 = vpop.f32.mrb[0].mxu0
        %v5700 = vadd.f32 0.0, %v5699
        %v5701 = vpop.f32.mrb[0].mxu0
        %5702 = vmatprep.mubr.bf16.mxu0 0
        %5703 = vmatmul.mubr.bf16.gmra.mrb[0].mxu0 %v5616
        %v5704 = vpop.f32.mrb[0].mxu0
        %v5705 = vadd.f32 0.0, %v5704
        %v5706 = vpop.f32.mrb[0].mxu0
        %v5707 = vpop.f32.mrb[0].mxu0
        %v5708 = vadd.f32 0.0, %v5707
        %v5709 = vpop.f32.mrb[0].mxu0
        %5710 = vmatprep.mubr.bf16.mxu0 0
        %5711 = vmatmul.mubr.bf16.gmra.mrb[0].mxu0 %v5617
        %v5712 = vpop.f32.mrb[0].mxu0
        %v5713 = vadd.f32 0.0, %v5712
        %v5714 = vpop.f32.mrb[0].mxu0
        %v5715 = vpop.f32.mrb[0].mxu0
        %v5716 = vadd.f32 0.0, %v5715
        %v5717 = vpop.f32.mrb[0].mxu0
        %5718 = vmatprep.mubr.bf16.mxu0 0
        %5719 = vmatmul.mubr.bf16.gmra.mrb[0].mxu0 %v5618
        %v5720 = vpop.f32.mrb[0].mxu0
        %v5721 = vadd.f32 0.0, %v5720
        %v5722 = vpop.f32.mrb[0].mxu0
        %v5723 = vpop.f32.mrb[0].mxu0
        %v5724 = vadd.f32 0.0, %v5723
        %v5725 = vpop.f32.mrb[0].mxu0
        %5726 = vmatprep.mubr.bf16.mxu0 0
        %5727 = vmatmul.mubr.bf16.gmra.mrb[0].mxu0 %v5619
        %v5728 = vpop.f32.mrb[0].mxu0
        %v5729 = vadd.f32 0.0, %v5728
        %v5730 = vpop.f32.mrb[0].mxu0
        %v5731 = vpop.f32.mrb[0].mxu0
        %v5732 = vadd.f32 0.0, %v5731
        %v5733 = vpop.f32.mrb[0].mxu0
        %5734 = vmatprep.mubr.bf16.mxu0 0
        %5735 = vmatmul.mubr.bf16.gmra.mrb[0].mxu0 %v5620
        %v5736 = vpop.f32.mrb[0].mxu0
        %v5737 = vadd.f32 0.0, %v5736
        %v5738 = vpop.f32.mrb[0].mxu0
        %v5739 = vpop.f32.mrb[0].mxu0
        %v5740 = vadd.f32 0.0, %v5739
        %v5741 = vpop.f32.mrb[0].mxu0
        %5742 = vmatprep.mubr.bf16.mxu0 0
        %5743 = vmatmul.mubr.bf16.gmra.mrb[0].mxu0 %v5621
        %v5744 = vpop.f32.mrb[0].mxu0
        %v5745 = vadd.f32 0.0, %v5744
        %v5746 = vpop.f32.mrb[0].mxu0
        %v5747 = vpop.f32.mrb[0].mxu0
        %v5748 = vadd.f32 0.0, %v5747
        %v5749 = vpop.f32.mrb[0].mxu0
        %5750 = vdwg.mxu0
        %v5751 = vmul.f32 %v5689, %v5598
        %v5752 = vmul.f32 %v5692, %v5599
        %v5753 = vmul.f32 %v5697, %v5600
        %v5754 = vmul.f32 %v5700, %v5601
        %v5755 = vmul.f32 %v5705, %v5602
        %v5756 = vmul.f32 %v5708, %v5603
        %v5757 = vmul.f32 %v5713, %v5604
        %v5758 = vmul.f32 %v5716, %v5605
        %v5759 = vmul.f32 %v5721, %v5606
        %v5760 = vmul.f32 %v5724, %v5607
        %v5761 = vmul.f32 %v5729, %v5608
        %v5762 = vmul.f32 %v5732, %v5609
        %v5763 = vmul.f32 %v5737, %v5610
        %v5764 = vmul.f32 %v5740, %v5611
        %v5765 = vmul.f32 %v5745, %v5612
        %v5766 = vmul.f32 %v5748, %v5613
        %v5767 = vpack.c.bf16 %v5752, %v5751
        %v5768 = vpack.c.bf16 %v5754, %v5753
        %v5769 = vpack.c.bf16 %v5756, %v5755
        %v5770 = vpack.c.bf16 %v5758, %v5757
        %v5771 = vpack.c.bf16 %v5760, %v5759
        %v5772 = vpack.c.bf16 %v5762, %v5761
        %v5773 = vpack.c.bf16 %v5764, %v5763
        %v5774 = vpack.c.bf16 %v5766, %v5765
        %5783 = vrot.lane.b32.xlu0 %v5767, 64
        %v5784 = vpop.permute.xlu0 %5783
        %5785 = vrot.lane.b32.xlu0 %v5768, 64
        %v5786 = vpop.permute.xlu0 %5785
        %5787 = vrot.lane.b32.xlu0 %v5769, 64
        %v5788 = vpop.permute.xlu0 %5787
        %5789 = vrot.lane.b32.xlu0 %v5770, 64
        %v5790 = vpop.permute.xlu0 %5789
        %5791 = vrot.lane.b32.xlu0 %v5771, 64
        %v5792 = vpop.permute.xlu0 %5791
        %5793 = vrot.lane.b32.xlu0 %v5772, 64
        %v5794 = vpop.permute.xlu0 %5793
        %5795 = vrot.lane.b32.xlu0 %v5773, 64
        %v5796 = vpop.permute.xlu0 %5795
        %5797 = vrot.lane.b32.xlu0 %v5774, 64
        %v5798 = vpop.permute.xlu0 %5797
        %5807 = vst.msk [vmem:[#allocation2 + $0x10] sm:$0xff] %vm3878, %v5784
        %5808 = vst.msk [vmem:[#allocation2 + $0x28] sm:$0xff] %vm3878, %v5786
        %5809 = vst.msk [vmem:[#allocation2 + $0x40] sm:$0xff] %vm3878, %v5788
        %5810 = vst.msk [vmem:[#allocation2 + $0x58] sm:$0xff] %vm3878, %v5790
        %5811 = vst.msk [vmem:[#allocation2 + $0x70] sm:$0xff] %vm3878, %v5792
        %5812 = vst.msk [vmem:[#allocation2 + $0x88] sm:$0xff] %vm3878, %v5794
        %5813 = vst.msk [vmem:[#allocation2 + $0xa0] sm:$0xff] %vm3878, %v5796
        %5814 = vst.msk [vmem:[#allocation2 + $0xb8] sm:$0xff] %vm3878, %v5798
        %v5815 = vld [vmem:[#allocation2] sm:$0xff]
        %v5816 = vld [vmem:[#allocation2 + $0x8] sm:$0xff]
        %v5817 = vld [vmem:[#allocation2 + $0x10] sm:$0xff]
        %v5818 = vld [vmem:[#allocation2 + $0x18] sm:$0xff]
        %v5819 = vld [vmem:[#allocation2 + $0x20] sm:$0xff]
        %v5820 = vld [vmem:[#allocation2 + $0x28] sm:$0xff]
        %v5821 = vld [vmem:[#allocation2 + $0x30] sm:$0xff]
        %v5822 = vld [vmem:[#allocation2 + $0x38] sm:$0xff]
        %v5823 = vld [vmem:[#allocation2 + $0x40] sm:$0xff]
        %v5824 = vld [vmem:[#allocation2 + $0x48] sm:$0xff]
        %v5825 = vld [vmem:[#allocation2 + $0x50] sm:$0xff]
        %v5826 = vld [vmem:[#allocation2 + $0x58] sm:$0xff]
        %v5827 = vld [vmem:[#allocation2 + $0x60] sm:$0xff]
        %v5828 = vld [vmem:[#allocation2 + $0x68] sm:$0xff]
        %v5829 = vld [vmem:[#allocation2 + $0x70] sm:$0xff]
        %v5830 = vld [vmem:[#allocation2 + $0x78] sm:$0xff]
        %v5831 = vld [vmem:[#allocation2 + $0x80] sm:$0xff]
        %v5832 = vld [vmem:[#allocation2 + $0x88] sm:$0xff]
        %v5833 = vld [vmem:[#allocation2 + $0x90] sm:$0xff]
        %v5834 = vld [vmem:[#allocation2 + $0x98] sm:$0xff]
        %v5835 = vld [vmem:[#allocation2 + $0xa0] sm:$0xff]
        %v5836 = vld [vmem:[#allocation2 + $0xa8] sm:$0xff]
        %v5837 = vld [vmem:[#allocation2 + $0xb0] sm:$0xff]
        %v5838 = vld [vmem:[#allocation2 + $0xb8] sm:$0xff]
        %v5839 = vld [vmem:[%s2] sm:$0xff]
        %v5840 = vld [vmem:[%s2 + $0x8] sm:$0xf]
        %v5841 = vld [vmem:[%s2 + $0xc] sm:$0xff]
        %v5842 = vld [vmem:[%s2 + $0x14] sm:$0xf]
        %v5843 = vld [vmem:[%s2 + $0x18] sm:$0xff]
        %v5844 = vld [vmem:[%s2 + $0x20] sm:$0xf]
        %v5845 = vld [vmem:[%s2 + $0x24] sm:$0xff]
        %v5846 = vld [vmem:[%s2 + $0x2c] sm:$0xf]
        %v5847 = vld [vmem:[%s2 + $0x30] sm:$0xff]
        %v5848 = vld [vmem:[%s2 + $0x38] sm:$0xf]
        %v5849 = vld [vmem:[%s2 + $0x3c] sm:$0xff]
        %v5850 = vld [vmem:[%s2 + $0x44] sm:$0xf]
        %v5851 = vld [vmem:[%s2 + $0x48] sm:$0xff]
        %v5852 = vld [vmem:[%s2 + $0x50] sm:$0xf]
        %v5853 = vld [vmem:[%s2 + $0x54] sm:$0xff]
        %v5854 = vld [vmem:[%s2 + $0x5c] sm:$0xf]
        %v5855 = vld [vmem:[%s2 + $0x60] sm:$0xff]
        %v5856 = vld [vmem:[%s2 + $0x68] sm:$0xf]
        %v5857 = vld [vmem:[%s2 + $0x6c] sm:$0xff]
        %v5858 = vld [vmem:[%s2 + $0x74] sm:$0xf]
        %v5859 = vld [vmem:[%s2 + $0x78] sm:$0xff]
        %v5860 = vld [vmem:[%s2 + $0x80] sm:$0xf]
        %v5861 = vld [vmem:[%s2 + $0x84] sm:$0xff]
        %v5862 = vld [vmem:[%s2 + $0x8c] sm:$0xf]
        %v5863 = vld [vmem:[%s2 + $0x90] sm:$0xff]
        %v5864 = vld [vmem:[%s2 + $0x98] sm:$0xf]
        %v5865 = vld [vmem:[%s2 + $0x9c] sm:$0xff]
        %v5866 = vld [vmem:[%s2 + $0xa4] sm:$0xf]
        %v5867 = vld [vmem:[%s2 + $0xa8] sm:$0xff]
        %v5868 = vld [vmem:[%s2 + $0xb0] sm:$0xf]
        %v5869 = vld [vmem:[%s2 + $0xb4] sm:$0xff]
        %v5870 = vld [vmem:[%s2 + $0xbc] sm:$0xf]
        %v5871 = vld [vmem:[%s2 + $0xc0] sm:$0xff]
        %v5872 = vld [vmem:[%s2 + $0xc8] sm:$0xf]
        %v5873 = vld [vmem:[%s2 + $0xcc] sm:$0xff]
        %v5874 = vld [vmem:[%s2 + $0xd4] sm:$0xf]
        %v5875 = vld [vmem:[%s2 + $0xd8] sm:$0xff]
        %v5876 = vld [vmem:[%s2 + $0xe0] sm:$0xf]
        %v5877 = vld [vmem:[%s2 + $0xe4] sm:$0xff]
        %v5878 = vld [vmem:[%s2 + $0xec] sm:$0xf]
        %v5879 = vld [vmem:[%s2 + $0xf0] sm:$0xff]
        %v5880 = vld [vmem:[%s2 + $0xf8] sm:$0xf]
        %v5881 = vld [vmem:[%s2 + $0xfc] sm:$0xff]
        %v5882 = vld [vmem:[%s2 + $0x104] sm:$0xf]
        %v5883 = vld [vmem:[%s2 + $0x108] sm:$0xff]
        %v5884 = vld [vmem:[%s2 + $0x110] sm:$0xf]
        %v5885 = vld [vmem:[%s2 + $0x114] sm:$0xff]
        %v5886 = vld [vmem:[%s2 + $0x11c] sm:$0xf]
        %v5887 = vld [vmem:[%s2 + $0x120] sm:$0xff]
        %v5888 = vld [vmem:[%s2 + $0x128] sm:$0xf]
        %v5889 = vld [vmem:[%s2 + $0x12c] sm:$0xff]
        %v5890 = vld [vmem:[%s2 + $0x134] sm:$0xf]
        %v5891 = vld [vmem:[%s2 + $0x138] sm:$0xff]
        %v5892 = vld [vmem:[%s2 + $0x140] sm:$0xf]
        %v5893 = vld [vmem:[%s2 + $0x144] sm:$0xff]
        %v5894 = vld [vmem:[%s2 + $0x14c] sm:$0xf]
        %v5895 = vld [vmem:[%s2 + $0x150] sm:$0xff]
        %v5896 = vld [vmem:[%s2 + $0x158] sm:$0xf]
        %v5897 = vld [vmem:[%s2 + $0x15c] sm:$0xff]
        %v5898 = vld [vmem:[%s2 + $0x164] sm:$0xf]
        %v5899 = vld [vmem:[%s2 + $0x168] sm:$0xff]
        %v5900 = vld [vmem:[%s2 + $0x170] sm:$0xf]
        %v5901 = vld [vmem:[%s2 + $0x174] sm:$0xff]
        %v5902 = vld [vmem:[%s2 + $0x17c] sm:$0xf]
        %v5903 = vld [vmem:[%s2 + $0x180] sm:$0xff]
        %v5904 = vld [vmem:[%s2 + $0x188] sm:$0xf]
        %v5905 = vld [vmem:[%s2 + $0x18c] sm:$0xff]
        %v5906 = vld [vmem:[%s2 + $0x194] sm:$0xf]
        %v5907 = vld [vmem:[%s2 + $0x198] sm:$0xff]
        %v5908 = vld [vmem:[%s2 + $0x1a0] sm:$0xf]
        %v5909 = vld [vmem:[%s2 + $0x1a4] sm:$0xff]
        %v5910 = vld [vmem:[%s2 + $0x1ac] sm:$0xf]
        %v5911 = vld [vmem:[%s2 + $0x1b0] sm:$0xff]
        %v5912 = vld [vmem:[%s2 + $0x1b8] sm:$0xf]
        %v5913 = vld [vmem:[%s2 + $0x1bc] sm:$0xff]
        %v5914 = vld [vmem:[%s2 + $0x1c4] sm:$0xf]
        %v5915 = vld [vmem:[%s2 + $0x1c8] sm:$0xff]
        %v5916 = vld [vmem:[%s2 + $0x1d0] sm:$0xf]
        %v5917 = vld [vmem:[%s2 + $0x1d4] sm:$0xff]
        %v5918 = vld [vmem:[%s2 + $0x1dc] sm:$0xf]
        %v5919 = vld [vmem:[%s2 + $0x1e0] sm:$0xff]
        %v5920 = vld [vmem:[%s2 + $0x1e8] sm:$0xf]
        %v5921 = vld [vmem:[%s2 + $0x1ec] sm:$0xff]
        %v5922 = vld [vmem:[%s2 + $0x1f4] sm:$0xf]
        %v5923 = vld [vmem:[%s2 + $0x1f8] sm:$0xff]
        %v5924 = vld [vmem:[%s2 + $0x200] sm:$0xf]
        %v5925 = vld [vmem:[%s2 + $0x204] sm:$0xff]
        %v5926 = vld [vmem:[%s2 + $0x20c] sm:$0xf]
        %v5927 = vld [vmem:[%s2 + $0x210] sm:$0xff]
        %v5928 = vld [vmem:[%s2 + $0x218] sm:$0xf]
        %v5929 = vld [vmem:[%s2 + $0x21c] sm:$0xff]
        %v5930 = vld [vmem:[%s2 + $0x224] sm:$0xf]
        %v5931 = vld [vmem:[%s2 + $0x228] sm:$0xff]
        %v5932 = vld [vmem:[%s2 + $0x230] sm:$0xf]
        %v5933 = vld [vmem:[%s2 + $0x234] sm:$0xff]
        %v5934 = vld [vmem:[%s2 + $0x23c] sm:$0xf]
        %v5935 = vld [vmem:[%s3] sm:$0x7]
        %v5937 = vlaneseq
        %v5938 = vshrl.u32 %v5937, 7
        %v5939 = vsub.s32 0, %v5938
        %v5940 = vrot.slane %v5935, %v5939
        %v5941 = vlaneseq
        %v5942 = vshrl.u32 %v5941, 7
        %v5943 = vsub.s32 1, %v5942
        %v5944 = vrot.slane %v5935, %v5943
        %v5945 = vlaneseq
        %v5946 = vshrl.u32 %v5945, 7
        %v5947 = vsub.s32 2, %v5946
        %v5948 = vrot.slane %v5935, %v5947
        %v6048 = vunpack.c.l.b16 %v5839
        %v6049 = vunpack.c.h.b16 %v5839
        %v6050 = vunpack.c.l.b16 %v5840
        %v6051 = vunpack.c.l.b16 %v5841
        %v6052 = vunpack.c.h.b16 %v5841
        %v6053 = vunpack.c.l.b16 %v5842
        %v6054 = vunpack.c.l.b16 %v5843
        %v6055 = vunpack.c.h.b16 %v5843
        %v6056 = vunpack.c.l.b16 %v5844
        %v6057 = vunpack.c.l.b16 %v5845
        %v6058 = vunpack.c.h.b16 %v5845
        %v6059 = vunpack.c.l.b16 %v5846
        %v6060 = vunpack.c.l.b16 %v5847
        %v6061 = vunpack.c.h.b16 %v5847
        %v6062 = vunpack.c.l.b16 %v5848
        %v6063 = vunpack.c.l.b16 %v5849
        %v6064 = vunpack.c.h.b16 %v5849
        %v6065 = vunpack.c.l.b16 %v5850
        %v6066 = vunpack.c.l.b16 %v5851
        %v6067 = vunpack.c.h.b16 %v5851
        %v6068 = vunpack.c.l.b16 %v5852
        %v6069 = vunpack.c.l.b16 %v5853
        %v6070 = vunpack.c.h.b16 %v5853
        %v6071 = vunpack.c.l.b16 %v5854
        %v6072 = vunpack.c.l.b16 %v5855
        %v6073 = vunpack.c.h.b16 %v5855
        %v6074 = vunpack.c.l.b16 %v5856
        %v6075 = vunpack.c.l.b16 %v5857
        %v6076 = vunpack.c.h.b16 %v5857
        %v6077 = vunpack.c.l.b16 %v5858
        %v6078 = vunpack.c.l.b16 %v5859
        %v6079 = vunpack.c.h.b16 %v5859
        %v6080 = vunpack.c.l.b16 %v5860
        %v6081 = vunpack.c.l.b16 %v5861
        %v6082 = vunpack.c.h.b16 %v5861
        %v6083 = vunpack.c.l.b16 %v5862
        %v6084 = vunpack.c.l.b16 %v5863
        %v6085 = vunpack.c.h.b16 %v5863
        %v6086 = vunpack.c.l.b16 %v5864
        %v6087 = vunpack.c.l.b16 %v5865
        %v6088 = vunpack.c.h.b16 %v5865
        %v6089 = vunpack.c.l.b16 %v5866
        %v6090 = vunpack.c.l.b16 %v5867
        %v6091 = vunpack.c.h.b16 %v5867
        %v6092 = vunpack.c.l.b16 %v5868
        %v6093 = vunpack.c.l.b16 %v5869
        %v6094 = vunpack.c.h.b16 %v5869
        %v6095 = vunpack.c.l.b16 %v5870
        %v6096 = vunpack.c.l.b16 %v5871
        %v6097 = vunpack.c.h.b16 %v5871
        %v6098 = vunpack.c.l.b16 %v5872
        %v6099 = vunpack.c.l.b16 %v5873
        %v6100 = vunpack.c.h.b16 %v5873
        %v6101 = vunpack.c.l.b16 %v5874
        %v6102 = vunpack.c.l.b16 %v5875
        %v6103 = vunpack.c.h.b16 %v5875
        %v6104 = vunpack.c.l.b16 %v5876
        %v6105 = vunpack.c.l.b16 %v5877
        %v6106 = vunpack.c.h.b16 %v5877
        %v6107 = vunpack.c.l.b16 %v5878
        %v6108 = vunpack.c.l.b16 %v5879
        %v6109 = vunpack.c.h.b16 %v5879
        %v6110 = vunpack.c.l.b16 %v5880
        %v6111 = vunpack.c.l.b16 %v5881
        %v6112 = vunpack.c.h.b16 %v5881
        %v6113 = vunpack.c.l.b16 %v5882
        %v6114 = vunpack.c.l.b16 %v5883
        %v6115 = vunpack.c.h.b16 %v5883
        %v6116 = vunpack.c.l.b16 %v5884
        %v6117 = vunpack.c.l.b16 %v5885
        %v6118 = vunpack.c.h.b16 %v5885
        %v6119 = vunpack.c.l.b16 %v5886
        %v6120 = vunpack.c.l.b16 %v5887
        %v6121 = vunpack.c.h.b16 %v5887
        %v6122 = vunpack.c.l.b16 %v5888
        %v6123 = vunpack.c.l.b16 %v5889
        %v6124 = vunpack.c.h.b16 %v5889
        %v6125 = vunpack.c.l.b16 %v5890
        %v6126 = vunpack.c.l.b16 %v5891
        %v6127 = vunpack.c.h.b16 %v5891
        %v6128 = vunpack.c.l.b16 %v5892
        %v6129 = vunpack.c.l.b16 %v5893
        %v6130 = vunpack.c.h.b16 %v5893
        %v6131 = vunpack.c.l.b16 %v5894
        %v6132 = vunpack.c.l.b16 %v5895
        %v6133 = vunpack.c.h.b16 %v5895
        %v6134 = vunpack.c.l.b16 %v5896
        %v6135 = vunpack.c.l.b16 %v5897
        %v6136 = vunpack.c.h.b16 %v5897
        %v6137 = vunpack.c.l.b16 %v5898
        %v6138 = vunpack.c.l.b16 %v5899
        %v6139 = vunpack.c.h.b16 %v5899
        %v6140 = vunpack.c.l.b16 %v5900
        %v6141 = vunpack.c.l.b16 %v5901
        %v6142 = vunpack.c.h.b16 %v5901
        %v6143 = vunpack.c.l.b16 %v5902
        %v6144 = vunpack.c.l.b16 %v5903
        %v6145 = vunpack.c.h.b16 %v5903
        %v6146 = vunpack.c.l.b16 %v5904
        %v6147 = vunpack.c.l.b16 %v5905
        %v6148 = vunpack.c.h.b16 %v5905
        %v6149 = vunpack.c.l.b16 %v5906
        %v6150 = vunpack.c.l.b16 %v5907
        %v6151 = vunpack.c.h.b16 %v5907
        %v6152 = vunpack.c.l.b16 %v5908
        %v6153 = vunpack.c.l.b16 %v5909
        %v6154 = vunpack.c.h.b16 %v5909
        %v6155 = vunpack.c.l.b16 %v5910
        %v6156 = vunpack.c.l.b16 %v5911
        %v6157 = vunpack.c.h.b16 %v5911
        %v6158 = vunpack.c.l.b16 %v5912
        %v6159 = vunpack.c.l.b16 %v5913
        %v6160 = vunpack.c.h.b16 %v5913
        %v6161 = vunpack.c.l.b16 %v5914
        %v6162 = vunpack.c.l.b16 %v5915
        %v6163 = vunpack.c.h.b16 %v5915
        %v6164 = vunpack.c.l.b16 %v5916
        %v6165 = vunpack.c.l.b16 %v5917
        %v6166 = vunpack.c.h.b16 %v5917
        %v6167 = vunpack.c.l.b16 %v5918
        %v6168 = vunpack.c.l.b16 %v5919
        %v6169 = vunpack.c.h.b16 %v5919
        %v6170 = vunpack.c.l.b16 %v5920
        %v6171 = vunpack.c.l.b16 %v5921
        %v6172 = vunpack.c.h.b16 %v5921
        %v6173 = vunpack.c.l.b16 %v5922
        %v6174 = vunpack.c.l.b16 %v5923
        %v6175 = vunpack.c.h.b16 %v5923
        %v6176 = vunpack.c.l.b16 %v5924
        %v6177 = vunpack.c.l.b16 %v5925
        %v6178 = vunpack.c.h.b16 %v5925
        %v6179 = vunpack.c.l.b16 %v5926
        %v6180 = vunpack.c.l.b16 %v5927
        %v6181 = vunpack.c.h.b16 %v5927
        %v6182 = vunpack.c.l.b16 %v5928
        %v6183 = vunpack.c.l.b16 %v5929
        %v6184 = vunpack.c.h.b16 %v5929
        %v6185 = vunpack.c.l.b16 %v5930
        %v6186 = vunpack.c.l.b16 %v5931
        %v6187 = vunpack.c.h.b16 %v5931
        %v6188 = vunpack.c.l.b16 %v5932
        %v6189 = vunpack.c.l.b16 %v5933
        %v6190 = vunpack.c.h.b16 %v5933
        %v6191 = vunpack.c.l.b16 %v5934
        %v6192 = vpack.c.b16 %v6051, %v6048
        %v6193 = vpack.c.b16 %v6052, %v6049
        %v6194 = vpack.c.b16 %v6053, %v6050
        %v6195 = vpack.c.b16 %v6057, %v6054
        %v6196 = vpack.c.b16 %v6058, %v6055
        %v6197 = vpack.c.b16 %v6059, %v6056
        %v6198 = vpack.c.b16 %v6063, %v6060
        %v6199 = vpack.c.b16 %v6064, %v6061
        %v6200 = vpack.c.b16 %v6065, %v6062
        %v6201 = vpack.c.b16 %v6069, %v6066
        %v6202 = vpack.c.b16 %v6070, %v6067
        %v6203 = vpack.c.b16 %v6071, %v6068
        %v6204 = vpack.c.b16 %v6075, %v6072
        %v6205 = vpack.c.b16 %v6076, %v6073
        %v6206 = vpack.c.b16 %v6077, %v6074
        %v6207 = vpack.c.b16 %v6081, %v6078
        %v6208 = vpack.c.b16 %v6082, %v6079
        %v6209 = vpack.c.b16 %v6083, %v6080
        %v6210 = vpack.c.b16 %v6087, %v6084
        %v6211 = vpack.c.b16 %v6088, %v6085
        %v6212 = vpack.c.b16 %v6089, %v6086
        %v6213 = vpack.c.b16 %v6093, %v6090
        %v6214 = vpack.c.b16 %v6094, %v6091
        %v6215 = vpack.c.b16 %v6095, %v6092
        %v6216 = vpack.c.b16 %v6099, %v6096
        %v6217 = vpack.c.b16 %v6100, %v6097
        %v6218 = vpack.c.b16 %v6101, %v6098
        %v6219 = vpack.c.b16 %v6105, %v6102
        %v6220 = vpack.c.b16 %v6106, %v6103
        %v6221 = vpack.c.b16 %v6107, %v6104
        %v6222 = vpack.c.b16 %v6111, %v6108
        %v6223 = vpack.c.b16 %v6112, %v6109
        %v6224 = vpack.c.b16 %v6113, %v6110
        %v6225 = vpack.c.b16 %v6117, %v6114
        %v6226 = vpack.c.b16 %v6118, %v6115
        %v6227 = vpack.c.b16 %v6119, %v6116
        %v6228 = vpack.c.b16 %v6123, %v6120
        %v6229 = vpack.c.b16 %v6124, %v6121
        %v6230 = vpack.c.b16 %v6125, %v6122
        %v6231 = vpack.c.b16 %v6129, %v6126
        %v6232 = vpack.c.b16 %v6130, %v6127
        %v6233 = vpack.c.b16 %v6131, %v6128
        %v6234 = vpack.c.b16 %v6135, %v6132
        %v6235 = vpack.c.b16 %v6136, %v6133
        %v6236 = vpack.c.b16 %v6137, %v6134
        %v6237 = vpack.c.b16 %v6141, %v6138
        %v6238 = vpack.c.b16 %v6142, %v6139
        %v6239 = vpack.c.b16 %v6143, %v6140
        %v6240 = vpack.c.b16 %v6147, %v6144
        %v6241 = vpack.c.b16 %v6148, %v6145
        %v6242 = vpack.c.b16 %v6149, %v6146
        %v6243 = vpack.c.b16 %v6153, %v6150
        %v6244 = vpack.c.b16 %v6154, %v6151
        %v6245 = vpack.c.b16 %v6155, %v6152
        %v6246 = vpack.c.b16 %v6159, %v6156
        %v6247 = vpack.c.b16 %v6160, %v6157
        %v6248 = vpack.c.b16 %v6161, %v6158
        %v6249 = vpack.c.b16 %v6165, %v6162
        %v6250 = vpack.c.b16 %v6166, %v6163
        %v6251 = vpack.c.b16 %v6167, %v6164
        %v6252 = vpack.c.b16 %v6171, %v6168
        %v6253 = vpack.c.b16 %v6172, %v6169
        %v6254 = vpack.c.b16 %v6173, %v6170
        %v6255 = vpack.c.b16 %v6177, %v6174
        %v6256 = vpack.c.b16 %v6178, %v6175
        %v6257 = vpack.c.b16 %v6179, %v6176
        %v6258 = vpack.c.b16 %v6183, %v6180
        %v6259 = vpack.c.b16 %v6184, %v6181
        %v6260 = vpack.c.b16 %v6185, %v6182
        %v6261 = vpack.c.b16 %v6189, %v6186
        %v6262 = vpack.c.b16 %v6190, %v6187
        %v6263 = vpack.c.b16 %v6191, %v6188
        %6336 = vmatprep.subr.bf16.mxu0 %v6193
        %6337 = vmatpush1.bf16.msra.mxu0 %v6192
        %6338 = vmatprep.subr.bf16.mxu0 %v6196
        %6339 = vmatpush1.bf16.msra.mxu0 %v6195
        %6340 = vmatprep.subr.bf16.mxu0 %v6199
        %6341 = vmatpush1.bf16.msra.mxu0 %v6198
        %6342 = vmatprep.subr.bf16.mxu0 %v6202
        %6343 = vmatpush1.bf16.msra.mxu0 %v6201
        %6344 = vmatprep.subr.bf16.mxu0 %v6205
        %6345 = vmatpush1.bf16.msra.mxu0 %v6204
        %6346 = vmatprep.subr.bf16.mxu0 %v6208
        %6347 = vmatpush1.bf16.msra.mxu0 %v6207
        %6348 = vmatprep.subr.bf16.mxu0 %v6211
        %6349 = vmatpush1.bf16.msra.mxu0 %v6210
        %6350 = vmatprep.subr.bf16.mxu0 %v6214
        %6351 = vmatpush1.bf16.msra.mxu0 %v6213
        %6352 = vmatprep.subr.bf16.mxu0 %v6217
        %6353 = vmatpush1.bf16.msra.mxu0 %v6216
        %6354 = vmatprep.subr.bf16.mxu0 %v6220
        %6355 = vmatpush1.bf16.msra.mxu0 %v6219
        %6356 = vmatprep.subr.bf16.mxu0 %v6223
        %6357 = vmatpush1.bf16.msra.mxu0 %v6222
        %6358 = vmatprep.subr.bf16.mxu0 %v6226
        %6359 = vmatpush1.bf16.msra.mxu0 %v6225
        %6360 = vmatprep.subr.bf16.mxu0 %v6229
        %6361 = vmatpush1.bf16.msra.mxu0 %v6228
        %6362 = vmatprep.subr.bf16.mxu0 %v6232
        %6363 = vmatpush1.bf16.msra.mxu0 %v6231
        %6364 = vmatprep.subr.bf16.mxu0 %v6235
        %6365 = vmatpush1.bf16.msra.mxu0 %v6234
        %6366 = vmatprep.subr.bf16.mxu0 %v6238
        %6367 = vmatpush1.bf16.msra.mxu0 %v6237
        %6368 = vmatprep.mubr.bf16.mxu0 %v5816
        %6369 = vmatmul.mubr.bf16.gmra.mrb[0].mxu0 %v5815
        %v6370 = vpop.f32.mrb[0].mxu0
        %v6371 = vadd.f32 %v5940, %v6370
        %v6372 = vpop.f32.mrb[0].mxu0
        %v6373 = vadd.f32 %v5944, %v6372
        %v6374 = vpop.f32.mrb[0].mxu0
        %v6375 = vadd.f32 %v5940, %v6374
        %v6376 = vpop.f32.mrb[0].mxu0
        %v6377 = vadd.f32 %v5944, %v6376
        %6378 = vmatprep.mubr.bf16.mxu0 %v5819
        %6379 = vmatmul.mubr.bf16.gmra.mrb[0].mxu0 %v5818
        %v6380 = vpop.f32.mrb[0].mxu0
        %v6381 = vadd.f32 %v5940, %v6380
        %v6382 = vpop.f32.mrb[0].mxu0
        %v6383 = vadd.f32 %v5944, %v6382
        %v6384 = vpop.f32.mrb[0].mxu0
        %v6385 = vadd.f32 %v5940, %v6384
        %v6386 = vpop.f32.mrb[0].mxu0
        %v6387 = vadd.f32 %v5944, %v6386
        %6388 = vmatprep.mubr.bf16.mxu0 %v5822
        %6389 = vmatmul.mubr.bf16.gmra.mrb[0].mxu0 %v5821
        %v6390 = vpop.f32.mrb[0].mxu0
        %v6391 = vadd.f32 %v5940, %v6390
        %v6392 = vpop.f32.mrb[0].mxu0
        %v6393 = vadd.f32 %v5944, %v6392
        %v6394 = vpop.f32.mrb[0].mxu0
        %v6395 = vadd.f32 %v5940, %v6394
        %v6396 = vpop.f32.mrb[0].mxu0
        %v6397 = vadd.f32 %v5944, %v6396
        %6398 = vmatprep.mubr.bf16.mxu0 %v5825
        %6399 = vmatmul.mubr.bf16.gmra.mrb[0].mxu0 %v5824
        %v6400 = vpop.f32.mrb[0].mxu0
        %v6401 = vadd.f32 %v5940, %v6400
        %v6402 = vpop.f32.mrb[0].mxu0
        %v6403 = vadd.f32 %v5944, %v6402
        %v6404 = vpop.f32.mrb[0].mxu0
        %v6405 = vadd.f32 %v5940, %v6404
        %v6406 = vpop.f32.mrb[0].mxu0
        %v6407 = vadd.f32 %v5944, %v6406
        %6408 = vmatprep.mubr.bf16.mxu0 %v5828
        %6409 = vmatmul.mubr.bf16.gmra.mrb[0].mxu0 %v5827
        %v6410 = vpop.f32.mrb[0].mxu0
        %v6411 = vadd.f32 %v5940, %v6410
        %v6412 = vpop.f32.mrb[0].mxu0
        %v6413 = vadd.f32 %v5944, %v6412
        %v6414 = vpop.f32.mrb[0].mxu0
        %v6415 = vadd.f32 %v5940, %v6414
        %v6416 = vpop.f32.mrb[0].mxu0
        %v6417 = vadd.f32 %v5944, %v6416
        %6418 = vmatprep.mubr.bf16.mxu0 %v5831
        %6419 = vmatmul.mubr.bf16.gmra.mrb[0].mxu0 %v5830
        %v6420 = vpop.f32.mrb[0].mxu0
        %v6421 = vadd.f32 %v5940, %v6420
        %v6422 = vpop.f32.mrb[0].mxu0
        %v6423 = vadd.f32 %v5944, %v6422
        %v6424 = vpop.f32.mrb[0].mxu0
        %v6425 = vadd.f32 %v5940, %v6424
        %v6426 = vpop.f32.mrb[0].mxu0
        %v6427 = vadd.f32 %v5944, %v6426
        %6428 = vmatprep.mubr.bf16.mxu0 %v5834
        %6429 = vmatmul.mubr.bf16.gmra.mrb[0].mxu0 %v5833
        %v6430 = vpop.f32.mrb[0].mxu0
        %v6431 = vadd.f32 %v5940, %v6430
        %v6432 = vpop.f32.mrb[0].mxu0
        %v6433 = vadd.f32 %v5944, %v6432
        %v6434 = vpop.f32.mrb[0].mxu0
        %v6435 = vadd.f32 %v5940, %v6434
        %v6436 = vpop.f32.mrb[0].mxu0
        %v6437 = vadd.f32 %v5944, %v6436
        %6438 = vmatprep.mubr.bf16.mxu0 %v5837
        %6439 = vmatmul.mubr.bf16.gmra.mrb[0].mxu0 %v5836
        %v6440 = vpop.f32.mrb[0].mxu0
        %v6441 = vadd.f32 %v5940, %v6440
        %v6442 = vpop.f32.mrb[0].mxu0
        %v6443 = vadd.f32 %v5944, %v6442
        %v6444 = vpop.f32.mrb[0].mxu0
        %v6445 = vadd.f32 %v5940, %v6444
        %v6446 = vpop.f32.mrb[0].mxu0
        %v6447 = vadd.f32 %v5944, %v6446
        %6448 = vdwg.mxu0
        %6449 = vmatprep.subr.bf16.mxu0 %v6241
        %6450 = vmatpush1.bf16.msra.mxu0 %v6240
        %6451 = vmatprep.subr.bf16.mxu0 %v6244
        %6452 = vmatpush1.bf16.msra.mxu0 %v6243
        %6453 = vmatprep.subr.bf16.mxu0 %v6247
        %6454 = vmatpush1.bf16.msra.mxu0 %v6246
        %6455 = vmatprep.subr.bf16.mxu0 %v6250
        %6456 = vmatpush1.bf16.msra.mxu0 %v6249
        %6457 = vmatprep.subr.bf16.mxu0 %v6253
        %6458 = vmatpush1.bf16.msra.mxu0 %v6252
        %6459 = vmatprep.subr.bf16.mxu0 %v6256
        %6460 = vmatpush1.bf16.msra.mxu0 %v6255
        %6461 = vmatprep.subr.bf16.mxu0 %v6259
        %6462 = vmatpush1.bf16.msra.mxu0 %v6258
        %6463 = vmatprep.subr.bf16.mxu0 %v6262
        %6464 = vmatpush1.bf16.msra.mxu0 %v6261
        %6465 = vmatprep.subr.bf16.mxu0 0
        %6466 = vmatpush1.bf16.msra.mxu0 0
        %6467 = vmatprep.subr.bf16.mxu0 0
        %6468 = vmatpush1.bf16.msra.mxu0 0
        %6469 = vmatprep.subr.bf16.mxu0 0
        %6470 = vmatpush1.bf16.msra.mxu0 0
        %6471 = vmatprep.subr.bf16.mxu0 0
        %6472 = vmatpush1.bf16.msra.mxu0 0
        %6473 = vmatprep.subr.bf16.mxu0 0
        %6474 = vmatpush1.bf16.msra.mxu0 0
        %6475 = vmatprep.subr.bf16.mxu0 0
        %6476 = vmatpush1.bf16.msra.mxu0 0
        %6477 = vmatprep.subr.bf16.mxu0 0
        %6478 = vmatpush1.bf16.msra.mxu0 0
        %6479 = vmatprep.subr.bf16.mxu0 0
        %6480 = vmatpush1.bf16.msra.mxu0 0
        %6481 = vmatprep.mubr.bf16.mxu0 0
        %6482 = vmatmul.mubr.bf16.gmra.mrb[0].mxu0 %v5817
        %v6483 = vpop.f32.mrb[0].mxu0
        %v6484 = vadd.f32 %v6371, %v6483
        %v6485 = vpop.f32.mrb[0].mxu0
        %v6486 = vadd.f32 %v6373, %v6485
        %v6487 = vpop.f32.mrb[0].mxu0
        %v6488 = vadd.f32 %v6375, %v6487
        %v6489 = vpop.f32.mrb[0].mxu0
        %v6490 = vadd.f32 %v6377, %v6489
        %6491 = vmatprep.mubr.bf16.mxu0 0
        %6492 = vmatmul.mubr.bf16.gmra.mrb[0].mxu0 %v5820
        %v6493 = vpop.f32.mrb[0].mxu0
        %v6494 = vadd.f32 %v6381, %v6493
        %v6495 = vpop.f32.mrb[0].mxu0
        %v6496 = vadd.f32 %v6383, %v6495
        %v6497 = vpop.f32.mrb[0].mxu0
        %v6498 = vadd.f32 %v6385, %v6497
        %v6499 = vpop.f32.mrb[0].mxu0
        %v6500 = vadd.f32 %v6387, %v6499
        %6501 = vmatprep.mubr.bf16.mxu0 0
        %6502 = vmatmul.mubr.bf16.gmra.mrb[0].mxu0 %v5823
        %v6503 = vpop.f32.mrb[0].mxu0
        %v6504 = vadd.f32 %v6391, %v6503
        %v6505 = vpop.f32.mrb[0].mxu0
        %v6506 = vadd.f32 %v6393, %v6505
        %v6507 = vpop.f32.mrb[0].mxu0
        %v6508 = vadd.f32 %v6395, %v6507
        %v6509 = vpop.f32.mrb[0].mxu0
        %v6510 = vadd.f32 %v6397, %v6509
        %6511 = vmatprep.mubr.bf16.mxu0 0
        %6512 = vmatmul.mubr.bf16.gmra.mrb[0].mxu0 %v5826
        %v6513 = vpop.f32.mrb[0].mxu0
        %v6514 = vadd.f32 %v6401, %v6513
        %v6515 = vpop.f32.mrb[0].mxu0
        %v6516 = vadd.f32 %v6403, %v6515
        %v6517 = vpop.f32.mrb[0].mxu0
        %v6518 = vadd.f32 %v6405, %v6517
        %v6519 = vpop.f32.mrb[0].mxu0
        %v6520 = vadd.f32 %v6407, %v6519
        %6521 = vmatprep.mubr.bf16.mxu0 0
        %6522 = vmatmul.mubr.bf16.gmra.mrb[0].mxu0 %v5829
        %v6523 = vpop.f32.mrb[0].mxu0
        %v6524 = vadd.f32 %v6411, %v6523
        %v6525 = vpop.f32.mrb[0].mxu0
        %v6526 = vadd.f32 %v6413, %v6525
        %v6527 = vpop.f32.mrb[0].mxu0
        %v6528 = vadd.f32 %v6415, %v6527
        %v6529 = vpop.f32.mrb[0].mxu0
        %v6530 = vadd.f32 %v6417, %v6529
        %6531 = vmatprep.mubr.bf16.mxu0 0
        %6532 = vmatmul.mubr.bf16.gmra.mrb[0].mxu0 %v5832
        %v6533 = vpop.f32.mrb[0].mxu0
        %v6534 = vadd.f32 %v6421, %v6533
        %v6535 = vpop.f32.mrb[0].mxu0
        %v6536 = vadd.f32 %v6423, %v6535
        %v6537 = vpop.f32.mrb[0].mxu0
        %v6538 = vadd.f32 %v6425, %v6537
        %v6539 = vpop.f32.mrb[0].mxu0
        %v6540 = vadd.f32 %v6427, %v6539
        %6541 = vmatprep.mubr.bf16.mxu0 0
        %6542 = vmatmul.mubr.bf16.gmra.mrb[0].mxu0 %v5835
        %v6543 = vpop.f32.mrb[0].mxu0
        %v6544 = vadd.f32 %v6431, %v6543
        %v6545 = vpop.f32.mrb[0].mxu0
        %v6546 = vadd.f32 %v6433, %v6545
        %v6547 = vpop.f32.mrb[0].mxu0
        %v6548 = vadd.f32 %v6435, %v6547
        %v6549 = vpop.f32.mrb[0].mxu0
        %v6550 = vadd.f32 %v6437, %v6549
        %6551 = vmatprep.mubr.bf16.mxu0 0
        %6552 = vmatmul.mubr.bf16.gmra.mrb[0].mxu0 %v5838
        %v6553 = vpop.f32.mrb[0].mxu0
        %v6554 = vadd.f32 %v6441, %v6553
        %v6555 = vpop.f32.mrb[0].mxu0
        %v6556 = vadd.f32 %v6443, %v6555
        %v6557 = vpop.f32.mrb[0].mxu0
        %v6558 = vadd.f32 %v6445, %v6557
        %v6559 = vpop.f32.mrb[0].mxu0
        %v6560 = vadd.f32 %v6447, %v6559
        %6561 = vdwg.mxu0
        %6562 = vmatprep.subr.bf16.mxu0 0
        %6563 = vmatpush1.bf16.msra.mxu0 %v6194
        %6564 = vmatprep.subr.bf16.mxu0 0
        %6565 = vmatpush1.bf16.msra.mxu0 %v6197
        %6566 = vmatprep.subr.bf16.mxu0 0
        %6567 = vmatpush1.bf16.msra.mxu0 %v6200
        %6568 = vmatprep.subr.bf16.mxu0 0
        %6569 = vmatpush1.bf16.msra.mxu0 %v6203
        %6570 = vmatprep.subr.bf16.mxu0 0
        %6571 = vmatpush1.bf16.msra.mxu0 %v6206
        %6572 = vmatprep.subr.bf16.mxu0 0
        %6573 = vmatpush1.bf16.msra.mxu0 %v6209
        %6574 = vmatprep.subr.bf16.mxu0 0
        %6575 = vmatpush1.bf16.msra.mxu0 %v6212
        %6576 = vmatprep.subr.bf16.mxu0 0
        %6577 = vmatpush1.bf16.msra.mxu0 %v6215
        %6578 = vmatprep.subr.bf16.mxu0 0
        %6579 = vmatpush1.bf16.msra.mxu0 %v6218
        %6580 = vmatprep.subr.bf16.mxu0 0
        %6581 = vmatpush1.bf16.msra.mxu0 %v6221
        %6582 = vmatprep.subr.bf16.mxu0 0
        %6583 = vmatpush1.bf16.msra.mxu0 %v6224
        %6584 = vmatprep.subr.bf16.mxu0 0
        %6585 = vmatpush1.bf16.msra.mxu0 %v6227
        %6586 = vmatprep.subr.bf16.mxu0 0
        %6587 = vmatpush1.bf16.msra.mxu0 %v6230
        %6588 = vmatprep.subr.bf16.mxu0 0
        %6589 = vmatpush1.bf16.msra.mxu0 %v6233
        %6590 = vmatprep.subr.bf16.mxu0 0
        %6591 = vmatpush1.bf16.msra.mxu0 %v6236
        %6592 = vmatprep.subr.bf16.mxu0 0
        %6593 = vmatpush1.bf16.msra.mxu0 %v6239
        %6594 = vmatprep.mubr.bf16.mxu0 %v5816
        %6595 = vmatmul.mubr.bf16.gmra.mrb[0].mxu0 %v5815
        %v6596 = vpop.f32.mrb[0].mxu0
        %v6597 = vadd.f32 %v5948, %v6596
        %v6598 = vpop.f32.mrb[0].mxu0
        %v6599 = vpop.f32.mrb[0].mxu0
        %v6600 = vadd.f32 %v5948, %v6599
        %v6601 = vpop.f32.mrb[0].mxu0
        %6602 = vmatprep.mubr.bf16.mxu0 %v5819
        %6603 = vmatmul.mubr.bf16.gmra.mrb[0].mxu0 %v5818
        %v6604 = vpop.f32.mrb[0].mxu0
        %v6605 = vadd.f32 %v5948, %v6604
        %v6606 = vpop.f32.mrb[0].mxu0
        %v6607 = vpop.f32.mrb[0].mxu0
        %v6608 = vadd.f32 %v5948, %v6607
        %v6609 = vpop.f32.mrb[0].mxu0
        %6610 = vmatprep.mubr.bf16.mxu0 %v5822
        %6611 = vmatmul.mubr.bf16.gmra.mrb[0].mxu0 %v5821
        %v6612 = vpop.f32.mrb[0].mxu0
        %v6613 = vadd.f32 %v5948, %v6612
        %v6614 = vpop.f32.mrb[0].mxu0
        %v6615 = vpop.f32.mrb[0].mxu0
        %v6616 = vadd.f32 %v5948, %v6615
        %v6617 = vpop.f32.mrb[0].mxu0
        %6618 = vmatprep.mubr.bf16.mxu0 %v5825
        %6619 = vmatmul.mubr.bf16.gmra.mrb[0].mxu0 %v5824
        %v6620 = vpop.f32.mrb[0].mxu0
        %v6621 = vadd.f32 %v5948, %v6620
        %v6622 = vpop.f32.mrb[0].mxu0
        %v6623 = vpop.f32.mrb[0].mxu0
        %v6624 = vadd.f32 %v5948, %v6623
        %v6625 = vpop.f32.mrb[0].mxu0
        %6626 = vmatprep.mubr.bf16.mxu0 %v5828
        %6627 = vmatmul.mubr.bf16.gmra.mrb[0].mxu0 %v5827
        %v6628 = vpop.f32.mrb[0].mxu0
        %v6629 = vadd.f32 %v5948, %v6628
        %v6630 = vpop.f32.mrb[0].mxu0
        %v6631 = vpop.f32.mrb[0].mxu0
        %v6632 = vadd.f32 %v5948, %v6631
        %v6633 = vpop.f32.mrb[0].mxu0
        %6634 = vmatprep.mubr.bf16.mxu0 %v5831
        %6635 = vmatmul.mubr.bf16.gmra.mrb[0].mxu0 %v5830
        %v6636 = vpop.f32.mrb[0].mxu0
        %v6637 = vadd.f32 %v5948, %v6636
        %v6638 = vpop.f32.mrb[0].mxu0
        %v6639 = vpop.f32.mrb[0].mxu0
        %v6640 = vadd.f32 %v5948, %v6639
        %v6641 = vpop.f32.mrb[0].mxu0
        %6642 = vmatprep.mubr.bf16.mxu0 %v5834
        %6643 = vmatmul.mubr.bf16.gmra.mrb[0].mxu0 %v5833
        %v6644 = vpop.f32.mrb[0].mxu0
        %v6645 = vadd.f32 %v5948, %v6644
        %v6646 = vpop.f32.mrb[0].mxu0
        %v6647 = vpop.f32.mrb[0].mxu0
        %v6648 = vadd.f32 %v5948, %v6647
        %v6649 = vpop.f32.mrb[0].mxu0
        %6650 = vmatprep.mubr.bf16.mxu0 %v5837
        %6651 = vmatmul.mubr.bf16.gmra.mrb[0].mxu0 %v5836
        %v6652 = vpop.f32.mrb[0].mxu0
        %v6653 = vadd.f32 %v5948, %v6652
        %v6654 = vpop.f32.mrb[0].mxu0
        %v6655 = vpop.f32.mrb[0].mxu0
        %v6656 = vadd.f32 %v5948, %v6655
        %v6657 = vpop.f32.mrb[0].mxu0
        %6658 = vdwg.mxu0
        %6659 = vmatprep.subr.bf16.mxu0 0
        %6660 = vmatpush1.bf16.msra.mxu0 %v6242
        %6661 = vmatprep.subr.bf16.mxu0 0
        %6662 = vmatpush1.bf16.msra.mxu0 %v6245
        %6663 = vmatprep.subr.bf16.mxu0 0
        %6664 = vmatpush1.bf16.msra.mxu0 %v6248
        %6665 = vmatprep.subr.bf16.mxu0 0
        %6666 = vmatpush1.bf16.msra.mxu0 %v6251
        %6667 = vmatprep.subr.bf16.mxu0 0
        %6668 = vmatpush1.bf16.msra.mxu0 %v6254
        %6669 = vmatprep.subr.bf16.mxu0 0
        %6670 = vmatpush1.bf16.msra.mxu0 %v6257
        %6671 = vmatprep.subr.bf16.mxu0 0
        %6672 = vmatpush1.bf16.msra.mxu0 %v6260
        %6673 = vmatprep.subr.bf16.mxu0 0
        %6674 = vmatpush1.bf16.msra.mxu0 %v6263
        %6675 = vmatprep.subr.bf16.mxu0 0
        %6676 = vmatpush1.bf16.msra.mxu0 0
        %6677 = vmatprep.subr.bf16.mxu0 0
        %6678 = vmatpush1.bf16.msra.mxu0 0
        %6679 = vmatprep.subr.bf16.mxu0 0
        %6680 = vmatpush1.bf16.msra.mxu0 0
        %6681 = vmatprep.subr.bf16.mxu0 0
        %6682 = vmatpush1.bf16.msra.mxu0 0
        %6683 = vmatprep.subr.bf16.mxu0 0
        %6684 = vmatpush1.bf16.msra.mxu0 0
        %6685 = vmatprep.subr.bf16.mxu0 0
        %6686 = vmatpush1.bf16.msra.mxu0 0
        %6687 = vmatprep.subr.bf16.mxu0 0
        %6688 = vmatpush1.bf16.msra.mxu0 0
        %6689 = vmatprep.subr.bf16.mxu0 0
        %6690 = vmatpush1.bf16.msra.mxu0 0
        %6691 = vmatprep.mubr.bf16.mxu0 0
        %6692 = vmatmul.mubr.bf16.gmra.mrb[0].mxu0 %v5817
        %v6693 = vpop.f32.mrb[0].mxu0
        %v6694 = vadd.f32 %v6597, %v6693
        %v6695 = vpop.f32.mrb[0].mxu0
        %v6696 = vpop.f32.mrb[0].mxu0
        %v6697 = vadd.f32 %v6600, %v6696
        %v6698 = vpop.f32.mrb[0].mxu0
        %6699 = vmatprep.mubr.bf16.mxu0 0
        %6700 = vmatmul.mubr.bf16.gmra.mrb[0].mxu0 %v5820
        %v6701 = vpop.f32.mrb[0].mxu0
        %v6702 = vadd.f32 %v6605, %v6701
        %v6703 = vpop.f32.mrb[0].mxu0
        %v6704 = vpop.f32.mrb[0].mxu0
        %v6705 = vadd.f32 %v6608, %v6704
        %v6706 = vpop.f32.mrb[0].mxu0
        %6707 = vmatprep.mubr.bf16.mxu0 0
        %6708 = vmatmul.mubr.bf16.gmra.mrb[0].mxu0 %v5823
        %v6709 = vpop.f32.mrb[0].mxu0
        %v6710 = vadd.f32 %v6613, %v6709
        %v6711 = vpop.f32.mrb[0].mxu0
        %v6712 = vpop.f32.mrb[0].mxu0
        %v6713 = vadd.f32 %v6616, %v6712
        %v6714 = vpop.f32.mrb[0].mxu0
        %6715 = vmatprep.mubr.bf16.mxu0 0
        %6716 = vmatmul.mubr.bf16.gmra.mrb[0].mxu0 %v5826
        %v6717 = vpop.f32.mrb[0].mxu0
        %v6718 = vadd.f32 %v6621, %v6717
        %v6719 = vpop.f32.mrb[0].mxu0
        %v6720 = vpop.f32.mrb[0].mxu0
        %v6721 = vadd.f32 %v6624, %v6720
        %v6722 = vpop.f32.mrb[0].mxu0
        %6723 = vmatprep.mubr.bf16.mxu0 0
        %6724 = vmatmul.mubr.bf16.gmra.mrb[0].mxu0 %v5829
        %v6725 = vpop.f32.mrb[0].mxu0
        %v6726 = vadd.f32 %v6629, %v6725
        %v6727 = vpop.f32.mrb[0].mxu0
        %v6728 = vpop.f32.mrb[0].mxu0
        %v6729 = vadd.f32 %v6632, %v6728
        %v6730 = vpop.f32.mrb[0].mxu0
        %6731 = vmatprep.mubr.bf16.mxu0 0
        %6732 = vmatmul.mubr.bf16.gmra.mrb[0].mxu0 %v5832
        %v6733 = vpop.f32.mrb[0].mxu0
        %v6734 = vadd.f32 %v6637, %v6733
        %v6735 = vpop.f32.mrb[0].mxu0
        %v6736 = vpop.f32.mrb[0].mxu0
        %v6737 = vadd.f32 %v6640, %v6736
        %v6738 = vpop.f32.mrb[0].mxu0
        %6739 = vmatprep.mubr.bf16.mxu0 0
        %6740 = vmatmul.mubr.bf16.gmra.mrb[0].mxu0 %v5835
        %v6741 = vpop.f32.mrb[0].mxu0
        %v6742 = vadd.f32 %v6645, %v6741
        %v6743 = vpop.f32.mrb[0].mxu0
        %v6744 = vpop.f32.mrb[0].mxu0
        %v6745 = vadd.f32 %v6648, %v6744
        %v6746 = vpop.f32.mrb[0].mxu0
        %6747 = vmatprep.mubr.bf16.mxu0 0
        %6748 = vmatmul.mubr.bf16.gmra.mrb[0].mxu0 %v5838
        %v6749 = vpop.f32.mrb[0].mxu0
        %v6750 = vadd.f32 %v6653, %v6749
        %v6751 = vpop.f32.mrb[0].mxu0
        %v6752 = vpop.f32.mrb[0].mxu0
        %v6753 = vadd.f32 %v6656, %v6752
        %v6754 = vpop.f32.mrb[0].mxu0
        %6755 = vdwg.mxu0
        %v6756 = vpack.c.bf16 %v6488, %v6484
        %v6757 = vpack.c.bf16 %v6490, %v6486
        %v6758 = vpack.c.bf16 %v6697, %v6694
        %v6759 = vpack.c.bf16 %v6498, %v6494
        %v6760 = vpack.c.bf16 %v6500, %v6496
        %v6761 = vpack.c.bf16 %v6705, %v6702
        %v6762 = vpack.c.bf16 %v6508, %v6504
        %v6763 = vpack.c.bf16 %v6510, %v6506
        %v6764 = vpack.c.bf16 %v6713, %v6710
        %v6765 = vpack.c.bf16 %v6518, %v6514
        %v6766 = vpack.c.bf16 %v6520, %v6516
        %v6767 = vpack.c.bf16 %v6721, %v6718
        %v6768 = vpack.c.bf16 %v6528, %v6524
        %v6769 = vpack.c.bf16 %v6530, %v6526
        %v6770 = vpack.c.bf16 %v6729, %v6726
        %v6771 = vpack.c.bf16 %v6538, %v6534
        %v6772 = vpack.c.bf16 %v6540, %v6536
        %v6773 = vpack.c.bf16 %v6737, %v6734
        %v6774 = vpack.c.bf16 %v6548, %v6544
        %v6775 = vpack.c.bf16 %v6550, %v6546
        %v6776 = vpack.c.bf16 %v6745, %v6742
        %v6777 = vpack.c.bf16 %v6558, %v6554
        %v6778 = vpack.c.bf16 %v6560, %v6556
        %v6779 = vpack.c.bf16 %v6753, %v6750
        %v6804 = vunpack.c.l.b16 %v6756
        %v6805 = vunpack.c.l.b16 %v6757
        %v6806 = vunpack.c.l.b16 %v6758
        %v6807 = vunpack.c.h.b16 %v6756
        %v6808 = vunpack.c.h.b16 %v6757
        %v6809 = vunpack.c.h.b16 %v6758
        %v6810 = vunpack.c.l.b16 %v6759
        %v6811 = vunpack.c.l.b16 %v6760
        %v6812 = vunpack.c.l.b16 %v6761
        %v6813 = vunpack.c.h.b16 %v6759
        %v6814 = vunpack.c.h.b16 %v6760
        %v6815 = vunpack.c.h.b16 %v6761
        %v6816 = vunpack.c.l.b16 %v6762
        %v6817 = vunpack.c.l.b16 %v6763
        %v6818 = vunpack.c.l.b16 %v6764
        %v6819 = vunpack.c.h.b16 %v6762
        %v6820 = vunpack.c.h.b16 %v6763
        %v6821 = vunpack.c.h.b16 %v6764
        %v6822 = vunpack.c.l.b16 %v6765
        %v6823 = vunpack.c.l.b16 %v6766
        %v6824 = vunpack.c.l.b16 %v6767
        %v6825 = vunpack.c.h.b16 %v6765
        %v6826 = vunpack.c.h.b16 %v6766
        %v6827 = vunpack.c.h.b16 %v6767
        %v6828 = vunpack.c.l.b16 %v6768
        %v6829 = vunpack.c.l.b16 %v6769
        %v6830 = vunpack.c.l.b16 %v6770
        %v6831 = vunpack.c.h.b16 %v6768
        %v6832 = vunpack.c.h.b16 %v6769
        %v6833 = vunpack.c.h.b16 %v6770
        %v6834 = vunpack.c.l.b16 %v6771
        %v6835 = vunpack.c.l.b16 %v6772
        %v6836 = vunpack.c.l.b16 %v6773
        %v6837 = vunpack.c.h.b16 %v6771
        %v6838 = vunpack.c.h.b16 %v6772
        %v6839 = vunpack.c.h.b16 %v6773
        %v6840 = vunpack.c.l.b16 %v6774
        %v6841 = vunpack.c.l.b16 %v6775
        %v6842 = vunpack.c.l.b16 %v6776
        %v6843 = vunpack.c.h.b16 %v6774
        %v6844 = vunpack.c.h.b16 %v6775
        %v6845 = vunpack.c.h.b16 %v6776
        %v6846 = vunpack.c.l.b16 %v6777
        %v6847 = vunpack.c.l.b16 %v6778
        %v6848 = vunpack.c.l.b16 %v6779
        %v6849 = vunpack.c.h.b16 %v6777
        %v6850 = vunpack.c.h.b16 %v6778
        %v6851 = vunpack.c.h.b16 %v6779
        %v6852 = vpack.c.b16 %v6805, %v6804
        %v6853 = vpack.c.b16 %v6806, %v6806
        %v6854 = vpack.c.b16 %v6808, %v6807
        %v6855 = vpack.c.b16 %v6809, %v6809
        %v6856 = vpack.c.b16 %v6811, %v6810
        %v6857 = vpack.c.b16 %v6812, %v6812
        %v6858 = vpack.c.b16 %v6814, %v6813
        %v6859 = vpack.c.b16 %v6815, %v6815
        %v6860 = vpack.c.b16 %v6817, %v6816
        %v6861 = vpack.c.b16 %v6818, %v6818
        %v6862 = vpack.c.b16 %v6820, %v6819
        %v6863 = vpack.c.b16 %v6821, %v6821
        %v6864 = vpack.c.b16 %v6823, %v6822
        %v6865 = vpack.c.b16 %v6824, %v6824
        %v6866 = vpack.c.b16 %v6826, %v6825
        %v6867 = vpack.c.b16 %v6827, %v6827
        %v6868 = vpack.c.b16 %v6829, %v6828
        %v6869 = vpack.c.b16 %v6830, %v6830
        %v6870 = vpack.c.b16 %v6832, %v6831
        %v6871 = vpack.c.b16 %v6833, %v6833
        %v6872 = vpack.c.b16 %v6835, %v6834
        %v6873 = vpack.c.b16 %v6836, %v6836
        %v6874 = vpack.c.b16 %v6838, %v6837
        %v6875 = vpack.c.b16 %v6839, %v6839
        %v6876 = vpack.c.b16 %v6841, %v6840
        %v6877 = vpack.c.b16 %v6842, %v6842
        %v6878 = vpack.c.b16 %v6844, %v6843
        %v6879 = vpack.c.b16 %v6845, %v6845
        %v6880 = vpack.c.b16 %v6847, %v6846
        %v6881 = vpack.c.b16 %v6848, %v6848
        %v6882 = vpack.c.b16 %v6850, %v6849
        %v6883 = vpack.c.b16 %v6851, %v6851
        %6916 = vst [vmem:[%s205] sm:$0xff] %v6852
        %6917 = vst [vmem:[%s205 + $0x8] sm:$0xf] %v6853
        %6918 = vst [vmem:[%s205 + $0xc] sm:$0xff] %v6854
        %6919 = vst [vmem:[%s205 + $0x14] sm:$0xf] %v6855
        %6920 = vst [vmem:[%s205 + $0x18] sm:$0xff] %v6856
        %6921 = vst [vmem:[%s205 + $0x20] sm:$0xf] %v6857
        %6922 = vst [vmem:[%s205 + $0x24] sm:$0xff] %v6858
        %6923 = vst [vmem:[%s205 + $0x2c] sm:$0xf] %v6859
        %6924 = vst [vmem:[%s205 + $0x30] sm:$0xff] %v6860
        %6925 = vst [vmem:[%s205 + $0x38] sm:$0xf] %v6861
        %6926 = vst [vmem:[%s205 + $0x3c] sm:$0xff] %v6862
        %6927 = vst [vmem:[%s205 + $0x44] sm:$0xf] %v6863
        %6928 = vst [vmem:[%s205 + $0x48] sm:$0xff] %v6864
        %6929 = vst [vmem:[%s205 + $0x50] sm:$0xf] %v6865
        %6930 = vst [vmem:[%s205 + $0x54] sm:$0xff] %v6866
        %6931 = vst [vmem:[%s205 + $0x5c] sm:$0xf] %v6867
        %6932 = vst [vmem:[%s205 + $0x60] sm:$0xff] %v6868
        %6933 = vst [vmem:[%s205 + $0x68] sm:$0xf] %v6869
        %6934 = vst [vmem:[%s205 + $0x6c] sm:$0xff] %v6870
        %6935 = vst [vmem:[%s205 + $0x74] sm:$0xf] %v6871
        %6936 = vst [vmem:[%s205 + $0x78] sm:$0xff] %v6872
        %6937 = vst [vmem:[%s205 + $0x80] sm:$0xf] %v6873
        %6938 = vst [vmem:[%s205 + $0x84] sm:$0xff] %v6874
        %6939 = vst [vmem:[%s205 + $0x8c] sm:$0xf] %v6875
        %6940 = vst [vmem:[%s205 + $0x90] sm:$0xff] %v6876
        %6941 = vst [vmem:[%s205 + $0x98] sm:$0xf] %v6877
        %6942 = vst [vmem:[%s205 + $0x9c] sm:$0xff] %v6878
        %6943 = vst [vmem:[%s205 + $0xa4] sm:$0xf] %v6879
        %6944 = vst [vmem:[%s205 + $0xa8] sm:$0xff] %v6880
        %6945 = vst [vmem:[%s205 + $0xb0] sm:$0xf] %v6881
        %6946 = vst [vmem:[%s205 + $0xb4] sm:$0xff] %v6882
        %6947 = vst [vmem:[%s205 + $0xbc] sm:$0xf] %v6883
        %s6948 = sand.u32 %s116, 1
        %s6949 = scalar_lea.sflag [#allocation5], %s6948
        %s6950 = sand.u32 %s116, 1
        %s6951 = smul.addr %s6950, 192
        %s6952 = scalar_lea.vmem [#allocation6], %s6951
        // Predicated region
        $region41: #{multi_head_attention.1} parent=35 // pred_check
          %p6953 = pneg %p126
        $region42: #{multi_head_attention.1} parent=35 // pred_check_branch
          %6955 = sbr.rel (%p6953) target = $region44
        $region43: #{multi_head_attention.1} parent=35 // pred_region
          %s6957 = ssub.s32 3072, 3072
          %6958 = vsyncadd %s6949, %s6957
          %s6959 = smul.addr %s19, 48
          %s6960 = smul.addr %s6959, 64
          %s6961 = scalar_lea.hbm %s4, %s6960
          %s6962 = sshll.u32 %s6952, 4
          %s6963 = int_to_ptr.vmem [resolvable:$true] %s6962
          %6968 = dma.vmem_to_hbm [thread:$0]  %s6963, 3072, %s6961, %s6949, 192, 192, 12
        $region44: #{multi_head_attention.1} parent=35 // pred_fallthru
          _
      $region36: #{multi_head_attention.1} parent=5 // pred_fallthru
        _
      %p6969 = scmp.le.s32.totalorder 2, %s14
      // Predicated region
      $region45: #{multi_head_attention.1} parent=5 // pred_check
        %p6970 = pneg %p6969
      $region46: #{multi_head_attention.1} parent=5 // pred_check_branch
        %6972 = sbr.rel (%p6970) target = $region48
      $region47: #{multi_head_attention.1} parent=5 // pred_region
        %s6973 = ssub.s32 %s14, 2
        // Predicated region
        $region49: #{multi_head_attention.1} parent=47 // pred_check
          %p6974 = pneg %p132
        $region50: #{multi_head_attention.1} parent=47 // pred_check_branch
          %6976 = sbr.rel (%p6974) target = $region52
        $region51: #{multi_head_attention.1} parent=47 // pred_region
          %s6977 = sand.u32 %s117, 1
          %s6978 = scalar_lea.sflag [#allocation5], %s6977
          %s6979 = sand.u32 %s117, 1
          %s6980 = smul.addr %s6979, 192
          %s6981 = scalar_lea.vmem [#allocation6], %s6980
          %6982 = dma.done %s6978, 3072
        $region52: #{multi_head_attention.1} parent=47 // pred_fallthru
          _
      $region48: #{multi_head_attention.1} parent=5 // pred_fallthru
        _
    $region6: #{multi_head_attention.1} parent=1 // loop_footer
      %s18 = sadd.s32 1, %s14
    $region7: #{multi_head_attention.1} parent=1 // loop_footer_branch
      %13 = sbr.rel target = $region3
    $region8: #{multi_head_attention.1} parent=1 // loop_exit
      _
    %6983 = vsyncpa [#allocation4], 1
    %s6984 = scalar_lea.sflag [#allocation4], 1
    %6985 = vsyncpa %s6984, 1
    %6986 = vsyncpa [#allocation5], 1
    %s6987 = scalar_lea.sflag [#allocation5], 1
    %6988 = vsyncpa %s6987, 1

</llo_original>
